<compile_context>
chip_gen: v6e
topology: v6e:2x2x1
jax: 0.10.0
libtpu: 0.0.40
codegen_flags: <defaults>
</compile_context>

<pallas_src>
import functools

import jax
import jax.numpy as jnp
import numpy as np
from jax.experimental import pallas as pl
from jax.experimental.pallas import tpu as pltpu

_LANE = 128
_BN_EPS = 1e-5

# Sub-pixel decomposition of ConvTranspose2d(k=4, s=2, p=1):
# output row-phase ph (0 = even rows, 1 = odd rows) reads the padded input at
# 3x3-patch row offset r with original kernel row index kh = _TAP[ph][r].
# The same map applies to columns.
_TAP = {0: {0: 3, 1: 1}, 1: {1: 2, 2: 0}}


def _rup(x, m=_LANE):
    return ((x + m - 1) // m) * m


def _vmem_limit_bytes():
    cap = 64 * 1024 * 1024
    try:
        cap = int(pltpu.get_tpu_info().vmem_capacity_bytes)
    except Exception:
        pass
    return max(32 * 1024 * 1024, min((cap * 3) // 4, 96 * 1024 * 1024))


# ---------------------------------------------------------------------------
# Pallas kernels
# ---------------------------------------------------------------------------
def _matmul_bn_relu_kernel(x_ref, w_ref, sel_ref, selt_ref, gamma_ref, beta_ref,
                           o_ref, *, inv_count):
    """One MXU pass + one-pass BatchNorm (batch statistics) + ReLU."""
    y = jnp.dot(x_ref[...], w_ref[...], preferred_element_type=jnp.float32)
    # One pass of column statistics over the (M, Wtot) f32 result.
    col_sum = jnp.sum(y, axis=0, keepdims=True)
    col_sq = jnp.sum(y * y, axis=0, keepdims=True)
    # Reduce the phase-packed column groups to per-channel stats (0/1 selector).
    csum = jnp.dot(col_sum, sel_ref[...], preferred_element_type=jnp.float32)
    csq = jnp.dot(col_sq, sel_ref[...], preferred_element_type=jnp.float32)
    mean = csum * inv_count
    var = jnp.maximum(csq * inv_count - mean * mean, 0.0)
    scale = gamma_ref[...] * jax.lax.rsqrt(var + _BN_EPS)
    shift = beta_ref[...] - mean * scale
    # Broadcast per-channel scale/shift back to the phase-packed columns
    # (padded columns get exactly 0 -> output stays 0 there).
    scale_f = jnp.dot(scale, selt_ref[...], preferred_element_type=jnp.float32)
    shift_f = jnp.dot(shift, selt_ref[...], preferred_element_type=jnp.float32)
    o_ref[...] = jnp.maximum(y * scale_f + shift_f, 0.0).astype(o_ref.dtype)


def _matmul_bias_tanh_kernel(x_ref, w_ref, bias_ref, o_ref):
    y = jnp.dot(x_ref[...], w_ref[...], preferred_element_type=jnp.float32)
    # TODO(synk): on v6e/v7x a bf16 tanh (EUP) would halve transcendental cost.
    o_ref[...] = jnp.tanh(y + bias_ref[...]).astype(o_ref.dtype)


# ---------------------------------------------------------------------------
# pallas_call wrappers
# ---------------------------------------------------------------------------
def _fused_matmul_bn_relu(x_mat, w_mat, sel, selt, gamma, beta, inv_count):
    # TODO(synk): for large batch, switch to a two-pass M-tiled BN (stats pass
    # + "parallel" apply pass) so VMEM does not scale with M on v7x.
    M, K = x_mat.shape
    wtot = w_mat.shape[1]
    cp = sel.shape[1]
    kernel = functools.partial(_matmul_bn_relu_kernel, inv_count=inv_count)
    return pl.pallas_call(
        kernel,
        out_shape=jax.ShapeDtypeStruct((M, wtot), jnp.bfloat16),
        grid_spec=pltpu.PrefetchScalarGridSpec(
            num_scalar_prefetch=0,
            grid=(1,),
            in_specs=[
                pl.BlockSpec((M, K), lambda i: (0, 0)),
                pl.BlockSpec((K, wtot), lambda i: (0, 0)),
                pl.BlockSpec((wtot, cp), lambda i: (0, 0)),
                pl.BlockSpec((cp, wtot), lambda i: (0, 0)),
                pl.BlockSpec((1, cp), lambda i: (0, 0)),
                pl.BlockSpec((1, cp), lambda i: (0, 0)),
            ],
            out_specs=pl.BlockSpec((M, wtot), lambda i: (0, 0)),
        ),
        compiler_params=pltpu.CompilerParams(
            dimension_semantics=("arbitrary",),
            vmem_limit_bytes=_vmem_limit_bytes(),
        ),
    )(x_mat, w_mat, sel, selt, gamma, beta)


def _pick_tm(M):
    # >= 2 (prefer 4) grid steps so megacore chips can split the work.
    if M < 256:
        return M
    target = max(M // 4, 128)
    for tm in (2048, 1024, 512, 256, 128):
        if tm <= target and M % tm == 0:
            return tm
    return M


def _fused_matmul_bias_tanh(x_mat, w_mat, bias):
    M, K = x_mat.shape
    wtot = w_mat.shape[1]
    tm = _pick_tm(M)
    return pl.pallas_call(
        _matmul_bias_tanh_kernel,
        out_shape=jax.ShapeDtypeStruct((M, wtot), jnp.bfloat16),
        grid_spec=pltpu.PrefetchScalarGridSpec(
            num_scalar_prefetch=0,
            grid=(M // tm,),
            in_specs=[
                pl.BlockSpec((tm, K), lambda i: (i, 0)),
                pl.BlockSpec((K, wtot), lambda i: (0, 0)),
                pl.BlockSpec((1, wtot), lambda i: (0, 0)),
            ],
            out_specs=pl.BlockSpec((tm, wtot), lambda i: (i, 0)),
        ),
        compiler_params=pltpu.CompilerParams(
            dimension_semantics=("parallel",),
            vmem_limit_bytes=_vmem_limit_bytes(),
        ),
    )(x_mat, w_mat, bias)


# ---------------------------------------------------------------------------
# Stride-2 transposed-conv layer: NHWC glue (pad / 3x3 im2col / depth-to-space)
# around one fused Pallas matmul.
# ---------------------------------------------------------------------------
def _deconv_s2_layer(h_nhwc, layer):
    N, H, W, Cin = h_nhwc.shape
    Cout = layer["cout"]
    xp = jnp.pad(h_nhwc, ((0, 0), (1, 1), (1, 1), (0, 0)))
    # 3x3 im2col over the un-dilated padded input: K = 9*Cin on N*H*W rows
    # (vs 16*Cin on 4*N*H*W rows with the dilation formulation).
    # TODO(synk): fuse this patch extraction into the Pallas kernel (shifted
    # in-VMEM window reads) to remove the remaining HBM patch materialization.
    cols = [xp[:, r:r + H, s:s + W, :] for r in range(3) for s in range(3)]
    patches = jnp.stack(cols, axis=3).reshape(N * H * W, 9 * Cin)
    patches = patches.astype(jnp.bfloat16)

    if layer["kind"] == "bn_relu":
        out = _fused_matmul_bn_relu(
            patches, layer["w_mat"], layer["sel"], layer["selt"],
            layer["gamma"], layer["beta"], inv_count=1.0 / (N * H * W * 4))
    else:
        out = _fused_matmul_bias_tanh(patches, layer["w_mat"], layer["bias"])

    # Depth-to-space: columns are (phase_h, phase_w, cout)-packed.
    out = out[:, :4 * Cout].reshape(N, H, W, 2, 2, Cout)
    out = out.transpose(0, 1, 3, 2, 4, 5).reshape(N, 2 * H, 2 * W, Cout)
    return out


# ---------------------------------------------------------------------------
# Parameter init: all weight/param packing hoisted out of the forward pass.
# ---------------------------------------------------------------------------
def _pack_deconv_s2_weight(w_np):
    """(Cin, Cout, 4, 4) -> (9*Cin, rup(4*Cout)) phase-packed bf16 matrix."""
    cin, cout = w_np.shape[0], w_np.shape[1]
    wtot = _rup(4 * cout)
    wm = np.zeros((9 * cin, wtot), np.float32)
    for ph in range(2):
        for pw in range(2):
            g = ph * 2 + pw
            for r, kh in _TAP[ph].items():
                for s, kw in _TAP[pw].items():
                    tap = r * 3 + s
                    wm[tap * cin:(tap + 1) * cin, g * cout:(g + 1) * cout] = \
                        w_np[:, :, kh, kw]
    return jnp.asarray(wm, jnp.bfloat16)


def _make_selectors(groups, cout):
    """0/1 matrices mapping phase-packed columns <-> channels (lane-padded)."""
    cp = _rup(cout)
    wtot = _rup(groups * cout)
    sel = np.zeros((wtot, cp), np.float32)
    eye = np.eye(cout, dtype=np.float32)
    for g in range(groups):
        sel[g * cout:(g + 1) * cout, :cout] = eye
    return jnp.asarray(sel), jnp.asarray(sel.T)


def _padded_bn_params(cout):
    cp = _rup(cout)
    gamma = np.zeros((1, cp), np.float32)
    gamma[0, :cout] = 1.0
    beta = np.zeros((1, cp), np.float32)
    return jnp.asarray(gamma), jnp.asarray(beta)


def init_generator_params(key, z_dim, channels_img, features_g):
    # Mirrors: _block(z,16f,4,1,0), _block(16f,8f,4,2,1), _block(8f,4f,4,2,1),
    #          _block(4f,2f,4,2,1), ConvTranspose2d(2f,img,4,2,1) + Tanh.
    specs = [
        (z_dim, features_g * 16, 1, 0),
        (features_g * 16, features_g * 8, 2, 1),
        (features_g * 8, features_g * 4, 2, 1),
        (features_g * 4, features_g * 2, 2, 1),
        (features_g * 2, channels_img, 2, 1),
    ]
    params = []
    for i, (cin, cout, _stride, _pad) in enumerate(specs):
        key, wk = jax.random.split(key)
        w = np.asarray(0.02 * jax.random.normal(wk, (cin, cout, 4, 4),
                                                jnp.float32))
        if i == 0:
            # 1x1 input, stride 1, pad 0 -> direct projection matmul, columns
            # ordered (kh, kw, cout) so the output reshapes straight to NHWC.
            wtot = _rup(16 * cout)
            wm = np.zeros((cin, wtot), np.float32)
            wm[:, :16 * cout] = w.transpose(0, 2, 3, 1).reshape(cin, 16 * cout)
            sel, selt = _make_selectors(16, cout)
            gamma, beta = _padded_bn_params(cout)
            params.append(dict(kind="proj_bn_relu", cout=cout,
                               w_mat=jnp.asarray(wm, jnp.bfloat16),
                               sel=sel, selt=selt, gamma=gamma, beta=beta))
        elif i < 4:
            sel, selt = _make_selectors(4, cout)
            gamma, beta = _padded_bn_params(cout)
            params.append(dict(kind="bn_relu", cout=cout,
                               w_mat=_pack_deconv_s2_weight(w),
                               sel=sel, selt=selt, gamma=gamma, beta=beta))
        else:
            key, bk = jax.random.split(key)
            b = np.asarray(0.02 * jax.random.normal(bk, (cout,), jnp.float32))
            wtot = _rup(4 * cout)
            bias = np.zeros((1, wtot), np.float32)
            for g in range(4):
                bias[0, g * cout:(g + 1) * cout] = b
            params.append(dict(kind="bias_tanh", cout=cout,
                               w_mat=_pack_deconv_s2_weight(w),
                               bias=jnp.asarray(bias)))
    return params


# ---------------------------------------------------------------------------
# Forward
# ---------------------------------------------------------------------------
def generator_forward(params, x_nchw):
    # TODO(synk): BatchNorm uses batch statistics (training-mode semantics);
    # eval-mode running_mean/var is not modeled.
    N = x_nchw.shape[0]
    p0 = params[0]
    z = x_nchw.reshape(N, -1).astype(jnp.bfloat16)          # (N, z_dim)
    y0 = _fused_matmul_bn_relu(z, p0["w_mat"], p0["sel"], p0["selt"],
                               p0["gamma"], p0["beta"],
                               inv_count=1.0 / (N * 16))
    h = y0[:, :16 * p0["cout"]].reshape(N, 4, 4, p0["cout"])  # NHWC bf16
    for layer in params[1:]:
        h = _deconv_s2_layer(h, layer)
    # NHWC -> NCHW once at the model boundary; upcast from bf16.
    return jnp.transpose(h, (0, 3, 1, 2)).astype(jnp.float32)


if __name__ == "__main__":
    key = jax.random.PRNGKey(0)
    z_dim, channels_img, features_g, batch = 32, 3, 8, 2

    key, pkey, xkey = jax.random.split(key, 3)
    params = init_generator_params(pkey, z_dim, channels_img, features_g)
    x = jax.random.normal(xkey, (batch, z_dim, 1, 1), jnp.float32)

    fwd = jax.jit(lambda inp: generator_forward(params, inp))
    out = jax.block_until_ready(fwd(x))

    assert out.shape == (batch, channels_img, 64, 64), out.shape
    assert bool(jnp.all(jnp.isfinite(out)))
    assert bool(jnp.all(jnp.abs(out) <= 1.0 + 1e-6))  # tanh range
    print("KERNEL_OK")
</pallas_src>

<mosaic_0001>
module attributes {stable_mosaic.version = 11 : i64} {
  func.func @_matmul_bn_relu_kernel(%arg0: i32, %arg1: memref<2x32xbf16, #tpu.memory_space<vmem>>, %arg2: memref<32x2048xbf16, #tpu.memory_space<vmem>>, %arg3: memref<2048x128xf32, #tpu.memory_space<vmem>>, %arg4: memref<128x2048xf32, #tpu.memory_space<vmem>>, %arg5: memref<1x128xf32, #tpu.memory_space<vmem>>, %arg6: memref<1x128xf32, #tpu.memory_space<vmem>>, %arg7: memref<2x2048xbf16, #tpu.memory_space<vmem>>) attributes {dimension_semantics = [#tpu.dimension_semantics<arbitrary>], iteration_bounds = array<i64: 1>, scalar_prefetch = 0 : i64, scratch_operands = 0 : i64, tpu.core_type = #tpu.core_type<tc>, window_params = [{pipeline_mode = #tpu.pipeline_mode<synchronous>, transform_indices = @transform_0, window_bounds = array<i64: 2, 32>}, {pipeline_mode = #tpu.pipeline_mode<synchronous>, transform_indices = @transform_1, window_bounds = array<i64: 32, 2048>}, {pipeline_mode = #tpu.pipeline_mode<synchronous>, transform_indices = @transform_2, window_bounds = array<i64: 2048, 128>}, {pipeline_mode = #tpu.pipeline_mode<synchronous>, transform_indices = @transform_3, window_bounds = array<i64: 128, 2048>}, {pipeline_mode = #tpu.pipeline_mode<synchronous>, transform_indices = @transform_4, window_bounds = array<i64: 1, 128>}, {pipeline_mode = #tpu.pipeline_mode<synchronous>, transform_indices = @transform_5, window_bounds = array<i64: 1, 128>}, {pipeline_mode = #tpu.pipeline_mode<synchronous>, transform_indices = @transform_6, window_bounds = array<i64: 2, 2048>}]} {
    %c0 = arith.constant 0 : index
    %c0_0 = arith.constant 0 : index
    %0 = vector.load %arg1[%c0, %c0_0] : memref<2x32xbf16, #tpu.memory_space<vmem>>, vector<2x32xbf16>
    %c0_1 = arith.constant 0 : index
    %c0_2 = arith.constant 0 : index
    %1 = vector.load %arg2[%c0_1, %c0_2] : memref<32x2048xbf16, #tpu.memory_space<vmem>>, vector<32x2048xbf16>
    %cst = arith.constant dense<0.000000e+00> : vector<2x2048xf32>
    %2 = tpu.matmul %0, %1, %cst {dimension_numbers = #tpu.dot_dimension_numbers<[1], [0], [0], [1], [0, 0, 1, 1], [], []>} : vector<2x32xbf16>, vector<32x2048xbf16>, vector<2x2048xf32> -> vector<2x2048xf32>
    %cst_3 = arith.constant dense<0.000000e+00> : vector<2048xf32>
    %3 = vector.multi_reduction <add>, %2, %cst_3 [0] : vector<2x2048xf32> to vector<2048xf32>
    %4 = vector.shape_cast %3 : vector<2048xf32> to vector<1x2048xf32>
    %5 = arith.mulf %2, %2 : vector<2x2048xf32>
    %cst_4 = arith.constant dense<0.000000e+00> : vector<2048xf32>
    %6 = vector.multi_reduction <add>, %5, %cst_4 [0] : vector<2x2048xf32> to vector<2048xf32>
    %7 = vector.shape_cast %6 : vector<2048xf32> to vector<1x2048xf32>
    %c0_5 = arith.constant 0 : index
    %c0_6 = arith.constant 0 : index
    %8 = vector.load %arg3[%c0_5, %c0_6] : memref<2048x128xf32, #tpu.memory_space<vmem>>, vector<2048x128xf32>
    %cst_7 = arith.constant dense<0.000000e+00> : vector<1x128xf32>
    %9 = tpu.matmul %4, %8, %cst_7 {dimension_numbers = #tpu.dot_dimension_numbers<[1], [0], [0], [1], [0, 0, 1, 1], [], []>} : vector<1x2048xf32>, vector<2048x128xf32>, vector<1x128xf32> -> vector<1x128xf32>
    %c0_8 = arith.constant 0 : index
    %c0_9 = arith.constant 0 : index
    %10 = vector.load %arg3[%c0_8, %c0_9] : memref<2048x128xf32, #tpu.memory_space<vmem>>, vector<2048x128xf32>
    %cst_10 = arith.constant dense<0.000000e+00> : vector<1x128xf32>
    %11 = tpu.matmul %7, %10, %cst_10 {dimension_numbers = #tpu.dot_dimension_numbers<[1], [0], [0], [1], [0, 0, 1, 1], [], []>} : vector<1x2048xf32>, vector<2048x128xf32>, vector<1x128xf32> -> vector<1x128xf32>
    %cst_11 = arith.constant 3.125000e-02 : f32
    %12 = vector.broadcast %cst_11 : f32 to vector<1x128xf32>
    %13 = arith.mulf %9, %12 : vector<1x128xf32>
    %cst_12 = arith.constant 3.125000e-02 : f32
    %14 = vector.broadcast %cst_12 : f32 to vector<1x128xf32>
    %15 = arith.mulf %11, %14 : vector<1x128xf32>
    %16 = arith.mulf %13, %13 : vector<1x128xf32>
    %17 = arith.subf %15, %16 : vector<1x128xf32>
    %cst_13 = arith.constant 0.000000e+00 : f32
    %18 = vector.broadcast %cst_13 : f32 to vector<1x128xf32>
    %19 = arith.maximumf %17, %18 : vector<1x128xf32>
    %c0_14 = arith.constant 0 : index
    %c0_15 = arith.constant 0 : index
    %20 = vector.load %arg5[%c0_14, %c0_15] : memref<1x128xf32, #tpu.memory_space<vmem>>, vector<1x128xf32>
    %cst_16 = arith.constant 9.99999974E-6 : f32
    %21 = vector.broadcast %cst_16 : f32 to vector<1x128xf32>
    %22 = arith.addf %19, %21 : vector<1x128xf32>
    %23 = math.rsqrt %22 : vector<1x128xf32>
    %24 = arith.mulf %20, %23 : vector<1x128xf32>
    %c0_17 = arith.constant 0 : index
    %c0_18 = arith.constant 0 : index
    %25 = vector.load %arg6[%c0_17, %c0_18] : memref<1x128xf32, #tpu.memory_space<vmem>>, vector<1x128xf32>
    %26 = arith.mulf %13, %24 : vector<1x128xf32>
    %27 = arith.subf %25, %26 : vector<1x128xf32>
    %c0_19 = arith.constant 0 : index
    %c0_20 = arith.constant 0 : index
    %28 = vector.load %arg4[%c0_19, %c0_20] : memref<128x2048xf32, #tpu.memory_space<vmem>>, vector<128x2048xf32>
    %cst_21 = arith.constant dense<0.000000e+00> : vector<1x2048xf32>
    %29 = tpu.matmul %24, %28, %cst_21 {dimension_numbers = #tpu.dot_dimension_numbers<[1], [0], [0], [1], [0, 0, 1, 1], [], []>} : vector<1x128xf32>, vector<128x2048xf32>, vector<1x2048xf32> -> vector<1x2048xf32>
    %c0_22 = arith.constant 0 : index
    %c0_23 = arith.constant 0 : index
    %30 = vector.load %arg4[%c0_22, %c0_23] : memref<128x2048xf32, #tpu.memory_space<vmem>>, vector<128x2048xf32>
    %cst_24 = arith.constant dense<0.000000e+00> : vector<1x2048xf32>
    %31 = tpu.matmul %27, %30, %cst_24 {dimension_numbers = #tpu.dot_dimension_numbers<[1], [0], [0], [1], [0, 0, 1, 1], [], []>} : vector<1x128xf32>, vector<128x2048xf32>, vector<1x2048xf32> -> vector<1x2048xf32>
    %32 = vector.broadcast %29 : vector<1x2048xf32> to vector<2x2048xf32>
    %33 = arith.mulf %2, %32 : vector<2x2048xf32>
    %34 = vector.broadcast %31 : vector<1x2048xf32> to vector<2x2048xf32>
    %35 = arith.addf %33, %34 : vector<2x2048xf32>
    %cst_25 = arith.constant 0.000000e+00 : f32
    %36 = vector.broadcast %cst_25 : f32 to vector<2x2048xf32>
    %37 = arith.maximumf %35, %36 : vector<2x2048xf32>
    %38 = arith.truncf %37 : vector<2x2048xf32> to vector<2x2048xbf16>
    %c0_26 = arith.constant 0 : index
    %c0_27 = arith.constant 0 : index
    %39 = vector.load %arg7[%c0_26, %c0_27] : memref<2x2048xbf16, #tpu.memory_space<vmem>>, vector<2x2048xbf16>
    tpu.vector_store %arg7[%c0_26, %c0_27], %38 {strides = array<i32>} : memref<2x2048xbf16, #tpu.memory_space<vmem>>, vector<2x2048xbf16>,
    return
  }
  func.func @transform_0(%arg0: i32) -> (i32, i32) {
    %c0_i32 = arith.constant 0 : i32
    %c0_i32_0 = arith.constant 0 : i32
    %c0_i32_1 = arith.constant 0 : i32
    return %c0_i32, %c0_i32_0 : i32, i32
  }
  func.func @transform_1(%arg0: i32) -> (i32, i32) {
    %c0_i32 = arith.constant 0 : i32
    %c0_i32_0 = arith.constant 0 : i32
    %c0_i32_1 = arith.constant 0 : i32
    return %c0_i32, %c0_i32_0 : i32, i32
  }
  func.func @transform_2(%arg0: i32) -> (i32, i32) {
    %c0_i32 = arith.constant 0 : i32
    %c0_i32_0 = arith.constant 0 : i32
    %c0_i32_1 = arith.constant 0 : i32
    return %c0_i32, %c0_i32_0 : i32, i32
  }
  func.func @transform_3(%arg0: i32) -> (i32, i32) {
    %c0_i32 = arith.constant 0 : i32
    %c0_i32_0 = arith.constant 0 : i32
    %c0_i32_1 = arith.constant 0 : i32
    return %c0_i32, %c0_i32_0 : i32, i32
  }
  func.func @transform_4(%arg0: i32) -> (i32, i32) {
    %c0_i32 = arith.constant 0 : i32
    %c0_i32_0 = arith.constant 0 : i32
    %c0_i32_1 = arith.constant 0 : i32
    return %c0_i32, %c0_i32_0 : i32, i32
  }
  func.func @transform_5(%arg0: i32) -> (i32, i32) {
    %c0_i32 = arith.constant 0 : i32
    %c0_i32_0 = arith.constant 0 : i32
    %c0_i32_1 = arith.constant 0 : i32
    return %c0_i32, %c0_i32_0 : i32, i32
  }
  func.func @transform_6(%arg0: i32) -> (i32, i32) {
    %c0_i32 = arith.constant 0 : i32
    %c0_i32_0 = arith.constant 0 : i32
    %c0_i32_1 = arith.constant 0 : i32
    return %c0_i32, %c0_i32_0 : i32, i32
  }
}

module attributes {stable_mosaic.version = 11 : i64} {
  func.func @_matmul_bn_relu_kernel(%arg0: i32, %arg1: memref<32x1152xbf16, #tpu.memory_space<vmem>>, %arg2: memref<1152x256xbf16, #tpu.memory_space<vmem>>, %arg3: memref<256x128xf32, #tpu.memory_space<vmem>>, %arg4: memref<128x256xf32, #tpu.memory_space<vmem>>, %arg5: memref<1x128xf32, #tpu.memory_space<vmem>>, %arg6: memref<1x128xf32, #tpu.memory_space<vmem>>, %arg7: memref<32x256xbf16, #tpu.memory_space<vmem>>) attributes {dimension_semantics = [#tpu.dimension_semantics<arbitrary>], iteration_bounds = array<i64: 1>, scalar_prefetch = 0 : i64, scratch_operands = 0 : i64, tpu.core_type = #tpu.core_type<tc>, window_params = [{pipeline_mode = #tpu.pipeline_mode<synchronous>, transform_indices = @transform_0, window_bounds = array<i64: 32, 1152>}, {pipeline_mode = #tpu.pipeline_mode<synchronous>, transform_indices = @transform_1, window_bounds = array<i64: 1152, 256>}, {pipeline_mode = #tpu.pipeline_mode<synchronous>, transform_indices = @transform_2, window_bounds = array<i64: 256, 128>}, {pipeline_mode = #tpu.pipeline_mode<synchronous>, transform_indices = @transform_3, window_bounds = array<i64: 128, 256>}, {pipeline_mode = #tpu.pipeline_mode<synchronous>, transform_indices = @transform_4, window_bounds = array<i64: 1, 128>}, {pipeline_mode = #tpu.pipeline_mode<synchronous>, transform_indices = @transform_5, window_bounds = array<i64: 1, 128>}, {pipeline_mode = #tpu.pipeline_mode<synchronous>, transform_indices = @transform_6, window_bounds = array<i64: 32, 256>}]} {
    %c0 = arith.constant 0 : index
    %c0_0 = arith.constant 0 : index
    %0 = vector.load %arg1[%c0, %c0_0] : memref<32x1152xbf16, #tpu.memory_space<vmem>>, vector<32x1152xbf16>
    %c0_1 = arith.constant 0 : index
    %c0_2 = arith.constant 0 : index
    %1 = vector.load %arg2[%c0_1, %c0_2] : memref<1152x256xbf16, #tpu.memory_space<vmem>>, vector<1152x256xbf16>
    %cst = arith.constant dense<0.000000e+00> : vector<32x256xf32>
    %2 = tpu.matmul %0, %1, %cst {dimension_numbers = #tpu.dot_dimension_numbers<[1], [0], [0], [1], [0, 0, 1, 1], [], []>} : vector<32x1152xbf16>, vector<1152x256xbf16>, vector<32x256xf32> -> vector<32x256xf32>
    %cst_3 = arith.constant dense<0.000000e+00> : vector<256xf32>
    %3 = vector.multi_reduction <add>, %2, %cst_3 [0] : vector<32x256xf32> to vector<256xf32>
    %4 = vector.shape_cast %3 : vector<256xf32> to vector<1x256xf32>
    %5 = arith.mulf %2, %2 : vector<32x256xf32>
    %cst_4 = arith.constant dense<0.000000e+00> : vector<256xf32>
    %6 = vector.multi_reduction <add>, %5, %cst_4 [0] : vector<32x256xf32> to vector<256xf32>
    %7 = vector.shape_cast %6 : vector<256xf32> to vector<1x256xf32>
    %c0_5 = arith.constant 0 : index
    %c0_6 = arith.constant 0 : index
    %8 = vector.load %arg3[%c0_5, %c0_6] : memref<256x128xf32, #tpu.memory_space<vmem>>, vector<256x128xf32>
    %cst_7 = arith.constant dense<0.000000e+00> : vector<1x128xf32>
    %9 = tpu.matmul %4, %8, %cst_7 {dimension_numbers = #tpu.dot_dimension_numbers<[1], [0], [0], [1], [0, 0, 1, 1], [], []>} : vector<1x256xf32>, vector<256x128xf32>, vector<1x128xf32> -> vector<1x128xf32>
    %c0_8 = arith.constant 0 : index
    %c0_9 = arith.constant 0 : index
    %10 = vector.load %arg3[%c0_8, %c0_9] : memref<256x128xf32, #tpu.memory_space<vmem>>, vector<256x128xf32>
    %cst_10 = arith.constant dense<0.000000e+00> : vector<1x128xf32>
    %11 = tpu.matmul %7, %10, %cst_10 {dimension_numbers = #tpu.dot_dimension_numbers<[1], [0], [0], [1], [0, 0, 1, 1], [], []>} : vector<1x256xf32>, vector<256x128xf32>, vector<1x128xf32> -> vector<1x128xf32>
    %cst_11 = arith.constant 7.812500e-03 : f32
    %12 = vector.broadcast %cst_11 : f32 to vector<1x128xf32>
    %13 = arith.mulf %9, %12 : vector<1x128xf32>
    %cst_12 = arith.constant 7.812500e-03 : f32
    %14 = vector.broadcast %cst_12 : f32 to vector<1x128xf32>
    %15 = arith.mulf %11, %14 : vector<1x128xf32>
    %16 = arith.mulf %13, %13 : vector<1x128xf32>
    %17 = arith.subf %15, %16 : vector<1x128xf32>
    %cst_13 = arith.constant 0.000000e+00 : f32
    %18 = vector.broadcast %cst_13 : f32 to vector<1x128xf32>
    %19 = arith.maximumf %17, %18 : vector<1x128xf32>
    %c0_14 = arith.constant 0 : index
    %c0_15 = arith.constant 0 : index
    %20 = vector.load %arg5[%c0_14, %c0_15] : memref<1x128xf32, #tpu.memory_space<vmem>>, vector<1x128xf32>
    %cst_16 = arith.constant 9.99999974E-6 : f32
    %21 = vector.broadcast %cst_16 : f32 to vector<1x128xf32>
    %22 = arith.addf %19, %21 : vector<1x128xf32>
    %23 = math.rsqrt %22 : vector<1x128xf32>
    %24 = arith.mulf %20, %23 : vector<1x128xf32>
    %c0_17 = arith.constant 0 : index
    %c0_18 = arith.constant 0 : index
    %25 = vector.load %arg6[%c0_17, %c0_18] : memref<1x128xf32, #tpu.memory_space<vmem>>, vector<1x128xf32>
    %26 = arith.mulf %13, %24 : vector<1x128xf32>
    %27 = arith.subf %25, %26 : vector<1x128xf32>
    %c0_19 = arith.constant 0 : index
    %c0_20 = arith.constant 0 : index
    %28 = vector.load %arg4[%c0_19, %c0_20] : memref<128x256xf32, #tpu.memory_space<vmem>>, vector<128x256xf32>
    %cst_21 = arith.constant dense<0.000000e+00> : vector<1x256xf32>
    %29 = tpu.matmul %24, %28, %cst_21 {dimension_numbers = #tpu.dot_dimension_numbers<[1], [0], [0], [1], [0, 0, 1, 1], [], []>} : vector<1x128xf32>, vector<128x256xf32>, vector<1x256xf32> -> vector<1x256xf32>
    %c0_22 = arith.constant 0 : index
    %c0_23 = arith.constant 0 : index
    %30 = vector.load %arg4[%c0_22, %c0_23] : memref<128x256xf32, #tpu.memory_space<vmem>>, vector<128x256xf32>
    %cst_24 = arith.constant dense<0.000000e+00> : vector<1x256xf32>
    %31 = tpu.matmul %27, %30, %cst_24 {dimension_numbers = #tpu.dot_dimension_numbers<[1], [0], [0], [1], [0, 0, 1, 1], [], []>} : vector<1x128xf32>, vector<128x256xf32>, vector<1x256xf32> -> vector<1x256xf32>
    %32 = vector.broadcast %29 : vector<1x256xf32> to vector<32x256xf32>
    %33 = arith.mulf %2, %32 : vector<32x256xf32>
    %34 = vector.broadcast %31 : vector<1x256xf32> to vector<32x256xf32>
    %35 = arith.addf %33, %34 : vector<32x256xf32>
    %cst_25 = arith.constant 0.000000e+00 : f32
    %36 = vector.broadcast %cst_25 : f32 to vector<32x256xf32>
    %37 = arith.maximumf %35, %36 : vector<32x256xf32>
    %38 = arith.truncf %37 : vector<32x256xf32> to vector<32x256xbf16>
    %c0_26 = arith.constant 0 : index
    %c0_27 = arith.constant 0 : index
    %39 = vector.load %arg7[%c0_26, %c0_27] : memref<32x256xbf16, #tpu.memory_space<vmem>>, vector<32x256xbf16>
    tpu.vector_store %arg7[%c0_26, %c0_27], %38 {strides = array<i32>} : memref<32x256xbf16, #tpu.memory_space<vmem>>, vector<32x256xbf16>,
    return
  }
  func.func @transform_0(%arg0: i32) -> (i32, i32) {
    %c0_i32 = arith.constant 0 : i32
    %c0_i32_0 = arith.constant 0 : i32
    %c0_i32_1 = arith.constant 0 : i32
    return %c0_i32, %c0_i32_0 : i32, i32
  }
  func.func @transform_1(%arg0: i32) -> (i32, i32) {
    %c0_i32 = arith.constant 0 : i32
    %c0_i32_0 = arith.constant 0 : i32
    %c0_i32_1 = arith.constant 0 : i32
    return %c0_i32, %c0_i32_0 : i32, i32
  }
  func.func @transform_2(%arg0: i32) -> (i32, i32) {
    %c0_i32 = arith.constant 0 : i32
    %c0_i32_0 = arith.constant 0 : i32
    %c0_i32_1 = arith.constant 0 : i32
    return %c0_i32, %c0_i32_0 : i32, i32
  }
  func.func @transform_3(%arg0: i32) -> (i32, i32) {
    %c0_i32 = arith.constant 0 : i32
    %c0_i32_0 = arith.constant 0 : i32
    %c0_i32_1 = arith.constant 0 : i32
    return %c0_i32, %c0_i32_0 : i32, i32
  }
  func.func @transform_4(%arg0: i32) -> (i32, i32) {
    %c0_i32 = arith.constant 0 : i32
    %c0_i32_0 = arith.constant 0 : i32
    %c0_i32_1 = arith.constant 0 : i32
    return %c0_i32, %c0_i32_0 : i32, i32
  }
  func.func @transform_5(%arg0: i32) -> (i32, i32) {
    %c0_i32 = arith.constant 0 : i32
    %c0_i32_0 = arith.constant 0 : i32
    %c0_i32_1 = arith.constant 0 : i32
    return %c0_i32, %c0_i32_0 : i32, i32
  }
  func.func @transform_6(%arg0: i32) -> (i32, i32) {
    %c0_i32 = arith.constant 0 : i32
    %c0_i32_0 = arith.constant 0 : i32
    %c0_i32_1 = arith.constant 0 : i32
    return %c0_i32, %c0_i32_0 : i32, i32
  }
}

module attributes {stable_mosaic.version = 11 : i64} {
  func.func @_matmul_bn_relu_kernel(%arg0: i32, %arg1: memref<128x576xbf16, #tpu.memory_space<vmem>>, %arg2: memref<576x128xbf16, #tpu.memory_space<vmem>>, %arg3: memref<128x128xf32, #tpu.memory_space<vmem>>, %arg4: memref<128x128xf32, #tpu.memory_space<vmem>>, %arg5: memref<1x128xf32, #tpu.memory_space<vmem>>, %arg6: memref<1x128xf32, #tpu.memory_space<vmem>>, %arg7: memref<128x128xbf16, #tpu.memory_space<vmem>>) attributes {dimension_semantics = [#tpu.dimension_semantics<arbitrary>], iteration_bounds = array<i64: 1>, scalar_prefetch = 0 : i64, scratch_operands = 0 : i64, tpu.core_type = #tpu.core_type<tc>, window_params = [{pipeline_mode = #tpu.pipeline_mode<synchronous>, transform_indices = @transform_0, window_bounds = array<i64: 128, 576>}, {pipeline_mode = #tpu.pipeline_mode<synchronous>, transform_indices = @transform_1, window_bounds = array<i64: 576, 128>}, {pipeline_mode = #tpu.pipeline_mode<synchronous>, transform_indices = @transform_2, window_bounds = array<i64: 128, 128>}, {pipeline_mode = #tpu.pipeline_mode<synchronous>, transform_indices = @transform_3, window_bounds = array<i64: 128, 128>}, {pipeline_mode = #tpu.pipeline_mode<synchronous>, transform_indices = @transform_4, window_bounds = array<i64: 1, 128>}, {pipeline_mode = #tpu.pipeline_mode<synchronous>, transform_indices = @transform_5, window_bounds = array<i64: 1, 128>}, {pipeline_mode = #tpu.pipeline_mode<synchronous>, transform_indices = @transform_6, window_bounds = array<i64: 128, 128>}]} {
    %c0 = arith.constant 0 : index
    %c0_0 = arith.constant 0 : index
    %0 = vector.load %arg1[%c0, %c0_0] : memref<128x576xbf16, #tpu.memory_space<vmem>>, vector<128x576xbf16>
    %c0_1 = arith.constant 0 : index
    %c0_2 = arith.constant 0 : index
    %1 = vector.load %arg2[%c0_1, %c0_2] : memref<576x128xbf16, #tpu.memory_space<vmem>>, vector<576x128xbf16>
    %cst = arith.constant dense<0.000000e+00> : vector<128x128xf32>
    %2 = tpu.matmul %0, %1, %cst {dimension_numbers = #tpu.dot_dimension_numbers<[1], [0], [0], [1], [0, 0, 1, 1], [], []>} : vector<128x576xbf16>, vector<576x128xbf16>, vector<128x128xf32> -> vector<128x128xf32>
    %cst_3 = arith.constant dense<0.000000e+00> : vector<128xf32>
    %3 = vector.multi_reduction <add>, %2, %cst_3 [0] : vector<128x128xf32> to vector<128xf32>
    %4 = vector.shape_cast %3 : vector<128xf32> to vector<1x128xf32>
    %5 = arith.mulf %2, %2 : vector<128x128xf32>
    %cst_4 = arith.constant dense<0.000000e+00> : vector<128xf32>
    %6 = vector.multi_reduction <add>, %5, %cst_4 [0] : vector<128x128xf32> to vector<128xf32>
    %7 = vector.shape_cast %6 : vector<128xf32> to vector<1x128xf32>
    %c0_5 = arith.constant 0 : index
    %c0_6 = arith.constant 0 : index
    %8 = vector.load %arg3[%c0_5, %c0_6] : memref<128x128xf32, #tpu.memory_space<vmem>>, vector<128x128xf32>
    %cst_7 = arith.constant dense<0.000000e+00> : vector<1x128xf32>
    %9 = tpu.matmul %4, %8, %cst_7 {dimension_numbers = #tpu.dot_dimension_numbers<[1], [0], [0], [1], [0, 0, 1, 1], [], []>} : vector<1x128xf32>, vector<128x128xf32>, vector<1x128xf32> -> vector<1x128xf32>
    %c0_8 = arith.constant 0 : index
    %c0_9 = arith.constant 0 : index
    %10 = vector.load %arg3[%c0_8, %c0_9] : memref<128x128xf32, #tpu.memory_space<vmem>>, vector<128x128xf32>
    %cst_10 = arith.constant dense<0.000000e+00> : vector<1x128xf32>
    %11 = tpu.matmul %7, %10, %cst_10 {dimension_numbers = #tpu.dot_dimension_numbers<[1], [0], [0], [1], [0, 0, 1, 1], [], []>} : vector<1x128xf32>, vector<128x128xf32>, vector<1x128xf32> -> vector<1x128xf32>
    %cst_11 = arith.constant 0.001953125 : f32
    %12 = vector.broadcast %cst_11 : f32 to vector<1x128xf32>
    %13 = arith.mulf %9, %12 : vector<1x128xf32>
    %cst_12 = arith.constant 0.001953125 : f32
    %14 = vector.broadcast %cst_12 : f32 to vector<1x128xf32>
    %15 = arith.mulf %11, %14 : vector<1x128xf32>
    %16 = arith.mulf %13, %13 : vector<1x128xf32>
    %17 = arith.subf %15, %16 : vector<1x128xf32>
    %cst_13 = arith.constant 0.000000e+00 : f32
    %18 = vector.broadcast %cst_13 : f32 to vector<1x128xf32>
    %19 = arith.maximumf %17, %18 : vector<1x128xf32>
    %c0_14 = arith.constant 0 : index
    %c0_15 = arith.constant 0 : index
    %20 = vector.load %arg5[%c0_14, %c0_15] : memref<1x128xf32, #tpu.memory_space<vmem>>, vector<1x128xf32>
    %cst_16 = arith.constant 9.99999974E-6 : f32
    %21 = vector.broadcast %cst_16 : f32 to vector<1x128xf32>
    %22 = arith.addf %19, %21 : vector<1x128xf32>
    %23 = math.rsqrt %22 : vector<1x128xf32>
    %24 = arith.mulf %20, %23 : vector<1x128xf32>
    %c0_17 = arith.constant 0 : index
    %c0_18 = arith.constant 0 : index
    %25 = vector.load %arg6[%c0_17, %c0_18] : memref<1x128xf32, #tpu.memory_space<vmem>>, vector<1x128xf32>
    %26 = arith.mulf %13, %24 : vector<1x128xf32>
    %27 = arith.subf %25, %26 : vector<1x128xf32>
    %c0_19 = arith.constant 0 : index
    %c0_20 = arith.constant 0 : index
    %28 = vector.load %arg4[%c0_19, %c0_20] : memref<128x128xf32, #tpu.memory_space<vmem>>, vector<128x128xf32>
    %cst_21 = arith.constant dense<0.000000e+00> : vector<1x128xf32>
    %29 = tpu.matmul %24, %28, %cst_21 {dimension_numbers = #tpu.dot_dimension_numbers<[1], [0], [0], [1], [0, 0, 1, 1], [], []>} : vector<1x128xf32>, vector<128x128xf32>, vector<1x128xf32> -> vector<1x128xf32>
    %c0_22 = arith.constant 0 : index
    %c0_23 = arith.constant 0 : index
    %30 = vector.load %arg4[%c0_22, %c0_23] : memref<128x128xf32, #tpu.memory_space<vmem>>, vector<128x128xf32>
    %cst_24 = arith.constant dense<0.000000e+00> : vector<1x128xf32>
    %31 = tpu.matmul %27, %30, %cst_24 {dimension_numbers = #tpu.dot_dimension_numbers<[1], [0], [0], [1], [0, 0, 1, 1], [], []>} : vector<1x128xf32>, vector<128x128xf32>, vector<1x128xf32> -> vector<1x128xf32>
    %32 = vector.broadcast %29 : vector<1x128xf32> to vector<128x128xf32>
    %33 = arith.mulf %2, %32 : vector<128x128xf32>
    %34 = vector.broadcast %31 : vector<1x128xf32> to vector<128x128xf32>
    %35 = arith.addf %33, %34 : vector<128x128xf32>
    %cst_25 = arith.constant 0.000000e+00 : f32
    %36 = vector.broadcast %cst_25 : f32 to vector<128x128xf32>
    %37 = arith.maximumf %35, %36 : vector<128x128xf32>
    %38 = arith.truncf %37 : vector<128x128xf32> to vector<128x128xbf16>
    %c0_26 = arith.constant 0 : index
    %c0_27 = arith.constant 0 : index
    %39 = vector.load %arg7[%c0_26, %c0_27] : memref<128x128xbf16, #tpu.memory_space<vmem>>, vector<128x128xbf16>
    tpu.vector_store %arg7[%c0_26, %c0_27], %38 {strides = array<i32>} : memref<128x128xbf16, #tpu.memory_space<vmem>>, vector<128x128xbf16>,
    return
  }
  func.func @transform_0(%arg0: i32) -> (i32, i32) {
    %c0_i32 = arith.constant 0 : i32
    %c0_i32_0 = arith.constant 0 : i32
    %c0_i32_1 = arith.constant 0 : i32
    return %c0_i32, %c0_i32_0 : i32, i32
  }
  func.func @transform_1(%arg0: i32) -> (i32, i32) {
    %c0_i32 = arith.constant 0 : i32
    %c0_i32_0 = arith.constant 0 : i32
    %c0_i32_1 = arith.constant 0 : i32
    return %c0_i32, %c0_i32_0 : i32, i32
  }
  func.func @transform_2(%arg0: i32) -> (i32, i32) {
    %c0_i32 = arith.constant 0 : i32
    %c0_i32_0 = arith.constant 0 : i32
    %c0_i32_1 = arith.constant 0 : i32
    return %c0_i32, %c0_i32_0 : i32, i32
  }
  func.func @transform_3(%arg0: i32) -> (i32, i32) {
    %c0_i32 = arith.constant 0 : i32
    %c0_i32_0 = arith.constant 0 : i32
    %c0_i32_1 = arith.constant 0 : i32
    return %c0_i32, %c0_i32_0 : i32, i32
  }
  func.func @transform_4(%arg0: i32) -> (i32, i32) {
    %c0_i32 = arith.constant 0 : i32
    %c0_i32_0 = arith.constant 0 : i32
    %c0_i32_1 = arith.constant 0 : i32
    return %c0_i32, %c0_i32_0 : i32, i32
  }
  func.func @transform_5(%arg0: i32) -> (i32, i32) {
    %c0_i32 = arith.constant 0 : i32
    %c0_i32_0 = arith.constant 0 : i32
    %c0_i32_1 = arith.constant 0 : i32
    return %c0_i32, %c0_i32_0 : i32, i32
  }
  func.func @transform_6(%arg0: i32) -> (i32, i32) {
    %c0_i32 = arith.constant 0 : i32
    %c0_i32_0 = arith.constant 0 : i32
    %c0_i32_1 = arith.constant 0 : i32
    return %c0_i32, %c0_i32_0 : i32, i32
  }
}

module attributes {stable_mosaic.version = 11 : i64} {
  func.func @_matmul_bn_relu_kernel(%arg0: i32, %arg1: memref<512x288xbf16, #tpu.memory_space<vmem>>, %arg2: memref<288x128xbf16, #tpu.memory_space<vmem>>, %arg3: memref<128x128xf32, #tpu.memory_space<vmem>>, %arg4: memref<128x128xf32, #tpu.memory_space<vmem>>, %arg5: memref<1x128xf32, #tpu.memory_space<vmem>>, %arg6: memref<1x128xf32, #tpu.memory_space<vmem>>, %arg7: memref<512x128xbf16, #tpu.memory_space<vmem>>) attributes {dimension_semantics = [#tpu.dimension_semantics<arbitrary>], iteration_bounds = array<i64: 1>, scalar_prefetch = 0 : i64, scratch_operands = 0 : i64, tpu.core_type = #tpu.core_type<tc>, window_params = [{pipeline_mode = #tpu.pipeline_mode<synchronous>, transform_indices = @transform_0, window_bounds = array<i64: 512, 288>}, {pipeline_mode = #tpu.pipeline_mode<synchronous>, transform_indices = @transform_1, window_bounds = array<i64: 288, 128>}, {pipeline_mode = #tpu.pipeline_mode<synchronous>, transform_indices = @transform_2, window_bounds = array<i64: 128, 128>}, {pipeline_mode = #tpu.pipeline_mode<synchronous>, transform_indices = @transform_3, window_bounds = array<i64: 128, 128>}, {pipeline_mode = #tpu.pipeline_mode<synchronous>, transform_indices = @transform_4, window_bounds = array<i64: 1, 128>}, {pipeline_mode = #tpu.pipeline_mode<synchronous>, transform_indices = @transform_5, window_bounds = array<i64: 1, 128>}, {pipeline_mode = #tpu.pipeline_mode<synchronous>, transform_indices = @transform_6, window_bounds = array<i64: 512, 128>}]} {
    %c0 = arith.constant 0 : index
    %c0_0 = arith.constant 0 : index
    %0 = vector.load %arg1[%c0, %c0_0] : memref<512x288xbf16, #tpu.memory_space<vmem>>, vector<512x288xbf16>
    %c0_1 = arith.constant 0 : index
    %c0_2 = arith.constant 0 : index
    %1 = vector.load %arg2[%c0_1, %c0_2] : memref<288x128xbf16, #tpu.memory_space<vmem>>, vector<288x128xbf16>
    %cst = arith.constant dense<0.000000e+00> : vector<512x128xf32>
    %2 = tpu.matmul %0, %1, %cst {dimension_numbers = #tpu.dot_dimension_numbers<[1], [0], [0], [1], [0, 0, 1, 1], [], []>} : vector<512x288xbf16>, vector<288x128xbf16>, vector<512x128xf32> -> vector<512x128xf32>
    %cst_3 = arith.constant dense<0.000000e+00> : vector<128xf32>
    %3 = vector.multi_reduction <add>, %2, %cst_3 [0] : vector<512x128xf32> to vector<128xf32>
    %4 = vector.shape_cast %3 : vector<128xf32> to vector<1x128xf32>
    %5 = arith.mulf %2, %2 : vector<512x128xf32>
    %cst_4 = arith.constant dense<0.000000e+00> : vector<128xf32>
    %6 = vector.multi_reduction <add>, %5, %cst_4 [0] : vector<512x128xf32> to vector<128xf32>
    %7 = vector.shape_cast %6 : vector<128xf32> to vector<1x128xf32>
    %c0_5 = arith.constant 0 : index
    %c0_6 = arith.constant 0 : index
    %8 = vector.load %arg3[%c0_5, %c0_6] : memref<128x128xf32, #tpu.memory_space<vmem>>, vector<128x128xf32>
    %cst_7 = arith.constant dense<0.000000e+00> : vector<1x128xf32>
    %9 = tpu.matmul %4, %8, %cst_7 {dimension_numbers = #tpu.dot_dimension_numbers<[1], [0], [0], [1], [0, 0, 1, 1], [], []>} : vector<1x128xf32>, vector<128x128xf32>, vector<1x128xf32> -> vector<1x128xf32>
    %c0_8 = arith.constant 0 : index
    %c0_9 = arith.constant 0 : index
    %10 = vector.load %arg3[%c0_8, %c0_9] : memref<128x128xf32, #tpu.memory_space<vmem>>, vector<128x128xf32>
    %cst_10 = arith.constant dense<0.000000e+00> : vector<1x128xf32>
    %11 = tpu.matmul %7, %10, %cst_10 {dimension_numbers = #tpu.dot_dimension_numbers<[1], [0], [0], [1], [0, 0, 1, 1], [], []>} : vector<1x128xf32>, vector<128x128xf32>, vector<1x128xf32> -> vector<1x128xf32>
    %cst_11 = arith.constant 4.8828125E-4 : f32
    %12 = vector.broadcast %cst_11 : f32 to vector<1x128xf32>
    %13 = arith.mulf %9, %12 : vector<1x128xf32>
    %cst_12 = arith.constant 4.8828125E-4 : f32
    %14 = vector.broadcast %cst_12 : f32 to vector<1x128xf32>
    %15 = arith.mulf %11, %14 : vector<1x128xf32>
    %16 = arith.mulf %13, %13 : vector<1x128xf32>
    %17 = arith.subf %15, %16 : vector<1x128xf32>
    %cst_13 = arith.constant 0.000000e+00 : f32
    %18 = vector.broadcast %cst_13 : f32 to vector<1x128xf32>
    %19 = arith.maximumf %17, %18 : vector<1x128xf32>
    %c0_14 = arith.constant 0 : index
    %c0_15 = arith.constant 0 : index
    %20 = vector.load %arg5[%c0_14, %c0_15] : memref<1x128xf32, #tpu.memory_space<vmem>>, vector<1x128xf32>
    %cst_16 = arith.constant 9.99999974E-6 : f32
    %21 = vector.broadcast %cst_16 : f32 to vector<1x128xf32>
    %22 = arith.addf %19, %21 : vector<1x128xf32>
    %23 = math.rsqrt %22 : vector<1x128xf32>
    %24 = arith.mulf %20, %23 : vector<1x128xf32>
    %c0_17 = arith.constant 0 : index
    %c0_18 = arith.constant 0 : index
    %25 = vector.load %arg6[%c0_17, %c0_18] : memref<1x128xf32, #tpu.memory_space<vmem>>, vector<1x128xf32>
    %26 = arith.mulf %13, %24 : vector<1x128xf32>
    %27 = arith.subf %25, %26 : vector<1x128xf32>
    %c0_19 = arith.constant 0 : index
    %c0_20 = arith.constant 0 : index
    %28 = vector.load %arg4[%c0_19, %c0_20] : memref<128x128xf32, #tpu.memory_space<vmem>>, vector<128x128xf32>
    %cst_21 = arith.constant dense<0.000000e+00> : vector<1x128xf32>
    %29 = tpu.matmul %24, %28, %cst_21 {dimension_numbers = #tpu.dot_dimension_numbers<[1], [0], [0], [1], [0, 0, 1, 1], [], []>} : vector<1x128xf32>, vector<128x128xf32>, vector<1x128xf32> -> vector<1x128xf32>
    %c0_22 = arith.constant 0 : index
    %c0_23 = arith.constant 0 : index
    %30 = vector.load %arg4[%c0_22, %c0_23] : memref<128x128xf32, #tpu.memory_space<vmem>>, vector<128x128xf32>
    %cst_24 = arith.constant dense<0.000000e+00> : vector<1x128xf32>
    %31 = tpu.matmul %27, %30, %cst_24 {dimension_numbers = #tpu.dot_dimension_numbers<[1], [0], [0], [1], [0, 0, 1, 1], [], []>} : vector<1x128xf32>, vector<128x128xf32>, vector<1x128xf32> -> vector<1x128xf32>
    %32 = vector.broadcast %29 : vector<1x128xf32> to vector<512x128xf32>
    %33 = arith.mulf %2, %32 : vector<512x128xf32>
    %34 = vector.broadcast %31 : vector<1x128xf32> to vector<512x128xf32>
    %35 = arith.addf %33, %34 : vector<512x128xf32>
    %cst_25 = arith.constant 0.000000e+00 : f32
    %36 = vector.broadcast %cst_25 : f32 to vector<512x128xf32>
    %37 = arith.maximumf %35, %36 : vector<512x128xf32>
    %38 = arith.truncf %37 : vector<512x128xf32> to vector<512x128xbf16>
    %c0_26 = arith.constant 0 : index
    %c0_27 = arith.constant 0 : index
    %39 = vector.load %arg7[%c0_26, %c0_27] : memref<512x128xbf16, #tpu.memory_space<vmem>>, vector<512x128xbf16>
    tpu.vector_store %arg7[%c0_26, %c0_27], %38 {strides = array<i32>} : memref<512x128xbf16, #tpu.memory_space<vmem>>, vector<512x128xbf16>,
    return
  }
  func.func @transform_0(%arg0: i32) -> (i32, i32) {
    %c0_i32 = arith.constant 0 : i32
    %c0_i32_0 = arith.constant 0 : i32
    %c0_i32_1 = arith.constant 0 : i32
    return %c0_i32, %c0_i32_0 : i32, i32
  }
  func.func @transform_1(%arg0: i32) -> (i32, i32) {
    %c0_i32 = arith.constant 0 : i32
    %c0_i32_0 = arith.constant 0 : i32
    %c0_i32_1 = arith.constant 0 : i32
    return %c0_i32, %c0_i32_0 : i32, i32
  }
  func.func @transform_2(%arg0: i32) -> (i32, i32) {
    %c0_i32 = arith.constant 0 : i32
    %c0_i32_0 = arith.constant 0 : i32
    %c0_i32_1 = arith.constant 0 : i32
    return %c0_i32, %c0_i32_0 : i32, i32
  }
  func.func @transform_3(%arg0: i32) -> (i32, i32) {
    %c0_i32 = arith.constant 0 : i32
    %c0_i32_0 = arith.constant 0 : i32
    %c0_i32_1 = arith.constant 0 : i32
    return %c0_i32, %c0_i32_0 : i32, i32
  }
  func.func @transform_4(%arg0: i32) -> (i32, i32) {
    %c0_i32 = arith.constant 0 : i32
    %c0_i32_0 = arith.constant 0 : i32
    %c0_i32_1 = arith.constant 0 : i32
    return %c0_i32, %c0_i32_0 : i32, i32
  }
  func.func @transform_5(%arg0: i32) -> (i32, i32) {
    %c0_i32 = arith.constant 0 : i32
    %c0_i32_0 = arith.constant 0 : i32
    %c0_i32_1 = arith.constant 0 : i32
    return %c0_i32, %c0_i32_0 : i32, i32
  }
  func.func @transform_6(%arg0: i32) -> (i32, i32) {
    %c0_i32 = arith.constant 0 : i32
    %c0_i32_0 = arith.constant 0 : i32
    %c0_i32_1 = arith.constant 0 : i32
    return %c0_i32, %c0_i32_0 : i32, i32
  }
}

module attributes {stable_mosaic.version = 11 : i64} {
  func.func @_matmul_bias_tanh_kernel(%arg0: i32, %arg1: memref<512x144xbf16, #tpu.memory_space<vmem>>, %arg2: memref<144x128xbf16, #tpu.memory_space<vmem>>, %arg3: memref<1x128xf32, #tpu.memory_space<vmem>>, %arg4: memref<512x128xbf16, #tpu.memory_space<vmem>>) attributes {dimension_semantics = [#tpu.dimension_semantics<parallel>], iteration_bounds = array<i64: 4>, scalar_prefetch = 0 : i64, scratch_operands = 0 : i64, tpu.core_type = #tpu.core_type<tc>, window_params = [{transform_indices = @transform_0, window_bounds = array<i64: 512, 144>}, {pipeline_mode = #tpu.pipeline_mode<synchronous>, transform_indices = @transform_1, window_bounds = array<i64: 144, 128>}, {pipeline_mode = #tpu.pipeline_mode<synchronous>, transform_indices = @transform_2, window_bounds = array<i64: 1, 128>}, {transform_indices = @transform_3, window_bounds = array<i64: 512, 128>}]} {
    %c0 = arith.constant 0 : index
    %c0_0 = arith.constant 0 : index
    %0 = vector.load %arg1[%c0, %c0_0] : memref<512x144xbf16, #tpu.memory_space<vmem>>, vector<512x144xbf16>
    %c0_1 = arith.constant 0 : index
    %c0_2 = arith.constant 0 : index
    %1 = vector.load %arg2[%c0_1, %c0_2] : memref<144x128xbf16, #tpu.memory_space<vmem>>, vector<144x128xbf16>
    %cst = arith.constant dense<0.000000e+00> : vector<512x128xf32>
    %2 = tpu.matmul %0, %1, %cst {dimension_numbers = #tpu.dot_dimension_numbers<[1], [0], [0], [1], [0, 0, 1, 1], [], []>} : vector<512x144xbf16>, vector<144x128xbf16>, vector<512x128xf32> -> vector<512x128xf32>
    %c0_3 = arith.constant 0 : index
    %c0_4 = arith.constant 0 : index
    %3 = vector.load %arg3[%c0_3, %c0_4] : memref<1x128xf32, #tpu.memory_space<vmem>>, vector<1x128xf32>
    %4 = vector.broadcast %3 : vector<1x128xf32> to vector<512x128xf32>
    %5 = arith.addf %2, %4 : vector<512x128xf32>
    %6 = math.tanh %5 : vector<512x128xf32>
    %7 = arith.truncf %6 : vector<512x128xf32> to vector<512x128xbf16>
    %c0_5 = arith.constant 0 : index
    %c0_6 = arith.constant 0 : index
    %8 = vector.load %arg4[%c0_5, %c0_6] : memref<512x128xbf16, #tpu.memory_space<vmem>>, vector<512x128xbf16>
    tpu.vector_store %arg4[%c0_5, %c0_6], %7 {strides = array<i32>} : memref<512x128xbf16, #tpu.memory_space<vmem>>, vector<512x128xbf16>,
    return
  }
  func.func @transform_0(%arg0: i32) -> (i32, i32) {
    %c0_i32 = arith.constant 0 : i32
    %c0_i32_0 = arith.constant 0 : i32
    return %arg0, %c0_i32 : i32, i32
  }
  func.func @transform_1(%arg0: i32) -> (i32, i32) {
    %c0_i32 = arith.constant 0 : i32
    %c0_i32_0 = arith.constant 0 : i32
    %c0_i32_1 = arith.constant 0 : i32
    return %c0_i32, %c0_i32_0 : i32, i32
  }
  func.func @transform_2(%arg0: i32) -> (i32, i32) {
    %c0_i32 = arith.constant 0 : i32
    %c0_i32_0 = arith.constant 0 : i32
    %c0_i32_1 = arith.constant 0 : i32
    return %c0_i32, %c0_i32_0 : i32, i32
  }
  func.func @transform_3(%arg0: i32) -> (i32, i32) {
    %c0_i32 = arith.constant 0 : i32
    %c0_i32_0 = arith.constant 0 : i32
    return %arg0, %c0_i32 : i32, i32
  }
}

</mosaic_0001>

<llo_original>
// kernel: _lambda_.6
$region0: #{_lambda_.6}
  #allocation0 [shape = 'u32[]', space=smem, size = 0x4, offset = 0x4, fixed_abs, tag = 'smem constant byte address 0x4 - core index']
  #allocation1 [shape = 'u32[144,128]{1,0:T(1,128)}', space=vmem, size = 0x12000, scoped, tag = 'internal scratch']
  %s0 = inlined_call_operand.vmem [shape: bf16[32,1152], index: 0, kind: input, shape index: {}]
  %s1 = inlined_call_operand.vmem [shape: bf16[1152,256], index: 1, kind: input, shape index: {}]
  %s2 = inlined_call_operand.vmem [shape: f32[256,128], index: 2, kind: input, shape index: {}]
  %s3 = inlined_call_operand.vmem [shape: f32[128,256], index: 3, kind: input, shape index: {}]
  %s4 = inlined_call_operand.vmem [shape: f32[1,128], index: 4, kind: input, shape index: {}]
  %s5 = inlined_call_operand.vmem [shape: f32[1,128], index: 5, kind: input, shape index: {}]
  %s6 = inlined_call_operand.vmem [shape: bf16[32,256], index: 6, kind: output, shape index: {}]
  %s7 = sld [smem:[#allocation0]]
  $region34: #{_lambda_.6} parent=0
    _
  %s9 = ssub.s32 1, %s7
  %s10 = scalar_select 0, %s9, %s7
  // Predicated region
  $region2: #{_lambda_.6} parent=0 // pred_check
    _
  $region3: #{_lambda_.6} parent=0 // pred_check_branch
    %12 = sbr.rel (0) target = $region5
  $region4: #{_lambda_.6} parent=0 // pred_region
    _
  $region5: #{_lambda_.6} parent=0 // pred_fallthru
    _
  // Predicated region
  $region6: #{_lambda_.6} parent=0 // pred_check
    _
  $region7: #{_lambda_.6} parent=0 // pred_check_branch
    %14 = sbr.rel (0) target = $region9
  $region8: #{_lambda_.6} parent=0 // pred_region
    _
  $region9: #{_lambda_.6} parent=0 // pred_fallthru
    _
  // Predicated region
  $region10: #{_lambda_.6} parent=0 // pred_check
    _
  $region11: #{_lambda_.6} parent=0 // pred_check_branch
    %16 = sbr.rel (0) target = $region13
  $region12: #{_lambda_.6} parent=0 // pred_region
    _
  $region13: #{_lambda_.6} parent=0 // pred_fallthru
    _
  // Predicated region
  $region14: #{_lambda_.6} parent=0 // pred_check
    _
  $region15: #{_lambda_.6} parent=0 // pred_check_branch
    %18 = sbr.rel (0) target = $region17
  $region16: #{_lambda_.6} parent=0 // pred_region
    _
  $region17: #{_lambda_.6} parent=0 // pred_fallthru
    _
  // Predicated region
  $region18: #{_lambda_.6} parent=0 // pred_check
    _
  $region19: #{_lambda_.6} parent=0 // pred_check_branch
    %20 = sbr.rel (0) target = $region21
  $region20: #{_lambda_.6} parent=0 // pred_region
    _
  $region21: #{_lambda_.6} parent=0 // pred_fallthru
    _
  // Predicated region
  $region22: #{_lambda_.6} parent=0 // pred_check
    _
  $region23: #{_lambda_.6} parent=0 // pred_check_branch
    %22 = sbr.rel (0) target = $region25
  $region24: #{_lambda_.6} parent=0 // pred_region
    _
  $region25: #{_lambda_.6} parent=0 // pred_fallthru
    _
  %v24 = vld [vmem:[%s0] sm:$0xff]
  %v25 = vld [vmem:[%s0 + $0x8] sm:$0xff]
  %v26 = vld [vmem:[%s0 + $0x10] sm:$0xff]
  %v27 = vld [vmem:[%s0 + $0x18] sm:$0xff]
  %v28 = vld [vmem:[%s0 + $0x20] sm:$0xf]
  %v29 = vld [vmem:[%s0 + $0x24] sm:$0xff]
  %v30 = vld [vmem:[%s0 + $0x2c] sm:$0xff]
  %v31 = vld [vmem:[%s0 + $0x34] sm:$0xff]
  %v32 = vld [vmem:[%s0 + $0x3c] sm:$0xff]
  %v33 = vld [vmem:[%s0 + $0x44] sm:$0xf]
  %v34 = vld [vmem:[%s0 + $0x48] sm:$0xff]
  %v35 = vld [vmem:[%s0 + $0x50] sm:$0xff]
  %v36 = vld [vmem:[%s0 + $0x58] sm:$0xff]
  %v37 = vld [vmem:[%s0 + $0x60] sm:$0xff]
  %v38 = vld [vmem:[%s0 + $0x68] sm:$0xf]
  %v39 = vld [vmem:[%s0 + $0x6c] sm:$0xff]
  %v40 = vld [vmem:[%s0 + $0x74] sm:$0xff]
  %v41 = vld [vmem:[%s0 + $0x7c] sm:$0xff]
  %v42 = vld [vmem:[%s0 + $0x84] sm:$0xff]
  %v43 = vld [vmem:[%s0 + $0x8c] sm:$0xf]
  %v44 = vld [vmem:[%s1] sm:$0xff]
  %v45 = vld [vmem:[%s1 + $0x8] sm:$0xff]
  %v46 = vld [vmem:[%s1 + $0x10] sm:$0xff]
  %v47 = vld [vmem:[%s1 + $0x18] sm:$0xff]
  %v48 = vld [vmem:[%s1 + $0x20] sm:$0xff]
  %v49 = vld [vmem:[%s1 + $0x28] sm:$0xff]
  %v50 = vld [vmem:[%s1 + $0x30] sm:$0xff]
  %v51 = vld [vmem:[%s1 + $0x38] sm:$0xff]
  %v52 = vld [vmem:[%s1 + $0x40] sm:$0xff]
  %v53 = vld [vmem:[%s1 + $0x48] sm:$0xff]
  %v54 = vld [vmem:[%s1 + $0x50] sm:$0xff]
  %v55 = vld [vmem:[%s1 + $0x58] sm:$0xff]
  %v56 = vld [vmem:[%s1 + $0x60] sm:$0xff]
  %v57 = vld [vmem:[%s1 + $0x68] sm:$0xff]
  %v58 = vld [vmem:[%s1 + $0x70] sm:$0xff]
  %v59 = vld [vmem:[%s1 + $0x78] sm:$0xff]
  %v60 = vld [vmem:[%s1 + $0x80] sm:$0xff]
  %v61 = vld [vmem:[%s1 + $0x88] sm:$0xff]
  %v62 = vld [vmem:[%s1 + $0x90] sm:$0xff]
  %v63 = vld [vmem:[%s1 + $0x98] sm:$0xff]
  %v64 = vld [vmem:[%s1 + $0xa0] sm:$0xff]
  %v65 = vld [vmem:[%s1 + $0xa8] sm:$0xff]
  %v66 = vld [vmem:[%s1 + $0xb0] sm:$0xff]
  %v67 = vld [vmem:[%s1 + $0xb8] sm:$0xff]
  %v68 = vld [vmem:[%s1 + $0xc0] sm:$0xff]
  %v69 = vld [vmem:[%s1 + $0xc8] sm:$0xff]
  %v70 = vld [vmem:[%s1 + $0xd0] sm:$0xff]
  %v71 = vld [vmem:[%s1 + $0xd8] sm:$0xff]
  %v72 = vld [vmem:[%s1 + $0xe0] sm:$0xff]
  %v73 = vld [vmem:[%s1 + $0xe8] sm:$0xff]
  %v74 = vld [vmem:[%s1 + $0xf0] sm:$0xff]
  %v75 = vld [vmem:[%s1 + $0xf8] sm:$0xff]
  %v76 = vld [vmem:[%s1 + $0x100] sm:$0xff]
  %v77 = vld [vmem:[%s1 + $0x108] sm:$0xff]
  %v78 = vld [vmem:[%s1 + $0x110] sm:$0xff]
  %v79 = vld [vmem:[%s1 + $0x118] sm:$0xff]
  %v80 = vld [vmem:[%s1 + $0x120] sm:$0xff]
  %v81 = vld [vmem:[%s1 + $0x128] sm:$0xff]
  %v82 = vld [vmem:[%s1 + $0x130] sm:$0xff]
  %v83 = vld [vmem:[%s1 + $0x138] sm:$0xff]
  %v84 = vld [vmem:[%s1 + $0x140] sm:$0xff]
  %v85 = vld [vmem:[%s1 + $0x148] sm:$0xff]
  %v86 = vld [vmem:[%s1 + $0x150] sm:$0xff]
  %v87 = vld [vmem:[%s1 + $0x158] sm:$0xff]
  %v88 = vld [vmem:[%s1 + $0x160] sm:$0xff]
  %v89 = vld [vmem:[%s1 + $0x168] sm:$0xff]
  %v90 = vld [vmem:[%s1 + $0x170] sm:$0xff]
  %v91 = vld [vmem:[%s1 + $0x178] sm:$0xff]
  %v92 = vld [vmem:[%s1 + $0x180] sm:$0xff]
  %v93 = vld [vmem:[%s1 + $0x188] sm:$0xff]
  %v94 = vld [vmem:[%s1 + $0x190] sm:$0xff]
  %v95 = vld [vmem:[%s1 + $0x198] sm:$0xff]
  %v96 = vld [vmem:[%s1 + $0x1a0] sm:$0xff]
  %v97 = vld [vmem:[%s1 + $0x1a8] sm:$0xff]
  %v98 = vld [vmem:[%s1 + $0x1b0] sm:$0xff]
  %v99 = vld [vmem:[%s1 + $0x1b8] sm:$0xff]
  %v100 = vld [vmem:[%s1 + $0x1c0] sm:$0xff]
  %v101 = vld [vmem:[%s1 + $0x1c8] sm:$0xff]
  %v102 = vld [vmem:[%s1 + $0x1d0] sm:$0xff]
  %v103 = vld [vmem:[%s1 + $0x1d8] sm:$0xff]
  %v104 = vld [vmem:[%s1 + $0x1e0] sm:$0xff]
  %v105 = vld [vmem:[%s1 + $0x1e8] sm:$0xff]
  %v106 = vld [vmem:[%s1 + $0x1f0] sm:$0xff]
  %v107 = vld [vmem:[%s1 + $0x1f8] sm:$0xff]
  %v108 = vld [vmem:[%s1 + $0x200] sm:$0xff]
  %v109 = vld [vmem:[%s1 + $0x208] sm:$0xff]
  %v110 = vld [vmem:[%s1 + $0x210] sm:$0xff]
  %v111 = vld [vmem:[%s1 + $0x218] sm:$0xff]
  %v112 = vld [vmem:[%s1 + $0x220] sm:$0xff]
  %v113 = vld [vmem:[%s1 + $0x228] sm:$0xff]
  %v114 = vld [vmem:[%s1 + $0x230] sm:$0xff]
  %v115 = vld [vmem:[%s1 + $0x238] sm:$0xff]
  %v116 = vld [vmem:[%s1 + $0x240] sm:$0xff]
  %v117 = vld [vmem:[%s1 + $0x248] sm:$0xff]
  %v118 = vld [vmem:[%s1 + $0x250] sm:$0xff]
  %v119 = vld [vmem:[%s1 + $0x258] sm:$0xff]
  %v120 = vld [vmem:[%s1 + $0x260] sm:$0xff]
  %v121 = vld [vmem:[%s1 + $0x268] sm:$0xff]
  %v122 = vld [vmem:[%s1 + $0x270] sm:$0xff]
  %v123 = vld [vmem:[%s1 + $0x278] sm:$0xff]
  %v124 = vld [vmem:[%s1 + $0x280] sm:$0xff]
  %v125 = vld [vmem:[%s1 + $0x288] sm:$0xff]
  %v126 = vld [vmem:[%s1 + $0x290] sm:$0xff]
  %v127 = vld [vmem:[%s1 + $0x298] sm:$0xff]
  %v128 = vld [vmem:[%s1 + $0x2a0] sm:$0xff]
  %v129 = vld [vmem:[%s1 + $0x2a8] sm:$0xff]
  %v130 = vld [vmem:[%s1 + $0x2b0] sm:$0xff]
  %v131 = vld [vmem:[%s1 + $0x2b8] sm:$0xff]
  %v132 = vld [vmem:[%s1 + $0x2c0] sm:$0xff]
  %v133 = vld [vmem:[%s1 + $0x2c8] sm:$0xff]
  %v134 = vld [vmem:[%s1 + $0x2d0] sm:$0xff]
  %v135 = vld [vmem:[%s1 + $0x2d8] sm:$0xff]
  %v136 = vld [vmem:[%s1 + $0x2e0] sm:$0xff]
  %v137 = vld [vmem:[%s1 + $0x2e8] sm:$0xff]
  %v138 = vld [vmem:[%s1 + $0x2f0] sm:$0xff]
  %v139 = vld [vmem:[%s1 + $0x2f8] sm:$0xff]
  %v140 = vld [vmem:[%s1 + $0x300] sm:$0xff]
  %v141 = vld [vmem:[%s1 + $0x308] sm:$0xff]
  %v142 = vld [vmem:[%s1 + $0x310] sm:$0xff]
  %v143 = vld [vmem:[%s1 + $0x318] sm:$0xff]
  %v144 = vld [vmem:[%s1 + $0x320] sm:$0xff]
  %v145 = vld [vmem:[%s1 + $0x328] sm:$0xff]
  %v146 = vld [vmem:[%s1 + $0x330] sm:$0xff]
  %v147 = vld [vmem:[%s1 + $0x338] sm:$0xff]
  %v148 = vld [vmem:[%s1 + $0x340] sm:$0xff]
  %v149 = vld [vmem:[%s1 + $0x348] sm:$0xff]
  %v150 = vld [vmem:[%s1 + $0x350] sm:$0xff]
  %v151 = vld [vmem:[%s1 + $0x358] sm:$0xff]
  %v152 = vld [vmem:[%s1 + $0x360] sm:$0xff]
  %v153 = vld [vmem:[%s1 + $0x368] sm:$0xff]
  %v154 = vld [vmem:[%s1 + $0x370] sm:$0xff]
  %v155 = vld [vmem:[%s1 + $0x378] sm:$0xff]
  %v156 = vld [vmem:[%s1 + $0x380] sm:$0xff]
  %v157 = vld [vmem:[%s1 + $0x388] sm:$0xff]
  %v158 = vld [vmem:[%s1 + $0x390] sm:$0xff]
  %v159 = vld [vmem:[%s1 + $0x398] sm:$0xff]
  %v160 = vld [vmem:[%s1 + $0x3a0] sm:$0xff]
  %v161 = vld [vmem:[%s1 + $0x3a8] sm:$0xff]
  %v162 = vld [vmem:[%s1 + $0x3b0] sm:$0xff]
  %v163 = vld [vmem:[%s1 + $0x3b8] sm:$0xff]
  %v164 = vld [vmem:[%s1 + $0x3c0] sm:$0xff]
  %v165 = vld [vmem:[%s1 + $0x3c8] sm:$0xff]
  %v166 = vld [vmem:[%s1 + $0x3d0] sm:$0xff]
  %v167 = vld [vmem:[%s1 + $0x3d8] sm:$0xff]
  %v168 = vld [vmem:[%s1 + $0x3e0] sm:$0xff]
  %v169 = vld [vmem:[%s1 + $0x3e8] sm:$0xff]
  %v170 = vld [vmem:[%s1 + $0x3f0] sm:$0xff]
  %v171 = vld [vmem:[%s1 + $0x3f8] sm:$0xff]
  %v172 = vld [vmem:[%s1 + $0x400] sm:$0xff]
  %v173 = vld [vmem:[%s1 + $0x408] sm:$0xff]
  %v174 = vld [vmem:[%s1 + $0x410] sm:$0xff]
  %v175 = vld [vmem:[%s1 + $0x418] sm:$0xff]
  %v176 = vld [vmem:[%s1 + $0x420] sm:$0xff]
  %v177 = vld [vmem:[%s1 + $0x428] sm:$0xff]
  %v178 = vld [vmem:[%s1 + $0x430] sm:$0xff]
  %v179 = vld [vmem:[%s1 + $0x438] sm:$0xff]
  %v180 = vld [vmem:[%s1 + $0x440] sm:$0xff]
  %v181 = vld [vmem:[%s1 + $0x448] sm:$0xff]
  %v182 = vld [vmem:[%s1 + $0x450] sm:$0xff]
  %v183 = vld [vmem:[%s1 + $0x458] sm:$0xff]
  %v184 = vld [vmem:[%s1 + $0x460] sm:$0xff]
  %v185 = vld [vmem:[%s1 + $0x468] sm:$0xff]
  %v186 = vld [vmem:[%s1 + $0x470] sm:$0xff]
  %v187 = vld [vmem:[%s1 + $0x478] sm:$0xff]
  %v208 = vunpack.c.l.b16 %v24
  %v209 = vunpack.c.h.b16 %v24
  %v210 = vunpack.c.l.b16 %v25
  %v211 = vunpack.c.h.b16 %v25
  %v212 = vunpack.c.l.b16 %v26
  %v213 = vunpack.c.h.b16 %v26
  %v214 = vunpack.c.l.b16 %v27
  %v215 = vunpack.c.h.b16 %v27
  %v216 = vunpack.c.l.b16 %v28
  %v217 = vunpack.c.l.b16 %v29
  %v218 = vunpack.c.h.b16 %v29
  %v219 = vunpack.c.l.b16 %v30
  %v220 = vunpack.c.h.b16 %v30
  %v221 = vunpack.c.l.b16 %v31
  %v222 = vunpack.c.h.b16 %v31
  %v223 = vunpack.c.l.b16 %v32
  %v224 = vunpack.c.h.b16 %v32
  %v225 = vunpack.c.l.b16 %v33
  %v226 = vunpack.c.l.b16 %v34
  %v227 = vunpack.c.h.b16 %v34
  %v228 = vunpack.c.l.b16 %v35
  %v229 = vunpack.c.h.b16 %v35
  %v230 = vunpack.c.l.b16 %v36
  %v231 = vunpack.c.h.b16 %v36
  %v232 = vunpack.c.l.b16 %v37
  %v233 = vunpack.c.h.b16 %v37
  %v234 = vunpack.c.l.b16 %v38
  %v235 = vunpack.c.l.b16 %v39
  %v236 = vunpack.c.h.b16 %v39
  %v237 = vunpack.c.l.b16 %v40
  %v238 = vunpack.c.h.b16 %v40
  %v239 = vunpack.c.l.b16 %v41
  %v240 = vunpack.c.h.b16 %v41
  %v241 = vunpack.c.l.b16 %v42
  %v242 = vunpack.c.h.b16 %v42
  %v243 = vunpack.c.l.b16 %v43
  %v244 = vpack.c.b16 %v217, %v208
  %v245 = vpack.c.b16 %v218, %v209
  %v246 = vpack.c.b16 %v219, %v210
  %v247 = vpack.c.b16 %v220, %v211
  %v248 = vpack.c.b16 %v221, %v212
  %v249 = vpack.c.b16 %v222, %v213
  %v250 = vpack.c.b16 %v223, %v214
  %v251 = vpack.c.b16 %v224, %v215
  %v252 = vpack.c.b16 %v225, %v216
  %v253 = vpack.c.b16 %v235, %v226
  %v254 = vpack.c.b16 %v236, %v227
  %v255 = vpack.c.b16 %v237, %v228
  %v256 = vpack.c.b16 %v238, %v229
  %v257 = vpack.c.b16 %v239, %v230
  %v258 = vpack.c.b16 %v240, %v231
  %v259 = vpack.c.b16 %v241, %v232
  %v260 = vpack.c.b16 %v242, %v233
  %v261 = vpack.c.b16 %v243, %v234
  %v424 = vunpack.c.l.b16 %v44
  %v425 = vunpack.c.h.b16 %v44
  %v426 = vunpack.c.l.b16 %v45
  %v427 = vunpack.c.h.b16 %v45
  %v428 = vunpack.c.l.b16 %v46
  %v429 = vunpack.c.h.b16 %v46
  %v430 = vunpack.c.l.b16 %v47
  %v431 = vunpack.c.h.b16 %v47
  %v432 = vunpack.c.l.b16 %v48
  %v433 = vunpack.c.h.b16 %v48
  %v434 = vunpack.c.l.b16 %v49
  %v435 = vunpack.c.h.b16 %v49
  %v436 = vunpack.c.l.b16 %v50
  %v437 = vunpack.c.h.b16 %v50
  %v438 = vunpack.c.l.b16 %v51
  %v439 = vunpack.c.h.b16 %v51
  %v440 = vunpack.c.l.b16 %v52
  %v441 = vunpack.c.h.b16 %v52
  %v442 = vunpack.c.l.b16 %v53
  %v443 = vunpack.c.h.b16 %v53
  %v444 = vunpack.c.l.b16 %v54
  %v445 = vunpack.c.h.b16 %v54
  %v446 = vunpack.c.l.b16 %v55
  %v447 = vunpack.c.h.b16 %v55
  %v448 = vunpack.c.l.b16 %v56
  %v449 = vunpack.c.h.b16 %v56
  %v450 = vunpack.c.l.b16 %v57
  %v451 = vunpack.c.h.b16 %v57
  %v452 = vunpack.c.l.b16 %v58
  %v453 = vunpack.c.h.b16 %v58
  %v454 = vunpack.c.l.b16 %v59
  %v455 = vunpack.c.h.b16 %v59
  %v456 = vunpack.c.l.b16 %v60
  %v457 = vunpack.c.h.b16 %v60
  %v458 = vunpack.c.l.b16 %v61
  %v459 = vunpack.c.h.b16 %v61
  %v460 = vunpack.c.l.b16 %v62
  %v461 = vunpack.c.h.b16 %v62
  %v462 = vunpack.c.l.b16 %v63
  %v463 = vunpack.c.h.b16 %v63
  %v464 = vunpack.c.l.b16 %v64
  %v465 = vunpack.c.h.b16 %v64
  %v466 = vunpack.c.l.b16 %v65
  %v467 = vunpack.c.h.b16 %v65
  %v468 = vunpack.c.l.b16 %v66
  %v469 = vunpack.c.h.b16 %v66
  %v470 = vunpack.c.l.b16 %v67
  %v471 = vunpack.c.h.b16 %v67
  %v472 = vunpack.c.l.b16 %v68
  %v473 = vunpack.c.h.b16 %v68
  %v474 = vunpack.c.l.b16 %v69
  %v475 = vunpack.c.h.b16 %v69
  %v476 = vunpack.c.l.b16 %v70
  %v477 = vunpack.c.h.b16 %v70
  %v478 = vunpack.c.l.b16 %v71
  %v479 = vunpack.c.h.b16 %v71
  %v480 = vunpack.c.l.b16 %v72
  %v481 = vunpack.c.h.b16 %v72
  %v482 = vunpack.c.l.b16 %v73
  %v483 = vunpack.c.h.b16 %v73
  %v484 = vunpack.c.l.b16 %v74
  %v485 = vunpack.c.h.b16 %v74
  %v486 = vunpack.c.l.b16 %v75
  %v487 = vunpack.c.h.b16 %v75
  %v488 = vunpack.c.l.b16 %v76
  %v489 = vunpack.c.h.b16 %v76
  %v490 = vunpack.c.l.b16 %v77
  %v491 = vunpack.c.h.b16 %v77
  %v492 = vunpack.c.l.b16 %v78
  %v493 = vunpack.c.h.b16 %v78
  %v494 = vunpack.c.l.b16 %v79
  %v495 = vunpack.c.h.b16 %v79
  %v496 = vunpack.c.l.b16 %v80
  %v497 = vunpack.c.h.b16 %v80
  %v498 = vunpack.c.l.b16 %v81
  %v499 = vunpack.c.h.b16 %v81
  %v500 = vunpack.c.l.b16 %v82
  %v501 = vunpack.c.h.b16 %v82
  %v502 = vunpack.c.l.b16 %v83
  %v503 = vunpack.c.h.b16 %v83
  %v504 = vunpack.c.l.b16 %v84
  %v505 = vunpack.c.h.b16 %v84
  %v506 = vunpack.c.l.b16 %v85
  %v507 = vunpack.c.h.b16 %v85
  %v508 = vunpack.c.l.b16 %v86
  %v509 = vunpack.c.h.b16 %v86
  %v510 = vunpack.c.l.b16 %v87
  %v511 = vunpack.c.h.b16 %v87
  %v512 = vunpack.c.l.b16 %v88
  %v513 = vunpack.c.h.b16 %v88
  %v514 = vunpack.c.l.b16 %v89
  %v515 = vunpack.c.h.b16 %v89
  %v516 = vunpack.c.l.b16 %v90
  %v517 = vunpack.c.h.b16 %v90
  %v518 = vunpack.c.l.b16 %v91
  %v519 = vunpack.c.h.b16 %v91
  %v520 = vunpack.c.l.b16 %v92
  %v521 = vunpack.c.h.b16 %v92
  %v522 = vunpack.c.l.b16 %v93
  %v523 = vunpack.c.h.b16 %v93
  %v524 = vunpack.c.l.b16 %v94
  %v525 = vunpack.c.h.b16 %v94
  %v526 = vunpack.c.l.b16 %v95
  %v527 = vunpack.c.h.b16 %v95
  %v528 = vunpack.c.l.b16 %v96
  %v529 = vunpack.c.h.b16 %v96
  %v530 = vunpack.c.l.b16 %v97
  %v531 = vunpack.c.h.b16 %v97
  %v532 = vunpack.c.l.b16 %v98
  %v533 = vunpack.c.h.b16 %v98
  %v534 = vunpack.c.l.b16 %v99
  %v535 = vunpack.c.h.b16 %v99
  %v536 = vunpack.c.l.b16 %v100
  %v537 = vunpack.c.h.b16 %v100
  %v538 = vunpack.c.l.b16 %v101
  %v539 = vunpack.c.h.b16 %v101
  %v540 = vunpack.c.l.b16 %v102
  %v541 = vunpack.c.h.b16 %v102
  %v542 = vunpack.c.l.b16 %v103
  %v543 = vunpack.c.h.b16 %v103
  %v544 = vunpack.c.l.b16 %v104
  %v545 = vunpack.c.h.b16 %v104
  %v546 = vunpack.c.l.b16 %v105
  %v547 = vunpack.c.h.b16 %v105
  %v548 = vunpack.c.l.b16 %v106
  %v549 = vunpack.c.h.b16 %v106
  %v550 = vunpack.c.l.b16 %v107
  %v551 = vunpack.c.h.b16 %v107
  %v552 = vunpack.c.l.b16 %v108
  %v553 = vunpack.c.h.b16 %v108
  %v554 = vunpack.c.l.b16 %v109
  %v555 = vunpack.c.h.b16 %v109
  %v556 = vunpack.c.l.b16 %v110
  %v557 = vunpack.c.h.b16 %v110
  %v558 = vunpack.c.l.b16 %v111
  %v559 = vunpack.c.h.b16 %v111
  %v560 = vunpack.c.l.b16 %v112
  %v561 = vunpack.c.h.b16 %v112
  %v562 = vunpack.c.l.b16 %v113
  %v563 = vunpack.c.h.b16 %v113
  %v564 = vunpack.c.l.b16 %v114
  %v565 = vunpack.c.h.b16 %v114
  %v566 = vunpack.c.l.b16 %v115
  %v567 = vunpack.c.h.b16 %v115
  %v568 = vunpack.c.l.b16 %v116
  %v569 = vunpack.c.h.b16 %v116
  %v570 = vunpack.c.l.b16 %v117
  %v571 = vunpack.c.h.b16 %v117
  %v572 = vunpack.c.l.b16 %v118
  %v573 = vunpack.c.h.b16 %v118
  %v574 = vunpack.c.l.b16 %v119
  %v575 = vunpack.c.h.b16 %v119
  %v576 = vunpack.c.l.b16 %v120
  %v577 = vunpack.c.h.b16 %v120
  %v578 = vunpack.c.l.b16 %v121
  %v579 = vunpack.c.h.b16 %v121
  %v580 = vunpack.c.l.b16 %v122
  %v581 = vunpack.c.h.b16 %v122
  %v582 = vunpack.c.l.b16 %v123
  %v583 = vunpack.c.h.b16 %v123
  %v584 = vunpack.c.l.b16 %v124
  %v585 = vunpack.c.h.b16 %v124
  %v586 = vunpack.c.l.b16 %v125
  %v587 = vunpack.c.h.b16 %v125
  %v588 = vunpack.c.l.b16 %v126
  %v589 = vunpack.c.h.b16 %v126
  %v590 = vunpack.c.l.b16 %v127
  %v591 = vunpack.c.h.b16 %v127
  %v592 = vunpack.c.l.b16 %v128
  %v593 = vunpack.c.h.b16 %v128
  %v594 = vunpack.c.l.b16 %v129
  %v595 = vunpack.c.h.b16 %v129
  %v596 = vunpack.c.l.b16 %v130
  %v597 = vunpack.c.h.b16 %v130
  %v598 = vunpack.c.l.b16 %v131
  %v599 = vunpack.c.h.b16 %v131
  %v600 = vunpack.c.l.b16 %v132
  %v601 = vunpack.c.h.b16 %v132
  %v602 = vunpack.c.l.b16 %v133
  %v603 = vunpack.c.h.b16 %v133
  %v604 = vunpack.c.l.b16 %v134
  %v605 = vunpack.c.h.b16 %v134
  %v606 = vunpack.c.l.b16 %v135
  %v607 = vunpack.c.h.b16 %v135
  %v608 = vunpack.c.l.b16 %v136
  %v609 = vunpack.c.h.b16 %v136
  %v610 = vunpack.c.l.b16 %v137
  %v611 = vunpack.c.h.b16 %v137
  %v612 = vunpack.c.l.b16 %v138
  %v613 = vunpack.c.h.b16 %v138
  %v614 = vunpack.c.l.b16 %v139
  %v615 = vunpack.c.h.b16 %v139
  %v616 = vunpack.c.l.b16 %v140
  %v617 = vunpack.c.h.b16 %v140
  %v618 = vunpack.c.l.b16 %v141
  %v619 = vunpack.c.h.b16 %v141
  %v620 = vunpack.c.l.b16 %v142
  %v621 = vunpack.c.h.b16 %v142
  %v622 = vunpack.c.l.b16 %v143
  %v623 = vunpack.c.h.b16 %v143
  %v624 = vunpack.c.l.b16 %v144
  %v625 = vunpack.c.h.b16 %v144
  %v626 = vunpack.c.l.b16 %v145
  %v627 = vunpack.c.h.b16 %v145
  %v628 = vunpack.c.l.b16 %v146
  %v629 = vunpack.c.h.b16 %v146
  %v630 = vunpack.c.l.b16 %v147
  %v631 = vunpack.c.h.b16 %v147
  %v632 = vunpack.c.l.b16 %v148
  %v633 = vunpack.c.h.b16 %v148
  %v634 = vunpack.c.l.b16 %v149
  %v635 = vunpack.c.h.b16 %v149
  %v636 = vunpack.c.l.b16 %v150
  %v637 = vunpack.c.h.b16 %v150
  %v638 = vunpack.c.l.b16 %v151
  %v639 = vunpack.c.h.b16 %v151
  %v640 = vunpack.c.l.b16 %v152
  %v641 = vunpack.c.h.b16 %v152
  %v642 = vunpack.c.l.b16 %v153
  %v643 = vunpack.c.h.b16 %v153
  %v644 = vunpack.c.l.b16 %v154
  %v645 = vunpack.c.h.b16 %v154
  %v646 = vunpack.c.l.b16 %v155
  %v647 = vunpack.c.h.b16 %v155
  %v648 = vunpack.c.l.b16 %v156
  %v649 = vunpack.c.h.b16 %v156
  %v650 = vunpack.c.l.b16 %v157
  %v651 = vunpack.c.h.b16 %v157
  %v652 = vunpack.c.l.b16 %v158
  %v653 = vunpack.c.h.b16 %v158
  %v654 = vunpack.c.l.b16 %v159
  %v655 = vunpack.c.h.b16 %v159
  %v656 = vunpack.c.l.b16 %v160
  %v657 = vunpack.c.h.b16 %v160
  %v658 = vunpack.c.l.b16 %v161
  %v659 = vunpack.c.h.b16 %v161
  %v660 = vunpack.c.l.b16 %v162
  %v661 = vunpack.c.h.b16 %v162
  %v662 = vunpack.c.l.b16 %v163
  %v663 = vunpack.c.h.b16 %v163
  %v664 = vunpack.c.l.b16 %v164
  %v665 = vunpack.c.h.b16 %v164
  %v666 = vunpack.c.l.b16 %v165
  %v667 = vunpack.c.h.b16 %v165
  %v668 = vunpack.c.l.b16 %v166
  %v669 = vunpack.c.h.b16 %v166
  %v670 = vunpack.c.l.b16 %v167
  %v671 = vunpack.c.h.b16 %v167
  %v672 = vunpack.c.l.b16 %v168
  %v673 = vunpack.c.h.b16 %v168
  %v674 = vunpack.c.l.b16 %v169
  %v675 = vunpack.c.h.b16 %v169
  %v676 = vunpack.c.l.b16 %v170
  %v677 = vunpack.c.h.b16 %v170
  %v678 = vunpack.c.l.b16 %v171
  %v679 = vunpack.c.h.b16 %v171
  %v680 = vunpack.c.l.b16 %v172
  %v681 = vunpack.c.h.b16 %v172
  %v682 = vunpack.c.l.b16 %v173
  %v683 = vunpack.c.h.b16 %v173
  %v684 = vunpack.c.l.b16 %v174
  %v685 = vunpack.c.h.b16 %v174
  %v686 = vunpack.c.l.b16 %v175
  %v687 = vunpack.c.h.b16 %v175
  %v688 = vunpack.c.l.b16 %v176
  %v689 = vunpack.c.h.b16 %v176
  %v690 = vunpack.c.l.b16 %v177
  %v691 = vunpack.c.h.b16 %v177
  %v692 = vunpack.c.l.b16 %v178
  %v693 = vunpack.c.h.b16 %v178
  %v694 = vunpack.c.l.b16 %v179
  %v695 = vunpack.c.h.b16 %v179
  %v696 = vunpack.c.l.b16 %v180
  %v697 = vunpack.c.h.b16 %v180
  %v698 = vunpack.c.l.b16 %v181
  %v699 = vunpack.c.h.b16 %v181
  %v700 = vunpack.c.l.b16 %v182
  %v701 = vunpack.c.h.b16 %v182
  %v702 = vunpack.c.l.b16 %v183
  %v703 = vunpack.c.h.b16 %v183
  %v704 = vunpack.c.l.b16 %v184
  %v705 = vunpack.c.h.b16 %v184
  %v706 = vunpack.c.l.b16 %v185
  %v707 = vunpack.c.h.b16 %v185
  %v708 = vunpack.c.l.b16 %v186
  %v709 = vunpack.c.h.b16 %v186
  %v710 = vunpack.c.l.b16 %v187
  %v711 = vunpack.c.h.b16 %v187
  %v712 = vpack.c.b16 %v426, %v424
  %v713 = vpack.c.b16 %v427, %v425
  %v714 = vpack.c.b16 %v430, %v428
  %v715 = vpack.c.b16 %v431, %v429
  %v716 = vpack.c.b16 %v434, %v432
  %v717 = vpack.c.b16 %v435, %v433
  %v718 = vpack.c.b16 %v438, %v436
  %v719 = vpack.c.b16 %v439, %v437
  %v720 = vpack.c.b16 %v442, %v440
  %v721 = vpack.c.b16 %v443, %v441
  %v722 = vpack.c.b16 %v446, %v444
  %v723 = vpack.c.b16 %v447, %v445
  %v724 = vpack.c.b16 %v450, %v448
  %v725 = vpack.c.b16 %v451, %v449
  %v726 = vpack.c.b16 %v454, %v452
  %v727 = vpack.c.b16 %v455, %v453
  %v728 = vpack.c.b16 %v458, %v456
  %v729 = vpack.c.b16 %v459, %v457
  %v730 = vpack.c.b16 %v462, %v460
  %v731 = vpack.c.b16 %v463, %v461
  %v732 = vpack.c.b16 %v466, %v464
  %v733 = vpack.c.b16 %v467, %v465
  %v734 = vpack.c.b16 %v470, %v468
  %v735 = vpack.c.b16 %v471, %v469
  %v736 = vpack.c.b16 %v474, %v472
  %v737 = vpack.c.b16 %v475, %v473
  %v738 = vpack.c.b16 %v478, %v476
  %v739 = vpack.c.b16 %v479, %v477
  %v740 = vpack.c.b16 %v482, %v480
  %v741 = vpack.c.b16 %v483, %v481
  %v742 = vpack.c.b16 %v486, %v484
  %v743 = vpack.c.b16 %v487, %v485
  %v744 = vpack.c.b16 %v490, %v488
  %v745 = vpack.c.b16 %v491, %v489
  %v746 = vpack.c.b16 %v494, %v492
  %v747 = vpack.c.b16 %v495, %v493
  %v748 = vpack.c.b16 %v498, %v496
  %v749 = vpack.c.b16 %v499, %v497
  %v750 = vpack.c.b16 %v502, %v500
  %v751 = vpack.c.b16 %v503, %v501
  %v752 = vpack.c.b16 %v506, %v504
  %v753 = vpack.c.b16 %v507, %v505
  %v754 = vpack.c.b16 %v510, %v508
  %v755 = vpack.c.b16 %v511, %v509
  %v756 = vpack.c.b16 %v514, %v512
  %v757 = vpack.c.b16 %v515, %v513
  %v758 = vpack.c.b16 %v518, %v516
  %v759 = vpack.c.b16 %v519, %v517
  %v760 = vpack.c.b16 %v522, %v520
  %v761 = vpack.c.b16 %v523, %v521
  %v762 = vpack.c.b16 %v526, %v524
  %v763 = vpack.c.b16 %v527, %v525
  %v764 = vpack.c.b16 %v530, %v528
  %v765 = vpack.c.b16 %v531, %v529
  %v766 = vpack.c.b16 %v534, %v532
  %v767 = vpack.c.b16 %v535, %v533
  %v768 = vpack.c.b16 %v538, %v536
  %v769 = vpack.c.b16 %v539, %v537
  %v770 = vpack.c.b16 %v542, %v540
  %v771 = vpack.c.b16 %v543, %v541
  %v772 = vpack.c.b16 %v546, %v544
  %v773 = vpack.c.b16 %v547, %v545
  %v774 = vpack.c.b16 %v550, %v548
  %v775 = vpack.c.b16 %v551, %v549
  %v776 = vpack.c.b16 %v554, %v552
  %v777 = vpack.c.b16 %v555, %v553
  %v778 = vpack.c.b16 %v558, %v556
  %v779 = vpack.c.b16 %v559, %v557
  %v780 = vpack.c.b16 %v562, %v560
  %v781 = vpack.c.b16 %v563, %v561
  %v782 = vpack.c.b16 %v566, %v564
  %v783 = vpack.c.b16 %v567, %v565
  %v784 = vpack.c.b16 %v570, %v568
  %v785 = vpack.c.b16 %v571, %v569
  %v786 = vpack.c.b16 %v574, %v572
  %v787 = vpack.c.b16 %v575, %v573
  %v788 = vpack.c.b16 %v578, %v576
  %v789 = vpack.c.b16 %v579, %v577
  %v790 = vpack.c.b16 %v582, %v580
  %v791 = vpack.c.b16 %v583, %v581
  %v792 = vpack.c.b16 %v586, %v584
  %v793 = vpack.c.b16 %v587, %v585
  %v794 = vpack.c.b16 %v590, %v588
  %v795 = vpack.c.b16 %v591, %v589
  %v796 = vpack.c.b16 %v594, %v592
  %v797 = vpack.c.b16 %v595, %v593
  %v798 = vpack.c.b16 %v598, %v596
  %v799 = vpack.c.b16 %v599, %v597
  %v800 = vpack.c.b16 %v602, %v600
  %v801 = vpack.c.b16 %v603, %v601
  %v802 = vpack.c.b16 %v606, %v604
  %v803 = vpack.c.b16 %v607, %v605
  %v804 = vpack.c.b16 %v610, %v608
  %v805 = vpack.c.b16 %v611, %v609
  %v806 = vpack.c.b16 %v614, %v612
  %v807 = vpack.c.b16 %v615, %v613
  %v808 = vpack.c.b16 %v618, %v616
  %v809 = vpack.c.b16 %v619, %v617
  %v810 = vpack.c.b16 %v622, %v620
  %v811 = vpack.c.b16 %v623, %v621
  %v812 = vpack.c.b16 %v626, %v624
  %v813 = vpack.c.b16 %v627, %v625
  %v814 = vpack.c.b16 %v630, %v628
  %v815 = vpack.c.b16 %v631, %v629
  %v816 = vpack.c.b16 %v634, %v632
  %v817 = vpack.c.b16 %v635, %v633
  %v818 = vpack.c.b16 %v638, %v636
  %v819 = vpack.c.b16 %v639, %v637
  %v820 = vpack.c.b16 %v642, %v640
  %v821 = vpack.c.b16 %v643, %v641
  %v822 = vpack.c.b16 %v646, %v644
  %v823 = vpack.c.b16 %v647, %v645
  %v824 = vpack.c.b16 %v650, %v648
  %v825 = vpack.c.b16 %v651, %v649
  %v826 = vpack.c.b16 %v654, %v652
  %v827 = vpack.c.b16 %v655, %v653
  %v828 = vpack.c.b16 %v658, %v656
  %v829 = vpack.c.b16 %v659, %v657
  %v830 = vpack.c.b16 %v662, %v660
  %v831 = vpack.c.b16 %v663, %v661
  %v832 = vpack.c.b16 %v666, %v664
  %v833 = vpack.c.b16 %v667, %v665
  %v834 = vpack.c.b16 %v670, %v668
  %v835 = vpack.c.b16 %v671, %v669
  %v836 = vpack.c.b16 %v674, %v672
  %v837 = vpack.c.b16 %v675, %v673
  %v838 = vpack.c.b16 %v678, %v676
  %v839 = vpack.c.b16 %v679, %v677
  %v840 = vpack.c.b16 %v682, %v680
  %v841 = vpack.c.b16 %v683, %v681
  %v842 = vpack.c.b16 %v686, %v684
  %v843 = vpack.c.b16 %v687, %v685
  %v844 = vpack.c.b16 %v690, %v688
  %v845 = vpack.c.b16 %v691, %v689
  %v846 = vpack.c.b16 %v694, %v692
  %v847 = vpack.c.b16 %v695, %v693
  %v848 = vpack.c.b16 %v698, %v696
  %v849 = vpack.c.b16 %v699, %v697
  %v850 = vpack.c.b16 %v702, %v700
  %v851 = vpack.c.b16 %v703, %v701
  %v852 = vpack.c.b16 %v706, %v704
  %v853 = vpack.c.b16 %v707, %v705
  %v854 = vpack.c.b16 %v710, %v708
  %v855 = vpack.c.b16 %v711, %v709
  %1000 = vmatprep.subr.bf16.mxu0 %v727
  %1001 = vmatpush1.bf16.msra.mxu0 %v726
  %1002 = vmatprep.subr.bf16.mxu0 %v725
  %1003 = vmatpush1.bf16.msra.mxu0 %v724
  %1004 = vmatprep.subr.bf16.mxu0 %v723
  %1005 = vmatpush1.bf16.msra.mxu0 %v722
  %1006 = vmatprep.subr.bf16.mxu0 %v721
  %1007 = vmatpush1.bf16.msra.mxu0 %v720
  %1008 = vmatprep.subr.bf16.mxu0 %v719
  %1009 = vmatpush1.bf16.msra.mxu0 %v718
  %1010 = vmatprep.subr.bf16.mxu0 %v717
  %1011 = vmatpush1.bf16.msra.mxu0 %v716
  %1012 = vmatprep.subr.bf16.mxu0 %v715
  %1013 = vmatpush1.bf16.msra.mxu0 %v714
  %1014 = vmatprep.subr.bf16.mxu0 %v713
  %1015 = vmatpush1.bf16.msra.mxu0 %v712
  %1016 = vmatprep.subr.bf16.mxu0 %v743
  %1017 = vmatpush2.bf16.msra.mxu0 %v742
  %1018 = vmatprep.subr.bf16.mxu0 %v741
  %1019 = vmatpush2.bf16.msra.mxu0 %v740
  %1020 = vmatprep.subr.bf16.mxu0 %v739
  %1021 = vmatpush2.bf16.msra.mxu0 %v738
  %1022 = vmatprep.subr.bf16.mxu0 %v737
  %1023 = vmatpush2.bf16.msra.mxu0 %v736
  %1024 = vmatprep.subr.bf16.mxu0 %v735
  %1025 = vmatpush2.bf16.msra.mxu0 %v734
  %1026 = vmatprep.subr.bf16.mxu0 %v733
  %1027 = vmatpush2.bf16.msra.mxu0 %v732
  %1028 = vmatprep.subr.bf16.mxu0 %v731
  %1029 = vmatpush2.bf16.msra.mxu0 %v730
  %1030 = vmatprep.subr.bf16.mxu0 %v729
  %1031 = vmatpush2.bf16.msra.mxu0 %v728
  %1032 = vmatprep.mubr.bf16.mxu0 %v245
  %1033 = vmatmul.mubr.bf16.gmra.mxu0 %v244
  %v1034 = vpop.f32.mrf.mxu0
  %v1035 = vadd.f32 0.0, %v1034
  %v1036 = vpop.f32.mrf.mxu0
  %v1037 = vadd.f32 0.0, %v1036
  %v1038 = vpop.f32.mrf.mxu0
  %v1039 = vadd.f32 0.0, %v1038
  %v1040 = vpop.f32.mrf.mxu0
  %v1041 = vadd.f32 0.0, %v1040
  %1042 = vmatprep.mubr.bf16.mxu0 %v254
  %1043 = vmatmul.mubr.bf16.gmra.mxu0 %v253
  %v1044 = vpop.f32.mrf.mxu0
  %v1045 = vadd.f32 0.0, %v1044
  %v1046 = vpop.f32.mrf.mxu0
  %v1047 = vadd.f32 0.0, %v1046
  %v1048 = vpop.f32.mrf.mxu0
  %v1049 = vadd.f32 0.0, %v1048
  %v1050 = vpop.f32.mrf.mxu0
  %v1051 = vadd.f32 0.0, %v1050
  %1052 = vdwg.mxu0
  %1053 = vmatprep.subr.bf16.mxu0 %v759
  %1054 = vmatpush1.bf16.msra.mxu0 %v758
  %1055 = vmatprep.subr.bf16.mxu0 %v757
  %1056 = vmatpush1.bf16.msra.mxu0 %v756
  %1057 = vmatprep.subr.bf16.mxu0 %v755
  %1058 = vmatpush1.bf16.msra.mxu0 %v754
  %1059 = vmatprep.subr.bf16.mxu0 %v753
  %1060 = vmatpush1.bf16.msra.mxu0 %v752
  %1061 = vmatprep.subr.bf16.mxu0 %v751
  %1062 = vmatpush1.bf16.msra.mxu0 %v750
  %1063 = vmatprep.subr.bf16.mxu0 %v749
  %1064 = vmatpush1.bf16.msra.mxu0 %v748
  %1065 = vmatprep.subr.bf16.mxu0 %v747
  %1066 = vmatpush1.bf16.msra.mxu0 %v746
  %1067 = vmatprep.subr.bf16.mxu0 %v745
  %1068 = vmatpush1.bf16.msra.mxu0 %v744
  %1069 = vmatprep.subr.bf16.mxu0 %v775
  %1070 = vmatpush2.bf16.msra.mxu0 %v774
  %1071 = vmatprep.subr.bf16.mxu0 %v773
  %1072 = vmatpush2.bf16.msra.mxu0 %v772
  %1073 = vmatprep.subr.bf16.mxu0 %v771
  %1074 = vmatpush2.bf16.msra.mxu0 %v770
  %1075 = vmatprep.subr.bf16.mxu0 %v769
  %1076 = vmatpush2.bf16.msra.mxu0 %v768
  %1077 = vmatprep.subr.bf16.mxu0 %v767
  %1078 = vmatpush2.bf16.msra.mxu0 %v766
  %1079 = vmatprep.subr.bf16.mxu0 %v765
  %1080 = vmatpush2.bf16.msra.mxu0 %v764
  %1081 = vmatprep.subr.bf16.mxu0 %v763
  %1082 = vmatpush2.bf16.msra.mxu0 %v762
  %1083 = vmatprep.subr.bf16.mxu0 %v761
  %1084 = vmatpush2.bf16.msra.mxu0 %v760
  %1085 = vmatprep.mubr.bf16.mxu0 %v247
  %1086 = vmatmul.mubr.bf16.gmra.mxu0 %v246
  %v1087 = vpop.f32.mrf.mxu0
  %v1088 = vadd.f32 %v1035, %v1087
  %v1089 = vpop.f32.mrf.mxu0
  %v1090 = vadd.f32 %v1037, %v1089
  %v1091 = vpop.f32.mrf.mxu0
  %v1092 = vadd.f32 %v1039, %v1091
  %v1093 = vpop.f32.mrf.mxu0
  %v1094 = vadd.f32 %v1041, %v1093
  %1095 = vmatprep.mubr.bf16.mxu0 %v256
  %1096 = vmatmul.mubr.bf16.gmra.mxu0 %v255
  %v1097 = vpop.f32.mrf.mxu0
  %v1098 = vadd.f32 %v1045, %v1097
  %v1099 = vpop.f32.mrf.mxu0
  %v1100 = vadd.f32 %v1047, %v1099
  %v1101 = vpop.f32.mrf.mxu0
  %v1102 = vadd.f32 %v1049, %v1101
  %v1103 = vpop.f32.mrf.mxu0
  %v1104 = vadd.f32 %v1051, %v1103
  %1105 = vdwg.mxu0
  %1106 = vmatprep.subr.bf16.mxu0 %v791
  %1107 = vmatpush1.bf16.msra.mxu0 %v790
  %1108 = vmatprep.subr.bf16.mxu0 %v789
  %1109 = vmatpush1.bf16.msra.mxu0 %v788
  %1110 = vmatprep.subr.bf16.mxu0 %v787
  %1111 = vmatpush1.bf16.msra.mxu0 %v786
  %1112 = vmatprep.subr.bf16.mxu0 %v785
  %1113 = vmatpush1.bf16.msra.mxu0 %v784
  %1114 = vmatprep.subr.bf16.mxu0 %v783
  %1115 = vmatpush1.bf16.msra.mxu0 %v782
  %1116 = vmatprep.subr.bf16.mxu0 %v781
  %1117 = vmatpush1.bf16.msra.mxu0 %v780
  %1118 = vmatprep.subr.bf16.mxu0 %v779
  %1119 = vmatpush1.bf16.msra.mxu0 %v778
  %1120 = vmatprep.subr.bf16.mxu0 %v777
  %1121 = vmatpush1.bf16.msra.mxu0 %v776
  %1122 = vmatprep.subr.bf16.mxu0 %v807
  %1123 = vmatpush2.bf16.msra.mxu0 %v806
  %1124 = vmatprep.subr.bf16.mxu0 %v805
  %1125 = vmatpush2.bf16.msra.mxu0 %v804
  %1126 = vmatprep.subr.bf16.mxu0 %v803
  %1127 = vmatpush2.bf16.msra.mxu0 %v802
  %1128 = vmatprep.subr.bf16.mxu0 %v801
  %1129 = vmatpush2.bf16.msra.mxu0 %v800
  %1130 = vmatprep.subr.bf16.mxu0 %v799
  %1131 = vmatpush2.bf16.msra.mxu0 %v798
  %1132 = vmatprep.subr.bf16.mxu0 %v797
  %1133 = vmatpush2.bf16.msra.mxu0 %v796
  %1134 = vmatprep.subr.bf16.mxu0 %v795
  %1135 = vmatpush2.bf16.msra.mxu0 %v794
  %1136 = vmatprep.subr.bf16.mxu0 %v793
  %1137 = vmatpush2.bf16.msra.mxu0 %v792
  %1138 = vmatprep.mubr.bf16.mxu0 %v249
  %1139 = vmatmul.mubr.bf16.gmra.mxu0 %v248
  %v1140 = vpop.f32.mrf.mxu0
  %v1141 = vadd.f32 %v1088, %v1140
  %v1142 = vpop.f32.mrf.mxu0
  %v1143 = vadd.f32 %v1090, %v1142
  %v1144 = vpop.f32.mrf.mxu0
  %v1145 = vadd.f32 %v1092, %v1144
  %v1146 = vpop.f32.mrf.mxu0
  %v1147 = vadd.f32 %v1094, %v1146
  %1148 = vmatprep.mubr.bf16.mxu0 %v258
  %1149 = vmatmul.mubr.bf16.gmra.mxu0 %v257
  %v1150 = vpop.f32.mrf.mxu0
  %v1151 = vadd.f32 %v1098, %v1150
  %v1152 = vpop.f32.mrf.mxu0
  %v1153 = vadd.f32 %v1100, %v1152
  %v1154 = vpop.f32.mrf.mxu0
  %v1155 = vadd.f32 %v1102, %v1154
  %v1156 = vpop.f32.mrf.mxu0
  %v1157 = vadd.f32 %v1104, %v1156
  %1158 = vdwg.mxu0
  %1159 = vmatprep.subr.bf16.mxu0 %v823
  %1160 = vmatpush1.bf16.msra.mxu0 %v822
  %1161 = vmatprep.subr.bf16.mxu0 %v821
  %1162 = vmatpush1.bf16.msra.mxu0 %v820
  %1163 = vmatprep.subr.bf16.mxu0 %v819
  %1164 = vmatpush1.bf16.msra.mxu0 %v818
  %1165 = vmatprep.subr.bf16.mxu0 %v817
  %1166 = vmatpush1.bf16.msra.mxu0 %v816
  %1167 = vmatprep.subr.bf16.mxu0 %v815
  %1168 = vmatpush1.bf16.msra.mxu0 %v814
  %1169 = vmatprep.subr.bf16.mxu0 %v813
  %1170 = vmatpush1.bf16.msra.mxu0 %v812
  %1171 = vmatprep.subr.bf16.mxu0 %v811
  %1172 = vmatpush1.bf16.msra.mxu0 %v810
  %1173 = vmatprep.subr.bf16.mxu0 %v809
  %1174 = vmatpush1.bf16.msra.mxu0 %v808
  %1175 = vmatprep.subr.bf16.mxu0 %v839
  %1176 = vmatpush2.bf16.msra.mxu0 %v838
  %1177 = vmatprep.subr.bf16.mxu0 %v837
  %1178 = vmatpush2.bf16.msra.mxu0 %v836
  %1179 = vmatprep.subr.bf16.mxu0 %v835
  %1180 = vmatpush2.bf16.msra.mxu0 %v834
  %1181 = vmatprep.subr.bf16.mxu0 %v833
  %1182 = vmatpush2.bf16.msra.mxu0 %v832
  %1183 = vmatprep.subr.bf16.mxu0 %v831
  %1184 = vmatpush2.bf16.msra.mxu0 %v830
  %1185 = vmatprep.subr.bf16.mxu0 %v829
  %1186 = vmatpush2.bf16.msra.mxu0 %v828
  %1187 = vmatprep.subr.bf16.mxu0 %v827
  %1188 = vmatpush2.bf16.msra.mxu0 %v826
  %1189 = vmatprep.subr.bf16.mxu0 %v825
  %1190 = vmatpush2.bf16.msra.mxu0 %v824
  %1191 = vmatprep.mubr.bf16.mxu0 %v251
  %1192 = vmatmul.mubr.bf16.gmra.mxu0 %v250
  %v1193 = vpop.f32.mrf.mxu0
  %v1194 = vadd.f32 %v1141, %v1193
  %v1195 = vpop.f32.mrf.mxu0
  %v1196 = vadd.f32 %v1143, %v1195
  %v1197 = vpop.f32.mrf.mxu0
  %v1198 = vadd.f32 %v1145, %v1197
  %v1199 = vpop.f32.mrf.mxu0
  %v1200 = vadd.f32 %v1147, %v1199
  %1201 = vmatprep.mubr.bf16.mxu0 %v260
  %1202 = vmatmul.mubr.bf16.gmra.mxu0 %v259
  %v1203 = vpop.f32.mrf.mxu0
  %v1204 = vadd.f32 %v1151, %v1203
  %v1205 = vpop.f32.mrf.mxu0
  %v1206 = vadd.f32 %v1153, %v1205
  %v1207 = vpop.f32.mrf.mxu0
  %v1208 = vadd.f32 %v1155, %v1207
  %v1209 = vpop.f32.mrf.mxu0
  %v1210 = vadd.f32 %v1157, %v1209
  %1211 = vdwg.mxu0
  %1212 = vmatprep.subr.bf16.mxu0 %v855
  %1213 = vmatpush1.bf16.msra.mxu0 %v854
  %1214 = vmatprep.subr.bf16.mxu0 %v853
  %1215 = vmatpush1.bf16.msra.mxu0 %v852
  %1216 = vmatprep.subr.bf16.mxu0 %v851
  %1217 = vmatpush1.bf16.msra.mxu0 %v850
  %1218 = vmatprep.subr.bf16.mxu0 %v849
  %1219 = vmatpush1.bf16.msra.mxu0 %v848
  %1220 = vmatprep.subr.bf16.mxu0 %v847
  %1221 = vmatpush1.bf16.msra.mxu0 %v846
  %1222 = vmatprep.subr.bf16.mxu0 %v845
  %1223 = vmatpush1.bf16.msra.mxu0 %v844
  %1224 = vmatprep.subr.bf16.mxu0 %v843
  %1225 = vmatpush1.bf16.msra.mxu0 %v842
  %1226 = vmatprep.subr.bf16.mxu0 %v841
  %1227 = vmatpush1.bf16.msra.mxu0 %v840
  %1228 = vmatprep.subr.bf16.mxu0 0
  %1229 = vmatpush2.bf16.msra.mxu0 0
  %1230 = vmatprep.subr.bf16.mxu0 0
  %1231 = vmatpush2.bf16.msra.mxu0 0
  %1232 = vmatprep.subr.bf16.mxu0 0
  %1233 = vmatpush2.bf16.msra.mxu0 0
  %1234 = vmatprep.subr.bf16.mxu0 0
  %1235 = vmatpush2.bf16.msra.mxu0 0
  %1236 = vmatprep.subr.bf16.mxu0 0
  %1237 = vmatpush2.bf16.msra.mxu0 0
  %1238 = vmatprep.subr.bf16.mxu0 0
  %1239 = vmatpush2.bf16.msra.mxu0 0
  %1240 = vmatprep.subr.bf16.mxu0 0
  %1241 = vmatpush2.bf16.msra.mxu0 0
  %1242 = vmatprep.subr.bf16.mxu0 0
  %1243 = vmatpush2.bf16.msra.mxu0 0
  %1244 = vmatprep.mubr.bf16.mxu0 0
  %1245 = vmatmul.mubr.bf16.gmra.mxu0 %v252
  %v1246 = vpop.f32.mrf.mxu0
  %v1247 = vadd.f32 %v1194, %v1246
  %v1248 = vpop.f32.mrf.mxu0
  %v1249 = vadd.f32 %v1196, %v1248
  %v1250 = vpop.f32.mrf.mxu0
  %v1251 = vadd.f32 %v1198, %v1250
  %v1252 = vpop.f32.mrf.mxu0
  %v1253 = vadd.f32 %v1200, %v1252
  %1254 = vmatprep.mubr.bf16.mxu0 0
  %1255 = vmatmul.mubr.bf16.gmra.mxu0 %v261
  %v1256 = vpop.f32.mrf.mxu0
  %v1257 = vadd.f32 %v1204, %v1256
  %v1258 = vpop.f32.mrf.mxu0
  %v1259 = vadd.f32 %v1206, %v1258
  %v1260 = vpop.f32.mrf.mxu0
  %v1261 = vadd.f32 %v1208, %v1260
  %v1262 = vpop.f32.mrf.mxu0
  %v1263 = vadd.f32 %v1210, %v1262
  %1264 = vdwg.mxu0
  %v1265 = vadd.f32 %v1247, %v1251
  %v1266 = vadd.f32 %v1265, %v1257
  %v1267 = vadd.f32 %v1266, %v1261
  %v1268 = vrot.slane %v1267, 4
  %v1269 = vadd.f32 %v1267, %v1268
  %v1270 = vrot.slane %v1269, 2
  %v1271 = vadd.f32 %v1269, %v1270
  %v1272 = vrot.slane %v1271, 1
  %v1273 = vadd.f32 %v1271, %v1272
  %v1274 = vadd.f32 %v1249, %v1253
  %v1275 = vadd.f32 %v1274, %v1259
  %v1276 = vadd.f32 %v1275, %v1263
  %v1277 = vrot.slane %v1276, 4
  %v1278 = vadd.f32 %v1276, %v1277
  %v1279 = vrot.slane %v1278, 2
  %v1280 = vadd.f32 %v1278, %v1279
  %v1281 = vrot.slane %v1280, 1
  %v1282 = vadd.f32 %v1280, %v1281
  %v1283 = vmul.f32 %v1247, %v1247
  %v1284 = vmul.f32 %v1249, %v1249
  %v1285 = vmul.f32 %v1251, %v1251
  %v1286 = vmul.f32 %v1253, %v1253
  %v1287 = vmul.f32 %v1257, %v1257
  %v1288 = vmul.f32 %v1259, %v1259
  %v1289 = vmul.f32 %v1261, %v1261
  %v1290 = vmul.f32 %v1263, %v1263
  %v1291 = vadd.f32 %v1283, %v1285
  %v1292 = vadd.f32 %v1291, %v1287
  %v1293 = vadd.f32 %v1292, %v1289
  %v1294 = vrot.slane %v1293, 4
  %v1295 = vadd.f32 %v1293, %v1294
  %v1296 = vrot.slane %v1295, 2
  %v1297 = vadd.f32 %v1295, %v1296
  %v1298 = vrot.slane %v1297, 1
  %v1299 = vadd.f32 %v1297, %v1298
  %v1300 = vadd.f32 %v1284, %v1286
  %v1301 = vadd.f32 %v1300, %v1288
  %v1302 = vadd.f32 %v1301, %v1290
  %v1303 = vrot.slane %v1302, 4
  %v1304 = vadd.f32 %v1302, %v1303
  %v1305 = vrot.slane %v1304, 2
  %v1306 = vadd.f32 %v1304, %v1305
  %v1307 = vrot.slane %v1306, 1
  %v1308 = vadd.f32 %v1306, %v1307
  %v1309 = vld [vmem:[%s2] sm:$0xff]
  %v1310 = vld [vmem:[%s2 + $0x8] sm:$0xff]
  %v1311 = vld [vmem:[%s2 + $0x10] sm:$0xff]
  %v1312 = vld [vmem:[%s2 + $0x18] sm:$0xff]
  %v1313 = vld [vmem:[%s2 + $0x20] sm:$0xff]
  %v1314 = vld [vmem:[%s2 + $0x28] sm:$0xff]
  %v1315 = vld [vmem:[%s2 + $0x30] sm:$0xff]
  %v1316 = vld [vmem:[%s2 + $0x38] sm:$0xff]
  %v1317 = vld [vmem:[%s2 + $0x40] sm:$0xff]
  %v1318 = vld [vmem:[%s2 + $0x48] sm:$0xff]
  %v1319 = vld [vmem:[%s2 + $0x50] sm:$0xff]
  %v1320 = vld [vmem:[%s2 + $0x58] sm:$0xff]
  %v1321 = vld [vmem:[%s2 + $0x60] sm:$0xff]
  %v1322 = vld [vmem:[%s2 + $0x68] sm:$0xff]
  %v1323 = vld [vmem:[%s2 + $0x70] sm:$0xff]
  %v1324 = vld [vmem:[%s2 + $0x78] sm:$0xff]
  %v1325 = vld [vmem:[%s2 + $0x80] sm:$0xff]
  %v1326 = vld [vmem:[%s2 + $0x88] sm:$0xff]
  %v1327 = vld [vmem:[%s2 + $0x90] sm:$0xff]
  %v1328 = vld [vmem:[%s2 + $0x98] sm:$0xff]
  %v1329 = vld [vmem:[%s2 + $0xa0] sm:$0xff]
  %v1330 = vld [vmem:[%s2 + $0xa8] sm:$0xff]
  %v1331 = vld [vmem:[%s2 + $0xb0] sm:$0xff]
  %v1332 = vld [vmem:[%s2 + $0xb8] sm:$0xff]
  %v1333 = vld [vmem:[%s2 + $0xc0] sm:$0xff]
  %v1334 = vld [vmem:[%s2 + $0xc8] sm:$0xff]
  %v1335 = vld [vmem:[%s2 + $0xd0] sm:$0xff]
  %v1336 = vld [vmem:[%s2 + $0xd8] sm:$0xff]
  %v1337 = vld [vmem:[%s2 + $0xe0] sm:$0xff]
  %v1338 = vld [vmem:[%s2 + $0xe8] sm:$0xff]
  %v1339 = vld [vmem:[%s2 + $0xf0] sm:$0xff]
  %v1340 = vld [vmem:[%s2 + $0xf8] sm:$0xff]
  %1341 = vmatprep.subr.mxu0 0.0
  %1342 = vmatpush1.msra.mxu0 %v1324
  %1343 = vmatprep.subr.mxu0 0.0
  %1344 = vmatpush1.msra.mxu0 %v1323
  %1345 = vmatprep.subr.mxu0 0.0
  %1346 = vmatpush1.msra.mxu0 %v1322
  %1347 = vmatprep.subr.mxu0 0.0
  %1348 = vmatpush1.msra.mxu0 %v1321
  %1349 = vmatprep.subr.mxu0 0.0
  %1350 = vmatpush1.msra.mxu0 %v1320
  %1351 = vmatprep.subr.mxu0 0.0
  %1352 = vmatpush1.msra.mxu0 %v1319
  %1353 = vmatprep.subr.mxu0 0.0
  %1354 = vmatpush1.msra.mxu0 %v1318
  %1355 = vmatprep.subr.mxu0 0.0
  %1356 = vmatpush1.msra.mxu0 %v1317
  %1357 = vmatprep.subr.mxu0 0.0
  %1358 = vmatpush1.msra.mxu0 %v1316
  %1359 = vmatprep.subr.mxu0 0.0
  %1360 = vmatpush1.msra.mxu0 %v1315
  %1361 = vmatprep.subr.mxu0 0.0
  %1362 = vmatpush1.msra.mxu0 %v1314
  %1363 = vmatprep.subr.mxu0 0.0
  %1364 = vmatpush1.msra.mxu0 %v1313
  %1365 = vmatprep.subr.mxu0 0.0
  %1366 = vmatpush1.msra.mxu0 %v1312
  %1367 = vmatprep.subr.mxu0 0.0
  %1368 = vmatpush1.msra.mxu0 %v1311
  %1369 = vmatprep.subr.mxu0 0.0
  %1370 = vmatpush1.msra.mxu0 %v1310
  %1371 = vmatprep.subr.mxu0 0.0
  %1372 = vmatpush1.msra.mxu0 %v1309
  %1373 = vmatprep.subr.mxu0 0.0
  %1374 = vmatpush2.msra.mxu0 %v1340
  %1375 = vmatprep.subr.mxu0 0.0
  %1376 = vmatpush2.msra.mxu0 %v1339
  %1377 = vmatprep.subr.mxu0 0.0
  %1378 = vmatpush2.msra.mxu0 %v1338
  %1379 = vmatprep.subr.mxu0 0.0
  %1380 = vmatpush2.msra.mxu0 %v1337
  %1381 = vmatprep.subr.mxu0 0.0
  %1382 = vmatpush2.msra.mxu0 %v1336
  %1383 = vmatprep.subr.mxu0 0.0
  %1384 = vmatpush2.msra.mxu0 %v1335
  %1385 = vmatprep.subr.mxu0 0.0
  %1386 = vmatpush2.msra.mxu0 %v1334
  %1387 = vmatprep.subr.mxu0 0.0
  %1388 = vmatpush2.msra.mxu0 %v1333
  %1389 = vmatprep.subr.mxu0 0.0
  %1390 = vmatpush2.msra.mxu0 %v1332
  %1391 = vmatprep.subr.mxu0 0.0
  %1392 = vmatpush2.msra.mxu0 %v1331
  %1393 = vmatprep.subr.mxu0 0.0
  %1394 = vmatpush2.msra.mxu0 %v1330
  %1395 = vmatprep.subr.mxu0 0.0
  %1396 = vmatpush2.msra.mxu0 %v1329
  %1397 = vmatprep.subr.mxu0 0.0
  %1398 = vmatpush2.msra.mxu0 %v1328
  %1399 = vmatprep.subr.mxu0 0.0
  %1400 = vmatpush2.msra.mxu0 %v1327
  %1401 = vmatprep.subr.mxu0 0.0
  %1402 = vmatpush2.msra.mxu0 %v1326
  %1403 = vmatprep.subr.mxu0 0.0
  %1404 = vmatpush2.msra.mxu0 %v1325
  %1405 = vmatprep.mubr.f32.mxu0 %v1282
  %1406 = vmatmul.mubr.f32.gmra.mxu0 %v1273
  %v1407 = vpop.f32.mrf.mxu0
  %v1408 = vadd.f32 0.0, %v1407
  %v1409 = vpop.f32.mrf.mxu0
  %1410 = vdwg.mxu0
  %1411 = vmatprep.subr.mxu0 0.0
  %1412 = vmatpush1.msra.mxu0 %v1324
  %1413 = vmatprep.subr.mxu0 0.0
  %1414 = vmatpush1.msra.mxu0 %v1323
  %1415 = vmatprep.subr.mxu0 0.0
  %1416 = vmatpush1.msra.mxu0 %v1322
  %1417 = vmatprep.subr.mxu0 0.0
  %1418 = vmatpush1.msra.mxu0 %v1321
  %1419 = vmatprep.subr.mxu0 0.0
  %1420 = vmatpush1.msra.mxu0 %v1320
  %1421 = vmatprep.subr.mxu0 0.0
  %1422 = vmatpush1.msra.mxu0 %v1319
  %1423 = vmatprep.subr.mxu0 0.0
  %1424 = vmatpush1.msra.mxu0 %v1318
  %1425 = vmatprep.subr.mxu0 0.0
  %1426 = vmatpush1.msra.mxu0 %v1317
  %1427 = vmatprep.subr.mxu0 0.0
  %1428 = vmatpush1.msra.mxu0 %v1316
  %1429 = vmatprep.subr.mxu0 0.0
  %1430 = vmatpush1.msra.mxu0 %v1315
  %1431 = vmatprep.subr.mxu0 0.0
  %1432 = vmatpush1.msra.mxu0 %v1314
  %1433 = vmatprep.subr.mxu0 0.0
  %1434 = vmatpush1.msra.mxu0 %v1313
  %1435 = vmatprep.subr.mxu0 0.0
  %1436 = vmatpush1.msra.mxu0 %v1312
  %1437 = vmatprep.subr.mxu0 0.0
  %1438 = vmatpush1.msra.mxu0 %v1311
  %1439 = vmatprep.subr.mxu0 0.0
  %1440 = vmatpush1.msra.mxu0 %v1310
  %1441 = vmatprep.subr.mxu0 0.0
  %1442 = vmatpush1.msra.mxu0 %v1309
  %1443 = vmatprep.subr.mxu0 0.0
  %1444 = vmatpush2.msra.mxu0 %v1340
  %1445 = vmatprep.subr.mxu0 0.0
  %1446 = vmatpush2.msra.mxu0 %v1339
  %1447 = vmatprep.subr.mxu0 0.0
  %1448 = vmatpush2.msra.mxu0 %v1338
  %1449 = vmatprep.subr.mxu0 0.0
  %1450 = vmatpush2.msra.mxu0 %v1337
  %1451 = vmatprep.subr.mxu0 0.0
  %1452 = vmatpush2.msra.mxu0 %v1336
  %1453 = vmatprep.subr.mxu0 0.0
  %1454 = vmatpush2.msra.mxu0 %v1335
  %1455 = vmatprep.subr.mxu0 0.0
  %1456 = vmatpush2.msra.mxu0 %v1334
  %1457 = vmatprep.subr.mxu0 0.0
  %1458 = vmatpush2.msra.mxu0 %v1333
  %1459 = vmatprep.subr.mxu0 0.0
  %1460 = vmatpush2.msra.mxu0 %v1332
  %1461 = vmatprep.subr.mxu0 0.0
  %1462 = vmatpush2.msra.mxu0 %v1331
  %1463 = vmatprep.subr.mxu0 0.0
  %1464 = vmatpush2.msra.mxu0 %v1330
  %1465 = vmatprep.subr.mxu0 0.0
  %1466 = vmatpush2.msra.mxu0 %v1329
  %1467 = vmatprep.subr.mxu0 0.0
  %1468 = vmatpush2.msra.mxu0 %v1328
  %1469 = vmatprep.subr.mxu0 0.0
  %1470 = vmatpush2.msra.mxu0 %v1327
  %1471 = vmatprep.subr.mxu0 0.0
  %1472 = vmatpush2.msra.mxu0 %v1326
  %1473 = vmatprep.subr.mxu0 0.0
  %1474 = vmatpush2.msra.mxu0 %v1325
  %1475 = vmatprep.mubr.f32.mxu0 %v1308
  %1476 = vmatmul.mubr.f32.gmra.mxu0 %v1299
  %v1477 = vpop.f32.mrf.mxu0
  %v1478 = vadd.f32 0.0, %v1477
  %v1479 = vpop.f32.mrf.mxu0
  %1480 = vdwg.mxu0
  %v1481 = vmul.f32 %v1408, 0.0078125
  %v1482 = vmul.f32 %v1478, 0.0078125
  %v1483 = vmul.f32 %v1481, %v1481
  %v1484 = vsub.f32 %v1482, %v1483
  %v1485 = vmax.f32 %v1484, 0.0
  %v1486 = vld [vmem:[%s4] sm:$0x1]
  %v1487 = vadd.f32 %v1485, 1e-05
  %v1488 = vrsqrt.pop %v1487
  %v1489 = vmul.f32 %v1486, %v1488
  %v1490 = vld [vmem:[%s5] sm:$0x1]
  %v1491 = vmul.f32 %v1481, %v1489
  %v1492 = vsub.f32 %v1490, %v1491
  %v1493 = vld [vmem:[%s3] sm:$0xff]
  %v1494 = vld [vmem:[%s3 + $0x8] sm:$0xff]
  %v1495 = vld [vmem:[%s3 + $0x10] sm:$0xff]
  %v1496 = vld [vmem:[%s3 + $0x18] sm:$0xff]
  %v1497 = vld [vmem:[%s3 + $0x20] sm:$0xff]
  %v1498 = vld [vmem:[%s3 + $0x28] sm:$0xff]
  %v1499 = vld [vmem:[%s3 + $0x30] sm:$0xff]
  %v1500 = vld [vmem:[%s3 + $0x38] sm:$0xff]
  %v1501 = vld [vmem:[%s3 + $0x40] sm:$0xff]
  %v1502 = vld [vmem:[%s3 + $0x48] sm:$0xff]
  %v1503 = vld [vmem:[%s3 + $0x50] sm:$0xff]
  %v1504 = vld [vmem:[%s3 + $0x58] sm:$0xff]
  %v1505 = vld [vmem:[%s3 + $0x60] sm:$0xff]
  %v1506 = vld [vmem:[%s3 + $0x68] sm:$0xff]
  %v1507 = vld [vmem:[%s3 + $0x70] sm:$0xff]
  %v1508 = vld [vmem:[%s3 + $0x78] sm:$0xff]
  %v1509 = vld [vmem:[%s3 + $0x80] sm:$0xff]
  %v1510 = vld [vmem:[%s3 + $0x88] sm:$0xff]
  %v1511 = vld [vmem:[%s3 + $0x90] sm:$0xff]
  %v1512 = vld [vmem:[%s3 + $0x98] sm:$0xff]
  %v1513 = vld [vmem:[%s3 + $0xa0] sm:$0xff]
  %v1514 = vld [vmem:[%s3 + $0xa8] sm:$0xff]
  %v1515 = vld [vmem:[%s3 + $0xb0] sm:$0xff]
  %v1516 = vld [vmem:[%s3 + $0xb8] sm:$0xff]
  %v1517 = vld [vmem:[%s3 + $0xc0] sm:$0xff]
  %v1518 = vld [vmem:[%s3 + $0xc8] sm:$0xff]
  %v1519 = vld [vmem:[%s3 + $0xd0] sm:$0xff]
  %v1520 = vld [vmem:[%s3 + $0xd8] sm:$0xff]
  %v1521 = vld [vmem:[%s3 + $0xe0] sm:$0xff]
  %v1522 = vld [vmem:[%s3 + $0xe8] sm:$0xff]
  %v1523 = vld [vmem:[%s3 + $0xf0] sm:$0xff]
  %v1524 = vld [vmem:[%s3 + $0xf8] sm:$0xff]
  %1525 = vmatprep.subr.mxu0 %v1524
  %1526 = vmatpush1.msra.mxu0 %v1523
  %1527 = vmatprep.subr.mxu0 %v1522
  %1528 = vmatpush1.msra.mxu0 %v1521
  %1529 = vmatprep.subr.mxu0 %v1520
  %1530 = vmatpush1.msra.mxu0 %v1519
  %1531 = vmatprep.subr.mxu0 %v1518
  %1532 = vmatpush1.msra.mxu0 %v1517
  %1533 = vmatprep.subr.mxu0 %v1516
  %1534 = vmatpush1.msra.mxu0 %v1515
  %1535 = vmatprep.subr.mxu0 %v1514
  %1536 = vmatpush1.msra.mxu0 %v1513
  %1537 = vmatprep.subr.mxu0 %v1512
  %1538 = vmatpush1.msra.mxu0 %v1511
  %1539 = vmatprep.subr.mxu0 %v1510
  %1540 = vmatpush1.msra.mxu0 %v1509
  %1541 = vmatprep.subr.mxu0 %v1508
  %1542 = vmatpush1.msra.mxu0 %v1507
  %1543 = vmatprep.subr.mxu0 %v1506
  %1544 = vmatpush1.msra.mxu0 %v1505
  %1545 = vmatprep.subr.mxu0 %v1504
  %1546 = vmatpush1.msra.mxu0 %v1503
  %1547 = vmatprep.subr.mxu0 %v1502
  %1548 = vmatpush1.msra.mxu0 %v1501
  %1549 = vmatprep.subr.mxu0 %v1500
  %1550 = vmatpush1.msra.mxu0 %v1499
  %1551 = vmatprep.subr.mxu0 %v1498
  %1552 = vmatpush1.msra.mxu0 %v1497
  %1553 = vmatprep.subr.mxu0 %v1496
  %1554 = vmatpush1.msra.mxu0 %v1495
  %1555 = vmatprep.subr.mxu0 %v1494
  %1556 = vmatpush1.msra.mxu0 %v1493
  %1557 = vmatprep.subr.mxu0 0.0
  %1558 = vmatpush2.msra.mxu0 0.0
  %1559 = vmatprep.subr.mxu0 0.0
  %1560 = vmatpush2.msra.mxu0 0.0
  %1561 = vmatprep.subr.mxu0 0.0
  %1562 = vmatpush2.msra.mxu0 0.0
  %1563 = vmatprep.subr.mxu0 0.0
  %1564 = vmatpush2.msra.mxu0 0.0
  %1565 = vmatprep.subr.mxu0 0.0
  %1566 = vmatpush2.msra.mxu0 0.0
  %1567 = vmatprep.subr.mxu0 0.0
  %1568 = vmatpush2.msra.mxu0 0.0
  %1569 = vmatprep.subr.mxu0 0.0
  %1570 = vmatpush2.msra.mxu0 0.0
  %1571 = vmatprep.subr.mxu0 0.0
  %1572 = vmatpush2.msra.mxu0 0.0
  %1573 = vmatprep.subr.mxu0 0.0
  %1574 = vmatpush2.msra.mxu0 0.0
  %1575 = vmatprep.subr.mxu0 0.0
  %1576 = vmatpush2.msra.mxu0 0.0
  %1577 = vmatprep.subr.mxu0 0.0
  %1578 = vmatpush2.msra.mxu0 0.0
  %1579 = vmatprep.subr.mxu0 0.0
  %1580 = vmatpush2.msra.mxu0 0.0
  %1581 = vmatprep.subr.mxu0 0.0
  %1582 = vmatpush2.msra.mxu0 0.0
  %1583 = vmatprep.subr.mxu0 0.0
  %1584 = vmatpush2.msra.mxu0 0.0
  %1585 = vmatprep.subr.mxu0 0.0
  %1586 = vmatpush2.msra.mxu0 0.0
  %1587 = vmatprep.subr.mxu0 0.0
  %1588 = vmatpush2.msra.mxu0 0.0
  %1589 = vmatprep.mubr.f32.mxu0 0.0
  %1590 = vmatmul.mubr.f32.gmra.mxu0 %v1489
  %v1591 = vpop.f32.mrf.mxu0
  %v1592 = vadd.f32 0.0, %v1591
  %v1593 = vpop.f32.mrf.mxu0
  %v1594 = vadd.f32 0.0, %v1593
  %1595 = vdwg.mxu0
  %1596 = vmatprep.subr.mxu0 %v1524
  %1597 = vmatpush1.msra.mxu0 %v1523
  %1598 = vmatprep.subr.mxu0 %v1522
  %1599 = vmatpush1.msra.mxu0 %v1521
  %1600 = vmatprep.subr.mxu0 %v1520
  %1601 = vmatpush1.msra.mxu0 %v1519
  %1602 = vmatprep.subr.mxu0 %v1518
  %1603 = vmatpush1.msra.mxu0 %v1517
  %1604 = vmatprep.subr.mxu0 %v1516
  %1605 = vmatpush1.msra.mxu0 %v1515
  %1606 = vmatprep.subr.mxu0 %v1514
  %1607 = vmatpush1.msra.mxu0 %v1513
  %1608 = vmatprep.subr.mxu0 %v1512
  %1609 = vmatpush1.msra.mxu0 %v1511
  %1610 = vmatprep.subr.mxu0 %v1510
  %1611 = vmatpush1.msra.mxu0 %v1509
  %1612 = vmatprep.subr.mxu0 %v1508
  %1613 = vmatpush1.msra.mxu0 %v1507
  %1614 = vmatprep.subr.mxu0 %v1506
  %1615 = vmatpush1.msra.mxu0 %v1505
  %1616 = vmatprep.subr.mxu0 %v1504
  %1617 = vmatpush1.msra.mxu0 %v1503
  %1618 = vmatprep.subr.mxu0 %v1502
  %1619 = vmatpush1.msra.mxu0 %v1501
  %1620 = vmatprep.subr.mxu0 %v1500
  %1621 = vmatpush1.msra.mxu0 %v1499
  %1622 = vmatprep.subr.mxu0 %v1498
  %1623 = vmatpush1.msra.mxu0 %v1497
  %1624 = vmatprep.subr.mxu0 %v1496
  %1625 = vmatpush1.msra.mxu0 %v1495
  %1626 = vmatprep.subr.mxu0 %v1494
  %1627 = vmatpush1.msra.mxu0 %v1493
  %1628 = vmatprep.subr.mxu0 0.0
  %1629 = vmatpush2.msra.mxu0 0.0
  %1630 = vmatprep.subr.mxu0 0.0
  %1631 = vmatpush2.msra.mxu0 0.0
  %1632 = vmatprep.subr.mxu0 0.0
  %1633 = vmatpush2.msra.mxu0 0.0
  %1634 = vmatprep.subr.mxu0 0.0
  %1635 = vmatpush2.msra.mxu0 0.0
  %1636 = vmatprep.subr.mxu0 0.0
  %1637 = vmatpush2.msra.mxu0 0.0
  %1638 = vmatprep.subr.mxu0 0.0
  %1639 = vmatpush2.msra.mxu0 0.0
  %1640 = vmatprep.subr.mxu0 0.0
  %1641 = vmatpush2.msra.mxu0 0.0
  %1642 = vmatprep.subr.mxu0 0.0
  %1643 = vmatpush2.msra.mxu0 0.0
  %1644 = vmatprep.subr.mxu0 0.0
  %1645 = vmatpush2.msra.mxu0 0.0
  %1646 = vmatprep.subr.mxu0 0.0
  %1647 = vmatpush2.msra.mxu0 0.0
  %1648 = vmatprep.subr.mxu0 0.0
  %1649 = vmatpush2.msra.mxu0 0.0
  %1650 = vmatprep.subr.mxu0 0.0
  %1651 = vmatpush2.msra.mxu0 0.0
  %1652 = vmatprep.subr.mxu0 0.0
  %1653 = vmatpush2.msra.mxu0 0.0
  %1654 = vmatprep.subr.mxu0 0.0
  %1655 = vmatpush2.msra.mxu0 0.0
  %1656 = vmatprep.subr.mxu0 0.0
  %1657 = vmatpush2.msra.mxu0 0.0
  %1658 = vmatprep.subr.mxu0 0.0
  %1659 = vmatpush2.msra.mxu0 0.0
  %1660 = vmatprep.mubr.f32.mxu0 0.0
  %1661 = vmatmul.mubr.f32.gmra.mxu0 %v1492
  %v1662 = vpop.f32.mrf.mxu0
  %v1663 = vadd.f32 0.0, %v1662
  %v1664 = vpop.f32.mrf.mxu0
  %v1665 = vadd.f32 0.0, %v1664
  %1666 = vdwg.mxu0
  %v1667 = vlaneseq
  %v1668 = vshrl.u32 %v1667, 7
  %v1669 = vsub.s32 0, %v1668
  %v1670 = vrot.slane %v1592, %v1669
  %v1671 = vlaneseq
  %v1672 = vshrl.u32 %v1671, 7
  %v1673 = vsub.s32 0, %v1672
  %v1674 = vrot.slane %v1594, %v1673
  %v1675 = vmul.f32 %v1247, %v1670
  %v1676 = vmul.f32 %v1249, %v1674
  %v1677 = vmul.f32 %v1251, %v1670
  %v1678 = vmul.f32 %v1253, %v1674
  %v1679 = vmul.f32 %v1257, %v1670
  %v1680 = vmul.f32 %v1259, %v1674
  %v1681 = vmul.f32 %v1261, %v1670
  %v1682 = vmul.f32 %v1263, %v1674
  %v1683 = vlaneseq
  %v1684 = vshrl.u32 %v1683, 7
  %v1685 = vsub.s32 0, %v1684
  %v1686 = vrot.slane %v1663, %v1685
  %v1687 = vlaneseq
  %v1688 = vshrl.u32 %v1687, 7
  %v1689 = vsub.s32 0, %v1688
  %v1690 = vrot.slane %v1665, %v1689
  %v1691 = vadd.f32 %v1675, %v1686
  %v1692 = vadd.f32 %v1676, %v1690
  %v1693 = vadd.f32 %v1677, %v1686
  %v1694 = vadd.f32 %v1678, %v1690
  %v1695 = vadd.f32 %v1679, %v1686
  %v1696 = vadd.f32 %v1680, %v1690
  %v1697 = vadd.f32 %v1681, %v1686
  %v1698 = vadd.f32 %v1682, %v1690
  %v1699 = vmax.f32 %v1691, 0.0
  %v1700 = vmax.f32 %v1692, 0.0
  %v1701 = vmax.f32 %v1693, 0.0
  %v1702 = vmax.f32 %v1694, 0.0
  %v1703 = vmax.f32 %v1695, 0.0
  %v1704 = vmax.f32 %v1696, 0.0
  %v1705 = vmax.f32 %v1697, 0.0
  %v1706 = vmax.f32 %v1698, 0.0
  %v1707 = vpack.c.bf16 %v1701, %v1699
  %v1708 = vpack.c.bf16 %v1702, %v1700
  %v1709 = vpack.c.bf16 %v1705, %v1703
  %v1710 = vpack.c.bf16 %v1706, %v1704
  %v1715 = vunpack.c.l.b16 %v1707
  %v1716 = vunpack.c.l.b16 %v1708
  %v1717 = vunpack.c.h.b16 %v1707
  %v1718 = vunpack.c.h.b16 %v1708
  %v1719 = vunpack.c.l.b16 %v1709
  %v1720 = vunpack.c.l.b16 %v1710
  %v1721 = vunpack.c.h.b16 %v1709
  %v1722 = vunpack.c.h.b16 %v1710
  %v1723 = vpack.c.b16 %v1716, %v1715
  %v1724 = vpack.c.b16 %v1718, %v1717
  %v1725 = vpack.c.b16 %v1720, %v1719
  %v1726 = vpack.c.b16 %v1722, %v1721
  %1731 = vst [vmem:[%s6] sm:$0xff] %v1723
  %1732 = vst [vmem:[%s6 + $0x8] sm:$0xff] %v1724
  %1733 = vst [vmem:[%s6 + $0x10] sm:$0xff] %v1725
  %1734 = vst [vmem:[%s6 + $0x18] sm:$0xff] %v1726
  // Predicated region
  $region26: #{_lambda_.6} parent=0 // pred_check
    _
  $region27: #{_lambda_.6} parent=0 // pred_check_branch
    %1736 = sbr.rel (0) target = $region29
  $region28: #{_lambda_.6} parent=0 // pred_region
    _
  $region29: #{_lambda_.6} parent=0 // pred_fallthru
    _
  // Predicated region
  $region30: #{_lambda_.6} parent=0 // pred_check
    _
  $region31: #{_lambda_.6} parent=0 // pred_check_branch
    %1738 = sbr.rel (0) target = $region33
  $region32: #{_lambda_.6} parent=0 // pred_region
    _
  $region33: #{_lambda_.6} parent=0 // pred_fallthru
    _

// kernel: _lambda_.5
$region0: #{_lambda_.5}
  #allocation0 [shape = 'u32[]', space=smem, size = 0x4, offset = 0x4, fixed_abs, tag = 'smem constant byte address 0x4 - core index']
  #allocation1 [shape = 'u32[144,128]{1,0:T(1,128)}', space=vmem, size = 0x12000, scoped, tag = 'internal scratch']
  %s0 = inlined_call_operand.vmem [shape: bf16[2,32], index: 0, kind: input, shape index: {}]
  %s1 = inlined_call_operand.hbm [shape: bf16[32,2048], index: 1, kind: input, shape index: {}]
  %s2 = inlined_call_operand.hbm [shape: f32[2048,128], index: 2, kind: input, shape index: {}]
  %s3 = inlined_call_operand.hbm [shape: f32[128,2048], index: 3, kind: input, shape index: {}]
  %s4 = inlined_call_operand.vmem [shape: f32[1,128], index: 4, kind: input, shape index: {}]
  %s5 = inlined_call_operand.vmem [shape: f32[1,128], index: 5, kind: input, shape index: {}]
  %s6 = inlined_call_operand.vmem [shape: bf16[2,2048], index: 6, kind: output, shape index: {}]
  %s7 = sld [smem:[#allocation0]]
  $region46: #{_lambda_.5} parent=0
    _
  %s9 = ssub.s32 1, %s7
  %s10 = scalar_select 0, %s9, %s7
  $region1: #{_lambda_.5} parent=0
    #allocation2 [shape = 'u8[131072]{0}', space=vmem, size = 0x20000, scoped, tag = 'input window, operand 1, single buffered']
    #allocation3 [shape = 's32[1]{0}', space=sflag, size = 0x4, scoped, tag = 'scoped memory for _lambda_.5']
    #allocation4 [shape = 'u8[1048576]{0}', space=vmem, size = 0x100000, scoped, tag = 'input window, operand 2, single buffered']
    #allocation5 [shape = 's32[1]{0}', space=sflag, size = 0x4, scoped, tag = 'scoped memory for _lambda_.5']
    #allocation6 [shape = 'u8[1048576]{0}', space=vmem, size = 0x100000, scoped, tag = 'input window, operand 3, single buffered']
    %11 = vsyncpa [#allocation3], 0
    %12 = vsyncpa [#allocation5], 0
    // Predicated region
    $region2: #{_lambda_.5} parent=1 // pred_check
      _
    $region3: #{_lambda_.5} parent=1 // pred_check_branch
      %14 = sbr.rel (0) target = $region5
    $region4: #{_lambda_.5} parent=1 // pred_region
      _
    $region5: #{_lambda_.5} parent=1 // pred_fallthru
      _
    // Predicated region
    $region6: #{_lambda_.5} parent=1 // pred_check
      _
    $region7: #{_lambda_.5} parent=1 // pred_check_branch
      %16 = sbr.rel (0) target = $region9
    $region8: #{_lambda_.5} parent=1 // pred_region
      %s18 = ssub.s32 4096, 4096
      %19 = vsyncadd [#allocation3], %s18
      %s20 = sshll.u32 [#allocation2], 4
      %s21 = int_to_ptr.vmem [resolvable:$true] %s20
      %26 = dma.hbm_to_vmem [thread:$0]  %s1, 4096, %s21, [#allocation3], 1024, 1024, 64
    $region9: #{_lambda_.5} parent=1 // pred_fallthru
      _
    // Predicated region
    $region10: #{_lambda_.5} parent=1 // pred_check
      _
    $region11: #{_lambda_.5} parent=1 // pred_check_branch
      %28 = sbr.rel (0) target = $region13
    $region12: #{_lambda_.5} parent=1 // pred_region
      %s30 = ssub.s32 32768, 32768
      %31 = vsyncadd [#allocation5], %s30
      %s32 = sshll.u32 [#allocation4], 4
      %s33 = int_to_ptr.vmem [resolvable:$true] %s32
      %38 = dma.hbm_to_vmem [thread:$0]  %s2, 32768, %s33, [#allocation5], 128, 128, 8
    $region13: #{_lambda_.5} parent=1 // pred_fallthru
      _
    // Predicated region
    $region14: #{_lambda_.5} parent=1 // pred_check
      _
    $region15: #{_lambda_.5} parent=1 // pred_check_branch
      %40 = sbr.rel (0) target = $region17
    $region16: #{_lambda_.5} parent=1 // pred_region
      %s42 = ssub.s32 32768, 32768
      %43 = vsyncadd [#allocation5], %s42
      %s44 = sshll.u32 [#allocation6], 4
      %s45 = int_to_ptr.vmem [resolvable:$true] %s44
      %50 = dma.hbm_to_vmem [thread:$0]  %s3, 32768, %s45, [#allocation5], 2048, 2048, 128
    $region17: #{_lambda_.5} parent=1 // pred_fallthru
      _
    // Predicated region
    $region18: #{_lambda_.5} parent=1 // pred_check
      _
    $region19: #{_lambda_.5} parent=1 // pred_check_branch
      %52 = sbr.rel (0) target = $region21
    $region20: #{_lambda_.5} parent=1 // pred_region
      _
    $region21: #{_lambda_.5} parent=1 // pred_fallthru
      _
    // Predicated region
    $region22: #{_lambda_.5} parent=1 // pred_check
      _
    $region23: #{_lambda_.5} parent=1 // pred_check_branch
      %54 = sbr.rel (0) target = $region25
    $region24: #{_lambda_.5} parent=1 // pred_region
      _
    $region25: #{_lambda_.5} parent=1 // pred_fallthru
      _
    // Predicated region
    $region26: #{_lambda_.5} parent=1 // pred_check
      _
    $region27: #{_lambda_.5} parent=1 // pred_check_branch
      %56 = sbr.rel (0) target = $region29
    $region28: #{_lambda_.5} parent=1 // pred_region
      %57 = dma.done [#allocation3], 4096
    $region29: #{_lambda_.5} parent=1 // pred_fallthru
      _
    // Predicated region
    $region30: #{_lambda_.5} parent=1 // pred_check
      _
    $region31: #{_lambda_.5} parent=1 // pred_check_branch
      %59 = sbr.rel (0) target = $region33
    $region32: #{_lambda_.5} parent=1 // pred_region
      %60 = dma.done [#allocation5], 32768
    $region33: #{_lambda_.5} parent=1 // pred_fallthru
      _
    // Predicated region
    $region34: #{_lambda_.5} parent=1 // pred_check
      _
    $region35: #{_lambda_.5} parent=1 // pred_check_branch
      %62 = sbr.rel (0) target = $region37
    $region36: #{_lambda_.5} parent=1 // pred_region
      %63 = dma.done [#allocation5], 32768
    $region37: #{_lambda_.5} parent=1 // pred_fallthru
      _
    %v65 = vld [vmem:[%s0] sm:$0x1]
    %v66 = vld [vmem:[#allocation2] sm:$0xff]
    %v67 = vld [vmem:[#allocation2 + $0x8] sm:$0xff]
    %v68 = vld [vmem:[#allocation2 + $0x10] sm:$0xff]
    %v69 = vld [vmem:[#allocation2 + $0x18] sm:$0xff]
    %v70 = vld [vmem:[#allocation2 + $0x20] sm:$0xff]
    %v71 = vld [vmem:[#allocation2 + $0x28] sm:$0xff]
    %v72 = vld [vmem:[#allocation2 + $0x30] sm:$0xff]
    %v73 = vld [vmem:[#allocation2 + $0x38] sm:$0xff]
    %v74 = vld [vmem:[#allocation2 + $0x40] sm:$0xff]
    %v75 = vld [vmem:[#allocation2 + $0x48] sm:$0xff]
    %v76 = vld [vmem:[#allocation2 + $0x50] sm:$0xff]
    %v77 = vld [vmem:[#allocation2 + $0x58] sm:$0xff]
    %v78 = vld [vmem:[#allocation2 + $0x60] sm:$0xff]
    %v79 = vld [vmem:[#allocation2 + $0x68] sm:$0xff]
    %v80 = vld [vmem:[#allocation2 + $0x70] sm:$0xff]
    %v81 = vld [vmem:[#allocation2 + $0x78] sm:$0xff]
    %v82 = vld [vmem:[#allocation2 + $0x80] sm:$0xff]
    %v83 = vld [vmem:[#allocation2 + $0x88] sm:$0xff]
    %v84 = vld [vmem:[#allocation2 + $0x90] sm:$0xff]
    %v85 = vld [vmem:[#allocation2 + $0x98] sm:$0xff]
    %v86 = vld [vmem:[#allocation2 + $0xa0] sm:$0xff]
    %v87 = vld [vmem:[#allocation2 + $0xa8] sm:$0xff]
    %v88 = vld [vmem:[#allocation2 + $0xb0] sm:$0xff]
    %v89 = vld [vmem:[#allocation2 + $0xb8] sm:$0xff]
    %v90 = vld [vmem:[#allocation2 + $0xc0] sm:$0xff]
    %v91 = vld [vmem:[#allocation2 + $0xc8] sm:$0xff]
    %v92 = vld [vmem:[#allocation2 + $0xd0] sm:$0xff]
    %v93 = vld [vmem:[#allocation2 + $0xd8] sm:$0xff]
    %v94 = vld [vmem:[#allocation2 + $0xe0] sm:$0xff]
    %v95 = vld [vmem:[#allocation2 + $0xe8] sm:$0xff]
    %v96 = vld [vmem:[#allocation2 + $0xf0] sm:$0xff]
    %v97 = vld [vmem:[#allocation2 + $0xf8] sm:$0xff]
    %v130 = vunpack.c.l.b16 %v66
    %v131 = vunpack.c.h.b16 %v66
    %v132 = vunpack.c.l.b16 %v67
    %v133 = vunpack.c.h.b16 %v67
    %v134 = vunpack.c.l.b16 %v68
    %v135 = vunpack.c.h.b16 %v68
    %v136 = vunpack.c.l.b16 %v69
    %v137 = vunpack.c.h.b16 %v69
    %v138 = vunpack.c.l.b16 %v70
    %v139 = vunpack.c.h.b16 %v70
    %v140 = vunpack.c.l.b16 %v71
    %v141 = vunpack.c.h.b16 %v71
    %v142 = vunpack.c.l.b16 %v72
    %v143 = vunpack.c.h.b16 %v72
    %v144 = vunpack.c.l.b16 %v73
    %v145 = vunpack.c.h.b16 %v73
    %v146 = vunpack.c.l.b16 %v74
    %v147 = vunpack.c.h.b16 %v74
    %v148 = vunpack.c.l.b16 %v75
    %v149 = vunpack.c.h.b16 %v75
    %v150 = vunpack.c.l.b16 %v76
    %v151 = vunpack.c.h.b16 %v76
    %v152 = vunpack.c.l.b16 %v77
    %v153 = vunpack.c.h.b16 %v77
    %v154 = vunpack.c.l.b16 %v78
    %v155 = vunpack.c.h.b16 %v78
    %v156 = vunpack.c.l.b16 %v79
    %v157 = vunpack.c.h.b16 %v79
    %v158 = vunpack.c.l.b16 %v80
    %v159 = vunpack.c.h.b16 %v80
    %v160 = vunpack.c.l.b16 %v81
    %v161 = vunpack.c.h.b16 %v81
    %v162 = vunpack.c.l.b16 %v82
    %v163 = vunpack.c.h.b16 %v82
    %v164 = vunpack.c.l.b16 %v83
    %v165 = vunpack.c.h.b16 %v83
    %v166 = vunpack.c.l.b16 %v84
    %v167 = vunpack.c.h.b16 %v84
    %v168 = vunpack.c.l.b16 %v85
    %v169 = vunpack.c.h.b16 %v85
    %v170 = vunpack.c.l.b16 %v86
    %v171 = vunpack.c.h.b16 %v86
    %v172 = vunpack.c.l.b16 %v87
    %v173 = vunpack.c.h.b16 %v87
    %v174 = vunpack.c.l.b16 %v88
    %v175 = vunpack.c.h.b16 %v88
    %v176 = vunpack.c.l.b16 %v89
    %v177 = vunpack.c.h.b16 %v89
    %v178 = vunpack.c.l.b16 %v90
    %v179 = vunpack.c.h.b16 %v90
    %v180 = vunpack.c.l.b16 %v91
    %v181 = vunpack.c.h.b16 %v91
    %v182 = vunpack.c.l.b16 %v92
    %v183 = vunpack.c.h.b16 %v92
    %v184 = vunpack.c.l.b16 %v93
    %v185 = vunpack.c.h.b16 %v93
    %v186 = vunpack.c.l.b16 %v94
    %v187 = vunpack.c.h.b16 %v94
    %v188 = vunpack.c.l.b16 %v95
    %v189 = vunpack.c.h.b16 %v95
    %v190 = vunpack.c.l.b16 %v96
    %v191 = vunpack.c.h.b16 %v96
    %v192 = vunpack.c.l.b16 %v97
    %v193 = vunpack.c.h.b16 %v97
    %v194 = vpack.c.b16 %v146, %v130
    %v195 = vpack.c.b16 %v147, %v131
    %v196 = vpack.c.b16 %v148, %v132
    %v197 = vpack.c.b16 %v149, %v133
    %v198 = vpack.c.b16 %v150, %v134
    %v199 = vpack.c.b16 %v151, %v135
    %v200 = vpack.c.b16 %v152, %v136
    %v201 = vpack.c.b16 %v153, %v137
    %v202 = vpack.c.b16 %v154, %v138
    %v203 = vpack.c.b16 %v155, %v139
    %v204 = vpack.c.b16 %v156, %v140
    %v205 = vpack.c.b16 %v157, %v141
    %v206 = vpack.c.b16 %v158, %v142
    %v207 = vpack.c.b16 %v159, %v143
    %v208 = vpack.c.b16 %v160, %v144
    %v209 = vpack.c.b16 %v161, %v145
    %v210 = vpack.c.b16 %v178, %v162
    %v211 = vpack.c.b16 %v179, %v163
    %v212 = vpack.c.b16 %v180, %v164
    %v213 = vpack.c.b16 %v181, %v165
    %v214 = vpack.c.b16 %v182, %v166
    %v215 = vpack.c.b16 %v183, %v167
    %v216 = vpack.c.b16 %v184, %v168
    %v217 = vpack.c.b16 %v185, %v169
    %v218 = vpack.c.b16 %v186, %v170
    %v219 = vpack.c.b16 %v187, %v171
    %v220 = vpack.c.b16 %v188, %v172
    %v221 = vpack.c.b16 %v189, %v173
    %v222 = vpack.c.b16 %v190, %v174
    %v223 = vpack.c.b16 %v191, %v175
    %v224 = vpack.c.b16 %v192, %v176
    %v225 = vpack.c.b16 %v193, %v177
    %vm258 = vcmask 261120
    %v260 = vsel %vm258, %v65, 0
    %262 = vmatprep.subr.bf16.mxu0 0
    %263 = vmatpush1.bf16.msra.mxu0 0
    %264 = vmatprep.subr.bf16.mxu0 0
    %265 = vmatpush1.bf16.msra.mxu0 0
    %266 = vmatprep.subr.bf16.mxu0 0
    %267 = vmatpush1.bf16.msra.mxu0 0
    %268 = vmatprep.subr.bf16.mxu0 0
    %269 = vmatpush1.bf16.msra.mxu0 0
    %270 = vmatprep.subr.bf16.mxu0 0
    %271 = vmatpush1.bf16.msra.mxu0 0
    %272 = vmatprep.subr.bf16.mxu0 0
    %273 = vmatpush1.bf16.msra.mxu0 0
    %274 = vmatprep.subr.bf16.mxu0 %v211
    %275 = vmatpush1.bf16.msra.mxu0 %v210
    %276 = vmatprep.subr.bf16.mxu0 %v195
    %277 = vmatpush1.bf16.msra.mxu0 %v194
    %278 = vmatprep.subr.bf16.mxu0 0
    %279 = vmatpush2.bf16.msra.mxu0 0
    %280 = vmatprep.subr.bf16.mxu0 0
    %281 = vmatpush2.bf16.msra.mxu0 0
    %282 = vmatprep.subr.bf16.mxu0 0
    %283 = vmatpush2.bf16.msra.mxu0 0
    %284 = vmatprep.subr.bf16.mxu0 0
    %285 = vmatpush2.bf16.msra.mxu0 0
    %286 = vmatprep.subr.bf16.mxu0 0
    %287 = vmatpush2.bf16.msra.mxu0 0
    %288 = vmatprep.subr.bf16.mxu0 0
    %289 = vmatpush2.bf16.msra.mxu0 0
    %290 = vmatprep.subr.bf16.mxu0 0
    %291 = vmatpush2.bf16.msra.mxu0 0
    %292 = vmatprep.subr.bf16.mxu0 0
    %293 = vmatpush2.bf16.msra.mxu0 0
    %294 = vmatprep.mubr.bf16.mxu0 0
    %295 = vmatmul.mubr.bf16.gmra.mxu0 %v260
    %v296 = vpop.f32.mrf.mxu0
    %v297 = vadd.f32 0.0, %v296
    %v298 = vpop.f32.mrf.mxu0
    %v299 = vadd.f32 0.0, %v298
    %v300 = vpop.f32.mrf.mxu0
    %v301 = vpop.f32.mrf.mxu0
    %302 = vdwg.mxu0
    %303 = vmatprep.subr.bf16.mxu0 0
    %304 = vmatpush1.bf16.msra.mxu0 0
    %305 = vmatprep.subr.bf16.mxu0 0
    %306 = vmatpush1.bf16.msra.mxu0 0
    %307 = vmatprep.subr.bf16.mxu0 0
    %308 = vmatpush1.bf16.msra.mxu0 0
    %309 = vmatprep.subr.bf16.mxu0 0
    %310 = vmatpush1.bf16.msra.mxu0 0
    %311 = vmatprep.subr.bf16.mxu0 0
    %312 = vmatpush1.bf16.msra.mxu0 0
    %313 = vmatprep.subr.bf16.mxu0 0
    %314 = vmatpush1.bf16.msra.mxu0 0
    %315 = vmatprep.subr.bf16.mxu0 %v213
    %316 = vmatpush1.bf16.msra.mxu0 %v212
    %317 = vmatprep.subr.bf16.mxu0 %v197
    %318 = vmatpush1.bf16.msra.mxu0 %v196
    %319 = vmatprep.subr.bf16.mxu0 0
    %320 = vmatpush2.bf16.msra.mxu0 0
    %321 = vmatprep.subr.bf16.mxu0 0
    %322 = vmatpush2.bf16.msra.mxu0 0
    %323 = vmatprep.subr.bf16.mxu0 0
    %324 = vmatpush2.bf16.msra.mxu0 0
    %325 = vmatprep.subr.bf16.mxu0 0
    %326 = vmatpush2.bf16.msra.mxu0 0
    %327 = vmatprep.subr.bf16.mxu0 0
    %328 = vmatpush2.bf16.msra.mxu0 0
    %329 = vmatprep.subr.bf16.mxu0 0
    %330 = vmatpush2.bf16.msra.mxu0 0
    %331 = vmatprep.subr.bf16.mxu0 0
    %332 = vmatpush2.bf16.msra.mxu0 0
    %333 = vmatprep.subr.bf16.mxu0 0
    %334 = vmatpush2.bf16.msra.mxu0 0
    %335 = vmatprep.mubr.bf16.mxu0 0
    %336 = vmatmul.mubr.bf16.gmra.mxu0 %v260
    %v337 = vpop.f32.mrf.mxu0
    %v338 = vadd.f32 0.0, %v337
    %v339 = vpop.f32.mrf.mxu0
    %v340 = vadd.f32 0.0, %v339
    %v341 = vpop.f32.mrf.mxu0
    %v342 = vpop.f32.mrf.mxu0
    %343 = vdwg.mxu0
    %344 = vmatprep.subr.bf16.mxu0 0
    %345 = vmatpush1.bf16.msra.mxu0 0
    %346 = vmatprep.subr.bf16.mxu0 0
    %347 = vmatpush1.bf16.msra.mxu0 0
    %348 = vmatprep.subr.bf16.mxu0 0
    %349 = vmatpush1.bf16.msra.mxu0 0
    %350 = vmatprep.subr.bf16.mxu0 0
    %351 = vmatpush1.bf16.msra.mxu0 0
    %352 = vmatprep.subr.bf16.mxu0 0
    %353 = vmatpush1.bf16.msra.mxu0 0
    %354 = vmatprep.subr.bf16.mxu0 0
    %355 = vmatpush1.bf16.msra.mxu0 0
    %356 = vmatprep.subr.bf16.mxu0 %v215
    %357 = vmatpush1.bf16.msra.mxu0 %v214
    %358 = vmatprep.subr.bf16.mxu0 %v199
    %359 = vmatpush1.bf16.msra.mxu0 %v198
    %360 = vmatprep.subr.bf16.mxu0 0
    %361 = vmatpush2.bf16.msra.mxu0 0
    %362 = vmatprep.subr.bf16.mxu0 0
    %363 = vmatpush2.bf16.msra.mxu0 0
    %364 = vmatprep.subr.bf16.mxu0 0
    %365 = vmatpush2.bf16.msra.mxu0 0
    %366 = vmatprep.subr.bf16.mxu0 0
    %367 = vmatpush2.bf16.msra.mxu0 0
    %368 = vmatprep.subr.bf16.mxu0 0
    %369 = vmatpush2.bf16.msra.mxu0 0
    %370 = vmatprep.subr.bf16.mxu0 0
    %371 = vmatpush2.bf16.msra.mxu0 0
    %372 = vmatprep.subr.bf16.mxu0 0
    %373 = vmatpush2.bf16.msra.mxu0 0
    %374 = vmatprep.subr.bf16.mxu0 0
    %375 = vmatpush2.bf16.msra.mxu0 0
    %376 = vmatprep.mubr.bf16.mxu0 0
    %377 = vmatmul.mubr.bf16.gmra.mxu0 %v260
    %v378 = vpop.f32.mrf.mxu0
    %v379 = vadd.f32 0.0, %v378
    %v380 = vpop.f32.mrf.mxu0
    %v381 = vadd.f32 0.0, %v380
    %v382 = vpop.f32.mrf.mxu0
    %v383 = vpop.f32.mrf.mxu0
    %384 = vdwg.mxu0
    %385 = vmatprep.subr.bf16.mxu0 0
    %386 = vmatpush1.bf16.msra.mxu0 0
    %387 = vmatprep.subr.bf16.mxu0 0
    %388 = vmatpush1.bf16.msra.mxu0 0
    %389 = vmatprep.subr.bf16.mxu0 0
    %390 = vmatpush1.bf16.msra.mxu0 0
    %391 = vmatprep.subr.bf16.mxu0 0
    %392 = vmatpush1.bf16.msra.mxu0 0
    %393 = vmatprep.subr.bf16.mxu0 0
    %394 = vmatpush1.bf16.msra.mxu0 0
    %395 = vmatprep.subr.bf16.mxu0 0
    %396 = vmatpush1.bf16.msra.mxu0 0
    %397 = vmatprep.subr.bf16.mxu0 %v217
    %398 = vmatpush1.bf16.msra.mxu0 %v216
    %399 = vmatprep.subr.bf16.mxu0 %v201
    %400 = vmatpush1.bf16.msra.mxu0 %v200
    %401 = vmatprep.subr.bf16.mxu0 0
    %402 = vmatpush2.bf16.msra.mxu0 0
    %403 = vmatprep.subr.bf16.mxu0 0
    %404 = vmatpush2.bf16.msra.mxu0 0
    %405 = vmatprep.subr.bf16.mxu0 0
    %406 = vmatpush2.bf16.msra.mxu0 0
    %407 = vmatprep.subr.bf16.mxu0 0
    %408 = vmatpush2.bf16.msra.mxu0 0
    %409 = vmatprep.subr.bf16.mxu0 0
    %410 = vmatpush2.bf16.msra.mxu0 0
    %411 = vmatprep.subr.bf16.mxu0 0
    %412 = vmatpush2.bf16.msra.mxu0 0
    %413 = vmatprep.subr.bf16.mxu0 0
    %414 = vmatpush2.bf16.msra.mxu0 0
    %415 = vmatprep.subr.bf16.mxu0 0
    %416 = vmatpush2.bf16.msra.mxu0 0
    %417 = vmatprep.mubr.bf16.mxu0 0
    %418 = vmatmul.mubr.bf16.gmra.mxu0 %v260
    %v419 = vpop.f32.mrf.mxu0
    %v420 = vadd.f32 0.0, %v419
    %v421 = vpop.f32.mrf.mxu0
    %v422 = vadd.f32 0.0, %v421
    %v423 = vpop.f32.mrf.mxu0
    %v424 = vpop.f32.mrf.mxu0
    %425 = vdwg.mxu0
    %426 = vmatprep.subr.bf16.mxu0 0
    %427 = vmatpush1.bf16.msra.mxu0 0
    %428 = vmatprep.subr.bf16.mxu0 0
    %429 = vmatpush1.bf16.msra.mxu0 0
    %430 = vmatprep.subr.bf16.mxu0 0
    %431 = vmatpush1.bf16.msra.mxu0 0
    %432 = vmatprep.subr.bf16.mxu0 0
    %433 = vmatpush1.bf16.msra.mxu0 0
    %434 = vmatprep.subr.bf16.mxu0 0
    %435 = vmatpush1.bf16.msra.mxu0 0
    %436 = vmatprep.subr.bf16.mxu0 0
    %437 = vmatpush1.bf16.msra.mxu0 0
    %438 = vmatprep.subr.bf16.mxu0 %v219
    %439 = vmatpush1.bf16.msra.mxu0 %v218
    %440 = vmatprep.subr.bf16.mxu0 %v203
    %441 = vmatpush1.bf16.msra.mxu0 %v202
    %442 = vmatprep.subr.bf16.mxu0 0
    %443 = vmatpush2.bf16.msra.mxu0 0
    %444 = vmatprep.subr.bf16.mxu0 0
    %445 = vmatpush2.bf16.msra.mxu0 0
    %446 = vmatprep.subr.bf16.mxu0 0
    %447 = vmatpush2.bf16.msra.mxu0 0
    %448 = vmatprep.subr.bf16.mxu0 0
    %449 = vmatpush2.bf16.msra.mxu0 0
    %450 = vmatprep.subr.bf16.mxu0 0
    %451 = vmatpush2.bf16.msra.mxu0 0
    %452 = vmatprep.subr.bf16.mxu0 0
    %453 = vmatpush2.bf16.msra.mxu0 0
    %454 = vmatprep.subr.bf16.mxu0 0
    %455 = vmatpush2.bf16.msra.mxu0 0
    %456 = vmatprep.subr.bf16.mxu0 0
    %457 = vmatpush2.bf16.msra.mxu0 0
    %458 = vmatprep.mubr.bf16.mxu0 0
    %459 = vmatmul.mubr.bf16.gmra.mxu0 %v260
    %v460 = vpop.f32.mrf.mxu0
    %v461 = vadd.f32 0.0, %v460
    %v462 = vpop.f32.mrf.mxu0
    %v463 = vadd.f32 0.0, %v462
    %v464 = vpop.f32.mrf.mxu0
    %v465 = vpop.f32.mrf.mxu0
    %466 = vdwg.mxu0
    %467 = vmatprep.subr.bf16.mxu0 0
    %468 = vmatpush1.bf16.msra.mxu0 0
    %469 = vmatprep.subr.bf16.mxu0 0
    %470 = vmatpush1.bf16.msra.mxu0 0
    %471 = vmatprep.subr.bf16.mxu0 0
    %472 = vmatpush1.bf16.msra.mxu0 0
    %473 = vmatprep.subr.bf16.mxu0 0
    %474 = vmatpush1.bf16.msra.mxu0 0
    %475 = vmatprep.subr.bf16.mxu0 0
    %476 = vmatpush1.bf16.msra.mxu0 0
    %477 = vmatprep.subr.bf16.mxu0 0
    %478 = vmatpush1.bf16.msra.mxu0 0
    %479 = vmatprep.subr.bf16.mxu0 %v221
    %480 = vmatpush1.bf16.msra.mxu0 %v220
    %481 = vmatprep.subr.bf16.mxu0 %v205
    %482 = vmatpush1.bf16.msra.mxu0 %v204
    %483 = vmatprep.subr.bf16.mxu0 0
    %484 = vmatpush2.bf16.msra.mxu0 0
    %485 = vmatprep.subr.bf16.mxu0 0
    %486 = vmatpush2.bf16.msra.mxu0 0
    %487 = vmatprep.subr.bf16.mxu0 0
    %488 = vmatpush2.bf16.msra.mxu0 0
    %489 = vmatprep.subr.bf16.mxu0 0
    %490 = vmatpush2.bf16.msra.mxu0 0
    %491 = vmatprep.subr.bf16.mxu0 0
    %492 = vmatpush2.bf16.msra.mxu0 0
    %493 = vmatprep.subr.bf16.mxu0 0
    %494 = vmatpush2.bf16.msra.mxu0 0
    %495 = vmatprep.subr.bf16.mxu0 0
    %496 = vmatpush2.bf16.msra.mxu0 0
    %497 = vmatprep.subr.bf16.mxu0 0
    %498 = vmatpush2.bf16.msra.mxu0 0
    %499 = vmatprep.mubr.bf16.mxu0 0
    %500 = vmatmul.mubr.bf16.gmra.mxu0 %v260
    %v501 = vpop.f32.mrf.mxu0
    %v502 = vadd.f32 0.0, %v501
    %v503 = vpop.f32.mrf.mxu0
    %v504 = vadd.f32 0.0, %v503
    %v505 = vpop.f32.mrf.mxu0
    %v506 = vpop.f32.mrf.mxu0
    %507 = vdwg.mxu0
    %508 = vmatprep.subr.bf16.mxu0 0
    %509 = vmatpush1.bf16.msra.mxu0 0
    %510 = vmatprep.subr.bf16.mxu0 0
    %511 = vmatpush1.bf16.msra.mxu0 0
    %512 = vmatprep.subr.bf16.mxu0 0
    %513 = vmatpush1.bf16.msra.mxu0 0
    %514 = vmatprep.subr.bf16.mxu0 0
    %515 = vmatpush1.bf16.msra.mxu0 0
    %516 = vmatprep.subr.bf16.mxu0 0
    %517 = vmatpush1.bf16.msra.mxu0 0
    %518 = vmatprep.subr.bf16.mxu0 0
    %519 = vmatpush1.bf16.msra.mxu0 0
    %520 = vmatprep.subr.bf16.mxu0 %v223
    %521 = vmatpush1.bf16.msra.mxu0 %v222
    %522 = vmatprep.subr.bf16.mxu0 %v207
    %523 = vmatpush1.bf16.msra.mxu0 %v206
    %524 = vmatprep.subr.bf16.mxu0 0
    %525 = vmatpush2.bf16.msra.mxu0 0
    %526 = vmatprep.subr.bf16.mxu0 0
    %527 = vmatpush2.bf16.msra.mxu0 0
    %528 = vmatprep.subr.bf16.mxu0 0
    %529 = vmatpush2.bf16.msra.mxu0 0
    %530 = vmatprep.subr.bf16.mxu0 0
    %531 = vmatpush2.bf16.msra.mxu0 0
    %532 = vmatprep.subr.bf16.mxu0 0
    %533 = vmatpush2.bf16.msra.mxu0 0
    %534 = vmatprep.subr.bf16.mxu0 0
    %535 = vmatpush2.bf16.msra.mxu0 0
    %536 = vmatprep.subr.bf16.mxu0 0
    %537 = vmatpush2.bf16.msra.mxu0 0
    %538 = vmatprep.subr.bf16.mxu0 0
    %539 = vmatpush2.bf16.msra.mxu0 0
    %540 = vmatprep.mubr.bf16.mxu0 0
    %541 = vmatmul.mubr.bf16.gmra.mxu0 %v260
    %v542 = vpop.f32.mrf.mxu0
    %v543 = vadd.f32 0.0, %v542
    %v544 = vpop.f32.mrf.mxu0
    %v545 = vadd.f32 0.0, %v544
    %v546 = vpop.f32.mrf.mxu0
    %v547 = vpop.f32.mrf.mxu0
    %548 = vdwg.mxu0
    %549 = vmatprep.subr.bf16.mxu0 0
    %550 = vmatpush1.bf16.msra.mxu0 0
    %551 = vmatprep.subr.bf16.mxu0 0
    %552 = vmatpush1.bf16.msra.mxu0 0
    %553 = vmatprep.subr.bf16.mxu0 0
    %554 = vmatpush1.bf16.msra.mxu0 0
    %555 = vmatprep.subr.bf16.mxu0 0
    %556 = vmatpush1.bf16.msra.mxu0 0
    %557 = vmatprep.subr.bf16.mxu0 0
    %558 = vmatpush1.bf16.msra.mxu0 0
    %559 = vmatprep.subr.bf16.mxu0 0
    %560 = vmatpush1.bf16.msra.mxu0 0
    %561 = vmatprep.subr.bf16.mxu0 %v225
    %562 = vmatpush1.bf16.msra.mxu0 %v224
    %563 = vmatprep.subr.bf16.mxu0 %v209
    %564 = vmatpush1.bf16.msra.mxu0 %v208
    %565 = vmatprep.subr.bf16.mxu0 0
    %566 = vmatpush2.bf16.msra.mxu0 0
    %567 = vmatprep.subr.bf16.mxu0 0
    %568 = vmatpush2.bf16.msra.mxu0 0
    %569 = vmatprep.subr.bf16.mxu0 0
    %570 = vmatpush2.bf16.msra.mxu0 0
    %571 = vmatprep.subr.bf16.mxu0 0
    %572 = vmatpush2.bf16.msra.mxu0 0
    %573 = vmatprep.subr.bf16.mxu0 0
    %574 = vmatpush2.bf16.msra.mxu0 0
    %575 = vmatprep.subr.bf16.mxu0 0
    %576 = vmatpush2.bf16.msra.mxu0 0
    %577 = vmatprep.subr.bf16.mxu0 0
    %578 = vmatpush2.bf16.msra.mxu0 0
    %579 = vmatprep.subr.bf16.mxu0 0
    %580 = vmatpush2.bf16.msra.mxu0 0
    %581 = vmatprep.mubr.bf16.mxu0 0
    %582 = vmatmul.mubr.bf16.gmra.mxu0 %v260
    %v583 = vpop.f32.mrf.mxu0
    %v584 = vadd.f32 0.0, %v583
    %v585 = vpop.f32.mrf.mxu0
    %v586 = vadd.f32 0.0, %v585
    %v587 = vpop.f32.mrf.mxu0
    %v588 = vpop.f32.mrf.mxu0
    %589 = vdwg.mxu0
    %vm590 = vcmask 1041408
    %v591 = vsel %vm590, %v297, 0.0
    %v592 = vrot.slane %v591, 4
    %v593 = vadd.f32 %v591, %v592
    %v594 = vrot.slane %v593, 2
    %v595 = vadd.f32 %v593, %v594
    %v596 = vrot.slane %v595, 1
    %v597 = vadd.f32 %v595, %v596
    %v598 = vsel %vm590, %v299, 0.0
    %v599 = vrot.slane %v598, 4
    %v600 = vadd.f32 %v598, %v599
    %v601 = vrot.slane %v600, 2
    %v602 = vadd.f32 %v600, %v601
    %v603 = vrot.slane %v602, 1
    %v604 = vadd.f32 %v602, %v603
    %v605 = vsel %vm590, %v338, 0.0
    %v606 = vrot.slane %v605, 4
    %v607 = vadd.f32 %v605, %v606
    %v608 = vrot.slane %v607, 2
    %v609 = vadd.f32 %v607, %v608
    %v610 = vrot.slane %v609, 1
    %v611 = vadd.f32 %v609, %v610
    %v612 = vsel %vm590, %v340, 0.0
    %v613 = vrot.slane %v612, 4
    %v614 = vadd.f32 %v612, %v613
    %v615 = vrot.slane %v614, 2
    %v616 = vadd.f32 %v614, %v615
    %v617 = vrot.slane %v616, 1
    %v618 = vadd.f32 %v616, %v617
    %v619 = vsel %vm590, %v379, 0.0
    %v620 = vrot.slane %v619, 4
    %v621 = vadd.f32 %v619, %v620
    %v622 = vrot.slane %v621, 2
    %v623 = vadd.f32 %v621, %v622
    %v624 = vrot.slane %v623, 1
    %v625 = vadd.f32 %v623, %v624
    %v626 = vsel %vm590, %v381, 0.0
    %v627 = vrot.slane %v626, 4
    %v628 = vadd.f32 %v626, %v627
    %v629 = vrot.slane %v628, 2
    %v630 = vadd.f32 %v628, %v629
    %v631 = vrot.slane %v630, 1
    %v632 = vadd.f32 %v630, %v631
    %v633 = vsel %vm590, %v420, 0.0
    %v634 = vrot.slane %v633, 4
    %v635 = vadd.f32 %v633, %v634
    %v636 = vrot.slane %v635, 2
    %v637 = vadd.f32 %v635, %v636
    %v638 = vrot.slane %v637, 1
    %v639 = vadd.f32 %v637, %v638
    %v640 = vsel %vm590, %v422, 0.0
    %v641 = vrot.slane %v640, 4
    %v642 = vadd.f32 %v640, %v641
    %v643 = vrot.slane %v642, 2
    %v644 = vadd.f32 %v642, %v643
    %v645 = vrot.slane %v644, 1
    %v646 = vadd.f32 %v644, %v645
    %v647 = vsel %vm590, %v461, 0.0
    %v648 = vrot.slane %v647, 4
    %v649 = vadd.f32 %v647, %v648
    %v650 = vrot.slane %v649, 2
    %v651 = vadd.f32 %v649, %v650
    %v652 = vrot.slane %v651, 1
    %v653 = vadd.f32 %v651, %v652
    %v654 = vsel %vm590, %v463, 0.0
    %v655 = vrot.slane %v654, 4
    %v656 = vadd.f32 %v654, %v655
    %v657 = vrot.slane %v656, 2
    %v658 = vadd.f32 %v656, %v657
    %v659 = vrot.slane %v658, 1
    %v660 = vadd.f32 %v658, %v659
    %v661 = vsel %vm590, %v502, 0.0
    %v662 = vrot.slane %v661, 4
    %v663 = vadd.f32 %v661, %v662
    %v664 = vrot.slane %v663, 2
    %v665 = vadd.f32 %v663, %v664
    %v666 = vrot.slane %v665, 1
    %v667 = vadd.f32 %v665, %v666
    %v668 = vsel %vm590, %v504, 0.0
    %v669 = vrot.slane %v668, 4
    %v670 = vadd.f32 %v668, %v669
    %v671 = vrot.slane %v670, 2
    %v672 = vadd.f32 %v670, %v671
    %v673 = vrot.slane %v672, 1
    %v674 = vadd.f32 %v672, %v673
    %v675 = vsel %vm590, %v543, 0.0
    %v676 = vrot.slane %v675, 4
    %v677 = vadd.f32 %v675, %v676
    %v678 = vrot.slane %v677, 2
    %v679 = vadd.f32 %v677, %v678
    %v680 = vrot.slane %v679, 1
    %v681 = vadd.f32 %v679, %v680
    %v682 = vsel %vm590, %v545, 0.0
    %v683 = vrot.slane %v682, 4
    %v684 = vadd.f32 %v682, %v683
    %v685 = vrot.slane %v684, 2
    %v686 = vadd.f32 %v684, %v685
    %v687 = vrot.slane %v686, 1
    %v688 = vadd.f32 %v686, %v687
    %v689 = vsel %vm590, %v584, 0.0
    %v690 = vrot.slane %v689, 4
    %v691 = vadd.f32 %v689, %v690
    %v692 = vrot.slane %v691, 2
    %v693 = vadd.f32 %v691, %v692
    %v694 = vrot.slane %v693, 1
    %v695 = vadd.f32 %v693, %v694
    %v696 = vsel %vm590, %v586, 0.0
    %v697 = vrot.slane %v696, 4
    %v698 = vadd.f32 %v696, %v697
    %v699 = vrot.slane %v698, 2
    %v700 = vadd.f32 %v698, %v699
    %v701 = vrot.slane %v700, 1
    %v702 = vadd.f32 %v700, %v701
    %v703 = vmul.f32 %v297, %v297
    %v704 = vmul.f32 %v299, %v299
    %v705 = vmul.f32 %v338, %v338
    %v706 = vmul.f32 %v340, %v340
    %v707 = vmul.f32 %v379, %v379
    %v708 = vmul.f32 %v381, %v381
    %v709 = vmul.f32 %v420, %v420
    %v710 = vmul.f32 %v422, %v422
    %v711 = vmul.f32 %v461, %v461
    %v712 = vmul.f32 %v463, %v463
    %v713 = vmul.f32 %v502, %v502
    %v714 = vmul.f32 %v504, %v504
    %v715 = vmul.f32 %v543, %v543
    %v716 = vmul.f32 %v545, %v545
    %v717 = vmul.f32 %v584, %v584
    %v718 = vmul.f32 %v586, %v586
    %v719 = vsel %vm590, %v703, 0.0
    %v720 = vrot.slane %v719, 4
    %v721 = vadd.f32 %v719, %v720
    %v722 = vrot.slane %v721, 2
    %v723 = vadd.f32 %v721, %v722
    %v724 = vrot.slane %v723, 1
    %v725 = vadd.f32 %v723, %v724
    %v726 = vsel %vm590, %v704, 0.0
    %v727 = vrot.slane %v726, 4
    %v728 = vadd.f32 %v726, %v727
    %v729 = vrot.slane %v728, 2
    %v730 = vadd.f32 %v728, %v729
    %v731 = vrot.slane %v730, 1
    %v732 = vadd.f32 %v730, %v731
    %v733 = vsel %vm590, %v705, 0.0
    %v734 = vrot.slane %v733, 4
    %v735 = vadd.f32 %v733, %v734
    %v736 = vrot.slane %v735, 2
    %v737 = vadd.f32 %v735, %v736
    %v738 = vrot.slane %v737, 1
    %v739 = vadd.f32 %v737, %v738
    %v740 = vsel %vm590, %v706, 0.0
    %v741 = vrot.slane %v740, 4
    %v742 = vadd.f32 %v740, %v741
    %v743 = vrot.slane %v742, 2
    %v744 = vadd.f32 %v742, %v743
    %v745 = vrot.slane %v744, 1
    %v746 = vadd.f32 %v744, %v745
    %v747 = vsel %vm590, %v707, 0.0
    %v748 = vrot.slane %v747, 4
    %v749 = vadd.f32 %v747, %v748
    %v750 = vrot.slane %v749, 2
    %v751 = vadd.f32 %v749, %v750
    %v752 = vrot.slane %v751, 1
    %v753 = vadd.f32 %v751, %v752
    %v754 = vsel %vm590, %v708, 0.0
    %v755 = vrot.slane %v754, 4
    %v756 = vadd.f32 %v754, %v755
    %v757 = vrot.slane %v756, 2
    %v758 = vadd.f32 %v756, %v757
    %v759 = vrot.slane %v758, 1
    %v760 = vadd.f32 %v758, %v759
    %v761 = vsel %vm590, %v709, 0.0
    %v762 = vrot.slane %v761, 4
    %v763 = vadd.f32 %v761, %v762
    %v764 = vrot.slane %v763, 2
    %v765 = vadd.f32 %v763, %v764
    %v766 = vrot.slane %v765, 1
    %v767 = vadd.f32 %v765, %v766
    %v768 = vsel %vm590, %v710, 0.0
    %v769 = vrot.slane %v768, 4
    %v770 = vadd.f32 %v768, %v769
    %v771 = vrot.slane %v770, 2
    %v772 = vadd.f32 %v770, %v771
    %v773 = vrot.slane %v772, 1
    %v774 = vadd.f32 %v772, %v773
    %v775 = vsel %vm590, %v711, 0.0
    %v776 = vrot.slane %v775, 4
    %v777 = vadd.f32 %v775, %v776
    %v778 = vrot.slane %v777, 2
    %v779 = vadd.f32 %v777, %v778
    %v780 = vrot.slane %v779, 1
    %v781 = vadd.f32 %v779, %v780
    %v782 = vsel %vm590, %v712, 0.0
    %v783 = vrot.slane %v782, 4
    %v784 = vadd.f32 %v782, %v783
    %v785 = vrot.slane %v784, 2
    %v786 = vadd.f32 %v784, %v785
    %v787 = vrot.slane %v786, 1
    %v788 = vadd.f32 %v786, %v787
    %v789 = vsel %vm590, %v713, 0.0
    %v790 = vrot.slane %v789, 4
    %v791 = vadd.f32 %v789, %v790
    %v792 = vrot.slane %v791, 2
    %v793 = vadd.f32 %v791, %v792
    %v794 = vrot.slane %v793, 1
    %v795 = vadd.f32 %v793, %v794
    %v796 = vsel %vm590, %v714, 0.0
    %v797 = vrot.slane %v796, 4
    %v798 = vadd.f32 %v796, %v797
    %v799 = vrot.slane %v798, 2
    %v800 = vadd.f32 %v798, %v799
    %v801 = vrot.slane %v800, 1
    %v802 = vadd.f32 %v800, %v801
    %v803 = vsel %vm590, %v715, 0.0
    %v804 = vrot.slane %v803, 4
    %v805 = vadd.f32 %v803, %v804
    %v806 = vrot.slane %v805, 2
    %v807 = vadd.f32 %v805, %v806
    %v808 = vrot.slane %v807, 1
    %v809 = vadd.f32 %v807, %v808
    %v810 = vsel %vm590, %v716, 0.0
    %v811 = vrot.slane %v810, 4
    %v812 = vadd.f32 %v810, %v811
    %v813 = vrot.slane %v812, 2
    %v814 = vadd.f32 %v812, %v813
    %v815 = vrot.slane %v814, 1
    %v816 = vadd.f32 %v814, %v815
    %v817 = vsel %vm590, %v717, 0.0
    %v818 = vrot.slane %v817, 4
    %v819 = vadd.f32 %v817, %v818
    %v820 = vrot.slane %v819, 2
    %v821 = vadd.f32 %v819, %v820
    %v822 = vrot.slane %v821, 1
    %v823 = vadd.f32 %v821, %v822
    %v824 = vsel %vm590, %v718, 0.0
    %v825 = vrot.slane %v824, 4
    %v826 = vadd.f32 %v824, %v825
    %v827 = vrot.slane %v826, 2
    %v828 = vadd.f32 %v826, %v827
    %v829 = vrot.slane %v828, 1
    %v830 = vadd.f32 %v828, %v829
    %v831 = vld [vmem:[#allocation4] sm:$0xff]
    %v832 = vld [vmem:[#allocation4 + $0x8] sm:$0xff]
    %v833 = vld [vmem:[#allocation4 + $0x10] sm:$0xff]
    %v834 = vld [vmem:[#allocation4 + $0x18] sm:$0xff]
    %v835 = vld [vmem:[#allocation4 + $0x20] sm:$0xff]
    %v836 = vld [vmem:[#allocation4 + $0x28] sm:$0xff]
    %v837 = vld [vmem:[#allocation4 + $0x30] sm:$0xff]
    %v838 = vld [vmem:[#allocation4 + $0x38] sm:$0xff]
    %v839 = vld [vmem:[#allocation4 + $0x40] sm:$0xff]
    %v840 = vld [vmem:[#allocation4 + $0x48] sm:$0xff]
    %v841 = vld [vmem:[#allocation4 + $0x50] sm:$0xff]
    %v842 = vld [vmem:[#allocation4 + $0x58] sm:$0xff]
    %v843 = vld [vmem:[#allocation4 + $0x60] sm:$0xff]
    %v844 = vld [vmem:[#allocation4 + $0x68] sm:$0xff]
    %v845 = vld [vmem:[#allocation4 + $0x70] sm:$0xff]
    %v846 = vld [vmem:[#allocation4 + $0x78] sm:$0xff]
    %v847 = vld [vmem:[#allocation4 + $0x80] sm:$0xff]
    %v848 = vld [vmem:[#allocation4 + $0x88] sm:$0xff]
    %v849 = vld [vmem:[#allocation4 + $0x90] sm:$0xff]
    %v850 = vld [vmem:[#allocation4 + $0x98] sm:$0xff]
    %v851 = vld [vmem:[#allocation4 + $0xa0] sm:$0xff]
    %v852 = vld [vmem:[#allocation4 + $0xa8] sm:$0xff]
    %v853 = vld [vmem:[#allocation4 + $0xb0] sm:$0xff]
    %v854 = vld [vmem:[#allocation4 + $0xb8] sm:$0xff]
    %v855 = vld [vmem:[#allocation4 + $0xc0] sm:$0xff]
    %v856 = vld [vmem:[#allocation4 + $0xc8] sm:$0xff]
    %v857 = vld [vmem:[#allocation4 + $0xd0] sm:$0xff]
    %v858 = vld [vmem:[#allocation4 + $0xd8] sm:$0xff]
    %v859 = vld [vmem:[#allocation4 + $0xe0] sm:$0xff]
    %v860 = vld [vmem:[#allocation4 + $0xe8] sm:$0xff]
    %v861 = vld [vmem:[#allocation4 + $0xf0] sm:$0xff]
    %v862 = vld [vmem:[#allocation4 + $0xf8] sm:$0xff]
    %v863 = vld [vmem:[#allocation4 + $0x100] sm:$0xff]
    %v864 = vld [vmem:[#allocation4 + $0x108] sm:$0xff]
    %v865 = vld [vmem:[#allocation4 + $0x110] sm:$0xff]
    %v866 = vld [vmem:[#allocation4 + $0x118] sm:$0xff]
    %v867 = vld [vmem:[#allocation4 + $0x120] sm:$0xff]
    %v868 = vld [vmem:[#allocation4 + $0x128] sm:$0xff]
    %v869 = vld [vmem:[#allocation4 + $0x130] sm:$0xff]
    %v870 = vld [vmem:[#allocation4 + $0x138] sm:$0xff]
    %v871 = vld [vmem:[#allocation4 + $0x140] sm:$0xff]
    %v872 = vld [vmem:[#allocation4 + $0x148] sm:$0xff]
    %v873 = vld [vmem:[#allocation4 + $0x150] sm:$0xff]
    %v874 = vld [vmem:[#allocation4 + $0x158] sm:$0xff]
    %v875 = vld [vmem:[#allocation4 + $0x160] sm:$0xff]
    %v876 = vld [vmem:[#allocation4 + $0x168] sm:$0xff]
    %v877 = vld [vmem:[#allocation4 + $0x170] sm:$0xff]
    %v878 = vld [vmem:[#allocation4 + $0x178] sm:$0xff]
    %v879 = vld [vmem:[#allocation4 + $0x180] sm:$0xff]
    %v880 = vld [vmem:[#allocation4 + $0x188] sm:$0xff]
    %v881 = vld [vmem:[#allocation4 + $0x190] sm:$0xff]
    %v882 = vld [vmem:[#allocation4 + $0x198] sm:$0xff]
    %v883 = vld [vmem:[#allocation4 + $0x1a0] sm:$0xff]
    %v884 = vld [vmem:[#allocation4 + $0x1a8] sm:$0xff]
    %v885 = vld [vmem:[#allocation4 + $0x1b0] sm:$0xff]
    %v886 = vld [vmem:[#allocation4 + $0x1b8] sm:$0xff]
    %v887 = vld [vmem:[#allocation4 + $0x1c0] sm:$0xff]
    %v888 = vld [vmem:[#allocation4 + $0x1c8] sm:$0xff]
    %v889 = vld [vmem:[#allocation4 + $0x1d0] sm:$0xff]
    %v890 = vld [vmem:[#allocation4 + $0x1d8] sm:$0xff]
    %v891 = vld [vmem:[#allocation4 + $0x1e0] sm:$0xff]
    %v892 = vld [vmem:[#allocation4 + $0x1e8] sm:$0xff]
    %v893 = vld [vmem:[#allocation4 + $0x1f0] sm:$0xff]
    %v894 = vld [vmem:[#allocation4 + $0x1f8] sm:$0xff]
    %v895 = vld [vmem:[#allocation4 + $0x200] sm:$0xff]
    %v896 = vld [vmem:[#allocation4 + $0x208] sm:$0xff]
    %v897 = vld [vmem:[#allocation4 + $0x210] sm:$0xff]
    %v898 = vld [vmem:[#allocation4 + $0x218] sm:$0xff]
    %v899 = vld [vmem:[#allocation4 + $0x220] sm:$0xff]
    %v900 = vld [vmem:[#allocation4 + $0x228] sm:$0xff]
    %v901 = vld [vmem:[#allocation4 + $0x230] sm:$0xff]
    %v902 = vld [vmem:[#allocation4 + $0x238] sm:$0xff]
    %v903 = vld [vmem:[#allocation4 + $0x240] sm:$0xff]
    %v904 = vld [vmem:[#allocation4 + $0x248] sm:$0xff]
    %v905 = vld [vmem:[#allocation4 + $0x250] sm:$0xff]
    %v906 = vld [vmem:[#allocation4 + $0x258] sm:$0xff]
    %v907 = vld [vmem:[#allocation4 + $0x260] sm:$0xff]
    %v908 = vld [vmem:[#allocation4 + $0x268] sm:$0xff]
    %v909 = vld [vmem:[#allocation4 + $0x270] sm:$0xff]
    %v910 = vld [vmem:[#allocation4 + $0x278] sm:$0xff]
    %v911 = vld [vmem:[#allocation4 + $0x280] sm:$0xff]
    %v912 = vld [vmem:[#allocation4 + $0x288] sm:$0xff]
    %v913 = vld [vmem:[#allocation4 + $0x290] sm:$0xff]
    %v914 = vld [vmem:[#allocation4 + $0x298] sm:$0xff]
    %v915 = vld [vmem:[#allocation4 + $0x2a0] sm:$0xff]
    %v916 = vld [vmem:[#allocation4 + $0x2a8] sm:$0xff]
    %v917 = vld [vmem:[#allocation4 + $0x2b0] sm:$0xff]
    %v918 = vld [vmem:[#allocation4 + $0x2b8] sm:$0xff]
    %v919 = vld [vmem:[#allocation4 + $0x2c0] sm:$0xff]
    %v920 = vld [vmem:[#allocation4 + $0x2c8] sm:$0xff]
    %v921 = vld [vmem:[#allocation4 + $0x2d0] sm:$0xff]
    %v922 = vld [vmem:[#allocation4 + $0x2d8] sm:$0xff]
    %v923 = vld [vmem:[#allocation4 + $0x2e0] sm:$0xff]
    %v924 = vld [vmem:[#allocation4 + $0x2e8] sm:$0xff]
    %v925 = vld [vmem:[#allocation4 + $0x2f0] sm:$0xff]
    %v926 = vld [vmem:[#allocation4 + $0x2f8] sm:$0xff]
    %v927 = vld [vmem:[#allocation4 + $0x300] sm:$0xff]
    %v928 = vld [vmem:[#allocation4 + $0x308] sm:$0xff]
    %v929 = vld [vmem:[#allocation4 + $0x310] sm:$0xff]
    %v930 = vld [vmem:[#allocation4 + $0x318] sm:$0xff]
    %v931 = vld [vmem:[#allocation4 + $0x320] sm:$0xff]
    %v932 = vld [vmem:[#allocation4 + $0x328] sm:$0xff]
    %v933 = vld [vmem:[#allocation4 + $0x330] sm:$0xff]
    %v934 = vld [vmem:[#allocation4 + $0x338] sm:$0xff]
    %v935 = vld [vmem:[#allocation4 + $0x340] sm:$0xff]
    %v936 = vld [vmem:[#allocation4 + $0x348] sm:$0xff]
    %v937 = vld [vmem:[#allocation4 + $0x350] sm:$0xff]
    %v938 = vld [vmem:[#allocation4 + $0x358] sm:$0xff]
    %v939 = vld [vmem:[#allocation4 + $0x360] sm:$0xff]
    %v940 = vld [vmem:[#allocation4 + $0x368] sm:$0xff]
    %v941 = vld [vmem:[#allocation4 + $0x370] sm:$0xff]
    %v942 = vld [vmem:[#allocation4 + $0x378] sm:$0xff]
    %v943 = vld [vmem:[#allocation4 + $0x380] sm:$0xff]
    %v944 = vld [vmem:[#allocation4 + $0x388] sm:$0xff]
    %v945 = vld [vmem:[#allocation4 + $0x390] sm:$0xff]
    %v946 = vld [vmem:[#allocation4 + $0x398] sm:$0xff]
    %v947 = vld [vmem:[#allocation4 + $0x3a0] sm:$0xff]
    %v948 = vld [vmem:[#allocation4 + $0x3a8] sm:$0xff]
    %v949 = vld [vmem:[#allocation4 + $0x3b0] sm:$0xff]
    %v950 = vld [vmem:[#allocation4 + $0x3b8] sm:$0xff]
    %v951 = vld [vmem:[#allocation4 + $0x3c0] sm:$0xff]
    %v952 = vld [vmem:[#allocation4 + $0x3c8] sm:$0xff]
    %v953 = vld [vmem:[#allocation4 + $0x3d0] sm:$0xff]
    %v954 = vld [vmem:[#allocation4 + $0x3d8] sm:$0xff]
    %v955 = vld [vmem:[#allocation4 + $0x3e0] sm:$0xff]
    %v956 = vld [vmem:[#allocation4 + $0x3e8] sm:$0xff]
    %v957 = vld [vmem:[#allocation4 + $0x3f0] sm:$0xff]
    %v958 = vld [vmem:[#allocation4 + $0x3f8] sm:$0xff]
    %v959 = vld [vmem:[#allocation4 + $0x400] sm:$0xff]
    %v960 = vld [vmem:[#allocation4 + $0x408] sm:$0xff]
    %v961 = vld [vmem:[#allocation4 + $0x410] sm:$0xff]
    %v962 = vld [vmem:[#allocation4 + $0x418] sm:$0xff]
    %v963 = vld [vmem:[#allocation4 + $0x420] sm:$0xff]
    %v964 = vld [vmem:[#allocation4 + $0x428] sm:$0xff]
    %v965 = vld [vmem:[#allocation4 + $0x430] sm:$0xff]
    %v966 = vld [vmem:[#allocation4 + $0x438] sm:$0xff]
    %v967 = vld [vmem:[#allocation4 + $0x440] sm:$0xff]
    %v968 = vld [vmem:[#allocation4 + $0x448] sm:$0xff]
    %v969 = vld [vmem:[#allocation4 + $0x450] sm:$0xff]
    %v970 = vld [vmem:[#allocation4 + $0x458] sm:$0xff]
    %v971 = vld [vmem:[#allocation4 + $0x460] sm:$0xff]
    %v972 = vld [vmem:[#allocation4 + $0x468] sm:$0xff]
    %v973 = vld [vmem:[#allocation4 + $0x470] sm:$0xff]
    %v974 = vld [vmem:[#allocation4 + $0x478] sm:$0xff]
    %v975 = vld [vmem:[#allocation4 + $0x480] sm:$0xff]
    %v976 = vld [vmem:[#allocation4 + $0x488] sm:$0xff]
    %v977 = vld [vmem:[#allocation4 + $0x490] sm:$0xff]
    %v978 = vld [vmem:[#allocation4 + $0x498] sm:$0xff]
    %v979 = vld [vmem:[#allocation4 + $0x4a0] sm:$0xff]
    %v980 = vld [vmem:[#allocation4 + $0x4a8] sm:$0xff]
    %v981 = vld [vmem:[#allocation4 + $0x4b0] sm:$0xff]
    %v982 = vld [vmem:[#allocation4 + $0x4b8] sm:$0xff]
    %v983 = vld [vmem:[#allocation4 + $0x4c0] sm:$0xff]
    %v984 = vld [vmem:[#allocation4 + $0x4c8] sm:$0xff]
    %v985 = vld [vmem:[#allocation4 + $0x4d0] sm:$0xff]
    %v986 = vld [vmem:[#allocation4 + $0x4d8] sm:$0xff]
    %v987 = vld [vmem:[#allocation4 + $0x4e0] sm:$0xff]
    %v988 = vld [vmem:[#allocation4 + $0x4e8] sm:$0xff]
    %v989 = vld [vmem:[#allocation4 + $0x4f0] sm:$0xff]
    %v990 = vld [vmem:[#allocation4 + $0x4f8] sm:$0xff]
    %v991 = vld [vmem:[#allocation4 + $0x500] sm:$0xff]
    %v992 = vld [vmem:[#allocation4 + $0x508] sm:$0xff]
    %v993 = vld [vmem:[#allocation4 + $0x510] sm:$0xff]
    %v994 = vld [vmem:[#allocation4 + $0x518] sm:$0xff]
    %v995 = vld [vmem:[#allocation4 + $0x520] sm:$0xff]
    %v996 = vld [vmem:[#allocation4 + $0x528] sm:$0xff]
    %v997 = vld [vmem:[#allocation4 + $0x530] sm:$0xff]
    %v998 = vld [vmem:[#allocation4 + $0x538] sm:$0xff]
    %v999 = vld [vmem:[#allocation4 + $0x540] sm:$0xff]
    %v1000 = vld [vmem:[#allocation4 + $0x548] sm:$0xff]
    %v1001 = vld [vmem:[#allocation4 + $0x550] sm:$0xff]
    %v1002 = vld [vmem:[#allocation4 + $0x558] sm:$0xff]
    %v1003 = vld [vmem:[#allocation4 + $0x560] sm:$0xff]
    %v1004 = vld [vmem:[#allocation4 + $0x568] sm:$0xff]
    %v1005 = vld [vmem:[#allocation4 + $0x570] sm:$0xff]
    %v1006 = vld [vmem:[#allocation4 + $0x578] sm:$0xff]
    %v1007 = vld [vmem:[#allocation4 + $0x580] sm:$0xff]
    %v1008 = vld [vmem:[#allocation4 + $0x588] sm:$0xff]
    %v1009 = vld [vmem:[#allocation4 + $0x590] sm:$0xff]
    %v1010 = vld [vmem:[#allocation4 + $0x598] sm:$0xff]
    %v1011 = vld [vmem:[#allocation4 + $0x5a0] sm:$0xff]
    %v1012 = vld [vmem:[#allocation4 + $0x5a8] sm:$0xff]
    %v1013 = vld [vmem:[#allocation4 + $0x5b0] sm:$0xff]
    %v1014 = vld [vmem:[#allocation4 + $0x5b8] sm:$0xff]
    %v1015 = vld [vmem:[#allocation4 + $0x5c0] sm:$0xff]
    %v1016 = vld [vmem:[#allocation4 + $0x5c8] sm:$0xff]
    %v1017 = vld [vmem:[#allocation4 + $0x5d0] sm:$0xff]
    %v1018 = vld [vmem:[#allocation4 + $0x5d8] sm:$0xff]
    %v1019 = vld [vmem:[#allocation4 + $0x5e0] sm:$0xff]
    %v1020 = vld [vmem:[#allocation4 + $0x5e8] sm:$0xff]
    %v1021 = vld [vmem:[#allocation4 + $0x5f0] sm:$0xff]
    %v1022 = vld [vmem:[#allocation4 + $0x5f8] sm:$0xff]
    %v1023 = vld [vmem:[#allocation4 + $0x600] sm:$0xff]
    %v1024 = vld [vmem:[#allocation4 + $0x608] sm:$0xff]
    %v1025 = vld [vmem:[#allocation4 + $0x610] sm:$0xff]
    %v1026 = vld [vmem:[#allocation4 + $0x618] sm:$0xff]
    %v1027 = vld [vmem:[#allocation4 + $0x620] sm:$0xff]
    %v1028 = vld [vmem:[#allocation4 + $0x628] sm:$0xff]
    %v1029 = vld [vmem:[#allocation4 + $0x630] sm:$0xff]
    %v1030 = vld [vmem:[#allocation4 + $0x638] sm:$0xff]
    %v1031 = vld [vmem:[#allocation4 + $0x640] sm:$0xff]
    %v1032 = vld [vmem:[#allocation4 + $0x648] sm:$0xff]
    %v1033 = vld [vmem:[#allocation4 + $0x650] sm:$0xff]
    %v1034 = vld [vmem:[#allocation4 + $0x658] sm:$0xff]
    %v1035 = vld [vmem:[#allocation4 + $0x660] sm:$0xff]
    %v1036 = vld [vmem:[#allocation4 + $0x668] sm:$0xff]
    %v1037 = vld [vmem:[#allocation4 + $0x670] sm:$0xff]
    %v1038 = vld [vmem:[#allocation4 + $0x678] sm:$0xff]
    %v1039 = vld [vmem:[#allocation4 + $0x680] sm:$0xff]
    %v1040 = vld [vmem:[#allocation4 + $0x688] sm:$0xff]
    %v1041 = vld [vmem:[#allocation4 + $0x690] sm:$0xff]
    %v1042 = vld [vmem:[#allocation4 + $0x698] sm:$0xff]
    %v1043 = vld [vmem:[#allocation4 + $0x6a0] sm:$0xff]
    %v1044 = vld [vmem:[#allocation4 + $0x6a8] sm:$0xff]
    %v1045 = vld [vmem:[#allocation4 + $0x6b0] sm:$0xff]
    %v1046 = vld [vmem:[#allocation4 + $0x6b8] sm:$0xff]
    %v1047 = vld [vmem:[#allocation4 + $0x6c0] sm:$0xff]
    %v1048 = vld [vmem:[#allocation4 + $0x6c8] sm:$0xff]
    %v1049 = vld [vmem:[#allocation4 + $0x6d0] sm:$0xff]
    %v1050 = vld [vmem:[#allocation4 + $0x6d8] sm:$0xff]
    %v1051 = vld [vmem:[#allocation4 + $0x6e0] sm:$0xff]
    %v1052 = vld [vmem:[#allocation4 + $0x6e8] sm:$0xff]
    %v1053 = vld [vmem:[#allocation4 + $0x6f0] sm:$0xff]
    %v1054 = vld [vmem:[#allocation4 + $0x6f8] sm:$0xff]
    %v1055 = vld [vmem:[#allocation4 + $0x700] sm:$0xff]
    %v1056 = vld [vmem:[#allocation4 + $0x708] sm:$0xff]
    %v1057 = vld [vmem:[#allocation4 + $0x710] sm:$0xff]
    %v1058 = vld [vmem:[#allocation4 + $0x718] sm:$0xff]
    %v1059 = vld [vmem:[#allocation4 + $0x720] sm:$0xff]
    %v1060 = vld [vmem:[#allocation4 + $0x728] sm:$0xff]
    %v1061 = vld [vmem:[#allocation4 + $0x730] sm:$0xff]
    %v1062 = vld [vmem:[#allocation4 + $0x738] sm:$0xff]
    %v1063 = vld [vmem:[#allocation4 + $0x740] sm:$0xff]
    %v1064 = vld [vmem:[#allocation4 + $0x748] sm:$0xff]
    %v1065 = vld [vmem:[#allocation4 + $0x750] sm:$0xff]
    %v1066 = vld [vmem:[#allocation4 + $0x758] sm:$0xff]
    %v1067 = vld [vmem:[#allocation4 + $0x760] sm:$0xff]
    %v1068 = vld [vmem:[#allocation4 + $0x768] sm:$0xff]
    %v1069 = vld [vmem:[#allocation4 + $0x770] sm:$0xff]
    %v1070 = vld [vmem:[#allocation4 + $0x778] sm:$0xff]
    %v1071 = vld [vmem:[#allocation4 + $0x780] sm:$0xff]
    %v1072 = vld [vmem:[#allocation4 + $0x788] sm:$0xff]
    %v1073 = vld [vmem:[#allocation4 + $0x790] sm:$0xff]
    %v1074 = vld [vmem:[#allocation4 + $0x798] sm:$0xff]
    %v1075 = vld [vmem:[#allocation4 + $0x7a0] sm:$0xff]
    %v1076 = vld [vmem:[#allocation4 + $0x7a8] sm:$0xff]
    %v1077 = vld [vmem:[#allocation4 + $0x7b0] sm:$0xff]
    %v1078 = vld [vmem:[#allocation4 + $0x7b8] sm:$0xff]
    %v1079 = vld [vmem:[#allocation4 + $0x7c0] sm:$0xff]
    %v1080 = vld [vmem:[#allocation4 + $0x7c8] sm:$0xff]
    %v1081 = vld [vmem:[#allocation4 + $0x7d0] sm:$0xff]
    %v1082 = vld [vmem:[#allocation4 + $0x7d8] sm:$0xff]
    %v1083 = vld [vmem:[#allocation4 + $0x7e0] sm:$0xff]
    %v1084 = vld [vmem:[#allocation4 + $0x7e8] sm:$0xff]
    %v1085 = vld [vmem:[#allocation4 + $0x7f0] sm:$0xff]
    %v1086 = vld [vmem:[#allocation4 + $0x7f8] sm:$0xff]
    %1087 = vmatprep.subr.mxu0 0.0
    %1088 = vmatpush1.msra.mxu0 %v846
    %1089 = vmatprep.subr.mxu0 0.0
    %1090 = vmatpush1.msra.mxu0 %v845
    %1091 = vmatprep.subr.mxu0 0.0
    %1092 = vmatpush1.msra.mxu0 %v844
    %1093 = vmatprep.subr.mxu0 0.0
    %1094 = vmatpush1.msra.mxu0 %v843
    %1095 = vmatprep.subr.mxu0 0.0
    %1096 = vmatpush1.msra.mxu0 %v842
    %1097 = vmatprep.subr.mxu0 0.0
    %1098 = vmatpush1.msra.mxu0 %v841
    %1099 = vmatprep.subr.mxu0 0.0
    %1100 = vmatpush1.msra.mxu0 %v840
    %1101 = vmatprep.subr.mxu0 0.0
    %1102 = vmatpush1.msra.mxu0 %v839
    %1103 = vmatprep.subr.mxu0 0.0
    %1104 = vmatpush1.msra.mxu0 %v838
    %1105 = vmatprep.subr.mxu0 0.0
    %1106 = vmatpush1.msra.mxu0 %v837
    %1107 = vmatprep.subr.mxu0 0.0
    %1108 = vmatpush1.msra.mxu0 %v836
    %1109 = vmatprep.subr.mxu0 0.0
    %1110 = vmatpush1.msra.mxu0 %v835
    %1111 = vmatprep.subr.mxu0 0.0
    %1112 = vmatpush1.msra.mxu0 %v834
    %1113 = vmatprep.subr.mxu0 0.0
    %1114 = vmatpush1.msra.mxu0 %v833
    %1115 = vmatprep.subr.mxu0 0.0
    %1116 = vmatpush1.msra.mxu0 %v832
    %1117 = vmatprep.subr.mxu0 0.0
    %1118 = vmatpush1.msra.mxu0 %v831
    %1119 = vmatprep.subr.mxu0 0.0
    %1120 = vmatpush2.msra.mxu0 %v862
    %1121 = vmatprep.subr.mxu0 0.0
    %1122 = vmatpush2.msra.mxu0 %v861
    %1123 = vmatprep.subr.mxu0 0.0
    %1124 = vmatpush2.msra.mxu0 %v860
    %1125 = vmatprep.subr.mxu0 0.0
    %1126 = vmatpush2.msra.mxu0 %v859
    %1127 = vmatprep.subr.mxu0 0.0
    %1128 = vmatpush2.msra.mxu0 %v858
    %1129 = vmatprep.subr.mxu0 0.0
    %1130 = vmatpush2.msra.mxu0 %v857
    %1131 = vmatprep.subr.mxu0 0.0
    %1132 = vmatpush2.msra.mxu0 %v856
    %1133 = vmatprep.subr.mxu0 0.0
    %1134 = vmatpush2.msra.mxu0 %v855
    %1135 = vmatprep.subr.mxu0 0.0
    %1136 = vmatpush2.msra.mxu0 %v854
    %1137 = vmatprep.subr.mxu0 0.0
    %1138 = vmatpush2.msra.mxu0 %v853
    %1139 = vmatprep.subr.mxu0 0.0
    %1140 = vmatpush2.msra.mxu0 %v852
    %1141 = vmatprep.subr.mxu0 0.0
    %1142 = vmatpush2.msra.mxu0 %v851
    %1143 = vmatprep.subr.mxu0 0.0
    %1144 = vmatpush2.msra.mxu0 %v850
    %1145 = vmatprep.subr.mxu0 0.0
    %1146 = vmatpush2.msra.mxu0 %v849
    %1147 = vmatprep.subr.mxu0 0.0
    %1148 = vmatpush2.msra.mxu0 %v848
    %1149 = vmatprep.subr.mxu0 0.0
    %1150 = vmatpush2.msra.mxu0 %v847
    %1151 = vmatprep.mubr.f32.mxu0 %v604
    %1152 = vmatmul.mubr.f32.gmra.mxu0 %v597
    %v1153 = vpop.f32.mrf.mxu0
    %v1154 = vadd.f32 0.0, %v1153
    %v1155 = vpop.f32.mrf.mxu0
    %1156 = vdwg.mxu0
    %1157 = vmatprep.subr.mxu0 0.0
    %1158 = vmatpush1.msra.mxu0 %v878
    %1159 = vmatprep.subr.mxu0 0.0
    %1160 = vmatpush1.msra.mxu0 %v877
    %1161 = vmatprep.subr.mxu0 0.0
    %1162 = vmatpush1.msra.mxu0 %v876
    %1163 = vmatprep.subr.mxu0 0.0
    %1164 = vmatpush1.msra.mxu0 %v875
    %1165 = vmatprep.subr.mxu0 0.0
    %1166 = vmatpush1.msra.mxu0 %v874
    %1167 = vmatprep.subr.mxu0 0.0
    %1168 = vmatpush1.msra.mxu0 %v873
    %1169 = vmatprep.subr.mxu0 0.0
    %1170 = vmatpush1.msra.mxu0 %v872
    %1171 = vmatprep.subr.mxu0 0.0
    %1172 = vmatpush1.msra.mxu0 %v871
    %1173 = vmatprep.subr.mxu0 0.0
    %1174 = vmatpush1.msra.mxu0 %v870
    %1175 = vmatprep.subr.mxu0 0.0
    %1176 = vmatpush1.msra.mxu0 %v869
    %1177 = vmatprep.subr.mxu0 0.0
    %1178 = vmatpush1.msra.mxu0 %v868
    %1179 = vmatprep.subr.mxu0 0.0
    %1180 = vmatpush1.msra.mxu0 %v867
    %1181 = vmatprep.subr.mxu0 0.0
    %1182 = vmatpush1.msra.mxu0 %v866
    %1183 = vmatprep.subr.mxu0 0.0
    %1184 = vmatpush1.msra.mxu0 %v865
    %1185 = vmatprep.subr.mxu0 0.0
    %1186 = vmatpush1.msra.mxu0 %v864
    %1187 = vmatprep.subr.mxu0 0.0
    %1188 = vmatpush1.msra.mxu0 %v863
    %1189 = vmatprep.subr.mxu0 0.0
    %1190 = vmatpush2.msra.mxu0 %v894
    %1191 = vmatprep.subr.mxu0 0.0
    %1192 = vmatpush2.msra.mxu0 %v893
    %1193 = vmatprep.subr.mxu0 0.0
    %1194 = vmatpush2.msra.mxu0 %v892
    %1195 = vmatprep.subr.mxu0 0.0
    %1196 = vmatpush2.msra.mxu0 %v891
    %1197 = vmatprep.subr.mxu0 0.0
    %1198 = vmatpush2.msra.mxu0 %v890
    %1199 = vmatprep.subr.mxu0 0.0
    %1200 = vmatpush2.msra.mxu0 %v889
    %1201 = vmatprep.subr.mxu0 0.0
    %1202 = vmatpush2.msra.mxu0 %v888
    %1203 = vmatprep.subr.mxu0 0.0
    %1204 = vmatpush2.msra.mxu0 %v887
    %1205 = vmatprep.subr.mxu0 0.0
    %1206 = vmatpush2.msra.mxu0 %v886
    %1207 = vmatprep.subr.mxu0 0.0
    %1208 = vmatpush2.msra.mxu0 %v885
    %1209 = vmatprep.subr.mxu0 0.0
    %1210 = vmatpush2.msra.mxu0 %v884
    %1211 = vmatprep.subr.mxu0 0.0
    %1212 = vmatpush2.msra.mxu0 %v883
    %1213 = vmatprep.subr.mxu0 0.0
    %1214 = vmatpush2.msra.mxu0 %v882
    %1215 = vmatprep.subr.mxu0 0.0
    %1216 = vmatpush2.msra.mxu0 %v881
    %1217 = vmatprep.subr.mxu0 0.0
    %1218 = vmatpush2.msra.mxu0 %v880
    %1219 = vmatprep.subr.mxu0 0.0
    %1220 = vmatpush2.msra.mxu0 %v879
    %1221 = vmatprep.mubr.f32.mxu0 %v618
    %1222 = vmatmul.mubr.f32.gmra.mxu0 %v611
    %v1223 = vpop.f32.mrf.mxu0
    %v1224 = vadd.f32 %v1154, %v1223
    %v1225 = vpop.f32.mrf.mxu0
    %1226 = vdwg.mxu0
    %1227 = vmatprep.subr.mxu0 0.0
    %1228 = vmatpush1.msra.mxu0 %v910
    %1229 = vmatprep.subr.mxu0 0.0
    %1230 = vmatpush1.msra.mxu0 %v909
    %1231 = vmatprep.subr.mxu0 0.0
    %1232 = vmatpush1.msra.mxu0 %v908
    %1233 = vmatprep.subr.mxu0 0.0
    %1234 = vmatpush1.msra.mxu0 %v907
    %1235 = vmatprep.subr.mxu0 0.0
    %1236 = vmatpush1.msra.mxu0 %v906
    %1237 = vmatprep.subr.mxu0 0.0
    %1238 = vmatpush1.msra.mxu0 %v905
    %1239 = vmatprep.subr.mxu0 0.0
    %1240 = vmatpush1.msra.mxu0 %v904
    %1241 = vmatprep.subr.mxu0 0.0
    %1242 = vmatpush1.msra.mxu0 %v903
    %1243 = vmatprep.subr.mxu0 0.0
    %1244 = vmatpush1.msra.mxu0 %v902
    %1245 = vmatprep.subr.mxu0 0.0
    %1246 = vmatpush1.msra.mxu0 %v901
    %1247 = vmatprep.subr.mxu0 0.0
    %1248 = vmatpush1.msra.mxu0 %v900
    %1249 = vmatprep.subr.mxu0 0.0
    %1250 = vmatpush1.msra.mxu0 %v899
    %1251 = vmatprep.subr.mxu0 0.0
    %1252 = vmatpush1.msra.mxu0 %v898
    %1253 = vmatprep.subr.mxu0 0.0
    %1254 = vmatpush1.msra.mxu0 %v897
    %1255 = vmatprep.subr.mxu0 0.0
    %1256 = vmatpush1.msra.mxu0 %v896
    %1257 = vmatprep.subr.mxu0 0.0
    %1258 = vmatpush1.msra.mxu0 %v895
    %1259 = vmatprep.subr.mxu0 0.0
    %1260 = vmatpush2.msra.mxu0 %v926
    %1261 = vmatprep.subr.mxu0 0.0
    %1262 = vmatpush2.msra.mxu0 %v925
    %1263 = vmatprep.subr.mxu0 0.0
    %1264 = vmatpush2.msra.mxu0 %v924
    %1265 = vmatprep.subr.mxu0 0.0
    %1266 = vmatpush2.msra.mxu0 %v923
    %1267 = vmatprep.subr.mxu0 0.0
    %1268 = vmatpush2.msra.mxu0 %v922
    %1269 = vmatprep.subr.mxu0 0.0
    %1270 = vmatpush2.msra.mxu0 %v921
    %1271 = vmatprep.subr.mxu0 0.0
    %1272 = vmatpush2.msra.mxu0 %v920
    %1273 = vmatprep.subr.mxu0 0.0
    %1274 = vmatpush2.msra.mxu0 %v919
    %1275 = vmatprep.subr.mxu0 0.0
    %1276 = vmatpush2.msra.mxu0 %v918
    %1277 = vmatprep.subr.mxu0 0.0
    %1278 = vmatpush2.msra.mxu0 %v917
    %1279 = vmatprep.subr.mxu0 0.0
    %1280 = vmatpush2.msra.mxu0 %v916
    %1281 = vmatprep.subr.mxu0 0.0
    %1282 = vmatpush2.msra.mxu0 %v915
    %1283 = vmatprep.subr.mxu0 0.0
    %1284 = vmatpush2.msra.mxu0 %v914
    %1285 = vmatprep.subr.mxu0 0.0
    %1286 = vmatpush2.msra.mxu0 %v913
    %1287 = vmatprep.subr.mxu0 0.0
    %1288 = vmatpush2.msra.mxu0 %v912
    %1289 = vmatprep.subr.mxu0 0.0
    %1290 = vmatpush2.msra.mxu0 %v911
    %1291 = vmatprep.mubr.f32.mxu0 %v632
    %1292 = vmatmul.mubr.f32.gmra.mxu0 %v625
    %v1293 = vpop.f32.mrf.mxu0
    %v1294 = vadd.f32 %v1224, %v1293
    %v1295 = vpop.f32.mrf.mxu0
    %1296 = vdwg.mxu0
    %1297 = vmatprep.subr.mxu0 0.0
    %1298 = vmatpush1.msra.mxu0 %v942
    %1299 = vmatprep.subr.mxu0 0.0
    %1300 = vmatpush1.msra.mxu0 %v941
    %1301 = vmatprep.subr.mxu0 0.0
    %1302 = vmatpush1.msra.mxu0 %v940
    %1303 = vmatprep.subr.mxu0 0.0
    %1304 = vmatpush1.msra.mxu0 %v939
    %1305 = vmatprep.subr.mxu0 0.0
    %1306 = vmatpush1.msra.mxu0 %v938
    %1307 = vmatprep.subr.mxu0 0.0
    %1308 = vmatpush1.msra.mxu0 %v937
    %1309 = vmatprep.subr.mxu0 0.0
    %1310 = vmatpush1.msra.mxu0 %v936
    %1311 = vmatprep.subr.mxu0 0.0
    %1312 = vmatpush1.msra.mxu0 %v935
    %1313 = vmatprep.subr.mxu0 0.0
    %1314 = vmatpush1.msra.mxu0 %v934
    %1315 = vmatprep.subr.mxu0 0.0
    %1316 = vmatpush1.msra.mxu0 %v933
    %1317 = vmatprep.subr.mxu0 0.0
    %1318 = vmatpush1.msra.mxu0 %v932
    %1319 = vmatprep.subr.mxu0 0.0
    %1320 = vmatpush1.msra.mxu0 %v931
    %1321 = vmatprep.subr.mxu0 0.0
    %1322 = vmatpush1.msra.mxu0 %v930
    %1323 = vmatprep.subr.mxu0 0.0
    %1324 = vmatpush1.msra.mxu0 %v929
    %1325 = vmatprep.subr.mxu0 0.0
    %1326 = vmatpush1.msra.mxu0 %v928
    %1327 = vmatprep.subr.mxu0 0.0
    %1328 = vmatpush1.msra.mxu0 %v927
    %1329 = vmatprep.subr.mxu0 0.0
    %1330 = vmatpush2.msra.mxu0 %v958
    %1331 = vmatprep.subr.mxu0 0.0
    %1332 = vmatpush2.msra.mxu0 %v957
    %1333 = vmatprep.subr.mxu0 0.0
    %1334 = vmatpush2.msra.mxu0 %v956
    %1335 = vmatprep.subr.mxu0 0.0
    %1336 = vmatpush2.msra.mxu0 %v955
    %1337 = vmatprep.subr.mxu0 0.0
    %1338 = vmatpush2.msra.mxu0 %v954
    %1339 = vmatprep.subr.mxu0 0.0
    %1340 = vmatpush2.msra.mxu0 %v953
    %1341 = vmatprep.subr.mxu0 0.0
    %1342 = vmatpush2.msra.mxu0 %v952
    %1343 = vmatprep.subr.mxu0 0.0
    %1344 = vmatpush2.msra.mxu0 %v951
    %1345 = vmatprep.subr.mxu0 0.0
    %1346 = vmatpush2.msra.mxu0 %v950
    %1347 = vmatprep.subr.mxu0 0.0
    %1348 = vmatpush2.msra.mxu0 %v949
    %1349 = vmatprep.subr.mxu0 0.0
    %1350 = vmatpush2.msra.mxu0 %v948
    %1351 = vmatprep.subr.mxu0 0.0
    %1352 = vmatpush2.msra.mxu0 %v947
    %1353 = vmatprep.subr.mxu0 0.0
    %1354 = vmatpush2.msra.mxu0 %v946
    %1355 = vmatprep.subr.mxu0 0.0
    %1356 = vmatpush2.msra.mxu0 %v945
    %1357 = vmatprep.subr.mxu0 0.0
    %1358 = vmatpush2.msra.mxu0 %v944
    %1359 = vmatprep.subr.mxu0 0.0
    %1360 = vmatpush2.msra.mxu0 %v943
    %1361 = vmatprep.mubr.f32.mxu0 %v646
    %1362 = vmatmul.mubr.f32.gmra.mxu0 %v639
    %v1363 = vpop.f32.mrf.mxu0
    %v1364 = vadd.f32 %v1294, %v1363
    %v1365 = vpop.f32.mrf.mxu0
    %1366 = vdwg.mxu0
    %1367 = vmatprep.subr.mxu0 0.0
    %1368 = vmatpush1.msra.mxu0 %v974
    %1369 = vmatprep.subr.mxu0 0.0
    %1370 = vmatpush1.msra.mxu0 %v973
    %1371 = vmatprep.subr.mxu0 0.0
    %1372 = vmatpush1.msra.mxu0 %v972
    %1373 = vmatprep.subr.mxu0 0.0
    %1374 = vmatpush1.msra.mxu0 %v971
    %1375 = vmatprep.subr.mxu0 0.0
    %1376 = vmatpush1.msra.mxu0 %v970
    %1377 = vmatprep.subr.mxu0 0.0
    %1378 = vmatpush1.msra.mxu0 %v969
    %1379 = vmatprep.subr.mxu0 0.0
    %1380 = vmatpush1.msra.mxu0 %v968
    %1381 = vmatprep.subr.mxu0 0.0
    %1382 = vmatpush1.msra.mxu0 %v967
    %1383 = vmatprep.subr.mxu0 0.0
    %1384 = vmatpush1.msra.mxu0 %v966
    %1385 = vmatprep.subr.mxu0 0.0
    %1386 = vmatpush1.msra.mxu0 %v965
    %1387 = vmatprep.subr.mxu0 0.0
    %1388 = vmatpush1.msra.mxu0 %v964
    %1389 = vmatprep.subr.mxu0 0.0
    %1390 = vmatpush1.msra.mxu0 %v963
    %1391 = vmatprep.subr.mxu0 0.0
    %1392 = vmatpush1.msra.mxu0 %v962
    %1393 = vmatprep.subr.mxu0 0.0
    %1394 = vmatpush1.msra.mxu0 %v961
    %1395 = vmatprep.subr.mxu0 0.0
    %1396 = vmatpush1.msra.mxu0 %v960
    %1397 = vmatprep.subr.mxu0 0.0
    %1398 = vmatpush1.msra.mxu0 %v959
    %1399 = vmatprep.subr.mxu0 0.0
    %1400 = vmatpush2.msra.mxu0 %v990
    %1401 = vmatprep.subr.mxu0 0.0
    %1402 = vmatpush2.msra.mxu0 %v989
    %1403 = vmatprep.subr.mxu0 0.0
    %1404 = vmatpush2.msra.mxu0 %v988
    %1405 = vmatprep.subr.mxu0 0.0
    %1406 = vmatpush2.msra.mxu0 %v987
    %1407 = vmatprep.subr.mxu0 0.0
    %1408 = vmatpush2.msra.mxu0 %v986
    %1409 = vmatprep.subr.mxu0 0.0
    %1410 = vmatpush2.msra.mxu0 %v985
    %1411 = vmatprep.subr.mxu0 0.0
    %1412 = vmatpush2.msra.mxu0 %v984
    %1413 = vmatprep.subr.mxu0 0.0
    %1414 = vmatpush2.msra.mxu0 %v983
    %1415 = vmatprep.subr.mxu0 0.0
    %1416 = vmatpush2.msra.mxu0 %v982
    %1417 = vmatprep.subr.mxu0 0.0
    %1418 = vmatpush2.msra.mxu0 %v981
    %1419 = vmatprep.subr.mxu0 0.0
    %1420 = vmatpush2.msra.mxu0 %v980
    %1421 = vmatprep.subr.mxu0 0.0
    %1422 = vmatpush2.msra.mxu0 %v979
    %1423 = vmatprep.subr.mxu0 0.0
    %1424 = vmatpush2.msra.mxu0 %v978
    %1425 = vmatprep.subr.mxu0 0.0
    %1426 = vmatpush2.msra.mxu0 %v977
    %1427 = vmatprep.subr.mxu0 0.0
    %1428 = vmatpush2.msra.mxu0 %v976
    %1429 = vmatprep.subr.mxu0 0.0
    %1430 = vmatpush2.msra.mxu0 %v975
    %1431 = vmatprep.mubr.f32.mxu0 %v660
    %1432 = vmatmul.mubr.f32.gmra.mxu0 %v653
    %v1433 = vpop.f32.mrf.mxu0
    %v1434 = vadd.f32 %v1364, %v1433
    %v1435 = vpop.f32.mrf.mxu0
    %1436 = vdwg.mxu0
    %1437 = vmatprep.subr.mxu0 0.0
    %1438 = vmatpush1.msra.mxu0 %v1006
    %1439 = vmatprep.subr.mxu0 0.0
    %1440 = vmatpush1.msra.mxu0 %v1005
    %1441 = vmatprep.subr.mxu0 0.0
    %1442 = vmatpush1.msra.mxu0 %v1004
    %1443 = vmatprep.subr.mxu0 0.0
    %1444 = vmatpush1.msra.mxu0 %v1003
    %1445 = vmatprep.subr.mxu0 0.0
    %1446 = vmatpush1.msra.mxu0 %v1002
    %1447 = vmatprep.subr.mxu0 0.0
    %1448 = vmatpush1.msra.mxu0 %v1001
    %1449 = vmatprep.subr.mxu0 0.0
    %1450 = vmatpush1.msra.mxu0 %v1000
    %1451 = vmatprep.subr.mxu0 0.0
    %1452 = vmatpush1.msra.mxu0 %v999
    %1453 = vmatprep.subr.mxu0 0.0
    %1454 = vmatpush1.msra.mxu0 %v998
    %1455 = vmatprep.subr.mxu0 0.0
    %1456 = vmatpush1.msra.mxu0 %v997
    %1457 = vmatprep.subr.mxu0 0.0
    %1458 = vmatpush1.msra.mxu0 %v996
    %1459 = vmatprep.subr.mxu0 0.0
    %1460 = vmatpush1.msra.mxu0 %v995
    %1461 = vmatprep.subr.mxu0 0.0
    %1462 = vmatpush1.msra.mxu0 %v994
    %1463 = vmatprep.subr.mxu0 0.0
    %1464 = vmatpush1.msra.mxu0 %v993
    %1465 = vmatprep.subr.mxu0 0.0
    %1466 = vmatpush1.msra.mxu0 %v992
    %1467 = vmatprep.subr.mxu0 0.0
    %1468 = vmatpush1.msra.mxu0 %v991
    %1469 = vmatprep.subr.mxu0 0.0
    %1470 = vmatpush2.msra.mxu0 %v1022
    %1471 = vmatprep.subr.mxu0 0.0
    %1472 = vmatpush2.msra.mxu0 %v1021
    %1473 = vmatprep.subr.mxu0 0.0
    %1474 = vmatpush2.msra.mxu0 %v1020
    %1475 = vmatprep.subr.mxu0 0.0
    %1476 = vmatpush2.msra.mxu0 %v1019
    %1477 = vmatprep.subr.mxu0 0.0
    %1478 = vmatpush2.msra.mxu0 %v1018
    %1479 = vmatprep.subr.mxu0 0.0
    %1480 = vmatpush2.msra.mxu0 %v1017
    %1481 = vmatprep.subr.mxu0 0.0
    %1482 = vmatpush2.msra.mxu0 %v1016
    %1483 = vmatprep.subr.mxu0 0.0
    %1484 = vmatpush2.msra.mxu0 %v1015
    %1485 = vmatprep.subr.mxu0 0.0
    %1486 = vmatpush2.msra.mxu0 %v1014
    %1487 = vmatprep.subr.mxu0 0.0
    %1488 = vmatpush2.msra.mxu0 %v1013
    %1489 = vmatprep.subr.mxu0 0.0
    %1490 = vmatpush2.msra.mxu0 %v1012
    %1491 = vmatprep.subr.mxu0 0.0
    %1492 = vmatpush2.msra.mxu0 %v1011
    %1493 = vmatprep.subr.mxu0 0.0
    %1494 = vmatpush2.msra.mxu0 %v1010
    %1495 = vmatprep.subr.mxu0 0.0
    %1496 = vmatpush2.msra.mxu0 %v1009
    %1497 = vmatprep.subr.mxu0 0.0
    %1498 = vmatpush2.msra.mxu0 %v1008
    %1499 = vmatprep.subr.mxu0 0.0
    %1500 = vmatpush2.msra.mxu0 %v1007
    %1501 = vmatprep.mubr.f32.mxu0 %v674
    %1502 = vmatmul.mubr.f32.gmra.mxu0 %v667
    %v1503 = vpop.f32.mrf.mxu0
    %v1504 = vadd.f32 %v1434, %v1503
    %v1505 = vpop.f32.mrf.mxu0
    %1506 = vdwg.mxu0
    %1507 = vmatprep.subr.mxu0 0.0
    %1508 = vmatpush1.msra.mxu0 %v1038
    %1509 = vmatprep.subr.mxu0 0.0
    %1510 = vmatpush1.msra.mxu0 %v1037
    %1511 = vmatprep.subr.mxu0 0.0
    %1512 = vmatpush1.msra.mxu0 %v1036
    %1513 = vmatprep.subr.mxu0 0.0
    %1514 = vmatpush1.msra.mxu0 %v1035
    %1515 = vmatprep.subr.mxu0 0.0
    %1516 = vmatpush1.msra.mxu0 %v1034
    %1517 = vmatprep.subr.mxu0 0.0
    %1518 = vmatpush1.msra.mxu0 %v1033
    %1519 = vmatprep.subr.mxu0 0.0
    %1520 = vmatpush1.msra.mxu0 %v1032
    %1521 = vmatprep.subr.mxu0 0.0
    %1522 = vmatpush1.msra.mxu0 %v1031
    %1523 = vmatprep.subr.mxu0 0.0
    %1524 = vmatpush1.msra.mxu0 %v1030
    %1525 = vmatprep.subr.mxu0 0.0
    %1526 = vmatpush1.msra.mxu0 %v1029
    %1527 = vmatprep.subr.mxu0 0.0
    %1528 = vmatpush1.msra.mxu0 %v1028
    %1529 = vmatprep.subr.mxu0 0.0
    %1530 = vmatpush1.msra.mxu0 %v1027
    %1531 = vmatprep.subr.mxu0 0.0
    %1532 = vmatpush1.msra.mxu0 %v1026
    %1533 = vmatprep.subr.mxu0 0.0
    %1534 = vmatpush1.msra.mxu0 %v1025
    %1535 = vmatprep.subr.mxu0 0.0
    %1536 = vmatpush1.msra.mxu0 %v1024
    %1537 = vmatprep.subr.mxu0 0.0
    %1538 = vmatpush1.msra.mxu0 %v1023
    %1539 = vmatprep.subr.mxu0 0.0
    %1540 = vmatpush2.msra.mxu0 %v1054
    %1541 = vmatprep.subr.mxu0 0.0
    %1542 = vmatpush2.msra.mxu0 %v1053
    %1543 = vmatprep.subr.mxu0 0.0
    %1544 = vmatpush2.msra.mxu0 %v1052
    %1545 = vmatprep.subr.mxu0 0.0
    %1546 = vmatpush2.msra.mxu0 %v1051
    %1547 = vmatprep.subr.mxu0 0.0
    %1548 = vmatpush2.msra.mxu0 %v1050
    %1549 = vmatprep.subr.mxu0 0.0
    %1550 = vmatpush2.msra.mxu0 %v1049
    %1551 = vmatprep.subr.mxu0 0.0
    %1552 = vmatpush2.msra.mxu0 %v1048
    %1553 = vmatprep.subr.mxu0 0.0
    %1554 = vmatpush2.msra.mxu0 %v1047
    %1555 = vmatprep.subr.mxu0 0.0
    %1556 = vmatpush2.msra.mxu0 %v1046
    %1557 = vmatprep.subr.mxu0 0.0
    %1558 = vmatpush2.msra.mxu0 %v1045
    %1559 = vmatprep.subr.mxu0 0.0
    %1560 = vmatpush2.msra.mxu0 %v1044
    %1561 = vmatprep.subr.mxu0 0.0
    %1562 = vmatpush2.msra.mxu0 %v1043
    %1563 = vmatprep.subr.mxu0 0.0
    %1564 = vmatpush2.msra.mxu0 %v1042
    %1565 = vmatprep.subr.mxu0 0.0
    %1566 = vmatpush2.msra.mxu0 %v1041
    %1567 = vmatprep.subr.mxu0 0.0
    %1568 = vmatpush2.msra.mxu0 %v1040
    %1569 = vmatprep.subr.mxu0 0.0
    %1570 = vmatpush2.msra.mxu0 %v1039
    %1571 = vmatprep.mubr.f32.mxu0 %v688
    %1572 = vmatmul.mubr.f32.gmra.mxu0 %v681
    %v1573 = vpop.f32.mrf.mxu0
    %v1574 = vadd.f32 %v1504, %v1573
    %v1575 = vpop.f32.mrf.mxu0
    %1576 = vdwg.mxu0
    %1577 = vmatprep.subr.mxu0 0.0
    %1578 = vmatpush1.msra.mxu0 %v1070
    %1579 = vmatprep.subr.mxu0 0.0
    %1580 = vmatpush1.msra.mxu0 %v1069
    %1581 = vmatprep.subr.mxu0 0.0
    %1582 = vmatpush1.msra.mxu0 %v1068
    %1583 = vmatprep.subr.mxu0 0.0
    %1584 = vmatpush1.msra.mxu0 %v1067
    %1585 = vmatprep.subr.mxu0 0.0
    %1586 = vmatpush1.msra.mxu0 %v1066
    %1587 = vmatprep.subr.mxu0 0.0
    %1588 = vmatpush1.msra.mxu0 %v1065
    %1589 = vmatprep.subr.mxu0 0.0
    %1590 = vmatpush1.msra.mxu0 %v1064
    %1591 = vmatprep.subr.mxu0 0.0
    %1592 = vmatpush1.msra.mxu0 %v1063
    %1593 = vmatprep.subr.mxu0 0.0
    %1594 = vmatpush1.msra.mxu0 %v1062
    %1595 = vmatprep.subr.mxu0 0.0
    %1596 = vmatpush1.msra.mxu0 %v1061
    %1597 = vmatprep.subr.mxu0 0.0
    %1598 = vmatpush1.msra.mxu0 %v1060
    %1599 = vmatprep.subr.mxu0 0.0
    %1600 = vmatpush1.msra.mxu0 %v1059
    %1601 = vmatprep.subr.mxu0 0.0
    %1602 = vmatpush1.msra.mxu0 %v1058
    %1603 = vmatprep.subr.mxu0 0.0
    %1604 = vmatpush1.msra.mxu0 %v1057
    %1605 = vmatprep.subr.mxu0 0.0
    %1606 = vmatpush1.msra.mxu0 %v1056
    %1607 = vmatprep.subr.mxu0 0.0
    %1608 = vmatpush1.msra.mxu0 %v1055
    %1609 = vmatprep.subr.mxu0 0.0
    %1610 = vmatpush2.msra.mxu0 %v1086
    %1611 = vmatprep.subr.mxu0 0.0
    %1612 = vmatpush2.msra.mxu0 %v1085
    %1613 = vmatprep.subr.mxu0 0.0
    %1614 = vmatpush2.msra.mxu0 %v1084
    %1615 = vmatprep.subr.mxu0 0.0
    %1616 = vmatpush2.msra.mxu0 %v1083
    %1617 = vmatprep.subr.mxu0 0.0
    %1618 = vmatpush2.msra.mxu0 %v1082
    %1619 = vmatprep.subr.mxu0 0.0
    %1620 = vmatpush2.msra.mxu0 %v1081
    %1621 = vmatprep.subr.mxu0 0.0
    %1622 = vmatpush2.msra.mxu0 %v1080
    %1623 = vmatprep.subr.mxu0 0.0
    %1624 = vmatpush2.msra.mxu0 %v1079
    %1625 = vmatprep.subr.mxu0 0.0
    %1626 = vmatpush2.msra.mxu0 %v1078
    %1627 = vmatprep.subr.mxu0 0.0
    %1628 = vmatpush2.msra.mxu0 %v1077
    %1629 = vmatprep.subr.mxu0 0.0
    %1630 = vmatpush2.msra.mxu0 %v1076
    %1631 = vmatprep.subr.mxu0 0.0
    %1632 = vmatpush2.msra.mxu0 %v1075
    %1633 = vmatprep.subr.mxu0 0.0
    %1634 = vmatpush2.msra.mxu0 %v1074
    %1635 = vmatprep.subr.mxu0 0.0
    %1636 = vmatpush2.msra.mxu0 %v1073
    %1637 = vmatprep.subr.mxu0 0.0
    %1638 = vmatpush2.msra.mxu0 %v1072
    %1639 = vmatprep.subr.mxu0 0.0
    %1640 = vmatpush2.msra.mxu0 %v1071
    %1641 = vmatprep.mubr.f32.mxu0 %v702
    %1642 = vmatmul.mubr.f32.gmra.mxu0 %v695
    %v1643 = vpop.f32.mrf.mxu0
    %v1644 = vadd.f32 %v1574, %v1643
    %v1645 = vpop.f32.mrf.mxu0
    %1646 = vdwg.mxu0
    %1647 = vmatprep.subr.mxu0 0.0
    %1648 = vmatpush1.msra.mxu0 %v846
    %1649 = vmatprep.subr.mxu0 0.0
    %1650 = vmatpush1.msra.mxu0 %v845
    %1651 = vmatprep.subr.mxu0 0.0
    %1652 = vmatpush1.msra.mxu0 %v844
    %1653 = vmatprep.subr.mxu0 0.0
    %1654 = vmatpush1.msra.mxu0 %v843
    %1655 = vmatprep.subr.mxu0 0.0
    %1656 = vmatpush1.msra.mxu0 %v842
    %1657 = vmatprep.subr.mxu0 0.0
    %1658 = vmatpush1.msra.mxu0 %v841
    %1659 = vmatprep.subr.mxu0 0.0
    %1660 = vmatpush1.msra.mxu0 %v840
    %1661 = vmatprep.subr.mxu0 0.0
    %1662 = vmatpush1.msra.mxu0 %v839
    %1663 = vmatprep.subr.mxu0 0.0
    %1664 = vmatpush1.msra.mxu0 %v838
    %1665 = vmatprep.subr.mxu0 0.0
    %1666 = vmatpush1.msra.mxu0 %v837
    %1667 = vmatprep.subr.mxu0 0.0
    %1668 = vmatpush1.msra.mxu0 %v836
    %1669 = vmatprep.subr.mxu0 0.0
    %1670 = vmatpush1.msra.mxu0 %v835
    %1671 = vmatprep.subr.mxu0 0.0
    %1672 = vmatpush1.msra.mxu0 %v834
    %1673 = vmatprep.subr.mxu0 0.0
    %1674 = vmatpush1.msra.mxu0 %v833
    %1675 = vmatprep.subr.mxu0 0.0
    %1676 = vmatpush1.msra.mxu0 %v832
    %1677 = vmatprep.subr.mxu0 0.0
    %1678 = vmatpush1.msra.mxu0 %v831
    %1679 = vmatprep.subr.mxu0 0.0
    %1680 = vmatpush2.msra.mxu0 %v862
    %1681 = vmatprep.subr.mxu0 0.0
    %1682 = vmatpush2.msra.mxu0 %v861
    %1683 = vmatprep.subr.mxu0 0.0
    %1684 = vmatpush2.msra.mxu0 %v860
    %1685 = vmatprep.subr.mxu0 0.0
    %1686 = vmatpush2.msra.mxu0 %v859
    %1687 = vmatprep.subr.mxu0 0.0
    %1688 = vmatpush2.msra.mxu0 %v858
    %1689 = vmatprep.subr.mxu0 0.0
    %1690 = vmatpush2.msra.mxu0 %v857
    %1691 = vmatprep.subr.mxu0 0.0
    %1692 = vmatpush2.msra.mxu0 %v856
    %1693 = vmatprep.subr.mxu0 0.0
    %1694 = vmatpush2.msra.mxu0 %v855
    %1695 = vmatprep.subr.mxu0 0.0
    %1696 = vmatpush2.msra.mxu0 %v854
    %1697 = vmatprep.subr.mxu0 0.0
    %1698 = vmatpush2.msra.mxu0 %v853
    %1699 = vmatprep.subr.mxu0 0.0
    %1700 = vmatpush2.msra.mxu0 %v852
    %1701 = vmatprep.subr.mxu0 0.0
    %1702 = vmatpush2.msra.mxu0 %v851
    %1703 = vmatprep.subr.mxu0 0.0
    %1704 = vmatpush2.msra.mxu0 %v850
    %1705 = vmatprep.subr.mxu0 0.0
    %1706 = vmatpush2.msra.mxu0 %v849
    %1707 = vmatprep.subr.mxu0 0.0
    %1708 = vmatpush2.msra.mxu0 %v848
    %1709 = vmatprep.subr.mxu0 0.0
    %1710 = vmatpush2.msra.mxu0 %v847
    %1711 = vmatprep.mubr.f32.mxu0 %v732
    %1712 = vmatmul.mubr.f32.gmra.mxu0 %v725
    %v1713 = vpop.f32.mrf.mxu0
    %v1714 = vadd.f32 0.0, %v1713
    %v1715 = vpop.f32.mrf.mxu0
    %1716 = vdwg.mxu0
    %1717 = vmatprep.subr.mxu0 0.0
    %1718 = vmatpush1.msra.mxu0 %v878
    %1719 = vmatprep.subr.mxu0 0.0
    %1720 = vmatpush1.msra.mxu0 %v877
    %1721 = vmatprep.subr.mxu0 0.0
    %1722 = vmatpush1.msra.mxu0 %v876
    %1723 = vmatprep.subr.mxu0 0.0
    %1724 = vmatpush1.msra.mxu0 %v875
    %1725 = vmatprep.subr.mxu0 0.0
    %1726 = vmatpush1.msra.mxu0 %v874
    %1727 = vmatprep.subr.mxu0 0.0
    %1728 = vmatpush1.msra.mxu0 %v873
    %1729 = vmatprep.subr.mxu0 0.0
    %1730 = vmatpush1.msra.mxu0 %v872
    %1731 = vmatprep.subr.mxu0 0.0
    %1732 = vmatpush1.msra.mxu0 %v871
    %1733 = vmatprep.subr.mxu0 0.0
    %1734 = vmatpush1.msra.mxu0 %v870
    %1735 = vmatprep.subr.mxu0 0.0
    %1736 = vmatpush1.msra.mxu0 %v869
    %1737 = vmatprep.subr.mxu0 0.0
    %1738 = vmatpush1.msra.mxu0 %v868
    %1739 = vmatprep.subr.mxu0 0.0
    %1740 = vmatpush1.msra.mxu0 %v867
    %1741 = vmatprep.subr.mxu0 0.0
    %1742 = vmatpush1.msra.mxu0 %v866
    %1743 = vmatprep.subr.mxu0 0.0
    %1744 = vmatpush1.msra.mxu0 %v865
    %1745 = vmatprep.subr.mxu0 0.0
    %1746 = vmatpush1.msra.mxu0 %v864
    %1747 = vmatprep.subr.mxu0 0.0
    %1748 = vmatpush1.msra.mxu0 %v863
    %1749 = vmatprep.subr.mxu0 0.0
    %1750 = vmatpush2.msra.mxu0 %v894
    %1751 = vmatprep.subr.mxu0 0.0
    %1752 = vmatpush2.msra.mxu0 %v893
    %1753 = vmatprep.subr.mxu0 0.0
    %1754 = vmatpush2.msra.mxu0 %v892
    %1755 = vmatprep.subr.mxu0 0.0
    %1756 = vmatpush2.msra.mxu0 %v891
    %1757 = vmatprep.subr.mxu0 0.0
    %1758 = vmatpush2.msra.mxu0 %v890
    %1759 = vmatprep.subr.mxu0 0.0
    %1760 = vmatpush2.msra.mxu0 %v889
    %1761 = vmatprep.subr.mxu0 0.0
    %1762 = vmatpush2.msra.mxu0 %v888
    %1763 = vmatprep.subr.mxu0 0.0
    %1764 = vmatpush2.msra.mxu0 %v887
    %1765 = vmatprep.subr.mxu0 0.0
    %1766 = vmatpush2.msra.mxu0 %v886
    %1767 = vmatprep.subr.mxu0 0.0
    %1768 = vmatpush2.msra.mxu0 %v885
    %1769 = vmatprep.subr.mxu0 0.0
    %1770 = vmatpush2.msra.mxu0 %v884
    %1771 = vmatprep.subr.mxu0 0.0
    %1772 = vmatpush2.msra.mxu0 %v883
    %1773 = vmatprep.subr.mxu0 0.0
    %1774 = vmatpush2.msra.mxu0 %v882
    %1775 = vmatprep.subr.mxu0 0.0
    %1776 = vmatpush2.msra.mxu0 %v881
    %1777 = vmatprep.subr.mxu0 0.0
    %1778 = vmatpush2.msra.mxu0 %v880
    %1779 = vmatprep.subr.mxu0 0.0
    %1780 = vmatpush2.msra.mxu0 %v879
    %1781 = vmatprep.mubr.f32.mxu0 %v746
    %1782 = vmatmul.mubr.f32.gmra.mxu0 %v739
    %v1783 = vpop.f32.mrf.mxu0
    %v1784 = vadd.f32 %v1714, %v1783
    %v1785 = vpop.f32.mrf.mxu0
    %1786 = vdwg.mxu0
    %1787 = vmatprep.subr.mxu0 0.0
    %1788 = vmatpush1.msra.mxu0 %v910
    %1789 = vmatprep.subr.mxu0 0.0
    %1790 = vmatpush1.msra.mxu0 %v909
    %1791 = vmatprep.subr.mxu0 0.0
    %1792 = vmatpush1.msra.mxu0 %v908
    %1793 = vmatprep.subr.mxu0 0.0
    %1794 = vmatpush1.msra.mxu0 %v907
    %1795 = vmatprep.subr.mxu0 0.0
    %1796 = vmatpush1.msra.mxu0 %v906
    %1797 = vmatprep.subr.mxu0 0.0
    %1798 = vmatpush1.msra.mxu0 %v905
    %1799 = vmatprep.subr.mxu0 0.0
    %1800 = vmatpush1.msra.mxu0 %v904
    %1801 = vmatprep.subr.mxu0 0.0
    %1802 = vmatpush1.msra.mxu0 %v903
    %1803 = vmatprep.subr.mxu0 0.0
    %1804 = vmatpush1.msra.mxu0 %v902
    %1805 = vmatprep.subr.mxu0 0.0
    %1806 = vmatpush1.msra.mxu0 %v901
    %1807 = vmatprep.subr.mxu0 0.0
    %1808 = vmatpush1.msra.mxu0 %v900
    %1809 = vmatprep.subr.mxu0 0.0
    %1810 = vmatpush1.msra.mxu0 %v899
    %1811 = vmatprep.subr.mxu0 0.0
    %1812 = vmatpush1.msra.mxu0 %v898
    %1813 = vmatprep.subr.mxu0 0.0
    %1814 = vmatpush1.msra.mxu0 %v897
    %1815 = vmatprep.subr.mxu0 0.0
    %1816 = vmatpush1.msra.mxu0 %v896
    %1817 = vmatprep.subr.mxu0 0.0
    %1818 = vmatpush1.msra.mxu0 %v895
    %1819 = vmatprep.subr.mxu0 0.0
    %1820 = vmatpush2.msra.mxu0 %v926
    %1821 = vmatprep.subr.mxu0 0.0
    %1822 = vmatpush2.msra.mxu0 %v925
    %1823 = vmatprep.subr.mxu0 0.0
    %1824 = vmatpush2.msra.mxu0 %v924
    %1825 = vmatprep.subr.mxu0 0.0
    %1826 = vmatpush2.msra.mxu0 %v923
    %1827 = vmatprep.subr.mxu0 0.0
    %1828 = vmatpush2.msra.mxu0 %v922
    %1829 = vmatprep.subr.mxu0 0.0
    %1830 = vmatpush2.msra.mxu0 %v921
    %1831 = vmatprep.subr.mxu0 0.0
    %1832 = vmatpush2.msra.mxu0 %v920
    %1833 = vmatprep.subr.mxu0 0.0
    %1834 = vmatpush2.msra.mxu0 %v919
    %1835 = vmatprep.subr.mxu0 0.0
    %1836 = vmatpush2.msra.mxu0 %v918
    %1837 = vmatprep.subr.mxu0 0.0
    %1838 = vmatpush2.msra.mxu0 %v917
    %1839 = vmatprep.subr.mxu0 0.0
    %1840 = vmatpush2.msra.mxu0 %v916
    %1841 = vmatprep.subr.mxu0 0.0
    %1842 = vmatpush2.msra.mxu0 %v915
    %1843 = vmatprep.subr.mxu0 0.0
    %1844 = vmatpush2.msra.mxu0 %v914
    %1845 = vmatprep.subr.mxu0 0.0
    %1846 = vmatpush2.msra.mxu0 %v913
    %1847 = vmatprep.subr.mxu0 0.0
    %1848 = vmatpush2.msra.mxu0 %v912
    %1849 = vmatprep.subr.mxu0 0.0
    %1850 = vmatpush2.msra.mxu0 %v911
    %1851 = vmatprep.mubr.f32.mxu0 %v760
    %1852 = vmatmul.mubr.f32.gmra.mxu0 %v753
    %v1853 = vpop.f32.mrf.mxu0
    %v1854 = vadd.f32 %v1784, %v1853
    %v1855 = vpop.f32.mrf.mxu0
    %1856 = vdwg.mxu0
    %1857 = vmatprep.subr.mxu0 0.0
    %1858 = vmatpush1.msra.mxu0 %v942
    %1859 = vmatprep.subr.mxu0 0.0
    %1860 = vmatpush1.msra.mxu0 %v941
    %1861 = vmatprep.subr.mxu0 0.0
    %1862 = vmatpush1.msra.mxu0 %v940
    %1863 = vmatprep.subr.mxu0 0.0
    %1864 = vmatpush1.msra.mxu0 %v939
    %1865 = vmatprep.subr.mxu0 0.0
    %1866 = vmatpush1.msra.mxu0 %v938
    %1867 = vmatprep.subr.mxu0 0.0
    %1868 = vmatpush1.msra.mxu0 %v937
    %1869 = vmatprep.subr.mxu0 0.0
    %1870 = vmatpush1.msra.mxu0 %v936
    %1871 = vmatprep.subr.mxu0 0.0
    %1872 = vmatpush1.msra.mxu0 %v935
    %1873 = vmatprep.subr.mxu0 0.0
    %1874 = vmatpush1.msra.mxu0 %v934
    %1875 = vmatprep.subr.mxu0 0.0
    %1876 = vmatpush1.msra.mxu0 %v933
    %1877 = vmatprep.subr.mxu0 0.0
    %1878 = vmatpush1.msra.mxu0 %v932
    %1879 = vmatprep.subr.mxu0 0.0
    %1880 = vmatpush1.msra.mxu0 %v931
    %1881 = vmatprep.subr.mxu0 0.0
    %1882 = vmatpush1.msra.mxu0 %v930
    %1883 = vmatprep.subr.mxu0 0.0
    %1884 = vmatpush1.msra.mxu0 %v929
    %1885 = vmatprep.subr.mxu0 0.0
    %1886 = vmatpush1.msra.mxu0 %v928
    %1887 = vmatprep.subr.mxu0 0.0
    %1888 = vmatpush1.msra.mxu0 %v927
    %1889 = vmatprep.subr.mxu0 0.0
    %1890 = vmatpush2.msra.mxu0 %v958
    %1891 = vmatprep.subr.mxu0 0.0
    %1892 = vmatpush2.msra.mxu0 %v957
    %1893 = vmatprep.subr.mxu0 0.0
    %1894 = vmatpush2.msra.mxu0 %v956
    %1895 = vmatprep.subr.mxu0 0.0
    %1896 = vmatpush2.msra.mxu0 %v955
    %1897 = vmatprep.subr.mxu0 0.0
    %1898 = vmatpush2.msra.mxu0 %v954
    %1899 = vmatprep.subr.mxu0 0.0
    %1900 = vmatpush2.msra.mxu0 %v953
    %1901 = vmatprep.subr.mxu0 0.0
    %1902 = vmatpush2.msra.mxu0 %v952
    %1903 = vmatprep.subr.mxu0 0.0
    %1904 = vmatpush2.msra.mxu0 %v951
    %1905 = vmatprep.subr.mxu0 0.0
    %1906 = vmatpush2.msra.mxu0 %v950
    %1907 = vmatprep.subr.mxu0 0.0
    %1908 = vmatpush2.msra.mxu0 %v949
    %1909 = vmatprep.subr.mxu0 0.0
    %1910 = vmatpush2.msra.mxu0 %v948
    %1911 = vmatprep.subr.mxu0 0.0
    %1912 = vmatpush2.msra.mxu0 %v947
    %1913 = vmatprep.subr.mxu0 0.0
    %1914 = vmatpush2.msra.mxu0 %v946
    %1915 = vmatprep.subr.mxu0 0.0
    %1916 = vmatpush2.msra.mxu0 %v945
    %1917 = vmatprep.subr.mxu0 0.0
    %1918 = vmatpush2.msra.mxu0 %v944
    %1919 = vmatprep.subr.mxu0 0.0
    %1920 = vmatpush2.msra.mxu0 %v943
    %1921 = vmatprep.mubr.f32.mxu0 %v774
    %1922 = vmatmul.mubr.f32.gmra.mxu0 %v767
    %v1923 = vpop.f32.mrf.mxu0
    %v1924 = vadd.f32 %v1854, %v1923
    %v1925 = vpop.f32.mrf.mxu0
    %1926 = vdwg.mxu0
    %1927 = vmatprep.subr.mxu0 0.0
    %1928 = vmatpush1.msra.mxu0 %v974
    %1929 = vmatprep.subr.mxu0 0.0
    %1930 = vmatpush1.msra.mxu0 %v973
    %1931 = vmatprep.subr.mxu0 0.0
    %1932 = vmatpush1.msra.mxu0 %v972
    %1933 = vmatprep.subr.mxu0 0.0
    %1934 = vmatpush1.msra.mxu0 %v971
    %1935 = vmatprep.subr.mxu0 0.0
    %1936 = vmatpush1.msra.mxu0 %v970
    %1937 = vmatprep.subr.mxu0 0.0
    %1938 = vmatpush1.msra.mxu0 %v969
    %1939 = vmatprep.subr.mxu0 0.0
    %1940 = vmatpush1.msra.mxu0 %v968
    %1941 = vmatprep.subr.mxu0 0.0
    %1942 = vmatpush1.msra.mxu0 %v967
    %1943 = vmatprep.subr.mxu0 0.0
    %1944 = vmatpush1.msra.mxu0 %v966
    %1945 = vmatprep.subr.mxu0 0.0
    %1946 = vmatpush1.msra.mxu0 %v965
    %1947 = vmatprep.subr.mxu0 0.0
    %1948 = vmatpush1.msra.mxu0 %v964
    %1949 = vmatprep.subr.mxu0 0.0
    %1950 = vmatpush1.msra.mxu0 %v963
    %1951 = vmatprep.subr.mxu0 0.0
    %1952 = vmatpush1.msra.mxu0 %v962
    %1953 = vmatprep.subr.mxu0 0.0
    %1954 = vmatpush1.msra.mxu0 %v961
    %1955 = vmatprep.subr.mxu0 0.0
    %1956 = vmatpush1.msra.mxu0 %v960
    %1957 = vmatprep.subr.mxu0 0.0
    %1958 = vmatpush1.msra.mxu0 %v959
    %1959 = vmatprep.subr.mxu0 0.0
    %1960 = vmatpush2.msra.mxu0 %v990
    %1961 = vmatprep.subr.mxu0 0.0
    %1962 = vmatpush2.msra.mxu0 %v989
    %1963 = vmatprep.subr.mxu0 0.0
    %1964 = vmatpush2.msra.mxu0 %v988
    %1965 = vmatprep.subr.mxu0 0.0
    %1966 = vmatpush2.msra.mxu0 %v987
    %1967 = vmatprep.subr.mxu0 0.0
    %1968 = vmatpush2.msra.mxu0 %v986
    %1969 = vmatprep.subr.mxu0 0.0
    %1970 = vmatpush2.msra.mxu0 %v985
    %1971 = vmatprep.subr.mxu0 0.0
    %1972 = vmatpush2.msra.mxu0 %v984
    %1973 = vmatprep.subr.mxu0 0.0
    %1974 = vmatpush2.msra.mxu0 %v983
    %1975 = vmatprep.subr.mxu0 0.0
    %1976 = vmatpush2.msra.mxu0 %v982
    %1977 = vmatprep.subr.mxu0 0.0
    %1978 = vmatpush2.msra.mxu0 %v981
    %1979 = vmatprep.subr.mxu0 0.0
    %1980 = vmatpush2.msra.mxu0 %v980
    %1981 = vmatprep.subr.mxu0 0.0
    %1982 = vmatpush2.msra.mxu0 %v979
    %1983 = vmatprep.subr.mxu0 0.0
    %1984 = vmatpush2.msra.mxu0 %v978
    %1985 = vmatprep.subr.mxu0 0.0
    %1986 = vmatpush2.msra.mxu0 %v977
    %1987 = vmatprep.subr.mxu0 0.0
    %1988 = vmatpush2.msra.mxu0 %v976
    %1989 = vmatprep.subr.mxu0 0.0
    %1990 = vmatpush2.msra.mxu0 %v975
    %1991 = vmatprep.mubr.f32.mxu0 %v788
    %1992 = vmatmul.mubr.f32.gmra.mxu0 %v781
    %v1993 = vpop.f32.mrf.mxu0
    %v1994 = vadd.f32 %v1924, %v1993
    %v1995 = vpop.f32.mrf.mxu0
    %1996 = vdwg.mxu0
    %1997 = vmatprep.subr.mxu0 0.0
    %1998 = vmatpush1.msra.mxu0 %v1006
    %1999 = vmatprep.subr.mxu0 0.0
    %2000 = vmatpush1.msra.mxu0 %v1005
    %2001 = vmatprep.subr.mxu0 0.0
    %2002 = vmatpush1.msra.mxu0 %v1004
    %2003 = vmatprep.subr.mxu0 0.0
    %2004 = vmatpush1.msra.mxu0 %v1003
    %2005 = vmatprep.subr.mxu0 0.0
    %2006 = vmatpush1.msra.mxu0 %v1002
    %2007 = vmatprep.subr.mxu0 0.0
    %2008 = vmatpush1.msra.mxu0 %v1001
    %2009 = vmatprep.subr.mxu0 0.0
    %2010 = vmatpush1.msra.mxu0 %v1000
    %2011 = vmatprep.subr.mxu0 0.0
    %2012 = vmatpush1.msra.mxu0 %v999
    %2013 = vmatprep.subr.mxu0 0.0
    %2014 = vmatpush1.msra.mxu0 %v998
    %2015 = vmatprep.subr.mxu0 0.0
    %2016 = vmatpush1.msra.mxu0 %v997
    %2017 = vmatprep.subr.mxu0 0.0
    %2018 = vmatpush1.msra.mxu0 %v996
    %2019 = vmatprep.subr.mxu0 0.0
    %2020 = vmatpush1.msra.mxu0 %v995
    %2021 = vmatprep.subr.mxu0 0.0
    %2022 = vmatpush1.msra.mxu0 %v994
    %2023 = vmatprep.subr.mxu0 0.0
    %2024 = vmatpush1.msra.mxu0 %v993
    %2025 = vmatprep.subr.mxu0 0.0
    %2026 = vmatpush1.msra.mxu0 %v992
    %2027 = vmatprep.subr.mxu0 0.0
    %2028 = vmatpush1.msra.mxu0 %v991
    %2029 = vmatprep.subr.mxu0 0.0
    %2030 = vmatpush2.msra.mxu0 %v1022
    %2031 = vmatprep.subr.mxu0 0.0
    %2032 = vmatpush2.msra.mxu0 %v1021
    %2033 = vmatprep.subr.mxu0 0.0
    %2034 = vmatpush2.msra.mxu0 %v1020
    %2035 = vmatprep.subr.mxu0 0.0
    %2036 = vmatpush2.msra.mxu0 %v1019
    %2037 = vmatprep.subr.mxu0 0.0
    %2038 = vmatpush2.msra.mxu0 %v1018
    %2039 = vmatprep.subr.mxu0 0.0
    %2040 = vmatpush2.msra.mxu0 %v1017
    %2041 = vmatprep.subr.mxu0 0.0
    %2042 = vmatpush2.msra.mxu0 %v1016
    %2043 = vmatprep.subr.mxu0 0.0
    %2044 = vmatpush2.msra.mxu0 %v1015
    %2045 = vmatprep.subr.mxu0 0.0
    %2046 = vmatpush2.msra.mxu0 %v1014
    %2047 = vmatprep.subr.mxu0 0.0
    %2048 = vmatpush2.msra.mxu0 %v1013
    %2049 = vmatprep.subr.mxu0 0.0
    %2050 = vmatpush2.msra.mxu0 %v1012
    %2051 = vmatprep.subr.mxu0 0.0
    %2052 = vmatpush2.msra.mxu0 %v1011
    %2053 = vmatprep.subr.mxu0 0.0
    %2054 = vmatpush2.msra.mxu0 %v1010
    %2055 = vmatprep.subr.mxu0 0.0
    %2056 = vmatpush2.msra.mxu0 %v1009
    %2057 = vmatprep.subr.mxu0 0.0
    %2058 = vmatpush2.msra.mxu0 %v1008
    %2059 = vmatprep.subr.mxu0 0.0
    %2060 = vmatpush2.msra.mxu0 %v1007
    %2061 = vmatprep.mubr.f32.mxu0 %v802
    %2062 = vmatmul.mubr.f32.gmra.mxu0 %v795
    %v2063 = vpop.f32.mrf.mxu0
    %v2064 = vadd.f32 %v1994, %v2063
    %v2065 = vpop.f32.mrf.mxu0
    %2066 = vdwg.mxu0
    %2067 = vmatprep.subr.mxu0 0.0
    %2068 = vmatpush1.msra.mxu0 %v1038
    %2069 = vmatprep.subr.mxu0 0.0
    %2070 = vmatpush1.msra.mxu0 %v1037
    %2071 = vmatprep.subr.mxu0 0.0
    %2072 = vmatpush1.msra.mxu0 %v1036
    %2073 = vmatprep.subr.mxu0 0.0
    %2074 = vmatpush1.msra.mxu0 %v1035
    %2075 = vmatprep.subr.mxu0 0.0
    %2076 = vmatpush1.msra.mxu0 %v1034
    %2077 = vmatprep.subr.mxu0 0.0
    %2078 = vmatpush1.msra.mxu0 %v1033
    %2079 = vmatprep.subr.mxu0 0.0
    %2080 = vmatpush1.msra.mxu0 %v1032
    %2081 = vmatprep.subr.mxu0 0.0
    %2082 = vmatpush1.msra.mxu0 %v1031
    %2083 = vmatprep.subr.mxu0 0.0
    %2084 = vmatpush1.msra.mxu0 %v1030
    %2085 = vmatprep.subr.mxu0 0.0
    %2086 = vmatpush1.msra.mxu0 %v1029
    %2087 = vmatprep.subr.mxu0 0.0
    %2088 = vmatpush1.msra.mxu0 %v1028
    %2089 = vmatprep.subr.mxu0 0.0
    %2090 = vmatpush1.msra.mxu0 %v1027
    %2091 = vmatprep.subr.mxu0 0.0
    %2092 = vmatpush1.msra.mxu0 %v1026
    %2093 = vmatprep.subr.mxu0 0.0
    %2094 = vmatpush1.msra.mxu0 %v1025
    %2095 = vmatprep.subr.mxu0 0.0
    %2096 = vmatpush1.msra.mxu0 %v1024
    %2097 = vmatprep.subr.mxu0 0.0
    %2098 = vmatpush1.msra.mxu0 %v1023
    %2099 = vmatprep.subr.mxu0 0.0
    %2100 = vmatpush2.msra.mxu0 %v1054
    %2101 = vmatprep.subr.mxu0 0.0
    %2102 = vmatpush2.msra.mxu0 %v1053
    %2103 = vmatprep.subr.mxu0 0.0
    %2104 = vmatpush2.msra.mxu0 %v1052
    %2105 = vmatprep.subr.mxu0 0.0
    %2106 = vmatpush2.msra.mxu0 %v1051
    %2107 = vmatprep.subr.mxu0 0.0
    %2108 = vmatpush2.msra.mxu0 %v1050
    %2109 = vmatprep.subr.mxu0 0.0
    %2110 = vmatpush2.msra.mxu0 %v1049
    %2111 = vmatprep.subr.mxu0 0.0
    %2112 = vmatpush2.msra.mxu0 %v1048
    %2113 = vmatprep.subr.mxu0 0.0
    %2114 = vmatpush2.msra.mxu0 %v1047
    %2115 = vmatprep.subr.mxu0 0.0
    %2116 = vmatpush2.msra.mxu0 %v1046
    %2117 = vmatprep.subr.mxu0 0.0
    %2118 = vmatpush2.msra.mxu0 %v1045
    %2119 = vmatprep.subr.mxu0 0.0
    %2120 = vmatpush2.msra.mxu0 %v1044
    %2121 = vmatprep.subr.mxu0 0.0
    %2122 = vmatpush2.msra.mxu0 %v1043
    %2123 = vmatprep.subr.mxu0 0.0
    %2124 = vmatpush2.msra.mxu0 %v1042
    %2125 = vmatprep.subr.mxu0 0.0
    %2126 = vmatpush2.msra.mxu0 %v1041
    %2127 = vmatprep.subr.mxu0 0.0
    %2128 = vmatpush2.msra.mxu0 %v1040
    %2129 = vmatprep.subr.mxu0 0.0
    %2130 = vmatpush2.msra.mxu0 %v1039
    %2131 = vmatprep.mubr.f32.mxu0 %v816
    %2132 = vmatmul.mubr.f32.gmra.mxu0 %v809
    %v2133 = vpop.f32.mrf.mxu0
    %v2134 = vadd.f32 %v2064, %v2133
    %v2135 = vpop.f32.mrf.mxu0
    %2136 = vdwg.mxu0
    %2137 = vmatprep.subr.mxu0 0.0
    %2138 = vmatpush1.msra.mxu0 %v1070
    %2139 = vmatprep.subr.mxu0 0.0
    %2140 = vmatpush1.msra.mxu0 %v1069
    %2141 = vmatprep.subr.mxu0 0.0
    %2142 = vmatpush1.msra.mxu0 %v1068
    %2143 = vmatprep.subr.mxu0 0.0
    %2144 = vmatpush1.msra.mxu0 %v1067
    %2145 = vmatprep.subr.mxu0 0.0
    %2146 = vmatpush1.msra.mxu0 %v1066
    %2147 = vmatprep.subr.mxu0 0.0
    %2148 = vmatpush1.msra.mxu0 %v1065
    %2149 = vmatprep.subr.mxu0 0.0
    %2150 = vmatpush1.msra.mxu0 %v1064
    %2151 = vmatprep.subr.mxu0 0.0
    %2152 = vmatpush1.msra.mxu0 %v1063
    %2153 = vmatprep.subr.mxu0 0.0
    %2154 = vmatpush1.msra.mxu0 %v1062
    %2155 = vmatprep.subr.mxu0 0.0
    %2156 = vmatpush1.msra.mxu0 %v1061
    %2157 = vmatprep.subr.mxu0 0.0
    %2158 = vmatpush1.msra.mxu0 %v1060
    %2159 = vmatprep.subr.mxu0 0.0
    %2160 = vmatpush1.msra.mxu0 %v1059
    %2161 = vmatprep.subr.mxu0 0.0
    %2162 = vmatpush1.msra.mxu0 %v1058
    %2163 = vmatprep.subr.mxu0 0.0
    %2164 = vmatpush1.msra.mxu0 %v1057
    %2165 = vmatprep.subr.mxu0 0.0
    %2166 = vmatpush1.msra.mxu0 %v1056
    %2167 = vmatprep.subr.mxu0 0.0
    %2168 = vmatpush1.msra.mxu0 %v1055
    %2169 = vmatprep.subr.mxu0 0.0
    %2170 = vmatpush2.msra.mxu0 %v1086
    %2171 = vmatprep.subr.mxu0 0.0
    %2172 = vmatpush2.msra.mxu0 %v1085
    %2173 = vmatprep.subr.mxu0 0.0
    %2174 = vmatpush2.msra.mxu0 %v1084
    %2175 = vmatprep.subr.mxu0 0.0
    %2176 = vmatpush2.msra.mxu0 %v1083
    %2177 = vmatprep.subr.mxu0 0.0
    %2178 = vmatpush2.msra.mxu0 %v1082
    %2179 = vmatprep.subr.mxu0 0.0
    %2180 = vmatpush2.msra.mxu0 %v1081
    %2181 = vmatprep.subr.mxu0 0.0
    %2182 = vmatpush2.msra.mxu0 %v1080
    %2183 = vmatprep.subr.mxu0 0.0
    %2184 = vmatpush2.msra.mxu0 %v1079
    %2185 = vmatprep.subr.mxu0 0.0
    %2186 = vmatpush2.msra.mxu0 %v1078
    %2187 = vmatprep.subr.mxu0 0.0
    %2188 = vmatpush2.msra.mxu0 %v1077
    %2189 = vmatprep.subr.mxu0 0.0
    %2190 = vmatpush2.msra.mxu0 %v1076
    %2191 = vmatprep.subr.mxu0 0.0
    %2192 = vmatpush2.msra.mxu0 %v1075
    %2193 = vmatprep.subr.mxu0 0.0
    %2194 = vmatpush2.msra.mxu0 %v1074
    %2195 = vmatprep.subr.mxu0 0.0
    %2196 = vmatpush2.msra.mxu0 %v1073
    %2197 = vmatprep.subr.mxu0 0.0
    %2198 = vmatpush2.msra.mxu0 %v1072
    %2199 = vmatprep.subr.mxu0 0.0
    %2200 = vmatpush2.msra.mxu0 %v1071
    %2201 = vmatprep.mubr.f32.mxu0 %v830
    %2202 = vmatmul.mubr.f32.gmra.mxu0 %v823
    %v2203 = vpop.f32.mrf.mxu0
    %v2204 = vadd.f32 %v2134, %v2203
    %v2205 = vpop.f32.mrf.mxu0
    %2206 = vdwg.mxu0
    %v2207 = vmul.f32 %v1644, 0.03125
    %v2208 = vmul.f32 %v2204, 0.03125
    %v2209 = vmul.f32 %v2207, %v2207
    %v2210 = vsub.f32 %v2208, %v2209
    %v2211 = vmax.f32 %v2210, 0.0
    %v2212 = vld [vmem:[%s4] sm:$0x1]
    %v2213 = vadd.f32 %v2211, 1e-05
    %v2214 = vrsqrt.pop %v2213
    %v2215 = vmul.f32 %v2212, %v2214
    %v2216 = vld [vmem:[%s5] sm:$0x1]
    %v2217 = vmul.f32 %v2207, %v2215
    %v2218 = vsub.f32 %v2216, %v2217
    %v2219 = vld [vmem:[#allocation6] sm:$0xff]
    %v2220 = vld [vmem:[#allocation6 + $0x8] sm:$0xff]
    %v2221 = vld [vmem:[#allocation6 + $0x10] sm:$0xff]
    %v2222 = vld [vmem:[#allocation6 + $0x18] sm:$0xff]
    %v2223 = vld [vmem:[#allocation6 + $0x20] sm:$0xff]
    %v2224 = vld [vmem:[#allocation6 + $0x28] sm:$0xff]
    %v2225 = vld [vmem:[#allocation6 + $0x30] sm:$0xff]
    %v2226 = vld [vmem:[#allocation6 + $0x38] sm:$0xff]
    %v2227 = vld [vmem:[#allocation6 + $0x40] sm:$0xff]
    %v2228 = vld [vmem:[#allocation6 + $0x48] sm:$0xff]
    %v2229 = vld [vmem:[#allocation6 + $0x50] sm:$0xff]
    %v2230 = vld [vmem:[#allocation6 + $0x58] sm:$0xff]
    %v2231 = vld [vmem:[#allocation6 + $0x60] sm:$0xff]
    %v2232 = vld [vmem:[#allocation6 + $0x68] sm:$0xff]
    %v2233 = vld [vmem:[#allocation6 + $0x70] sm:$0xff]
    %v2234 = vld [vmem:[#allocation6 + $0x78] sm:$0xff]
    %v2235 = vld [vmem:[#allocation6 + $0x80] sm:$0xff]
    %v2236 = vld [vmem:[#allocation6 + $0x88] sm:$0xff]
    %v2237 = vld [vmem:[#allocation6 + $0x90] sm:$0xff]
    %v2238 = vld [vmem:[#allocation6 + $0x98] sm:$0xff]
    %v2239 = vld [vmem:[#allocation6 + $0xa0] sm:$0xff]
    %v2240 = vld [vmem:[#allocation6 + $0xa8] sm:$0xff]
    %v2241 = vld [vmem:[#allocation6 + $0xb0] sm:$0xff]
    %v2242 = vld [vmem:[#allocation6 + $0xb8] sm:$0xff]
    %v2243 = vld [vmem:[#allocation6 + $0xc0] sm:$0xff]
    %v2244 = vld [vmem:[#allocation6 + $0xc8] sm:$0xff]
    %v2245 = vld [vmem:[#allocation6 + $0xd0] sm:$0xff]
    %v2246 = vld [vmem:[#allocation6 + $0xd8] sm:$0xff]
    %v2247 = vld [vmem:[#allocation6 + $0xe0] sm:$0xff]
    %v2248 = vld [vmem:[#allocation6 + $0xe8] sm:$0xff]
    %v2249 = vld [vmem:[#allocation6 + $0xf0] sm:$0xff]
    %v2250 = vld [vmem:[#allocation6 + $0xf8] sm:$0xff]
    %v2251 = vld [vmem:[#allocation6 + $0x100] sm:$0xff]
    %v2252 = vld [vmem:[#allocation6 + $0x108] sm:$0xff]
    %v2253 = vld [vmem:[#allocation6 + $0x110] sm:$0xff]
    %v2254 = vld [vmem:[#allocation6 + $0x118] sm:$0xff]
    %v2255 = vld [vmem:[#allocation6 + $0x120] sm:$0xff]
    %v2256 = vld [vmem:[#allocation6 + $0x128] sm:$0xff]
    %v2257 = vld [vmem:[#allocation6 + $0x130] sm:$0xff]
    %v2258 = vld [vmem:[#allocation6 + $0x138] sm:$0xff]
    %v2259 = vld [vmem:[#allocation6 + $0x140] sm:$0xff]
    %v2260 = vld [vmem:[#allocation6 + $0x148] sm:$0xff]
    %v2261 = vld [vmem:[#allocation6 + $0x150] sm:$0xff]
    %v2262 = vld [vmem:[#allocation6 + $0x158] sm:$0xff]
    %v2263 = vld [vmem:[#allocation6 + $0x160] sm:$0xff]
    %v2264 = vld [vmem:[#allocation6 + $0x168] sm:$0xff]
    %v2265 = vld [vmem:[#allocation6 + $0x170] sm:$0xff]
    %v2266 = vld [vmem:[#allocation6 + $0x178] sm:$0xff]
    %v2267 = vld [vmem:[#allocation6 + $0x180] sm:$0xff]
    %v2268 = vld [vmem:[#allocation6 + $0x188] sm:$0xff]
    %v2269 = vld [vmem:[#allocation6 + $0x190] sm:$0xff]
    %v2270 = vld [vmem:[#allocation6 + $0x198] sm:$0xff]
    %v2271 = vld [vmem:[#allocation6 + $0x1a0] sm:$0xff]
    %v2272 = vld [vmem:[#allocation6 + $0x1a8] sm:$0xff]
    %v2273 = vld [vmem:[#allocation6 + $0x1b0] sm:$0xff]
    %v2274 = vld [vmem:[#allocation6 + $0x1b8] sm:$0xff]
    %v2275 = vld [vmem:[#allocation6 + $0x1c0] sm:$0xff]
    %v2276 = vld [vmem:[#allocation6 + $0x1c8] sm:$0xff]
    %v2277 = vld [vmem:[#allocation6 + $0x1d0] sm:$0xff]
    %v2278 = vld [vmem:[#allocation6 + $0x1d8] sm:$0xff]
    %v2279 = vld [vmem:[#allocation6 + $0x1e0] sm:$0xff]
    %v2280 = vld [vmem:[#allocation6 + $0x1e8] sm:$0xff]
    %v2281 = vld [vmem:[#allocation6 + $0x1f0] sm:$0xff]
    %v2282 = vld [vmem:[#allocation6 + $0x1f8] sm:$0xff]
    %v2283 = vld [vmem:[#allocation6 + $0x200] sm:$0xff]
    %v2284 = vld [vmem:[#allocation6 + $0x208] sm:$0xff]
    %v2285 = vld [vmem:[#allocation6 + $0x210] sm:$0xff]
    %v2286 = vld [vmem:[#allocation6 + $0x218] sm:$0xff]
    %v2287 = vld [vmem:[#allocation6 + $0x220] sm:$0xff]
    %v2288 = vld [vmem:[#allocation6 + $0x228] sm:$0xff]
    %v2289 = vld [vmem:[#allocation6 + $0x230] sm:$0xff]
    %v2290 = vld [vmem:[#allocation6 + $0x238] sm:$0xff]
    %v2291 = vld [vmem:[#allocation6 + $0x240] sm:$0xff]
    %v2292 = vld [vmem:[#allocation6 + $0x248] sm:$0xff]
    %v2293 = vld [vmem:[#allocation6 + $0x250] sm:$0xff]
    %v2294 = vld [vmem:[#allocation6 + $0x258] sm:$0xff]
    %v2295 = vld [vmem:[#allocation6 + $0x260] sm:$0xff]
    %v2296 = vld [vmem:[#allocation6 + $0x268] sm:$0xff]
    %v2297 = vld [vmem:[#allocation6 + $0x270] sm:$0xff]
    %v2298 = vld [vmem:[#allocation6 + $0x278] sm:$0xff]
    %v2299 = vld [vmem:[#allocation6 + $0x280] sm:$0xff]
    %v2300 = vld [vmem:[#allocation6 + $0x288] sm:$0xff]
    %v2301 = vld [vmem:[#allocation6 + $0x290] sm:$0xff]
    %v2302 = vld [vmem:[#allocation6 + $0x298] sm:$0xff]
    %v2303 = vld [vmem:[#allocation6 + $0x2a0] sm:$0xff]
    %v2304 = vld [vmem:[#allocation6 + $0x2a8] sm:$0xff]
    %v2305 = vld [vmem:[#allocation6 + $0x2b0] sm:$0xff]
    %v2306 = vld [vmem:[#allocation6 + $0x2b8] sm:$0xff]
    %v2307 = vld [vmem:[#allocation6 + $0x2c0] sm:$0xff]
    %v2308 = vld [vmem:[#allocation6 + $0x2c8] sm:$0xff]
    %v2309 = vld [vmem:[#allocation6 + $0x2d0] sm:$0xff]
    %v2310 = vld [vmem:[#allocation6 + $0x2d8] sm:$0xff]
    %v2311 = vld [vmem:[#allocation6 + $0x2e0] sm:$0xff]
    %v2312 = vld [vmem:[#allocation6 + $0x2e8] sm:$0xff]
    %v2313 = vld [vmem:[#allocation6 + $0x2f0] sm:$0xff]
    %v2314 = vld [vmem:[#allocation6 + $0x2f8] sm:$0xff]
    %v2315 = vld [vmem:[#allocation6 + $0x300] sm:$0xff]
    %v2316 = vld [vmem:[#allocation6 + $0x308] sm:$0xff]
    %v2317 = vld [vmem:[#allocation6 + $0x310] sm:$0xff]
    %v2318 = vld [vmem:[#allocation6 + $0x318] sm:$0xff]
    %v2319 = vld [vmem:[#allocation6 + $0x320] sm:$0xff]
    %v2320 = vld [vmem:[#allocation6 + $0x328] sm:$0xff]
    %v2321 = vld [vmem:[#allocation6 + $0x330] sm:$0xff]
    %v2322 = vld [vmem:[#allocation6 + $0x338] sm:$0xff]
    %v2323 = vld [vmem:[#allocation6 + $0x340] sm:$0xff]
    %v2324 = vld [vmem:[#allocation6 + $0x348] sm:$0xff]
    %v2325 = vld [vmem:[#allocation6 + $0x350] sm:$0xff]
    %v2326 = vld [vmem:[#allocation6 + $0x358] sm:$0xff]
    %v2327 = vld [vmem:[#allocation6 + $0x360] sm:$0xff]
    %v2328 = vld [vmem:[#allocation6 + $0x368] sm:$0xff]
    %v2329 = vld [vmem:[#allocation6 + $0x370] sm:$0xff]
    %v2330 = vld [vmem:[#allocation6 + $0x378] sm:$0xff]
    %v2331 = vld [vmem:[#allocation6 + $0x380] sm:$0xff]
    %v2332 = vld [vmem:[#allocation6 + $0x388] sm:$0xff]
    %v2333 = vld [vmem:[#allocation6 + $0x390] sm:$0xff]
    %v2334 = vld [vmem:[#allocation6 + $0x398] sm:$0xff]
    %v2335 = vld [vmem:[#allocation6 + $0x3a0] sm:$0xff]
    %v2336 = vld [vmem:[#allocation6 + $0x3a8] sm:$0xff]
    %v2337 = vld [vmem:[#allocation6 + $0x3b0] sm:$0xff]
    %v2338 = vld [vmem:[#allocation6 + $0x3b8] sm:$0xff]
    %v2339 = vld [vmem:[#allocation6 + $0x3c0] sm:$0xff]
    %v2340 = vld [vmem:[#allocation6 + $0x3c8] sm:$0xff]
    %v2341 = vld [vmem:[#allocation6 + $0x3d0] sm:$0xff]
    %v2342 = vld [vmem:[#allocation6 + $0x3d8] sm:$0xff]
    %v2343 = vld [vmem:[#allocation6 + $0x3e0] sm:$0xff]
    %v2344 = vld [vmem:[#allocation6 + $0x3e8] sm:$0xff]
    %v2345 = vld [vmem:[#allocation6 + $0x3f0] sm:$0xff]
    %v2346 = vld [vmem:[#allocation6 + $0x3f8] sm:$0xff]
    %v2347 = vld [vmem:[#allocation6 + $0x400] sm:$0xff]
    %v2348 = vld [vmem:[#allocation6 + $0x408] sm:$0xff]
    %v2349 = vld [vmem:[#allocation6 + $0x410] sm:$0xff]
    %v2350 = vld [vmem:[#allocation6 + $0x418] sm:$0xff]
    %v2351 = vld [vmem:[#allocation6 + $0x420] sm:$0xff]
    %v2352 = vld [vmem:[#allocation6 + $0x428] sm:$0xff]
    %v2353 = vld [vmem:[#allocation6 + $0x430] sm:$0xff]
    %v2354 = vld [vmem:[#allocation6 + $0x438] sm:$0xff]
    %v2355 = vld [vmem:[#allocation6 + $0x440] sm:$0xff]
    %v2356 = vld [vmem:[#allocation6 + $0x448] sm:$0xff]
    %v2357 = vld [vmem:[#allocation6 + $0x450] sm:$0xff]
    %v2358 = vld [vmem:[#allocation6 + $0x458] sm:$0xff]
    %v2359 = vld [vmem:[#allocation6 + $0x460] sm:$0xff]
    %v2360 = vld [vmem:[#allocation6 + $0x468] sm:$0xff]
    %v2361 = vld [vmem:[#allocation6 + $0x470] sm:$0xff]
    %v2362 = vld [vmem:[#allocation6 + $0x478] sm:$0xff]
    %v2363 = vld [vmem:[#allocation6 + $0x480] sm:$0xff]
    %v2364 = vld [vmem:[#allocation6 + $0x488] sm:$0xff]
    %v2365 = vld [vmem:[#allocation6 + $0x490] sm:$0xff]
    %v2366 = vld [vmem:[#allocation6 + $0x498] sm:$0xff]
    %v2367 = vld [vmem:[#allocation6 + $0x4a0] sm:$0xff]
    %v2368 = vld [vmem:[#allocation6 + $0x4a8] sm:$0xff]
    %v2369 = vld [vmem:[#allocation6 + $0x4b0] sm:$0xff]
    %v2370 = vld [vmem:[#allocation6 + $0x4b8] sm:$0xff]
    %v2371 = vld [vmem:[#allocation6 + $0x4c0] sm:$0xff]
    %v2372 = vld [vmem:[#allocation6 + $0x4c8] sm:$0xff]
    %v2373 = vld [vmem:[#allocation6 + $0x4d0] sm:$0xff]
    %v2374 = vld [vmem:[#allocation6 + $0x4d8] sm:$0xff]
    %v2375 = vld [vmem:[#allocation6 + $0x4e0] sm:$0xff]
    %v2376 = vld [vmem:[#allocation6 + $0x4e8] sm:$0xff]
    %v2377 = vld [vmem:[#allocation6 + $0x4f0] sm:$0xff]
    %v2378 = vld [vmem:[#allocation6 + $0x4f8] sm:$0xff]
    %v2379 = vld [vmem:[#allocation6 + $0x500] sm:$0xff]
    %v2380 = vld [vmem:[#allocation6 + $0x508] sm:$0xff]
    %v2381 = vld [vmem:[#allocation6 + $0x510] sm:$0xff]
    %v2382 = vld [vmem:[#allocation6 + $0x518] sm:$0xff]
    %v2383 = vld [vmem:[#allocation6 + $0x520] sm:$0xff]
    %v2384 = vld [vmem:[#allocation6 + $0x528] sm:$0xff]
    %v2385 = vld [vmem:[#allocation6 + $0x530] sm:$0xff]
    %v2386 = vld [vmem:[#allocation6 + $0x538] sm:$0xff]
    %v2387 = vld [vmem:[#allocation6 + $0x540] sm:$0xff]
    %v2388 = vld [vmem:[#allocation6 + $0x548] sm:$0xff]
    %v2389 = vld [vmem:[#allocation6 + $0x550] sm:$0xff]
    %v2390 = vld [vmem:[#allocation6 + $0x558] sm:$0xff]
    %v2391 = vld [vmem:[#allocation6 + $0x560] sm:$0xff]
    %v2392 = vld [vmem:[#allocation6 + $0x568] sm:$0xff]
    %v2393 = vld [vmem:[#allocation6 + $0x570] sm:$0xff]
    %v2394 = vld [vmem:[#allocation6 + $0x578] sm:$0xff]
    %v2395 = vld [vmem:[#allocation6 + $0x580] sm:$0xff]
    %v2396 = vld [vmem:[#allocation6 + $0x588] sm:$0xff]
    %v2397 = vld [vmem:[#allocation6 + $0x590] sm:$0xff]
    %v2398 = vld [vmem:[#allocation6 + $0x598] sm:$0xff]
    %v2399 = vld [vmem:[#allocation6 + $0x5a0] sm:$0xff]
    %v2400 = vld [vmem:[#allocation6 + $0x5a8] sm:$0xff]
    %v2401 = vld [vmem:[#allocation6 + $0x5b0] sm:$0xff]
    %v2402 = vld [vmem:[#allocation6 + $0x5b8] sm:$0xff]
    %v2403 = vld [vmem:[#allocation6 + $0x5c0] sm:$0xff]
    %v2404 = vld [vmem:[#allocation6 + $0x5c8] sm:$0xff]
    %v2405 = vld [vmem:[#allocation6 + $0x5d0] sm:$0xff]
    %v2406 = vld [vmem:[#allocation6 + $0x5d8] sm:$0xff]
    %v2407 = vld [vmem:[#allocation6 + $0x5e0] sm:$0xff]
    %v2408 = vld [vmem:[#allocation6 + $0x5e8] sm:$0xff]
    %v2409 = vld [vmem:[#allocation6 + $0x5f0] sm:$0xff]
    %v2410 = vld [vmem:[#allocation6 + $0x5f8] sm:$0xff]
    %v2411 = vld [vmem:[#allocation6 + $0x600] sm:$0xff]
    %v2412 = vld [vmem:[#allocation6 + $0x608] sm:$0xff]
    %v2413 = vld [vmem:[#allocation6 + $0x610] sm:$0xff]
    %v2414 = vld [vmem:[#allocation6 + $0x618] sm:$0xff]
    %v2415 = vld [vmem:[#allocation6 + $0x620] sm:$0xff]
    %v2416 = vld [vmem:[#allocation6 + $0x628] sm:$0xff]
    %v2417 = vld [vmem:[#allocation6 + $0x630] sm:$0xff]
    %v2418 = vld [vmem:[#allocation6 + $0x638] sm:$0xff]
    %v2419 = vld [vmem:[#allocation6 + $0x640] sm:$0xff]
    %v2420 = vld [vmem:[#allocation6 + $0x648] sm:$0xff]
    %v2421 = vld [vmem:[#allocation6 + $0x650] sm:$0xff]
    %v2422 = vld [vmem:[#allocation6 + $0x658] sm:$0xff]
    %v2423 = vld [vmem:[#allocation6 + $0x660] sm:$0xff]
    %v2424 = vld [vmem:[#allocation6 + $0x668] sm:$0xff]
    %v2425 = vld [vmem:[#allocation6 + $0x670] sm:$0xff]
    %v2426 = vld [vmem:[#allocation6 + $0x678] sm:$0xff]
    %v2427 = vld [vmem:[#allocation6 + $0x680] sm:$0xff]
    %v2428 = vld [vmem:[#allocation6 + $0x688] sm:$0xff]
    %v2429 = vld [vmem:[#allocation6 + $0x690] sm:$0xff]
    %v2430 = vld [vmem:[#allocation6 + $0x698] sm:$0xff]
    %v2431 = vld [vmem:[#allocation6 + $0x6a0] sm:$0xff]
    %v2432 = vld [vmem:[#allocation6 + $0x6a8] sm:$0xff]
    %v2433 = vld [vmem:[#allocation6 + $0x6b0] sm:$0xff]
    %v2434 = vld [vmem:[#allocation6 + $0x6b8] sm:$0xff]
    %v2435 = vld [vmem:[#allocation6 + $0x6c0] sm:$0xff]
    %v2436 = vld [vmem:[#allocation6 + $0x6c8] sm:$0xff]
    %v2437 = vld [vmem:[#allocation6 + $0x6d0] sm:$0xff]
    %v2438 = vld [vmem:[#allocation6 + $0x6d8] sm:$0xff]
    %v2439 = vld [vmem:[#allocation6 + $0x6e0] sm:$0xff]
    %v2440 = vld [vmem:[#allocation6 + $0x6e8] sm:$0xff]
    %v2441 = vld [vmem:[#allocation6 + $0x6f0] sm:$0xff]
    %v2442 = vld [vmem:[#allocation6 + $0x6f8] sm:$0xff]
    %v2443 = vld [vmem:[#allocation6 + $0x700] sm:$0xff]
    %v2444 = vld [vmem:[#allocation6 + $0x708] sm:$0xff]
    %v2445 = vld [vmem:[#allocation6 + $0x710] sm:$0xff]
    %v2446 = vld [vmem:[#allocation6 + $0x718] sm:$0xff]
    %v2447 = vld [vmem:[#allocation6 + $0x720] sm:$0xff]
    %v2448 = vld [vmem:[#allocation6 + $0x728] sm:$0xff]
    %v2449 = vld [vmem:[#allocation6 + $0x730] sm:$0xff]
    %v2450 = vld [vmem:[#allocation6 + $0x738] sm:$0xff]
    %v2451 = vld [vmem:[#allocation6 + $0x740] sm:$0xff]
    %v2452 = vld [vmem:[#allocation6 + $0x748] sm:$0xff]
    %v2453 = vld [vmem:[#allocation6 + $0x750] sm:$0xff]
    %v2454 = vld [vmem:[#allocation6 + $0x758] sm:$0xff]
    %v2455 = vld [vmem:[#allocation6 + $0x760] sm:$0xff]
    %v2456 = vld [vmem:[#allocation6 + $0x768] sm:$0xff]
    %v2457 = vld [vmem:[#allocation6 + $0x770] sm:$0xff]
    %v2458 = vld [vmem:[#allocation6 + $0x778] sm:$0xff]
    %v2459 = vld [vmem:[#allocation6 + $0x780] sm:$0xff]
    %v2460 = vld [vmem:[#allocation6 + $0x788] sm:$0xff]
    %v2461 = vld [vmem:[#allocation6 + $0x790] sm:$0xff]
    %v2462 = vld [vmem:[#allocation6 + $0x798] sm:$0xff]
    %v2463 = vld [vmem:[#allocation6 + $0x7a0] sm:$0xff]
    %v2464 = vld [vmem:[#allocation6 + $0x7a8] sm:$0xff]
    %v2465 = vld [vmem:[#allocation6 + $0x7b0] sm:$0xff]
    %v2466 = vld [vmem:[#allocation6 + $0x7b8] sm:$0xff]
    %v2467 = vld [vmem:[#allocation6 + $0x7c0] sm:$0xff]
    %v2468 = vld [vmem:[#allocation6 + $0x7c8] sm:$0xff]
    %v2469 = vld [vmem:[#allocation6 + $0x7d0] sm:$0xff]
    %v2470 = vld [vmem:[#allocation6 + $0x7d8] sm:$0xff]
    %v2471 = vld [vmem:[#allocation6 + $0x7e0] sm:$0xff]
    %v2472 = vld [vmem:[#allocation6 + $0x7e8] sm:$0xff]
    %v2473 = vld [vmem:[#allocation6 + $0x7f0] sm:$0xff]
    %v2474 = vld [vmem:[#allocation6 + $0x7f8] sm:$0xff]
    %2475 = vmatprep.subr.mxu0 %v2460
    %2476 = vmatpush1.msra.mxu0 %v2459
    %2477 = vmatprep.subr.mxu0 %v2444
    %2478 = vmatpush1.msra.mxu0 %v2443
    %2479 = vmatprep.subr.mxu0 %v2428
    %2480 = vmatpush1.msra.mxu0 %v2427
    %2481 = vmatprep.subr.mxu0 %v2412
    %2482 = vmatpush1.msra.mxu0 %v2411
    %2483 = vmatprep.subr.mxu0 %v2396
    %2484 = vmatpush1.msra.mxu0 %v2395
    %2485 = vmatprep.subr.mxu0 %v2380
    %2486 = vmatpush1.msra.mxu0 %v2379
    %2487 = vmatprep.subr.mxu0 %v2364
    %2488 = vmatpush1.msra.mxu0 %v2363
    %2489 = vmatprep.subr.mxu0 %v2348
    %2490 = vmatpush1.msra.mxu0 %v2347
    %2491 = vmatprep.subr.mxu0 %v2332
    %2492 = vmatpush1.msra.mxu0 %v2331
    %2493 = vmatprep.subr.mxu0 %v2316
    %2494 = vmatpush1.msra.mxu0 %v2315
    %2495 = vmatprep.subr.mxu0 %v2300
    %2496 = vmatpush1.msra.mxu0 %v2299
    %2497 = vmatprep.subr.mxu0 %v2284
    %2498 = vmatpush1.msra.mxu0 %v2283
    %2499 = vmatprep.subr.mxu0 %v2268
    %2500 = vmatpush1.msra.mxu0 %v2267
    %2501 = vmatprep.subr.mxu0 %v2252
    %2502 = vmatpush1.msra.mxu0 %v2251
    %2503 = vmatprep.subr.mxu0 %v2236
    %2504 = vmatpush1.msra.mxu0 %v2235
    %2505 = vmatprep.subr.mxu0 %v2220
    %2506 = vmatpush1.msra.mxu0 %v2219
    %2507 = vmatprep.subr.mxu0 0.0
    %2508 = vmatpush2.msra.mxu0 0.0
    %2509 = vmatprep.subr.mxu0 0.0
    %2510 = vmatpush2.msra.mxu0 0.0
    %2511 = vmatprep.subr.mxu0 0.0
    %2512 = vmatpush2.msra.mxu0 0.0
    %2513 = vmatprep.subr.mxu0 0.0
    %2514 = vmatpush2.msra.mxu0 0.0
    %2515 = vmatprep.subr.mxu0 0.0
    %2516 = vmatpush2.msra.mxu0 0.0
    %2517 = vmatprep.subr.mxu0 0.0
    %2518 = vmatpush2.msra.mxu0 0.0
    %2519 = vmatprep.subr.mxu0 0.0
    %2520 = vmatpush2.msra.mxu0 0.0
    %2521 = vmatprep.subr.mxu0 0.0
    %2522 = vmatpush2.msra.mxu0 0.0
    %2523 = vmatprep.subr.mxu0 0.0
    %2524 = vmatpush2.msra.mxu0 0.0
    %2525 = vmatprep.subr.mxu0 0.0
    %2526 = vmatpush2.msra.mxu0 0.0
    %2527 = vmatprep.subr.mxu0 0.0
    %2528 = vmatpush2.msra.mxu0 0.0
    %2529 = vmatprep.subr.mxu0 0.0
    %2530 = vmatpush2.msra.mxu0 0.0
    %2531 = vmatprep.subr.mxu0 0.0
    %2532 = vmatpush2.msra.mxu0 0.0
    %2533 = vmatprep.subr.mxu0 0.0
    %2534 = vmatpush2.msra.mxu0 0.0
    %2535 = vmatprep.subr.mxu0 0.0
    %2536 = vmatpush2.msra.mxu0 0.0
    %2537 = vmatprep.subr.mxu0 0.0
    %2538 = vmatpush2.msra.mxu0 0.0
    %2539 = vmatprep.mubr.f32.mxu0 0.0
    %2540 = vmatmul.mubr.f32.gmra.mxu0 %v2215
    %v2541 = vpop.f32.mrf.mxu0
    %v2542 = vadd.f32 0.0, %v2541
    %v2543 = vpop.f32.mrf.mxu0
    %v2544 = vadd.f32 0.0, %v2543
    %2545 = vdwg.mxu0
    %2546 = vmatprep.subr.mxu0 %v2462
    %2547 = vmatpush1.msra.mxu0 %v2461
    %2548 = vmatprep.subr.mxu0 %v2446
    %2549 = vmatpush1.msra.mxu0 %v2445
    %2550 = vmatprep.subr.mxu0 %v2430
    %2551 = vmatpush1.msra.mxu0 %v2429
    %2552 = vmatprep.subr.mxu0 %v2414
    %2553 = vmatpush1.msra.mxu0 %v2413
    %2554 = vmatprep.subr.mxu0 %v2398
    %2555 = vmatpush1.msra.mxu0 %v2397
    %2556 = vmatprep.subr.mxu0 %v2382
    %2557 = vmatpush1.msra.mxu0 %v2381
    %2558 = vmatprep.subr.mxu0 %v2366
    %2559 = vmatpush1.msra.mxu0 %v2365
    %2560 = vmatprep.subr.mxu0 %v2350
    %2561 = vmatpush1.msra.mxu0 %v2349
    %2562 = vmatprep.subr.mxu0 %v2334
    %2563 = vmatpush1.msra.mxu0 %v2333
    %2564 = vmatprep.subr.mxu0 %v2318
    %2565 = vmatpush1.msra.mxu0 %v2317
    %2566 = vmatprep.subr.mxu0 %v2302
    %2567 = vmatpush1.msra.mxu0 %v2301
    %2568 = vmatprep.subr.mxu0 %v2286
    %2569 = vmatpush1.msra.mxu0 %v2285
    %2570 = vmatprep.subr.mxu0 %v2270
    %2571 = vmatpush1.msra.mxu0 %v2269
    %2572 = vmatprep.subr.mxu0 %v2254
    %2573 = vmatpush1.msra.mxu0 %v2253
    %2574 = vmatprep.subr.mxu0 %v2238
    %2575 = vmatpush1.msra.mxu0 %v2237
    %2576 = vmatprep.subr.mxu0 %v2222
    %2577 = vmatpush1.msra.mxu0 %v2221
    %2578 = vmatprep.subr.mxu0 0.0
    %2579 = vmatpush2.msra.mxu0 0.0
    %2580 = vmatprep.subr.mxu0 0.0
    %2581 = vmatpush2.msra.mxu0 0.0
    %2582 = vmatprep.subr.mxu0 0.0
    %2583 = vmatpush2.msra.mxu0 0.0
    %2584 = vmatprep.subr.mxu0 0.0
    %2585 = vmatpush2.msra.mxu0 0.0
    %2586 = vmatprep.subr.mxu0 0.0
    %2587 = vmatpush2.msra.mxu0 0.0
    %2588 = vmatprep.subr.mxu0 0.0
    %2589 = vmatpush2.msra.mxu0 0.0
    %2590 = vmatprep.subr.mxu0 0.0
    %2591 = vmatpush2.msra.mxu0 0.0
    %2592 = vmatprep.subr.mxu0 0.0
    %2593 = vmatpush2.msra.mxu0 0.0
    %2594 = vmatprep.subr.mxu0 0.0
    %2595 = vmatpush2.msra.mxu0 0.0
    %2596 = vmatprep.subr.mxu0 0.0
    %2597 = vmatpush2.msra.mxu0 0.0
    %2598 = vmatprep.subr.mxu0 0.0
    %2599 = vmatpush2.msra.mxu0 0.0
    %2600 = vmatprep.subr.mxu0 0.0
    %2601 = vmatpush2.msra.mxu0 0.0
    %2602 = vmatprep.subr.mxu0 0.0
    %2603 = vmatpush2.msra.mxu0 0.0
    %2604 = vmatprep.subr.mxu0 0.0
    %2605 = vmatpush2.msra.mxu0 0.0
    %2606 = vmatprep.subr.mxu0 0.0
    %2607 = vmatpush2.msra.mxu0 0.0
    %2608 = vmatprep.subr.mxu0 0.0
    %2609 = vmatpush2.msra.mxu0 0.0
    %2610 = vmatprep.mubr.f32.mxu0 0.0
    %2611 = vmatmul.mubr.f32.gmra.mxu0 %v2215
    %v2612 = vpop.f32.mrf.mxu0
    %v2613 = vadd.f32 0.0, %v2612
    %v2614 = vpop.f32.mrf.mxu0
    %v2615 = vadd.f32 0.0, %v2614
    %2616 = vdwg.mxu0
    %2617 = vmatprep.subr.mxu0 %v2464
    %2618 = vmatpush1.msra.mxu0 %v2463
    %2619 = vmatprep.subr.mxu0 %v2448
    %2620 = vmatpush1.msra.mxu0 %v2447
    %2621 = vmatprep.subr.mxu0 %v2432
    %2622 = vmatpush1.msra.mxu0 %v2431
    %2623 = vmatprep.subr.mxu0 %v2416
    %2624 = vmatpush1.msra.mxu0 %v2415
    %2625 = vmatprep.subr.mxu0 %v2400
    %2626 = vmatpush1.msra.mxu0 %v2399
    %2627 = vmatprep.subr.mxu0 %v2384
    %2628 = vmatpush1.msra.mxu0 %v2383
    %2629 = vmatprep.subr.mxu0 %v2368
    %2630 = vmatpush1.msra.mxu0 %v2367
    %2631 = vmatprep.subr.mxu0 %v2352
    %2632 = vmatpush1.msra.mxu0 %v2351
    %2633 = vmatprep.subr.mxu0 %v2336
    %2634 = vmatpush1.msra.mxu0 %v2335
    %2635 = vmatprep.subr.mxu0 %v2320
    %2636 = vmatpush1.msra.mxu0 %v2319
    %2637 = vmatprep.subr.mxu0 %v2304
    %2638 = vmatpush1.msra.mxu0 %v2303
    %2639 = vmatprep.subr.mxu0 %v2288
    %2640 = vmatpush1.msra.mxu0 %v2287
    %2641 = vmatprep.subr.mxu0 %v2272
    %2642 = vmatpush1.msra.mxu0 %v2271
    %2643 = vmatprep.subr.mxu0 %v2256
    %2644 = vmatpush1.msra.mxu0 %v2255
    %2645 = vmatprep.subr.mxu0 %v2240
    %2646 = vmatpush1.msra.mxu0 %v2239
    %2647 = vmatprep.subr.mxu0 %v2224
    %2648 = vmatpush1.msra.mxu0 %v2223
    %2649 = vmatprep.subr.mxu0 0.0
    %2650 = vmatpush2.msra.mxu0 0.0
    %2651 = vmatprep.subr.mxu0 0.0
    %2652 = vmatpush2.msra.mxu0 0.0
    %2653 = vmatprep.subr.mxu0 0.0
    %2654 = vmatpush2.msra.mxu0 0.0
    %2655 = vmatprep.subr.mxu0 0.0
    %2656 = vmatpush2.msra.mxu0 0.0
    %2657 = vmatprep.subr.mxu0 0.0
    %2658 = vmatpush2.msra.mxu0 0.0
    %2659 = vmatprep.subr.mxu0 0.0
    %2660 = vmatpush2.msra.mxu0 0.0
    %2661 = vmatprep.subr.mxu0 0.0
    %2662 = vmatpush2.msra.mxu0 0.0
    %2663 = vmatprep.subr.mxu0 0.0
    %2664 = vmatpush2.msra.mxu0 0.0
    %2665 = vmatprep.subr.mxu0 0.0
    %2666 = vmatpush2.msra.mxu0 0.0
    %2667 = vmatprep.subr.mxu0 0.0
    %2668 = vmatpush2.msra.mxu0 0.0
    %2669 = vmatprep.subr.mxu0 0.0
    %2670 = vmatpush2.msra.mxu0 0.0
    %2671 = vmatprep.subr.mxu0 0.0
    %2672 = vmatpush2.msra.mxu0 0.0
    %2673 = vmatprep.subr.mxu0 0.0
    %2674 = vmatpush2.msra.mxu0 0.0
    %2675 = vmatprep.subr.mxu0 0.0
    %2676 = vmatpush2.msra.mxu0 0.0
    %2677 = vmatprep.subr.mxu0 0.0
    %2678 = vmatpush2.msra.mxu0 0.0
    %2679 = vmatprep.subr.mxu0 0.0
    %2680 = vmatpush2.msra.mxu0 0.0
    %2681 = vmatprep.mubr.f32.mxu0 0.0
    %2682 = vmatmul.mubr.f32.gmra.mxu0 %v2215
    %v2683 = vpop.f32.mrf.mxu0
    %v2684 = vadd.f32 0.0, %v2683
    %v2685 = vpop.f32.mrf.mxu0
    %v2686 = vadd.f32 0.0, %v2685
    %2687 = vdwg.mxu0
    %2688 = vmatprep.subr.mxu0 %v2466
    %2689 = vmatpush1.msra.mxu0 %v2465
    %2690 = vmatprep.subr.mxu0 %v2450
    %2691 = vmatpush1.msra.mxu0 %v2449
    %2692 = vmatprep.subr.mxu0 %v2434
    %2693 = vmatpush1.msra.mxu0 %v2433
    %2694 = vmatprep.subr.mxu0 %v2418
    %2695 = vmatpush1.msra.mxu0 %v2417
    %2696 = vmatprep.subr.mxu0 %v2402
    %2697 = vmatpush1.msra.mxu0 %v2401
    %2698 = vmatprep.subr.mxu0 %v2386
    %2699 = vmatpush1.msra.mxu0 %v2385
    %2700 = vmatprep.subr.mxu0 %v2370
    %2701 = vmatpush1.msra.mxu0 %v2369
    %2702 = vmatprep.subr.mxu0 %v2354
    %2703 = vmatpush1.msra.mxu0 %v2353
    %2704 = vmatprep.subr.mxu0 %v2338
    %2705 = vmatpush1.msra.mxu0 %v2337
    %2706 = vmatprep.subr.mxu0 %v2322
    %2707 = vmatpush1.msra.mxu0 %v2321
    %2708 = vmatprep.subr.mxu0 %v2306
    %2709 = vmatpush1.msra.mxu0 %v2305
    %2710 = vmatprep.subr.mxu0 %v2290
    %2711 = vmatpush1.msra.mxu0 %v2289
    %2712 = vmatprep.subr.mxu0 %v2274
    %2713 = vmatpush1.msra.mxu0 %v2273
    %2714 = vmatprep.subr.mxu0 %v2258
    %2715 = vmatpush1.msra.mxu0 %v2257
    %2716 = vmatprep.subr.mxu0 %v2242
    %2717 = vmatpush1.msra.mxu0 %v2241
    %2718 = vmatprep.subr.mxu0 %v2226
    %2719 = vmatpush1.msra.mxu0 %v2225
    %2720 = vmatprep.subr.mxu0 0.0
    %2721 = vmatpush2.msra.mxu0 0.0
    %2722 = vmatprep.subr.mxu0 0.0
    %2723 = vmatpush2.msra.mxu0 0.0
    %2724 = vmatprep.subr.mxu0 0.0
    %2725 = vmatpush2.msra.mxu0 0.0
    %2726 = vmatprep.subr.mxu0 0.0
    %2727 = vmatpush2.msra.mxu0 0.0
    %2728 = vmatprep.subr.mxu0 0.0
    %2729 = vmatpush2.msra.mxu0 0.0
    %2730 = vmatprep.subr.mxu0 0.0
    %2731 = vmatpush2.msra.mxu0 0.0
    %2732 = vmatprep.subr.mxu0 0.0
    %2733 = vmatpush2.msra.mxu0 0.0
    %2734 = vmatprep.subr.mxu0 0.0
    %2735 = vmatpush2.msra.mxu0 0.0
    %2736 = vmatprep.subr.mxu0 0.0
    %2737 = vmatpush2.msra.mxu0 0.0
    %2738 = vmatprep.subr.mxu0 0.0
    %2739 = vmatpush2.msra.mxu0 0.0
    %2740 = vmatprep.subr.mxu0 0.0
    %2741 = vmatpush2.msra.mxu0 0.0
    %2742 = vmatprep.subr.mxu0 0.0
    %2743 = vmatpush2.msra.mxu0 0.0
    %2744 = vmatprep.subr.mxu0 0.0
    %2745 = vmatpush2.msra.mxu0 0.0
    %2746 = vmatprep.subr.mxu0 0.0
    %2747 = vmatpush2.msra.mxu0 0.0
    %2748 = vmatprep.subr.mxu0 0.0
    %2749 = vmatpush2.msra.mxu0 0.0
    %2750 = vmatprep.subr.mxu0 0.0
    %2751 = vmatpush2.msra.mxu0 0.0
    %2752 = vmatprep.mubr.f32.mxu0 0.0
    %2753 = vmatmul.mubr.f32.gmra.mxu0 %v2215
    %v2754 = vpop.f32.mrf.mxu0
    %v2755 = vadd.f32 0.0, %v2754
    %v2756 = vpop.f32.mrf.mxu0
    %v2757 = vadd.f32 0.0, %v2756
    %2758 = vdwg.mxu0
    %2759 = vmatprep.subr.mxu0 %v2468
    %2760 = vmatpush1.msra.mxu0 %v2467
    %2761 = vmatprep.subr.mxu0 %v2452
    %2762 = vmatpush1.msra.mxu0 %v2451
    %2763 = vmatprep.subr.mxu0 %v2436
    %2764 = vmatpush1.msra.mxu0 %v2435
    %2765 = vmatprep.subr.mxu0 %v2420
    %2766 = vmatpush1.msra.mxu0 %v2419
    %2767 = vmatprep.subr.mxu0 %v2404
    %2768 = vmatpush1.msra.mxu0 %v2403
    %2769 = vmatprep.subr.mxu0 %v2388
    %2770 = vmatpush1.msra.mxu0 %v2387
    %2771 = vmatprep.subr.mxu0 %v2372
    %2772 = vmatpush1.msra.mxu0 %v2371
    %2773 = vmatprep.subr.mxu0 %v2356
    %2774 = vmatpush1.msra.mxu0 %v2355
    %2775 = vmatprep.subr.mxu0 %v2340
    %2776 = vmatpush1.msra.mxu0 %v2339
    %2777 = vmatprep.subr.mxu0 %v2324
    %2778 = vmatpush1.msra.mxu0 %v2323
    %2779 = vmatprep.subr.mxu0 %v2308
    %2780 = vmatpush1.msra.mxu0 %v2307
    %2781 = vmatprep.subr.mxu0 %v2292
    %2782 = vmatpush1.msra.mxu0 %v2291
    %2783 = vmatprep.subr.mxu0 %v2276
    %2784 = vmatpush1.msra.mxu0 %v2275
    %2785 = vmatprep.subr.mxu0 %v2260
    %2786 = vmatpush1.msra.mxu0 %v2259
    %2787 = vmatprep.subr.mxu0 %v2244
    %2788 = vmatpush1.msra.mxu0 %v2243
    %2789 = vmatprep.subr.mxu0 %v2228
    %2790 = vmatpush1.msra.mxu0 %v2227
    %2791 = vmatprep.subr.mxu0 0.0
    %2792 = vmatpush2.msra.mxu0 0.0
    %2793 = vmatprep.subr.mxu0 0.0
    %2794 = vmatpush2.msra.mxu0 0.0
    %2795 = vmatprep.subr.mxu0 0.0
    %2796 = vmatpush2.msra.mxu0 0.0
    %2797 = vmatprep.subr.mxu0 0.0
    %2798 = vmatpush2.msra.mxu0 0.0
    %2799 = vmatprep.subr.mxu0 0.0
    %2800 = vmatpush2.msra.mxu0 0.0
    %2801 = vmatprep.subr.mxu0 0.0
    %2802 = vmatpush2.msra.mxu0 0.0
    %2803 = vmatprep.subr.mxu0 0.0
    %2804 = vmatpush2.msra.mxu0 0.0
    %2805 = vmatprep.subr.mxu0 0.0
    %2806 = vmatpush2.msra.mxu0 0.0
    %2807 = vmatprep.subr.mxu0 0.0
    %2808 = vmatpush2.msra.mxu0 0.0
    %2809 = vmatprep.subr.mxu0 0.0
    %2810 = vmatpush2.msra.mxu0 0.0
    %2811 = vmatprep.subr.mxu0 0.0
    %2812 = vmatpush2.msra.mxu0 0.0
    %2813 = vmatprep.subr.mxu0 0.0
    %2814 = vmatpush2.msra.mxu0 0.0
    %2815 = vmatprep.subr.mxu0 0.0
    %2816 = vmatpush2.msra.mxu0 0.0
    %2817 = vmatprep.subr.mxu0 0.0
    %2818 = vmatpush2.msra.mxu0 0.0
    %2819 = vmatprep.subr.mxu0 0.0
    %2820 = vmatpush2.msra.mxu0 0.0
    %2821 = vmatprep.subr.mxu0 0.0
    %2822 = vmatpush2.msra.mxu0 0.0
    %2823 = vmatprep.mubr.f32.mxu0 0.0
    %2824 = vmatmul.mubr.f32.gmra.mxu0 %v2215
    %v2825 = vpop.f32.mrf.mxu0
    %v2826 = vadd.f32 0.0, %v2825
    %v2827 = vpop.f32.mrf.mxu0
    %v2828 = vadd.f32 0.0, %v2827
    %2829 = vdwg.mxu0
    %2830 = vmatprep.subr.mxu0 %v2470
    %2831 = vmatpush1.msra.mxu0 %v2469
    %2832 = vmatprep.subr.mxu0 %v2454
    %2833 = vmatpush1.msra.mxu0 %v2453
    %2834 = vmatprep.subr.mxu0 %v2438
    %2835 = vmatpush1.msra.mxu0 %v2437
    %2836 = vmatprep.subr.mxu0 %v2422
    %2837 = vmatpush1.msra.mxu0 %v2421
    %2838 = vmatprep.subr.mxu0 %v2406
    %2839 = vmatpush1.msra.mxu0 %v2405
    %2840 = vmatprep.subr.mxu0 %v2390
    %2841 = vmatpush1.msra.mxu0 %v2389
    %2842 = vmatprep.subr.mxu0 %v2374
    %2843 = vmatpush1.msra.mxu0 %v2373
    %2844 = vmatprep.subr.mxu0 %v2358
    %2845 = vmatpush1.msra.mxu0 %v2357
    %2846 = vmatprep.subr.mxu0 %v2342
    %2847 = vmatpush1.msra.mxu0 %v2341
    %2848 = vmatprep.subr.mxu0 %v2326
    %2849 = vmatpush1.msra.mxu0 %v2325
    %2850 = vmatprep.subr.mxu0 %v2310
    %2851 = vmatpush1.msra.mxu0 %v2309
    %2852 = vmatprep.subr.mxu0 %v2294
    %2853 = vmatpush1.msra.mxu0 %v2293
    %2854 = vmatprep.subr.mxu0 %v2278
    %2855 = vmatpush1.msra.mxu0 %v2277
    %2856 = vmatprep.subr.mxu0 %v2262
    %2857 = vmatpush1.msra.mxu0 %v2261
    %2858 = vmatprep.subr.mxu0 %v2246
    %2859 = vmatpush1.msra.mxu0 %v2245
    %2860 = vmatprep.subr.mxu0 %v2230
    %2861 = vmatpush1.msra.mxu0 %v2229
    %2862 = vmatprep.subr.mxu0 0.0
    %2863 = vmatpush2.msra.mxu0 0.0
    %2864 = vmatprep.subr.mxu0 0.0
    %2865 = vmatpush2.msra.mxu0 0.0
    %2866 = vmatprep.subr.mxu0 0.0
    %2867 = vmatpush2.msra.mxu0 0.0
    %2868 = vmatprep.subr.mxu0 0.0
    %2869 = vmatpush2.msra.mxu0 0.0
    %2870 = vmatprep.subr.mxu0 0.0
    %2871 = vmatpush2.msra.mxu0 0.0
    %2872 = vmatprep.subr.mxu0 0.0
    %2873 = vmatpush2.msra.mxu0 0.0
    %2874 = vmatprep.subr.mxu0 0.0
    %2875 = vmatpush2.msra.mxu0 0.0
    %2876 = vmatprep.subr.mxu0 0.0
    %2877 = vmatpush2.msra.mxu0 0.0
    %2878 = vmatprep.subr.mxu0 0.0
    %2879 = vmatpush2.msra.mxu0 0.0
    %2880 = vmatprep.subr.mxu0 0.0
    %2881 = vmatpush2.msra.mxu0 0.0
    %2882 = vmatprep.subr.mxu0 0.0
    %2883 = vmatpush2.msra.mxu0 0.0
    %2884 = vmatprep.subr.mxu0 0.0
    %2885 = vmatpush2.msra.mxu0 0.0
    %2886 = vmatprep.subr.mxu0 0.0
    %2887 = vmatpush2.msra.mxu0 0.0
    %2888 = vmatprep.subr.mxu0 0.0
    %2889 = vmatpush2.msra.mxu0 0.0
    %2890 = vmatprep.subr.mxu0 0.0
    %2891 = vmatpush2.msra.mxu0 0.0
    %2892 = vmatprep.subr.mxu0 0.0
    %2893 = vmatpush2.msra.mxu0 0.0
    %2894 = vmatprep.mubr.f32.mxu0 0.0
    %2895 = vmatmul.mubr.f32.gmra.mxu0 %v2215
    %v2896 = vpop.f32.mrf.mxu0
    %v2897 = vadd.f32 0.0, %v2896
    %v2898 = vpop.f32.mrf.mxu0
    %v2899 = vadd.f32 0.0, %v2898
    %2900 = vdwg.mxu0
    %2901 = vmatprep.subr.mxu0 %v2472
    %2902 = vmatpush1.msra.mxu0 %v2471
    %2903 = vmatprep.subr.mxu0 %v2456
    %2904 = vmatpush1.msra.mxu0 %v2455
    %2905 = vmatprep.subr.mxu0 %v2440
    %2906 = vmatpush1.msra.mxu0 %v2439
    %2907 = vmatprep.subr.mxu0 %v2424
    %2908 = vmatpush1.msra.mxu0 %v2423
    %2909 = vmatprep.subr.mxu0 %v2408
    %2910 = vmatpush1.msra.mxu0 %v2407
    %2911 = vmatprep.subr.mxu0 %v2392
    %2912 = vmatpush1.msra.mxu0 %v2391
    %2913 = vmatprep.subr.mxu0 %v2376
    %2914 = vmatpush1.msra.mxu0 %v2375
    %2915 = vmatprep.subr.mxu0 %v2360
    %2916 = vmatpush1.msra.mxu0 %v2359
    %2917 = vmatprep.subr.mxu0 %v2344
    %2918 = vmatpush1.msra.mxu0 %v2343
    %2919 = vmatprep.subr.mxu0 %v2328
    %2920 = vmatpush1.msra.mxu0 %v2327
    %2921 = vmatprep.subr.mxu0 %v2312
    %2922 = vmatpush1.msra.mxu0 %v2311
    %2923 = vmatprep.subr.mxu0 %v2296
    %2924 = vmatpush1.msra.mxu0 %v2295
    %2925 = vmatprep.subr.mxu0 %v2280
    %2926 = vmatpush1.msra.mxu0 %v2279
    %2927 = vmatprep.subr.mxu0 %v2264
    %2928 = vmatpush1.msra.mxu0 %v2263
    %2929 = vmatprep.subr.mxu0 %v2248
    %2930 = vmatpush1.msra.mxu0 %v2247
    %2931 = vmatprep.subr.mxu0 %v2232
    %2932 = vmatpush1.msra.mxu0 %v2231
    %2933 = vmatprep.subr.mxu0 0.0
    %2934 = vmatpush2.msra.mxu0 0.0
    %2935 = vmatprep.subr.mxu0 0.0
    %2936 = vmatpush2.msra.mxu0 0.0
    %2937 = vmatprep.subr.mxu0 0.0
    %2938 = vmatpush2.msra.mxu0 0.0
    %2939 = vmatprep.subr.mxu0 0.0
    %2940 = vmatpush2.msra.mxu0 0.0
    %2941 = vmatprep.subr.mxu0 0.0
    %2942 = vmatpush2.msra.mxu0 0.0
    %2943 = vmatprep.subr.mxu0 0.0
    %2944 = vmatpush2.msra.mxu0 0.0
    %2945 = vmatprep.subr.mxu0 0.0
    %2946 = vmatpush2.msra.mxu0 0.0
    %2947 = vmatprep.subr.mxu0 0.0
    %2948 = vmatpush2.msra.mxu0 0.0
    %2949 = vmatprep.subr.mxu0 0.0
    %2950 = vmatpush2.msra.mxu0 0.0
    %2951 = vmatprep.subr.mxu0 0.0
    %2952 = vmatpush2.msra.mxu0 0.0
    %2953 = vmatprep.subr.mxu0 0.0
    %2954 = vmatpush2.msra.mxu0 0.0
    %2955 = vmatprep.subr.mxu0 0.0
    %2956 = vmatpush2.msra.mxu0 0.0
    %2957 = vmatprep.subr.mxu0 0.0
    %2958 = vmatpush2.msra.mxu0 0.0
    %2959 = vmatprep.subr.mxu0 0.0
    %2960 = vmatpush2.msra.mxu0 0.0
    %2961 = vmatprep.subr.mxu0 0.0
    %2962 = vmatpush2.msra.mxu0 0.0
    %2963 = vmatprep.subr.mxu0 0.0
    %2964 = vmatpush2.msra.mxu0 0.0
    %2965 = vmatprep.mubr.f32.mxu0 0.0
    %2966 = vmatmul.mubr.f32.gmra.mxu0 %v2215
    %v2967 = vpop.f32.mrf.mxu0
    %v2968 = vadd.f32 0.0, %v2967
    %v2969 = vpop.f32.mrf.mxu0
    %v2970 = vadd.f32 0.0, %v2969
    %2971 = vdwg.mxu0
    %2972 = vmatprep.subr.mxu0 %v2474
    %2973 = vmatpush1.msra.mxu0 %v2473
    %2974 = vmatprep.subr.mxu0 %v2458
    %2975 = vmatpush1.msra.mxu0 %v2457
    %2976 = vmatprep.subr.mxu0 %v2442
    %2977 = vmatpush1.msra.mxu0 %v2441
    %2978 = vmatprep.subr.mxu0 %v2426
    %2979 = vmatpush1.msra.mxu0 %v2425
    %2980 = vmatprep.subr.mxu0 %v2410
    %2981 = vmatpush1.msra.mxu0 %v2409
    %2982 = vmatprep.subr.mxu0 %v2394
    %2983 = vmatpush1.msra.mxu0 %v2393
    %2984 = vmatprep.subr.mxu0 %v2378
    %2985 = vmatpush1.msra.mxu0 %v2377
    %2986 = vmatprep.subr.mxu0 %v2362
    %2987 = vmatpush1.msra.mxu0 %v2361
    %2988 = vmatprep.subr.mxu0 %v2346
    %2989 = vmatpush1.msra.mxu0 %v2345
    %2990 = vmatprep.subr.mxu0 %v2330
    %2991 = vmatpush1.msra.mxu0 %v2329
    %2992 = vmatprep.subr.mxu0 %v2314
    %2993 = vmatpush1.msra.mxu0 %v2313
    %2994 = vmatprep.subr.mxu0 %v2298
    %2995 = vmatpush1.msra.mxu0 %v2297
    %2996 = vmatprep.subr.mxu0 %v2282
    %2997 = vmatpush1.msra.mxu0 %v2281
    %2998 = vmatprep.subr.mxu0 %v2266
    %2999 = vmatpush1.msra.mxu0 %v2265
    %3000 = vmatprep.subr.mxu0 %v2250
    %3001 = vmatpush1.msra.mxu0 %v2249
    %3002 = vmatprep.subr.mxu0 %v2234
    %3003 = vmatpush1.msra.mxu0 %v2233
    %3004 = vmatprep.subr.mxu0 0.0
    %3005 = vmatpush2.msra.mxu0 0.0
    %3006 = vmatprep.subr.mxu0 0.0
    %3007 = vmatpush2.msra.mxu0 0.0
    %3008 = vmatprep.subr.mxu0 0.0
    %3009 = vmatpush2.msra.mxu0 0.0
    %3010 = vmatprep.subr.mxu0 0.0
    %3011 = vmatpush2.msra.mxu0 0.0
    %3012 = vmatprep.subr.mxu0 0.0
    %3013 = vmatpush2.msra.mxu0 0.0
    %3014 = vmatprep.subr.mxu0 0.0
    %3015 = vmatpush2.msra.mxu0 0.0
    %3016 = vmatprep.subr.mxu0 0.0
    %3017 = vmatpush2.msra.mxu0 0.0
    %3018 = vmatprep.subr.mxu0 0.0
    %3019 = vmatpush2.msra.mxu0 0.0
    %3020 = vmatprep.subr.mxu0 0.0
    %3021 = vmatpush2.msra.mxu0 0.0
    %3022 = vmatprep.subr.mxu0 0.0
    %3023 = vmatpush2.msra.mxu0 0.0
    %3024 = vmatprep.subr.mxu0 0.0
    %3025 = vmatpush2.msra.mxu0 0.0
    %3026 = vmatprep.subr.mxu0 0.0
    %3027 = vmatpush2.msra.mxu0 0.0
    %3028 = vmatprep.subr.mxu0 0.0
    %3029 = vmatpush2.msra.mxu0 0.0
    %3030 = vmatprep.subr.mxu0 0.0
    %3031 = vmatpush2.msra.mxu0 0.0
    %3032 = vmatprep.subr.mxu0 0.0
    %3033 = vmatpush2.msra.mxu0 0.0
    %3034 = vmatprep.subr.mxu0 0.0
    %3035 = vmatpush2.msra.mxu0 0.0
    %3036 = vmatprep.mubr.f32.mxu0 0.0
    %3037 = vmatmul.mubr.f32.gmra.mxu0 %v2215
    %v3038 = vpop.f32.mrf.mxu0
    %v3039 = vadd.f32 0.0, %v3038
    %v3040 = vpop.f32.mrf.mxu0
    %v3041 = vadd.f32 0.0, %v3040
    %3042 = vdwg.mxu0
    %3043 = vmatprep.subr.mxu0 %v2460
    %3044 = vmatpush1.msra.mxu0 %v2459
    %3045 = vmatprep.subr.mxu0 %v2444
    %3046 = vmatpush1.msra.mxu0 %v2443
    %3047 = vmatprep.subr.mxu0 %v2428
    %3048 = vmatpush1.msra.mxu0 %v2427
    %3049 = vmatprep.subr.mxu0 %v2412
    %3050 = vmatpush1.msra.mxu0 %v2411
    %3051 = vmatprep.subr.mxu0 %v2396
    %3052 = vmatpush1.msra.mxu0 %v2395
    %3053 = vmatprep.subr.mxu0 %v2380
    %3054 = vmatpush1.msra.mxu0 %v2379
    %3055 = vmatprep.subr.mxu0 %v2364
    %3056 = vmatpush1.msra.mxu0 %v2363
    %3057 = vmatprep.subr.mxu0 %v2348
    %3058 = vmatpush1.msra.mxu0 %v2347
    %3059 = vmatprep.subr.mxu0 %v2332
    %3060 = vmatpush1.msra.mxu0 %v2331
    %3061 = vmatprep.subr.mxu0 %v2316
    %3062 = vmatpush1.msra.mxu0 %v2315
    %3063 = vmatprep.subr.mxu0 %v2300
    %3064 = vmatpush1.msra.mxu0 %v2299
    %3065 = vmatprep.subr.mxu0 %v2284
    %3066 = vmatpush1.msra.mxu0 %v2283
    %3067 = vmatprep.subr.mxu0 %v2268
    %3068 = vmatpush1.msra.mxu0 %v2267
    %3069 = vmatprep.subr.mxu0 %v2252
    %3070 = vmatpush1.msra.mxu0 %v2251
    %3071 = vmatprep.subr.mxu0 %v2236
    %3072 = vmatpush1.msra.mxu0 %v2235
    %3073 = vmatprep.subr.mxu0 %v2220
    %3074 = vmatpush1.msra.mxu0 %v2219
    %3075 = vmatprep.subr.mxu0 0.0
    %3076 = vmatpush2.msra.mxu0 0.0
    %3077 = vmatprep.subr.mxu0 0.0
    %3078 = vmatpush2.msra.mxu0 0.0
    %3079 = vmatprep.subr.mxu0 0.0
    %3080 = vmatpush2.msra.mxu0 0.0
    %3081 = vmatprep.subr.mxu0 0.0
    %3082 = vmatpush2.msra.mxu0 0.0
    %3083 = vmatprep.subr.mxu0 0.0
    %3084 = vmatpush2.msra.mxu0 0.0
    %3085 = vmatprep.subr.mxu0 0.0
    %3086 = vmatpush2.msra.mxu0 0.0
    %3087 = vmatprep.subr.mxu0 0.0
    %3088 = vmatpush2.msra.mxu0 0.0
    %3089 = vmatprep.subr.mxu0 0.0
    %3090 = vmatpush2.msra.mxu0 0.0
    %3091 = vmatprep.subr.mxu0 0.0
    %3092 = vmatpush2.msra.mxu0 0.0
    %3093 = vmatprep.subr.mxu0 0.0
    %3094 = vmatpush2.msra.mxu0 0.0
    %3095 = vmatprep.subr.mxu0 0.0
    %3096 = vmatpush2.msra.mxu0 0.0
    %3097 = vmatprep.subr.mxu0 0.0
    %3098 = vmatpush2.msra.mxu0 0.0
    %3099 = vmatprep.subr.mxu0 0.0
    %3100 = vmatpush2.msra.mxu0 0.0
    %3101 = vmatprep.subr.mxu0 0.0
    %3102 = vmatpush2.msra.mxu0 0.0
    %3103 = vmatprep.subr.mxu0 0.0
    %3104 = vmatpush2.msra.mxu0 0.0
    %3105 = vmatprep.subr.mxu0 0.0
    %3106 = vmatpush2.msra.mxu0 0.0
    %3107 = vmatprep.mubr.f32.mxu0 0.0
    %3108 = vmatmul.mubr.f32.gmra.mxu0 %v2218
    %v3109 = vpop.f32.mrf.mxu0
    %v3110 = vadd.f32 0.0, %v3109
    %v3111 = vpop.f32.mrf.mxu0
    %v3112 = vadd.f32 0.0, %v3111
    %3113 = vdwg.mxu0
    %3114 = vmatprep.subr.mxu0 %v2462
    %3115 = vmatpush1.msra.mxu0 %v2461
    %3116 = vmatprep.subr.mxu0 %v2446
    %3117 = vmatpush1.msra.mxu0 %v2445
    %3118 = vmatprep.subr.mxu0 %v2430
    %3119 = vmatpush1.msra.mxu0 %v2429
    %3120 = vmatprep.subr.mxu0 %v2414
    %3121 = vmatpush1.msra.mxu0 %v2413
    %3122 = vmatprep.subr.mxu0 %v2398
    %3123 = vmatpush1.msra.mxu0 %v2397
    %3124 = vmatprep.subr.mxu0 %v2382
    %3125 = vmatpush1.msra.mxu0 %v2381
    %3126 = vmatprep.subr.mxu0 %v2366
    %3127 = vmatpush1.msra.mxu0 %v2365
    %3128 = vmatprep.subr.mxu0 %v2350
    %3129 = vmatpush1.msra.mxu0 %v2349
    %3130 = vmatprep.subr.mxu0 %v2334
    %3131 = vmatpush1.msra.mxu0 %v2333
    %3132 = vmatprep.subr.mxu0 %v2318
    %3133 = vmatpush1.msra.mxu0 %v2317
    %3134 = vmatprep.subr.mxu0 %v2302
    %3135 = vmatpush1.msra.mxu0 %v2301
    %3136 = vmatprep.subr.mxu0 %v2286
    %3137 = vmatpush1.msra.mxu0 %v2285
    %3138 = vmatprep.subr.mxu0 %v2270
    %3139 = vmatpush1.msra.mxu0 %v2269
    %3140 = vmatprep.subr.mxu0 %v2254
    %3141 = vmatpush1.msra.mxu0 %v2253
    %3142 = vmatprep.subr.mxu0 %v2238
    %3143 = vmatpush1.msra.mxu0 %v2237
    %3144 = vmatprep.subr.mxu0 %v2222
    %3145 = vmatpush1.msra.mxu0 %v2221
    %3146 = vmatprep.subr.mxu0 0.0
    %3147 = vmatpush2.msra.mxu0 0.0
    %3148 = vmatprep.subr.mxu0 0.0
    %3149 = vmatpush2.msra.mxu0 0.0
    %3150 = vmatprep.subr.mxu0 0.0
    %3151 = vmatpush2.msra.mxu0 0.0
    %3152 = vmatprep.subr.mxu0 0.0
    %3153 = vmatpush2.msra.mxu0 0.0
    %3154 = vmatprep.subr.mxu0 0.0
    %3155 = vmatpush2.msra.mxu0 0.0
    %3156 = vmatprep.subr.mxu0 0.0
    %3157 = vmatpush2.msra.mxu0 0.0
    %3158 = vmatprep.subr.mxu0 0.0
    %3159 = vmatpush2.msra.mxu0 0.0
    %3160 = vmatprep.subr.mxu0 0.0
    %3161 = vmatpush2.msra.mxu0 0.0
    %3162 = vmatprep.subr.mxu0 0.0
    %3163 = vmatpush2.msra.mxu0 0.0
    %3164 = vmatprep.subr.mxu0 0.0
    %3165 = vmatpush2.msra.mxu0 0.0
    %3166 = vmatprep.subr.mxu0 0.0
    %3167 = vmatpush2.msra.mxu0 0.0
    %3168 = vmatprep.subr.mxu0 0.0
    %3169 = vmatpush2.msra.mxu0 0.0
    %3170 = vmatprep.subr.mxu0 0.0
    %3171 = vmatpush2.msra.mxu0 0.0
    %3172 = vmatprep.subr.mxu0 0.0
    %3173 = vmatpush2.msra.mxu0 0.0
    %3174 = vmatprep.subr.mxu0 0.0
    %3175 = vmatpush2.msra.mxu0 0.0
    %3176 = vmatprep.subr.mxu0 0.0
    %3177 = vmatpush2.msra.mxu0 0.0
    %3178 = vmatprep.mubr.f32.mxu0 0.0
    %3179 = vmatmul.mubr.f32.gmra.mxu0 %v2218
    %v3180 = vpop.f32.mrf.mxu0
    %v3181 = vadd.f32 0.0, %v3180
    %v3182 = vpop.f32.mrf.mxu0
    %v3183 = vadd.f32 0.0, %v3182
    %3184 = vdwg.mxu0
    %3185 = vmatprep.subr.mxu0 %v2464
    %3186 = vmatpush1.msra.mxu0 %v2463
    %3187 = vmatprep.subr.mxu0 %v2448
    %3188 = vmatpush1.msra.mxu0 %v2447
    %3189 = vmatprep.subr.mxu0 %v2432
    %3190 = vmatpush1.msra.mxu0 %v2431
    %3191 = vmatprep.subr.mxu0 %v2416
    %3192 = vmatpush1.msra.mxu0 %v2415
    %3193 = vmatprep.subr.mxu0 %v2400
    %3194 = vmatpush1.msra.mxu0 %v2399
    %3195 = vmatprep.subr.mxu0 %v2384
    %3196 = vmatpush1.msra.mxu0 %v2383
    %3197 = vmatprep.subr.mxu0 %v2368
    %3198 = vmatpush1.msra.mxu0 %v2367
    %3199 = vmatprep.subr.mxu0 %v2352
    %3200 = vmatpush1.msra.mxu0 %v2351
    %3201 = vmatprep.subr.mxu0 %v2336
    %3202 = vmatpush1.msra.mxu0 %v2335
    %3203 = vmatprep.subr.mxu0 %v2320
    %3204 = vmatpush1.msra.mxu0 %v2319
    %3205 = vmatprep.subr.mxu0 %v2304
    %3206 = vmatpush1.msra.mxu0 %v2303
    %3207 = vmatprep.subr.mxu0 %v2288
    %3208 = vmatpush1.msra.mxu0 %v2287
    %3209 = vmatprep.subr.mxu0 %v2272
    %3210 = vmatpush1.msra.mxu0 %v2271
    %3211 = vmatprep.subr.mxu0 %v2256
    %3212 = vmatpush1.msra.mxu0 %v2255
    %3213 = vmatprep.subr.mxu0 %v2240
    %3214 = vmatpush1.msra.mxu0 %v2239
    %3215 = vmatprep.subr.mxu0 %v2224
    %3216 = vmatpush1.msra.mxu0 %v2223
    %3217 = vmatprep.subr.mxu0 0.0
    %3218 = vmatpush2.msra.mxu0 0.0
    %3219 = vmatprep.subr.mxu0 0.0
    %3220 = vmatpush2.msra.mxu0 0.0
    %3221 = vmatprep.subr.mxu0 0.0
    %3222 = vmatpush2.msra.mxu0 0.0
    %3223 = vmatprep.subr.mxu0 0.0
    %3224 = vmatpush2.msra.mxu0 0.0
    %3225 = vmatprep.subr.mxu0 0.0
    %3226 = vmatpush2.msra.mxu0 0.0
    %3227 = vmatprep.subr.mxu0 0.0
    %3228 = vmatpush2.msra.mxu0 0.0
    %3229 = vmatprep.subr.mxu0 0.0
    %3230 = vmatpush2.msra.mxu0 0.0
    %3231 = vmatprep.subr.mxu0 0.0
    %3232 = vmatpush2.msra.mxu0 0.0
    %3233 = vmatprep.subr.mxu0 0.0
    %3234 = vmatpush2.msra.mxu0 0.0
    %3235 = vmatprep.subr.mxu0 0.0
    %3236 = vmatpush2.msra.mxu0 0.0
    %3237 = vmatprep.subr.mxu0 0.0
    %3238 = vmatpush2.msra.mxu0 0.0
    %3239 = vmatprep.subr.mxu0 0.0
    %3240 = vmatpush2.msra.mxu0 0.0
    %3241 = vmatprep.subr.mxu0 0.0
    %3242 = vmatpush2.msra.mxu0 0.0
    %3243 = vmatprep.subr.mxu0 0.0
    %3244 = vmatpush2.msra.mxu0 0.0
    %3245 = vmatprep.subr.mxu0 0.0
    %3246 = vmatpush2.msra.mxu0 0.0
    %3247 = vmatprep.subr.mxu0 0.0
    %3248 = vmatpush2.msra.mxu0 0.0
    %3249 = vmatprep.mubr.f32.mxu0 0.0
    %3250 = vmatmul.mubr.f32.gmra.mxu0 %v2218
    %v3251 = vpop.f32.mrf.mxu0
    %v3252 = vadd.f32 0.0, %v3251
    %v3253 = vpop.f32.mrf.mxu0
    %v3254 = vadd.f32 0.0, %v3253
    %3255 = vdwg.mxu0
    %3256 = vmatprep.subr.mxu0 %v2466
    %3257 = vmatpush1.msra.mxu0 %v2465
    %3258 = vmatprep.subr.mxu0 %v2450
    %3259 = vmatpush1.msra.mxu0 %v2449
    %3260 = vmatprep.subr.mxu0 %v2434
    %3261 = vmatpush1.msra.mxu0 %v2433
    %3262 = vmatprep.subr.mxu0 %v2418
    %3263 = vmatpush1.msra.mxu0 %v2417
    %3264 = vmatprep.subr.mxu0 %v2402
    %3265 = vmatpush1.msra.mxu0 %v2401
    %3266 = vmatprep.subr.mxu0 %v2386
    %3267 = vmatpush1.msra.mxu0 %v2385
    %3268 = vmatprep.subr.mxu0 %v2370
    %3269 = vmatpush1.msra.mxu0 %v2369
    %3270 = vmatprep.subr.mxu0 %v2354
    %3271 = vmatpush1.msra.mxu0 %v2353
    %3272 = vmatprep.subr.mxu0 %v2338
    %3273 = vmatpush1.msra.mxu0 %v2337
    %3274 = vmatprep.subr.mxu0 %v2322
    %3275 = vmatpush1.msra.mxu0 %v2321
    %3276 = vmatprep.subr.mxu0 %v2306
    %3277 = vmatpush1.msra.mxu0 %v2305
    %3278 = vmatprep.subr.mxu0 %v2290
    %3279 = vmatpush1.msra.mxu0 %v2289
    %3280 = vmatprep.subr.mxu0 %v2274
    %3281 = vmatpush1.msra.mxu0 %v2273
    %3282 = vmatprep.subr.mxu0 %v2258
    %3283 = vmatpush1.msra.mxu0 %v2257
    %3284 = vmatprep.subr.mxu0 %v2242
    %3285 = vmatpush1.msra.mxu0 %v2241
    %3286 = vmatprep.subr.mxu0 %v2226
    %3287 = vmatpush1.msra.mxu0 %v2225
    %3288 = vmatprep.subr.mxu0 0.0
    %3289 = vmatpush2.msra.mxu0 0.0
    %3290 = vmatprep.subr.mxu0 0.0
    %3291 = vmatpush2.msra.mxu0 0.0
    %3292 = vmatprep.subr.mxu0 0.0
    %3293 = vmatpush2.msra.mxu0 0.0
    %3294 = vmatprep.subr.mxu0 0.0
    %3295 = vmatpush2.msra.mxu0 0.0
    %3296 = vmatprep.subr.mxu0 0.0
    %3297 = vmatpush2.msra.mxu0 0.0
    %3298 = vmatprep.subr.mxu0 0.0
    %3299 = vmatpush2.msra.mxu0 0.0
    %3300 = vmatprep.subr.mxu0 0.0
    %3301 = vmatpush2.msra.mxu0 0.0
    %3302 = vmatprep.subr.mxu0 0.0
    %3303 = vmatpush2.msra.mxu0 0.0
    %3304 = vmatprep.subr.mxu0 0.0
    %3305 = vmatpush2.msra.mxu0 0.0
    %3306 = vmatprep.subr.mxu0 0.0
    %3307 = vmatpush2.msra.mxu0 0.0
    %3308 = vmatprep.subr.mxu0 0.0
    %3309 = vmatpush2.msra.mxu0 0.0
    %3310 = vmatprep.subr.mxu0 0.0
    %3311 = vmatpush2.msra.mxu0 0.0
    %3312 = vmatprep.subr.mxu0 0.0
    %3313 = vmatpush2.msra.mxu0 0.0
    %3314 = vmatprep.subr.mxu0 0.0
    %3315 = vmatpush2.msra.mxu0 0.0
    %3316 = vmatprep.subr.mxu0 0.0
    %3317 = vmatpush2.msra.mxu0 0.0
    %3318 = vmatprep.subr.mxu0 0.0
    %3319 = vmatpush2.msra.mxu0 0.0
    %3320 = vmatprep.mubr.f32.mxu0 0.0
    %3321 = vmatmul.mubr.f32.gmra.mxu0 %v2218
    %v3322 = vpop.f32.mrf.mxu0
    %v3323 = vadd.f32 0.0, %v3322
    %v3324 = vpop.f32.mrf.mxu0
    %v3325 = vadd.f32 0.0, %v3324
    %3326 = vdwg.mxu0
    %3327 = vmatprep.subr.mxu0 %v2468
    %3328 = vmatpush1.msra.mxu0 %v2467
    %3329 = vmatprep.subr.mxu0 %v2452
    %3330 = vmatpush1.msra.mxu0 %v2451
    %3331 = vmatprep.subr.mxu0 %v2436
    %3332 = vmatpush1.msra.mxu0 %v2435
    %3333 = vmatprep.subr.mxu0 %v2420
    %3334 = vmatpush1.msra.mxu0 %v2419
    %3335 = vmatprep.subr.mxu0 %v2404
    %3336 = vmatpush1.msra.mxu0 %v2403
    %3337 = vmatprep.subr.mxu0 %v2388
    %3338 = vmatpush1.msra.mxu0 %v2387
    %3339 = vmatprep.subr.mxu0 %v2372
    %3340 = vmatpush1.msra.mxu0 %v2371
    %3341 = vmatprep.subr.mxu0 %v2356
    %3342 = vmatpush1.msra.mxu0 %v2355
    %3343 = vmatprep.subr.mxu0 %v2340
    %3344 = vmatpush1.msra.mxu0 %v2339
    %3345 = vmatprep.subr.mxu0 %v2324
    %3346 = vmatpush1.msra.mxu0 %v2323
    %3347 = vmatprep.subr.mxu0 %v2308
    %3348 = vmatpush1.msra.mxu0 %v2307
    %3349 = vmatprep.subr.mxu0 %v2292
    %3350 = vmatpush1.msra.mxu0 %v2291
    %3351 = vmatprep.subr.mxu0 %v2276
    %3352 = vmatpush1.msra.mxu0 %v2275
    %3353 = vmatprep.subr.mxu0 %v2260
    %3354 = vmatpush1.msra.mxu0 %v2259
    %3355 = vmatprep.subr.mxu0 %v2244
    %3356 = vmatpush1.msra.mxu0 %v2243
    %3357 = vmatprep.subr.mxu0 %v2228
    %3358 = vmatpush1.msra.mxu0 %v2227
    %3359 = vmatprep.subr.mxu0 0.0
    %3360 = vmatpush2.msra.mxu0 0.0
    %3361 = vmatprep.subr.mxu0 0.0
    %3362 = vmatpush2.msra.mxu0 0.0
    %3363 = vmatprep.subr.mxu0 0.0
    %3364 = vmatpush2.msra.mxu0 0.0
    %3365 = vmatprep.subr.mxu0 0.0
    %3366 = vmatpush2.msra.mxu0 0.0
    %3367 = vmatprep.subr.mxu0 0.0
    %3368 = vmatpush2.msra.mxu0 0.0
    %3369 = vmatprep.subr.mxu0 0.0
    %3370 = vmatpush2.msra.mxu0 0.0
    %3371 = vmatprep.subr.mxu0 0.0
    %3372 = vmatpush2.msra.mxu0 0.0
    %3373 = vmatprep.subr.mxu0 0.0
    %3374 = vmatpush2.msra.mxu0 0.0
    %3375 = vmatprep.subr.mxu0 0.0
    %3376 = vmatpush2.msra.mxu0 0.0
    %3377 = vmatprep.subr.mxu0 0.0
    %3378 = vmatpush2.msra.mxu0 0.0
    %3379 = vmatprep.subr.mxu0 0.0
    %3380 = vmatpush2.msra.mxu0 0.0
    %3381 = vmatprep.subr.mxu0 0.0
    %3382 = vmatpush2.msra.mxu0 0.0
    %3383 = vmatprep.subr.mxu0 0.0
    %3384 = vmatpush2.msra.mxu0 0.0
    %3385 = vmatprep.subr.mxu0 0.0
    %3386 = vmatpush2.msra.mxu0 0.0
    %3387 = vmatprep.subr.mxu0 0.0
    %3388 = vmatpush2.msra.mxu0 0.0
    %3389 = vmatprep.subr.mxu0 0.0
    %3390 = vmatpush2.msra.mxu0 0.0
    %3391 = vmatprep.mubr.f32.mxu0 0.0
    %3392 = vmatmul.mubr.f32.gmra.mxu0 %v2218
    %v3393 = vpop.f32.mrf.mxu0
    %v3394 = vadd.f32 0.0, %v3393
    %v3395 = vpop.f32.mrf.mxu0
    %v3396 = vadd.f32 0.0, %v3395
    %3397 = vdwg.mxu0
    %3398 = vmatprep.subr.mxu0 %v2470
    %3399 = vmatpush1.msra.mxu0 %v2469
    %3400 = vmatprep.subr.mxu0 %v2454
    %3401 = vmatpush1.msra.mxu0 %v2453
    %3402 = vmatprep.subr.mxu0 %v2438
    %3403 = vmatpush1.msra.mxu0 %v2437
    %3404 = vmatprep.subr.mxu0 %v2422
    %3405 = vmatpush1.msra.mxu0 %v2421
    %3406 = vmatprep.subr.mxu0 %v2406
    %3407 = vmatpush1.msra.mxu0 %v2405
    %3408 = vmatprep.subr.mxu0 %v2390
    %3409 = vmatpush1.msra.mxu0 %v2389
    %3410 = vmatprep.subr.mxu0 %v2374
    %3411 = vmatpush1.msra.mxu0 %v2373
    %3412 = vmatprep.subr.mxu0 %v2358
    %3413 = vmatpush1.msra.mxu0 %v2357
    %3414 = vmatprep.subr.mxu0 %v2342
    %3415 = vmatpush1.msra.mxu0 %v2341
    %3416 = vmatprep.subr.mxu0 %v2326
    %3417 = vmatpush1.msra.mxu0 %v2325
    %3418 = vmatprep.subr.mxu0 %v2310
    %3419 = vmatpush1.msra.mxu0 %v2309
    %3420 = vmatprep.subr.mxu0 %v2294
    %3421 = vmatpush1.msra.mxu0 %v2293
    %3422 = vmatprep.subr.mxu0 %v2278
    %3423 = vmatpush1.msra.mxu0 %v2277
    %3424 = vmatprep.subr.mxu0 %v2262
    %3425 = vmatpush1.msra.mxu0 %v2261
    %3426 = vmatprep.subr.mxu0 %v2246
    %3427 = vmatpush1.msra.mxu0 %v2245
    %3428 = vmatprep.subr.mxu0 %v2230
    %3429 = vmatpush1.msra.mxu0 %v2229
    %3430 = vmatprep.subr.mxu0 0.0
    %3431 = vmatpush2.msra.mxu0 0.0
    %3432 = vmatprep.subr.mxu0 0.0
    %3433 = vmatpush2.msra.mxu0 0.0
    %3434 = vmatprep.subr.mxu0 0.0
    %3435 = vmatpush2.msra.mxu0 0.0
    %3436 = vmatprep.subr.mxu0 0.0
    %3437 = vmatpush2.msra.mxu0 0.0
    %3438 = vmatprep.subr.mxu0 0.0
    %3439 = vmatpush2.msra.mxu0 0.0
    %3440 = vmatprep.subr.mxu0 0.0
    %3441 = vmatpush2.msra.mxu0 0.0
    %3442 = vmatprep.subr.mxu0 0.0
    %3443 = vmatpush2.msra.mxu0 0.0
    %3444 = vmatprep.subr.mxu0 0.0
    %3445 = vmatpush2.msra.mxu0 0.0
    %3446 = vmatprep.subr.mxu0 0.0
    %3447 = vmatpush2.msra.mxu0 0.0
    %3448 = vmatprep.subr.mxu0 0.0
    %3449 = vmatpush2.msra.mxu0 0.0
    %3450 = vmatprep.subr.mxu0 0.0
    %3451 = vmatpush2.msra.mxu0 0.0
    %3452 = vmatprep.subr.mxu0 0.0
    %3453 = vmatpush2.msra.mxu0 0.0
    %3454 = vmatprep.subr.mxu0 0.0
    %3455 = vmatpush2.msra.mxu0 0.0
    %3456 = vmatprep.subr.mxu0 0.0
    %3457 = vmatpush2.msra.mxu0 0.0
    %3458 = vmatprep.subr.mxu0 0.0
    %3459 = vmatpush2.msra.mxu0 0.0
    %3460 = vmatprep.subr.mxu0 0.0
    %3461 = vmatpush2.msra.mxu0 0.0
    %3462 = vmatprep.mubr.f32.mxu0 0.0
    %3463 = vmatmul.mubr.f32.gmra.mxu0 %v2218
    %v3464 = vpop.f32.mrf.mxu0
    %v3465 = vadd.f32 0.0, %v3464
    %v3466 = vpop.f32.mrf.mxu0
    %v3467 = vadd.f32 0.0, %v3466
    %3468 = vdwg.mxu0
    %3469 = vmatprep.subr.mxu0 %v2472
    %3470 = vmatpush1.msra.mxu0 %v2471
    %3471 = vmatprep.subr.mxu0 %v2456
    %3472 = vmatpush1.msra.mxu0 %v2455
    %3473 = vmatprep.subr.mxu0 %v2440
    %3474 = vmatpush1.msra.mxu0 %v2439
    %3475 = vmatprep.subr.mxu0 %v2424
    %3476 = vmatpush1.msra.mxu0 %v2423
    %3477 = vmatprep.subr.mxu0 %v2408
    %3478 = vmatpush1.msra.mxu0 %v2407
    %3479 = vmatprep.subr.mxu0 %v2392
    %3480 = vmatpush1.msra.mxu0 %v2391
    %3481 = vmatprep.subr.mxu0 %v2376
    %3482 = vmatpush1.msra.mxu0 %v2375
    %3483 = vmatprep.subr.mxu0 %v2360
    %3484 = vmatpush1.msra.mxu0 %v2359
    %3485 = vmatprep.subr.mxu0 %v2344
    %3486 = vmatpush1.msra.mxu0 %v2343
    %3487 = vmatprep.subr.mxu0 %v2328
    %3488 = vmatpush1.msra.mxu0 %v2327
    %3489 = vmatprep.subr.mxu0 %v2312
    %3490 = vmatpush1.msra.mxu0 %v2311
    %3491 = vmatprep.subr.mxu0 %v2296
    %3492 = vmatpush1.msra.mxu0 %v2295
    %3493 = vmatprep.subr.mxu0 %v2280
    %3494 = vmatpush1.msra.mxu0 %v2279
    %3495 = vmatprep.subr.mxu0 %v2264
    %3496 = vmatpush1.msra.mxu0 %v2263
    %3497 = vmatprep.subr.mxu0 %v2248
    %3498 = vmatpush1.msra.mxu0 %v2247
    %3499 = vmatprep.subr.mxu0 %v2232
    %3500 = vmatpush1.msra.mxu0 %v2231
    %3501 = vmatprep.subr.mxu0 0.0
    %3502 = vmatpush2.msra.mxu0 0.0
    %3503 = vmatprep.subr.mxu0 0.0
    %3504 = vmatpush2.msra.mxu0 0.0
    %3505 = vmatprep.subr.mxu0 0.0
    %3506 = vmatpush2.msra.mxu0 0.0
    %3507 = vmatprep.subr.mxu0 0.0
    %3508 = vmatpush2.msra.mxu0 0.0
    %3509 = vmatprep.subr.mxu0 0.0
    %3510 = vmatpush2.msra.mxu0 0.0
    %3511 = vmatprep.subr.mxu0 0.0
    %3512 = vmatpush2.msra.mxu0 0.0
    %3513 = vmatprep.subr.mxu0 0.0
    %3514 = vmatpush2.msra.mxu0 0.0
    %3515 = vmatprep.subr.mxu0 0.0
    %3516 = vmatpush2.msra.mxu0 0.0
    %3517 = vmatprep.subr.mxu0 0.0
    %3518 = vmatpush2.msra.mxu0 0.0
    %3519 = vmatprep.subr.mxu0 0.0
    %3520 = vmatpush2.msra.mxu0 0.0
    %3521 = vmatprep.subr.mxu0 0.0
    %3522 = vmatpush2.msra.mxu0 0.0
    %3523 = vmatprep.subr.mxu0 0.0
    %3524 = vmatpush2.msra.mxu0 0.0
    %3525 = vmatprep.subr.mxu0 0.0
    %3526 = vmatpush2.msra.mxu0 0.0
    %3527 = vmatprep.subr.mxu0 0.0
    %3528 = vmatpush2.msra.mxu0 0.0
    %3529 = vmatprep.subr.mxu0 0.0
    %3530 = vmatpush2.msra.mxu0 0.0
    %3531 = vmatprep.subr.mxu0 0.0
    %3532 = vmatpush2.msra.mxu0 0.0
    %3533 = vmatprep.mubr.f32.mxu0 0.0
    %3534 = vmatmul.mubr.f32.gmra.mxu0 %v2218
    %v3535 = vpop.f32.mrf.mxu0
    %v3536 = vadd.f32 0.0, %v3535
    %v3537 = vpop.f32.mrf.mxu0
    %v3538 = vadd.f32 0.0, %v3537
    %3539 = vdwg.mxu0
    %3540 = vmatprep.subr.mxu0 %v2474
    %3541 = vmatpush1.msra.mxu0 %v2473
    %3542 = vmatprep.subr.mxu0 %v2458
    %3543 = vmatpush1.msra.mxu0 %v2457
    %3544 = vmatprep.subr.mxu0 %v2442
    %3545 = vmatpush1.msra.mxu0 %v2441
    %3546 = vmatprep.subr.mxu0 %v2426
    %3547 = vmatpush1.msra.mxu0 %v2425
    %3548 = vmatprep.subr.mxu0 %v2410
    %3549 = vmatpush1.msra.mxu0 %v2409
    %3550 = vmatprep.subr.mxu0 %v2394
    %3551 = vmatpush1.msra.mxu0 %v2393
    %3552 = vmatprep.subr.mxu0 %v2378
    %3553 = vmatpush1.msra.mxu0 %v2377
    %3554 = vmatprep.subr.mxu0 %v2362
    %3555 = vmatpush1.msra.mxu0 %v2361
    %3556 = vmatprep.subr.mxu0 %v2346
    %3557 = vmatpush1.msra.mxu0 %v2345
    %3558 = vmatprep.subr.mxu0 %v2330
    %3559 = vmatpush1.msra.mxu0 %v2329
    %3560 = vmatprep.subr.mxu0 %v2314
    %3561 = vmatpush1.msra.mxu0 %v2313
    %3562 = vmatprep.subr.mxu0 %v2298
    %3563 = vmatpush1.msra.mxu0 %v2297
    %3564 = vmatprep.subr.mxu0 %v2282
    %3565 = vmatpush1.msra.mxu0 %v2281
    %3566 = vmatprep.subr.mxu0 %v2266
    %3567 = vmatpush1.msra.mxu0 %v2265
    %3568 = vmatprep.subr.mxu0 %v2250
    %3569 = vmatpush1.msra.mxu0 %v2249
    %3570 = vmatprep.subr.mxu0 %v2234
    %3571 = vmatpush1.msra.mxu0 %v2233
    %3572 = vmatprep.subr.mxu0 0.0
    %3573 = vmatpush2.msra.mxu0 0.0
    %3574 = vmatprep.subr.mxu0 0.0
    %3575 = vmatpush2.msra.mxu0 0.0
    %3576 = vmatprep.subr.mxu0 0.0
    %3577 = vmatpush2.msra.mxu0 0.0
    %3578 = vmatprep.subr.mxu0 0.0
    %3579 = vmatpush2.msra.mxu0 0.0
    %3580 = vmatprep.subr.mxu0 0.0
    %3581 = vmatpush2.msra.mxu0 0.0
    %3582 = vmatprep.subr.mxu0 0.0
    %3583 = vmatpush2.msra.mxu0 0.0
    %3584 = vmatprep.subr.mxu0 0.0
    %3585 = vmatpush2.msra.mxu0 0.0
    %3586 = vmatprep.subr.mxu0 0.0
    %3587 = vmatpush2.msra.mxu0 0.0
    %3588 = vmatprep.subr.mxu0 0.0
    %3589 = vmatpush2.msra.mxu0 0.0
    %3590 = vmatprep.subr.mxu0 0.0
    %3591 = vmatpush2.msra.mxu0 0.0
    %3592 = vmatprep.subr.mxu0 0.0
    %3593 = vmatpush2.msra.mxu0 0.0
    %3594 = vmatprep.subr.mxu0 0.0
    %3595 = vmatpush2.msra.mxu0 0.0
    %3596 = vmatprep.subr.mxu0 0.0
    %3597 = vmatpush2.msra.mxu0 0.0
    %3598 = vmatprep.subr.mxu0 0.0
    %3599 = vmatpush2.msra.mxu0 0.0
    %3600 = vmatprep.subr.mxu0 0.0
    %3601 = vmatpush2.msra.mxu0 0.0
    %3602 = vmatprep.subr.mxu0 0.0
    %3603 = vmatpush2.msra.mxu0 0.0
    %3604 = vmatprep.mubr.f32.mxu0 0.0
    %3605 = vmatmul.mubr.f32.gmra.mxu0 %v2218
    %v3606 = vpop.f32.mrf.mxu0
    %v3607 = vadd.f32 0.0, %v3606
    %v3608 = vpop.f32.mrf.mxu0
    %v3609 = vadd.f32 0.0, %v3608
    %3610 = vdwg.mxu0
    %v3611 = vlaneseq
    %v3612 = vshrl.u32 %v3611, 7
    %v3613 = vsub.s32 0, %v3612
    %v3614 = vrot.slane %v2542, %v3613
    %v3615 = vlaneseq
    %v3616 = vshrl.u32 %v3615, 7
    %v3617 = vsub.s32 0, %v3616
    %v3618 = vrot.slane %v2544, %v3617
    %v3619 = vlaneseq
    %v3620 = vshrl.u32 %v3619, 7
    %v3621 = vsub.s32 0, %v3620
    %v3622 = vrot.slane %v2613, %v3621
    %v3623 = vlaneseq
    %v3624 = vshrl.u32 %v3623, 7
    %v3625 = vsub.s32 0, %v3624
    %v3626 = vrot.slane %v2615, %v3625
    %v3627 = vlaneseq
    %v3628 = vshrl.u32 %v3627, 7
    %v3629 = vsub.s32 0, %v3628
    %v3630 = vrot.slane %v2684, %v3629
    %v3631 = vlaneseq
    %v3632 = vshrl.u32 %v3631, 7
    %v3633 = vsub.s32 0, %v3632
    %v3634 = vrot.slane %v2686, %v3633
    %v3635 = vlaneseq
    %v3636 = vshrl.u32 %v3635, 7
    %v3637 = vsub.s32 0, %v3636
    %v3638 = vrot.slane %v2755, %v3637
    %v3639 = vlaneseq
    %v3640 = vshrl.u32 %v3639, 7
    %v3641 = vsub.s32 0, %v3640
    %v3642 = vrot.slane %v2757, %v3641
    %v3643 = vlaneseq
    %v3644 = vshrl.u32 %v3643, 7
    %v3645 = vsub.s32 0, %v3644
    %v3646 = vrot.slane %v2826, %v3645
    %v3647 = vlaneseq
    %v3648 = vshrl.u32 %v3647, 7
    %v3649 = vsub.s32 0, %v3648
    %v3650 = vrot.slane %v2828, %v3649
    %v3651 = vlaneseq
    %v3652 = vshrl.u32 %v3651, 7
    %v3653 = vsub.s32 0, %v3652
    %v3654 = vrot.slane %v2897, %v3653
    %v3655 = vlaneseq
    %v3656 = vshrl.u32 %v3655, 7
    %v3657 = vsub.s32 0, %v3656
    %v3658 = vrot.slane %v2899, %v3657
    %v3659 = vlaneseq
    %v3660 = vshrl.u32 %v3659, 7
    %v3661 = vsub.s32 0, %v3660
    %v3662 = vrot.slane %v2968, %v3661
    %v3663 = vlaneseq
    %v3664 = vshrl.u32 %v3663, 7
    %v3665 = vsub.s32 0, %v3664
    %v3666 = vrot.slane %v2970, %v3665
    %v3667 = vlaneseq
    %v3668 = vshrl.u32 %v3667, 7
    %v3669 = vsub.s32 0, %v3668
    %v3670 = vrot.slane %v3039, %v3669
    %v3671 = vlaneseq
    %v3672 = vshrl.u32 %v3671, 7
    %v3673 = vsub.s32 0, %v3672
    %v3674 = vrot.slane %v3041, %v3673
    %v3675 = vmul.f32 %v297, %v3614
    %v3676 = vmul.f32 %v299, %v3618
    %v3677 = vmul.f32 %v338, %v3622
    %v3678 = vmul.f32 %v340, %v3626
    %v3679 = vmul.f32 %v379, %v3630
    %v3680 = vmul.f32 %v381, %v3634
    %v3681 = vmul.f32 %v420, %v3638
    %v3682 = vmul.f32 %v422, %v3642
    %v3683 = vmul.f32 %v461, %v3646
    %v3684 = vmul.f32 %v463, %v3650
    %v3685 = vmul.f32 %v502, %v3654
    %v3686 = vmul.f32 %v504, %v3658
    %v3687 = vmul.f32 %v543, %v3662
    %v3688 = vmul.f32 %v545, %v3666
    %v3689 = vmul.f32 %v584, %v3670
    %v3690 = vmul.f32 %v586, %v3674
    %v3691 = vlaneseq
    %v3692 = vshrl.u32 %v3691, 7
    %v3693 = vsub.s32 0, %v3692
    %v3694 = vrot.slane %v3110, %v3693
    %v3695 = vlaneseq
    %v3696 = vshrl.u32 %v3695, 7
    %v3697 = vsub.s32 0, %v3696
    %v3698 = vrot.slane %v3112, %v3697
    %v3699 = vlaneseq
    %v3700 = vshrl.u32 %v3699, 7
    %v3701 = vsub.s32 0, %v3700
    %v3702 = vrot.slane %v3181, %v3701
    %v3703 = vlaneseq
    %v3704 = vshrl.u32 %v3703, 7
    %v3705 = vsub.s32 0, %v3704
    %v3706 = vrot.slane %v3183, %v3705
    %v3707 = vlaneseq
    %v3708 = vshrl.u32 %v3707, 7
    %v3709 = vsub.s32 0, %v3708
    %v3710 = vrot.slane %v3252, %v3709
    %v3711 = vlaneseq
    %v3712 = vshrl.u32 %v3711, 7
    %v3713 = vsub.s32 0, %v3712
    %v3714 = vrot.slane %v3254, %v3713
    %v3715 = vlaneseq
    %v3716 = vshrl.u32 %v3715, 7
    %v3717 = vsub.s32 0, %v3716
    %v3718 = vrot.slane %v3323, %v3717
    %v3719 = vlaneseq
    %v3720 = vshrl.u32 %v3719, 7
    %v3721 = vsub.s32 0, %v3720
    %v3722 = vrot.slane %v3325, %v3721
    %v3723 = vlaneseq
    %v3724 = vshrl.u32 %v3723, 7
    %v3725 = vsub.s32 0, %v3724
    %v3726 = vrot.slane %v3394, %v3725
    %v3727 = vlaneseq
    %v3728 = vshrl.u32 %v3727, 7
    %v3729 = vsub.s32 0, %v3728
    %v3730 = vrot.slane %v3396, %v3729
    %v3731 = vlaneseq
    %v3732 = vshrl.u32 %v3731, 7
    %v3733 = vsub.s32 0, %v3732
    %v3734 = vrot.slane %v3465, %v3733
    %v3735 = vlaneseq
    %v3736 = vshrl.u32 %v3735, 7
    %v3737 = vsub.s32 0, %v3736
    %v3738 = vrot.slane %v3467, %v3737
    %v3739 = vlaneseq
    %v3740 = vshrl.u32 %v3739, 7
    %v3741 = vsub.s32 0, %v3740
    %v3742 = vrot.slane %v3536, %v3741
    %v3743 = vlaneseq
    %v3744 = vshrl.u32 %v3743, 7
    %v3745 = vsub.s32 0, %v3744
    %v3746 = vrot.slane %v3538, %v3745
    %v3747 = vlaneseq
    %v3748 = vshrl.u32 %v3747, 7
    %v3749 = vsub.s32 0, %v3748
    %v3750 = vrot.slane %v3607, %v3749
    %v3751 = vlaneseq
    %v3752 = vshrl.u32 %v3751, 7
    %v3753 = vsub.s32 0, %v3752
    %v3754 = vrot.slane %v3609, %v3753
    %v3755 = vadd.f32 %v3675, %v3694
    %v3756 = vadd.f32 %v3676, %v3698
    %v3757 = vadd.f32 %v3677, %v3702
    %v3758 = vadd.f32 %v3678, %v3706
    %v3759 = vadd.f32 %v3679, %v3710
    %v3760 = vadd.f32 %v3680, %v3714
    %v3761 = vadd.f32 %v3681, %v3718
    %v3762 = vadd.f32 %v3682, %v3722
    %v3763 = vadd.f32 %v3683, %v3726
    %v3764 = vadd.f32 %v3684, %v3730
    %v3765 = vadd.f32 %v3685, %v3734
    %v3766 = vadd.f32 %v3686, %v3738
    %v3767 = vadd.f32 %v3687, %v3742
    %v3768 = vadd.f32 %v3688, %v3746
    %v3769 = vadd.f32 %v3689, %v3750
    %v3770 = vadd.f32 %v3690, %v3754
    %v3771 = vmax.f32 %v3755, 0.0
    %v3772 = vmax.f32 %v3756, 0.0
    %v3773 = vmax.f32 %v3757, 0.0
    %v3774 = vmax.f32 %v3758, 0.0
    %v3775 = vmax.f32 %v3759, 0.0
    %v3776 = vmax.f32 %v3760, 0.0
    %v3777 = vmax.f32 %v3761, 0.0
    %v3778 = vmax.f32 %v3762, 0.0
    %v3779 = vmax.f32 %v3763, 0.0
    %v3780 = vmax.f32 %v3764, 0.0
    %v3781 = vmax.f32 %v3765, 0.0
    %v3782 = vmax.f32 %v3766, 0.0
    %v3783 = vmax.f32 %v3767, 0.0
    %v3784 = vmax.f32 %v3768, 0.0
    %v3785 = vmax.f32 %v3769, 0.0
    %v3786 = vmax.f32 %v3770, 0.0
    %v3787 = vpack.c.bf16 %v3771, %v3771
    %v3788 = vpack.c.bf16 %v3772, %v3772
    %v3789 = vpack.c.bf16 %v3773, %v3773
    %v3790 = vpack.c.bf16 %v3774, %v3774
    %v3791 = vpack.c.bf16 %v3775, %v3775
    %v3792 = vpack.c.bf16 %v3776, %v3776
    %v3793 = vpack.c.bf16 %v3777, %v3777
    %v3794 = vpack.c.bf16 %v3778, %v3778
    %v3795 = vpack.c.bf16 %v3779, %v3779
    %v3796 = vpack.c.bf16 %v3780, %v3780
    %v3797 = vpack.c.bf16 %v3781, %v3781
    %v3798 = vpack.c.bf16 %v3782, %v3782
    %v3799 = vpack.c.bf16 %v3783, %v3783
    %v3800 = vpack.c.bf16 %v3784, %v3784
    %v3801 = vpack.c.bf16 %v3785, %v3785
    %v3802 = vpack.c.bf16 %v3786, %v3786
    %v3819 = vcombine.low %v3787, %v3788
    %v3820 = vcombine.low %v3789, %v3790
    %v3821 = vcombine.low %v3791, %v3792
    %v3822 = vcombine.low %v3793, %v3794
    %v3824 = vunpack.c.l.s4 1966171168
    %v3825 = vunpack.c.0.s8 %v3824
    %v3826 = vlaneseq
    %v3827 = vshrl.u32 %v3826, 7
    %v3828 = vsub.s32 %v3825, %v3827
    %v3829 = vrot.slane %v3819, %v3828
    %v3831 = vunpack.c.l.s4 1966171168
    %v3832 = vunpack.c.0.s8 %v3831
    %v3833 = vlaneseq
    %v3834 = vshrl.u32 %v3833, 7
    %v3835 = vsub.s32 %v3832, %v3834
    %v3836 = vrot.slane %v3820, %v3835
    %v3838 = vunpack.c.l.s4 1966171168
    %v3839 = vunpack.c.0.s8 %v3838
    %v3840 = vlaneseq
    %v3841 = vshrl.u32 %v3840, 7
    %v3842 = vsub.s32 %v3839, %v3841
    %v3843 = vrot.slane %v3821, %v3842
    %v3845 = vunpack.c.l.s4 1966171168
    %v3846 = vunpack.c.0.s8 %v3845
    %v3847 = vlaneseq
    %v3848 = vshrl.u32 %v3847, 7
    %v3849 = vsub.s32 %v3846, %v3848
    %v3850 = vrot.slane %v3822, %v3849
    %v3851 = vcombine.low %v3829, %v3836
    %v3852 = vcombine.low %v3843, %v3850
    %v3854 = vunpack.c.l.s4 1966171168
    %v3855 = vunpack.c.0.s8 %v3854
    %v3856 = vlaneseq
    %v3857 = vshrl.u32 %v3856, 7
    %v3858 = vsub.s32 %v3855, %v3857
    %v3859 = vrot.slane %v3851, %v3858
    %v3861 = vunpack.c.l.s4 1966171168
    %v3862 = vunpack.c.0.s8 %v3861
    %v3863 = vlaneseq
    %v3864 = vshrl.u32 %v3863, 7
    %v3865 = vsub.s32 %v3862, %v3864
    %v3866 = vrot.slane %v3852, %v3865
    %v3867 = vcombine.low %v3859, %v3866
    %v3868 = vcombine.low %v3795, %v3796
    %v3869 = vcombine.low %v3797, %v3798
    %v3870 = vcombine.low %v3799, %v3800
    %v3871 = vcombine.low %v3801, %v3802
    %v3873 = vunpack.c.l.s4 1966171168
    %v3874 = vunpack.c.0.s8 %v3873
    %v3875 = vlaneseq
    %v3876 = vshrl.u32 %v3875, 7
    %v3877 = vsub.s32 %v3874, %v3876
    %v3878 = vrot.slane %v3868, %v3877
    %v3880 = vunpack.c.l.s4 1966171168
    %v3881 = vunpack.c.0.s8 %v3880
    %v3882 = vlaneseq
    %v3883 = vshrl.u32 %v3882, 7
    %v3884 = vsub.s32 %v3881, %v3883
    %v3885 = vrot.slane %v3869, %v3884
    %v3887 = vunpack.c.l.s4 1966171168
    %v3888 = vunpack.c.0.s8 %v3887
    %v3889 = vlaneseq
    %v3890 = vshrl.u32 %v3889, 7
    %v3891 = vsub.s32 %v3888, %v3890
    %v3892 = vrot.slane %v3870, %v3891
    %v3894 = vunpack.c.l.s4 1966171168
    %v3895 = vunpack.c.0.s8 %v3894
    %v3896 = vlaneseq
    %v3897 = vshrl.u32 %v3896, 7
    %v3898 = vsub.s32 %v3895, %v3897
    %v3899 = vrot.slane %v3871, %v3898
    %v3900 = vcombine.low %v3878, %v3885
    %v3901 = vcombine.low %v3892, %v3899
    %v3903 = vunpack.c.l.s4 1966171168
    %v3904 = vunpack.c.0.s8 %v3903
    %v3905 = vlaneseq
    %v3906 = vshrl.u32 %v3905, 7
    %v3907 = vsub.s32 %v3904, %v3906
    %v3908 = vrot.slane %v3900, %v3907
    %v3910 = vunpack.c.l.s4 1966171168
    %v3911 = vunpack.c.0.s8 %v3910
    %v3912 = vlaneseq
    %v3913 = vshrl.u32 %v3912, 7
    %v3914 = vsub.s32 %v3911, %v3913
    %v3915 = vrot.slane %v3901, %v3914
    %v3916 = vcombine.low %v3908, %v3915
    %3919 = vst [vmem:[%s6] sm:$0xff] %v3867
    %3920 = vst [vmem:[%s6 + $0x8] sm:$0xff] %v3916
    // Predicated region
    $region38: #{_lambda_.5} parent=1 // pred_check
      _
    $region39: #{_lambda_.5} parent=1 // pred_check_branch
      %3922 = sbr.rel (0) target = $region41
    $region40: #{_lambda_.5} parent=1 // pred_region
      _
    $region41: #{_lambda_.5} parent=1 // pred_fallthru
      _
    // Predicated region
    $region42: #{_lambda_.5} parent=1 // pred_check
      _
    $region43: #{_lambda_.5} parent=1 // pred_check_branch
      %3924 = sbr.rel (0) target = $region45
    $region44: #{_lambda_.5} parent=1 // pred_region
      _
    $region45: #{_lambda_.5} parent=1 // pred_fallthru
      _
    %3925 = vsyncpa [#allocation3], 1
    %3926 = vsyncpa [#allocation5], 1

// kernel: _lambda_.7
$region0: #{_lambda_.7}
  #allocation0 [shape = 'u32[]', space=smem, size = 0x4, offset = 0x4, fixed_abs, tag = 'smem constant byte address 0x4 - core index']
  #allocation1 [shape = 'u32[144,128]{1,0:T(1,128)}', space=vmem, size = 0x12000, scoped, tag = 'internal scratch']
  %s0 = inlined_call_operand.vmem [shape: bf16[128,576], index: 0, kind: input, shape index: {}]
  %s1 = inlined_call_operand.vmem [shape: bf16[576,128], index: 1, kind: input, shape index: {}]
  %s2 = inlined_call_operand.vmem [shape: f32[128,128], index: 2, kind: input, shape index: {}]
  %s3 = inlined_call_operand.vmem [shape: f32[128,128], index: 3, kind: input, shape index: {}]
  %s4 = inlined_call_operand.vmem [shape: f32[1,128], index: 4, kind: input, shape index: {}]
  %s5 = inlined_call_operand.vmem [shape: f32[1,128], index: 5, kind: input, shape index: {}]
  %s6 = inlined_call_operand.vmem [shape: bf16[128,128], index: 6, kind: output, shape index: {}]
  %s7 = sld [smem:[#allocation0]]
  $region34: #{_lambda_.7} parent=0
    _
  %s9 = ssub.s32 1, %s7
  %s10 = scalar_select 0, %s9, %s7
  // Predicated region
  $region2: #{_lambda_.7} parent=0 // pred_check
    _
  $region3: #{_lambda_.7} parent=0 // pred_check_branch
    %12 = sbr.rel (0) target = $region5
  $region4: #{_lambda_.7} parent=0 // pred_region
    _
  $region5: #{_lambda_.7} parent=0 // pred_fallthru
    _
  // Predicated region
  $region6: #{_lambda_.7} parent=0 // pred_check
    _
  $region7: #{_lambda_.7} parent=0 // pred_check_branch
    %14 = sbr.rel (0) target = $region9
  $region8: #{_lambda_.7} parent=0 // pred_region
    _
  $region9: #{_lambda_.7} parent=0 // pred_fallthru
    _
  // Predicated region
  $region10: #{_lambda_.7} parent=0 // pred_check
    _
  $region11: #{_lambda_.7} parent=0 // pred_check_branch
    %16 = sbr.rel (0) target = $region13
  $region12: #{_lambda_.7} parent=0 // pred_region
    _
  $region13: #{_lambda_.7} parent=0 // pred_fallthru
    _
  // Predicated region
  $region14: #{_lambda_.7} parent=0 // pred_check
    _
  $region15: #{_lambda_.7} parent=0 // pred_check_branch
    %18 = sbr.rel (0) target = $region17
  $region16: #{_lambda_.7} parent=0 // pred_region
    _
  $region17: #{_lambda_.7} parent=0 // pred_fallthru
    _
  // Predicated region
  $region18: #{_lambda_.7} parent=0 // pred_check
    _
  $region19: #{_lambda_.7} parent=0 // pred_check_branch
    %20 = sbr.rel (0) target = $region21
  $region20: #{_lambda_.7} parent=0 // pred_region
    _
  $region21: #{_lambda_.7} parent=0 // pred_fallthru
    _
  // Predicated region
  $region22: #{_lambda_.7} parent=0 // pred_check
    _
  $region23: #{_lambda_.7} parent=0 // pred_check_branch
    %22 = sbr.rel (0) target = $region25
  $region24: #{_lambda_.7} parent=0 // pred_region
    _
  $region25: #{_lambda_.7} parent=0 // pred_fallthru
    _
  %v24 = vld [vmem:[%s0] sm:$0xff]
  %v25 = vld [vmem:[%s0 + $0x8] sm:$0xff]
  %v26 = vld [vmem:[%s0 + $0x10] sm:$0xf]
  %v27 = vld [vmem:[%s0 + $0x14] sm:$0xff]
  %v28 = vld [vmem:[%s0 + $0x1c] sm:$0xff]
  %v29 = vld [vmem:[%s0 + $0x24] sm:$0xf]
  %v30 = vld [vmem:[%s0 + $0x28] sm:$0xff]
  %v31 = vld [vmem:[%s0 + $0x30] sm:$0xff]
  %v32 = vld [vmem:[%s0 + $0x38] sm:$0xf]
  %v33 = vld [vmem:[%s0 + $0x3c] sm:$0xff]
  %v34 = vld [vmem:[%s0 + $0x44] sm:$0xff]
  %v35 = vld [vmem:[%s0 + $0x4c] sm:$0xf]
  %v36 = vld [vmem:[%s0 + $0x50] sm:$0xff]
  %v37 = vld [vmem:[%s0 + $0x58] sm:$0xff]
  %v38 = vld [vmem:[%s0 + $0x60] sm:$0xf]
  %v39 = vld [vmem:[%s0 + $0x64] sm:$0xff]
  %v40 = vld [vmem:[%s0 + $0x6c] sm:$0xff]
  %v41 = vld [vmem:[%s0 + $0x74] sm:$0xf]
  %v42 = vld [vmem:[%s0 + $0x78] sm:$0xff]
  %v43 = vld [vmem:[%s0 + $0x80] sm:$0xff]
  %v44 = vld [vmem:[%s0 + $0x88] sm:$0xf]
  %v45 = vld [vmem:[%s0 + $0x8c] sm:$0xff]
  %v46 = vld [vmem:[%s0 + $0x94] sm:$0xff]
  %v47 = vld [vmem:[%s0 + $0x9c] sm:$0xf]
  %v48 = vld [vmem:[%s0 + $0xa0] sm:$0xff]
  %v49 = vld [vmem:[%s0 + $0xa8] sm:$0xff]
  %v50 = vld [vmem:[%s0 + $0xb0] sm:$0xf]
  %v51 = vld [vmem:[%s0 + $0xb4] sm:$0xff]
  %v52 = vld [vmem:[%s0 + $0xbc] sm:$0xff]
  %v53 = vld [vmem:[%s0 + $0xc4] sm:$0xf]
  %v54 = vld [vmem:[%s0 + $0xc8] sm:$0xff]
  %v55 = vld [vmem:[%s0 + $0xd0] sm:$0xff]
  %v56 = vld [vmem:[%s0 + $0xd8] sm:$0xf]
  %v57 = vld [vmem:[%s0 + $0xdc] sm:$0xff]
  %v58 = vld [vmem:[%s0 + $0xe4] sm:$0xff]
  %v59 = vld [vmem:[%s0 + $0xec] sm:$0xf]
  %v60 = vld [vmem:[%s0 + $0xf0] sm:$0xff]
  %v61 = vld [vmem:[%s0 + $0xf8] sm:$0xff]
  %v62 = vld [vmem:[%s0 + $0x100] sm:$0xf]
  %v63 = vld [vmem:[%s0 + $0x104] sm:$0xff]
  %v64 = vld [vmem:[%s0 + $0x10c] sm:$0xff]
  %v65 = vld [vmem:[%s0 + $0x114] sm:$0xf]
  %v66 = vld [vmem:[%s0 + $0x118] sm:$0xff]
  %v67 = vld [vmem:[%s0 + $0x120] sm:$0xff]
  %v68 = vld [vmem:[%s0 + $0x128] sm:$0xf]
  %v69 = vld [vmem:[%s0 + $0x12c] sm:$0xff]
  %v70 = vld [vmem:[%s0 + $0x134] sm:$0xff]
  %v71 = vld [vmem:[%s0 + $0x13c] sm:$0xf]
  %v72 = vld [vmem:[%s1] sm:$0xf]
  %v73 = vld [vmem:[%s1 + $0x4] sm:$0xf]
  %v74 = vld [vmem:[%s1 + $0x8] sm:$0xf]
  %v75 = vld [vmem:[%s1 + $0xc] sm:$0xf]
  %v76 = vld [vmem:[%s1 + $0x10] sm:$0xf]
  %v77 = vld [vmem:[%s1 + $0x14] sm:$0xf]
  %v78 = vld [vmem:[%s1 + $0x18] sm:$0xf]
  %v79 = vld [vmem:[%s1 + $0x1c] sm:$0xf]
  %v80 = vld [vmem:[%s1 + $0x20] sm:$0xf]
  %v81 = vld [vmem:[%s1 + $0x24] sm:$0xf]
  %v82 = vld [vmem:[%s1 + $0x28] sm:$0xf]
  %v83 = vld [vmem:[%s1 + $0x2c] sm:$0xf]
  %v84 = vld [vmem:[%s1 + $0x30] sm:$0xf]
  %v85 = vld [vmem:[%s1 + $0x34] sm:$0xf]
  %v86 = vld [vmem:[%s1 + $0x38] sm:$0xf]
  %v87 = vld [vmem:[%s1 + $0x3c] sm:$0xf]
  %v88 = vld [vmem:[%s1 + $0x40] sm:$0xf]
  %v89 = vld [vmem:[%s1 + $0x44] sm:$0xf]
  %v90 = vld [vmem:[%s1 + $0x48] sm:$0xf]
  %v91 = vld [vmem:[%s1 + $0x4c] sm:$0xf]
  %v92 = vld [vmem:[%s1 + $0x50] sm:$0xf]
  %v93 = vld [vmem:[%s1 + $0x54] sm:$0xf]
  %v94 = vld [vmem:[%s1 + $0x58] sm:$0xf]
  %v95 = vld [vmem:[%s1 + $0x5c] sm:$0xf]
  %v96 = vld [vmem:[%s1 + $0x60] sm:$0xf]
  %v97 = vld [vmem:[%s1 + $0x64] sm:$0xf]
  %v98 = vld [vmem:[%s1 + $0x68] sm:$0xf]
  %v99 = vld [vmem:[%s1 + $0x6c] sm:$0xf]
  %v100 = vld [vmem:[%s1 + $0x70] sm:$0xf]
  %v101 = vld [vmem:[%s1 + $0x74] sm:$0xf]
  %v102 = vld [vmem:[%s1 + $0x78] sm:$0xf]
  %v103 = vld [vmem:[%s1 + $0x7c] sm:$0xf]
  %v104 = vld [vmem:[%s1 + $0x80] sm:$0xf]
  %v105 = vld [vmem:[%s1 + $0x84] sm:$0xf]
  %v106 = vld [vmem:[%s1 + $0x88] sm:$0xf]
  %v107 = vld [vmem:[%s1 + $0x8c] sm:$0xf]
  %v108 = vld [vmem:[%s1 + $0x90] sm:$0xf]
  %v109 = vld [vmem:[%s1 + $0x94] sm:$0xf]
  %v110 = vld [vmem:[%s1 + $0x98] sm:$0xf]
  %v111 = vld [vmem:[%s1 + $0x9c] sm:$0xf]
  %v112 = vld [vmem:[%s1 + $0xa0] sm:$0xf]
  %v113 = vld [vmem:[%s1 + $0xa4] sm:$0xf]
  %v114 = vld [vmem:[%s1 + $0xa8] sm:$0xf]
  %v115 = vld [vmem:[%s1 + $0xac] sm:$0xf]
  %v116 = vld [vmem:[%s1 + $0xb0] sm:$0xf]
  %v117 = vld [vmem:[%s1 + $0xb4] sm:$0xf]
  %v118 = vld [vmem:[%s1 + $0xb8] sm:$0xf]
  %v119 = vld [vmem:[%s1 + $0xbc] sm:$0xf]
  %v120 = vld [vmem:[%s1 + $0xc0] sm:$0xf]
  %v121 = vld [vmem:[%s1 + $0xc4] sm:$0xf]
  %v122 = vld [vmem:[%s1 + $0xc8] sm:$0xf]
  %v123 = vld [vmem:[%s1 + $0xcc] sm:$0xf]
  %v124 = vld [vmem:[%s1 + $0xd0] sm:$0xf]
  %v125 = vld [vmem:[%s1 + $0xd4] sm:$0xf]
  %v126 = vld [vmem:[%s1 + $0xd8] sm:$0xf]
  %v127 = vld [vmem:[%s1 + $0xdc] sm:$0xf]
  %v128 = vld [vmem:[%s1 + $0xe0] sm:$0xf]
  %v129 = vld [vmem:[%s1 + $0xe4] sm:$0xf]
  %v130 = vld [vmem:[%s1 + $0xe8] sm:$0xf]
  %v131 = vld [vmem:[%s1 + $0xec] sm:$0xf]
  %v132 = vld [vmem:[%s1 + $0xf0] sm:$0xf]
  %v133 = vld [vmem:[%s1 + $0xf4] sm:$0xf]
  %v134 = vld [vmem:[%s1 + $0xf8] sm:$0xf]
  %v135 = vld [vmem:[%s1 + $0xfc] sm:$0xf]
  %v136 = vld [vmem:[%s1 + $0x100] sm:$0xf]
  %v137 = vld [vmem:[%s1 + $0x104] sm:$0xf]
  %v138 = vld [vmem:[%s1 + $0x108] sm:$0xf]
  %v139 = vld [vmem:[%s1 + $0x10c] sm:$0xf]
  %v140 = vld [vmem:[%s1 + $0x110] sm:$0xf]
  %v141 = vld [vmem:[%s1 + $0x114] sm:$0xf]
  %v142 = vld [vmem:[%s1 + $0x118] sm:$0xf]
  %v143 = vld [vmem:[%s1 + $0x11c] sm:$0xf]
  %v192 = vunpack.c.l.b16 %v24
  %v193 = vunpack.c.h.b16 %v24
  %v194 = vunpack.c.l.b16 %v25
  %v195 = vunpack.c.h.b16 %v25
  %v196 = vunpack.c.l.b16 %v26
  %v197 = vunpack.c.l.b16 %v27
  %v198 = vunpack.c.h.b16 %v27
  %v199 = vunpack.c.l.b16 %v28
  %v200 = vunpack.c.h.b16 %v28
  %v201 = vunpack.c.l.b16 %v29
  %v202 = vunpack.c.l.b16 %v30
  %v203 = vunpack.c.h.b16 %v30
  %v204 = vunpack.c.l.b16 %v31
  %v205 = vunpack.c.h.b16 %v31
  %v206 = vunpack.c.l.b16 %v32
  %v207 = vunpack.c.l.b16 %v33
  %v208 = vunpack.c.h.b16 %v33
  %v209 = vunpack.c.l.b16 %v34
  %v210 = vunpack.c.h.b16 %v34
  %v211 = vunpack.c.l.b16 %v35
  %v212 = vunpack.c.l.b16 %v36
  %v213 = vunpack.c.h.b16 %v36
  %v214 = vunpack.c.l.b16 %v37
  %v215 = vunpack.c.h.b16 %v37
  %v216 = vunpack.c.l.b16 %v38
  %v217 = vunpack.c.l.b16 %v39
  %v218 = vunpack.c.h.b16 %v39
  %v219 = vunpack.c.l.b16 %v40
  %v220 = vunpack.c.h.b16 %v40
  %v221 = vunpack.c.l.b16 %v41
  %v222 = vunpack.c.l.b16 %v42
  %v223 = vunpack.c.h.b16 %v42
  %v224 = vunpack.c.l.b16 %v43
  %v225 = vunpack.c.h.b16 %v43
  %v226 = vunpack.c.l.b16 %v44
  %v227 = vunpack.c.l.b16 %v45
  %v228 = vunpack.c.h.b16 %v45
  %v229 = vunpack.c.l.b16 %v46
  %v230 = vunpack.c.h.b16 %v46
  %v231 = vunpack.c.l.b16 %v47
  %v232 = vunpack.c.l.b16 %v48
  %v233 = vunpack.c.h.b16 %v48
  %v234 = vunpack.c.l.b16 %v49
  %v235 = vunpack.c.h.b16 %v49
  %v236 = vunpack.c.l.b16 %v50
  %v237 = vunpack.c.l.b16 %v51
  %v238 = vunpack.c.h.b16 %v51
  %v239 = vunpack.c.l.b16 %v52
  %v240 = vunpack.c.h.b16 %v52
  %v241 = vunpack.c.l.b16 %v53
  %v242 = vunpack.c.l.b16 %v54
  %v243 = vunpack.c.h.b16 %v54
  %v244 = vunpack.c.l.b16 %v55
  %v245 = vunpack.c.h.b16 %v55
  %v246 = vunpack.c.l.b16 %v56
  %v247 = vunpack.c.l.b16 %v57
  %v248 = vunpack.c.h.b16 %v57
  %v249 = vunpack.c.l.b16 %v58
  %v250 = vunpack.c.h.b16 %v58
  %v251 = vunpack.c.l.b16 %v59
  %v252 = vunpack.c.l.b16 %v60
  %v253 = vunpack.c.h.b16 %v60
  %v254 = vunpack.c.l.b16 %v61
  %v255 = vunpack.c.h.b16 %v61
  %v256 = vunpack.c.l.b16 %v62
  %v257 = vunpack.c.l.b16 %v63
  %v258 = vunpack.c.h.b16 %v63
  %v259 = vunpack.c.l.b16 %v64
  %v260 = vunpack.c.h.b16 %v64
  %v261 = vunpack.c.l.b16 %v65
  %v262 = vunpack.c.l.b16 %v66
  %v263 = vunpack.c.h.b16 %v66
  %v264 = vunpack.c.l.b16 %v67
  %v265 = vunpack.c.h.b16 %v67
  %v266 = vunpack.c.l.b16 %v68
  %v267 = vunpack.c.l.b16 %v69
  %v268 = vunpack.c.h.b16 %v69
  %v269 = vunpack.c.l.b16 %v70
  %v270 = vunpack.c.h.b16 %v70
  %v271 = vunpack.c.l.b16 %v71
  %v272 = vpack.c.b16 %v197, %v192
  %v273 = vpack.c.b16 %v198, %v193
  %v274 = vpack.c.b16 %v199, %v194
  %v275 = vpack.c.b16 %v200, %v195
  %v276 = vpack.c.b16 %v201, %v196
  %v277 = vpack.c.b16 %v207, %v202
  %v278 = vpack.c.b16 %v208, %v203
  %v279 = vpack.c.b16 %v209, %v204
  %v280 = vpack.c.b16 %v210, %v205
  %v281 = vpack.c.b16 %v211, %v206
  %v282 = vpack.c.b16 %v217, %v212
  %v283 = vpack.c.b16 %v218, %v213
  %v284 = vpack.c.b16 %v219, %v214
  %v285 = vpack.c.b16 %v220, %v215
  %v286 = vpack.c.b16 %v221, %v216
  %v287 = vpack.c.b16 %v227, %v222
  %v288 = vpack.c.b16 %v228, %v223
  %v289 = vpack.c.b16 %v229, %v224
  %v290 = vpack.c.b16 %v230, %v225
  %v291 = vpack.c.b16 %v231, %v226
  %v292 = vpack.c.b16 %v237, %v232
  %v293 = vpack.c.b16 %v238, %v233
  %v294 = vpack.c.b16 %v239, %v234
  %v295 = vpack.c.b16 %v240, %v235
  %v296 = vpack.c.b16 %v241, %v236
  %v297 = vpack.c.b16 %v247, %v242
  %v298 = vpack.c.b16 %v248, %v243
  %v299 = vpack.c.b16 %v249, %v244
  %v300 = vpack.c.b16 %v250, %v245
  %v301 = vpack.c.b16 %v251, %v246
  %v302 = vpack.c.b16 %v257, %v252
  %v303 = vpack.c.b16 %v258, %v253
  %v304 = vpack.c.b16 %v259, %v254
  %v305 = vpack.c.b16 %v260, %v255
  %v306 = vpack.c.b16 %v261, %v256
  %v307 = vpack.c.b16 %v267, %v262
  %v308 = vpack.c.b16 %v268, %v263
  %v309 = vpack.c.b16 %v269, %v264
  %v310 = vpack.c.b16 %v270, %v265
  %v311 = vpack.c.b16 %v271, %v266
  %v416 = vunpack.c.l.b16 %v72
  %v417 = vunpack.c.l.b16 %v73
  %v418 = vunpack.c.l.b16 %v74
  %v419 = vunpack.c.l.b16 %v75
  %v420 = vunpack.c.l.b16 %v76
  %v421 = vunpack.c.l.b16 %v77
  %v422 = vunpack.c.l.b16 %v78
  %v423 = vunpack.c.l.b16 %v79
  %v424 = vunpack.c.l.b16 %v80
  %v425 = vunpack.c.l.b16 %v81
  %v426 = vunpack.c.l.b16 %v82
  %v427 = vunpack.c.l.b16 %v83
  %v428 = vunpack.c.l.b16 %v84
  %v429 = vunpack.c.l.b16 %v85
  %v430 = vunpack.c.l.b16 %v86
  %v431 = vunpack.c.l.b16 %v87
  %v432 = vunpack.c.l.b16 %v88
  %v433 = vunpack.c.l.b16 %v89
  %v434 = vunpack.c.l.b16 %v90
  %v435 = vunpack.c.l.b16 %v91
  %v436 = vunpack.c.l.b16 %v92
  %v437 = vunpack.c.l.b16 %v93
  %v438 = vunpack.c.l.b16 %v94
  %v439 = vunpack.c.l.b16 %v95
  %v440 = vunpack.c.l.b16 %v96
  %v441 = vunpack.c.l.b16 %v97
  %v442 = vunpack.c.l.b16 %v98
  %v443 = vunpack.c.l.b16 %v99
  %v444 = vunpack.c.l.b16 %v100
  %v445 = vunpack.c.l.b16 %v101
  %v446 = vunpack.c.l.b16 %v102
  %v447 = vunpack.c.l.b16 %v103
  %v448 = vunpack.c.l.b16 %v104
  %v449 = vunpack.c.l.b16 %v105
  %v450 = vunpack.c.l.b16 %v106
  %v451 = vunpack.c.l.b16 %v107
  %v452 = vunpack.c.l.b16 %v108
  %v453 = vunpack.c.l.b16 %v109
  %v454 = vunpack.c.l.b16 %v110
  %v455 = vunpack.c.l.b16 %v111
  %v456 = vunpack.c.l.b16 %v112
  %v457 = vunpack.c.l.b16 %v113
  %v458 = vunpack.c.l.b16 %v114
  %v459 = vunpack.c.l.b16 %v115
  %v460 = vunpack.c.l.b16 %v116
  %v461 = vunpack.c.l.b16 %v117
  %v462 = vunpack.c.l.b16 %v118
  %v463 = vunpack.c.l.b16 %v119
  %v464 = vunpack.c.l.b16 %v120
  %v465 = vunpack.c.l.b16 %v121
  %v466 = vunpack.c.l.b16 %v122
  %v467 = vunpack.c.l.b16 %v123
  %v468 = vunpack.c.l.b16 %v124
  %v469 = vunpack.c.l.b16 %v125
  %v470 = vunpack.c.l.b16 %v126
  %v471 = vunpack.c.l.b16 %v127
  %v472 = vunpack.c.l.b16 %v128
  %v473 = vunpack.c.l.b16 %v129
  %v474 = vunpack.c.l.b16 %v130
  %v475 = vunpack.c.l.b16 %v131
  %v476 = vunpack.c.l.b16 %v132
  %v477 = vunpack.c.l.b16 %v133
  %v478 = vunpack.c.l.b16 %v134
  %v479 = vunpack.c.l.b16 %v135
  %v480 = vunpack.c.l.b16 %v136
  %v481 = vunpack.c.l.b16 %v137
  %v482 = vunpack.c.l.b16 %v138
  %v483 = vunpack.c.l.b16 %v139
  %v484 = vunpack.c.l.b16 %v140
  %v485 = vunpack.c.l.b16 %v141
  %v486 = vunpack.c.l.b16 %v142
  %v487 = vunpack.c.l.b16 %v143
  %v488 = vpack.c.b16 %v417, %v416
  %v489 = vpack.c.b16 %v419, %v418
  %v490 = vpack.c.b16 %v421, %v420
  %v491 = vpack.c.b16 %v423, %v422
  %v492 = vpack.c.b16 %v425, %v424
  %v493 = vpack.c.b16 %v427, %v426
  %v494 = vpack.c.b16 %v429, %v428
  %v495 = vpack.c.b16 %v431, %v430
  %v496 = vpack.c.b16 %v433, %v432
  %v497 = vpack.c.b16 %v435, %v434
  %v498 = vpack.c.b16 %v437, %v436
  %v499 = vpack.c.b16 %v439, %v438
  %v500 = vpack.c.b16 %v441, %v440
  %v501 = vpack.c.b16 %v443, %v442
  %v502 = vpack.c.b16 %v445, %v444
  %v503 = vpack.c.b16 %v447, %v446
  %v504 = vpack.c.b16 %v449, %v448
  %v505 = vpack.c.b16 %v451, %v450
  %v506 = vpack.c.b16 %v453, %v452
  %v507 = vpack.c.b16 %v455, %v454
  %v508 = vpack.c.b16 %v457, %v456
  %v509 = vpack.c.b16 %v459, %v458
  %v510 = vpack.c.b16 %v461, %v460
  %v511 = vpack.c.b16 %v463, %v462
  %v512 = vpack.c.b16 %v465, %v464
  %v513 = vpack.c.b16 %v467, %v466
  %v514 = vpack.c.b16 %v469, %v468
  %v515 = vpack.c.b16 %v471, %v470
  %v516 = vpack.c.b16 %v473, %v472
  %v517 = vpack.c.b16 %v475, %v474
  %v518 = vpack.c.b16 %v477, %v476
  %v519 = vpack.c.b16 %v479, %v478
  %v520 = vpack.c.b16 %v481, %v480
  %v521 = vpack.c.b16 %v483, %v482
  %v522 = vpack.c.b16 %v485, %v484
  %v523 = vpack.c.b16 %v487, %v486
  %vm560 = vcmask 523264
  %v562 = vsel %vm560, %v276, 0
  %v565 = vsel %vm560, %v281, 0
  %v568 = vsel %vm560, %v286, 0
  %v571 = vsel %vm560, %v291, 0
  %v574 = vsel %vm560, %v296, 0
  %v577 = vsel %vm560, %v301, 0
  %v580 = vsel %vm560, %v306, 0
  %v583 = vsel %vm560, %v311, 0
  %585 = vmatprep.subr.bf16.mxu0 0
  %586 = vmatpush1.bf16.msra.mxu0 %v495
  %587 = vmatprep.subr.bf16.mxu0 0
  %588 = vmatpush1.bf16.msra.mxu0 %v494
  %589 = vmatprep.subr.bf16.mxu0 0
  %590 = vmatpush1.bf16.msra.mxu0 %v493
  %591 = vmatprep.subr.bf16.mxu0 0
  %592 = vmatpush1.bf16.msra.mxu0 %v492
  %593 = vmatprep.subr.bf16.mxu0 0
  %594 = vmatpush1.bf16.msra.mxu0 %v491
  %595 = vmatprep.subr.bf16.mxu0 0
  %596 = vmatpush1.bf16.msra.mxu0 %v490
  %597 = vmatprep.subr.bf16.mxu0 0
  %598 = vmatpush1.bf16.msra.mxu0 %v489
  %599 = vmatprep.subr.bf16.mxu0 0
  %600 = vmatpush1.bf16.msra.mxu0 %v488
  %601 = vmatprep.subr.bf16.mxu0 0
  %602 = vmatpush2.bf16.msra.mxu0 %v503
  %603 = vmatprep.subr.bf16.mxu0 0
  %604 = vmatpush2.bf16.msra.mxu0 %v502
  %605 = vmatprep.subr.bf16.mxu0 0
  %606 = vmatpush2.bf16.msra.mxu0 %v501
  %607 = vmatprep.subr.bf16.mxu0 0
  %608 = vmatpush2.bf16.msra.mxu0 %v500
  %609 = vmatprep.subr.bf16.mxu0 0
  %610 = vmatpush2.bf16.msra.mxu0 %v499
  %611 = vmatprep.subr.bf16.mxu0 0
  %612 = vmatpush2.bf16.msra.mxu0 %v498
  %613 = vmatprep.subr.bf16.mxu0 0
  %614 = vmatpush2.bf16.msra.mxu0 %v497
  %615 = vmatprep.subr.bf16.mxu0 0
  %616 = vmatpush2.bf16.msra.mxu0 %v496
  %617 = vmatprep.mubr.bf16.mxu0 %v273
  %618 = vmatmul.mubr.bf16.gmra.mxu0 %v272
  %v619 = vpop.f32.mrf.mxu0
  %v620 = vadd.f32 0.0, %v619
  %v621 = vpop.f32.mrf.mxu0
  %v622 = vpop.f32.mrf.mxu0
  %v623 = vadd.f32 0.0, %v622
  %v624 = vpop.f32.mrf.mxu0
  %625 = vmatprep.mubr.bf16.mxu0 %v278
  %626 = vmatmul.mubr.bf16.gmra.mxu0 %v277
  %v627 = vpop.f32.mrf.mxu0
  %v628 = vadd.f32 0.0, %v627
  %v629 = vpop.f32.mrf.mxu0
  %v630 = vpop.f32.mrf.mxu0
  %v631 = vadd.f32 0.0, %v630
  %v632 = vpop.f32.mrf.mxu0
  %633 = vmatprep.mubr.bf16.mxu0 %v283
  %634 = vmatmul.mubr.bf16.gmra.mxu0 %v282
  %v635 = vpop.f32.mrf.mxu0
  %v636 = vadd.f32 0.0, %v635
  %v637 = vpop.f32.mrf.mxu0
  %v638 = vpop.f32.mrf.mxu0
  %v639 = vadd.f32 0.0, %v638
  %v640 = vpop.f32.mrf.mxu0
  %641 = vmatprep.mubr.bf16.mxu0 %v288
  %642 = vmatmul.mubr.bf16.gmra.mxu0 %v287
  %v643 = vpop.f32.mrf.mxu0
  %v644 = vadd.f32 0.0, %v643
  %v645 = vpop.f32.mrf.mxu0
  %v646 = vpop.f32.mrf.mxu0
  %v647 = vadd.f32 0.0, %v646
  %v648 = vpop.f32.mrf.mxu0
  %649 = vmatprep.mubr.bf16.mxu0 %v293
  %650 = vmatmul.mubr.bf16.gmra.mxu0 %v292
  %v651 = vpop.f32.mrf.mxu0
  %v652 = vadd.f32 0.0, %v651
  %v653 = vpop.f32.mrf.mxu0
  %v654 = vpop.f32.mrf.mxu0
  %v655 = vadd.f32 0.0, %v654
  %v656 = vpop.f32.mrf.mxu0
  %657 = vmatprep.mubr.bf16.mxu0 %v298
  %658 = vmatmul.mubr.bf16.gmra.mxu0 %v297
  %v659 = vpop.f32.mrf.mxu0
  %v660 = vadd.f32 0.0, %v659
  %v661 = vpop.f32.mrf.mxu0
  %v662 = vpop.f32.mrf.mxu0
  %v663 = vadd.f32 0.0, %v662
  %v664 = vpop.f32.mrf.mxu0
  %665 = vmatprep.mubr.bf16.mxu0 %v303
  %666 = vmatmul.mubr.bf16.gmra.mxu0 %v302
  %v667 = vpop.f32.mrf.mxu0
  %v668 = vadd.f32 0.0, %v667
  %v669 = vpop.f32.mrf.mxu0
  %v670 = vpop.f32.mrf.mxu0
  %v671 = vadd.f32 0.0, %v670
  %v672 = vpop.f32.mrf.mxu0
  %673 = vmatprep.mubr.bf16.mxu0 %v308
  %674 = vmatmul.mubr.bf16.gmra.mxu0 %v307
  %v675 = vpop.f32.mrf.mxu0
  %v676 = vadd.f32 0.0, %v675
  %v677 = vpop.f32.mrf.mxu0
  %v678 = vpop.f32.mrf.mxu0
  %v679 = vadd.f32 0.0, %v678
  %v680 = vpop.f32.mrf.mxu0
  %681 = vdwg.mxu0
  %682 = vmatprep.subr.bf16.mxu0 0
  %683 = vmatpush1.bf16.msra.mxu0 %v511
  %684 = vmatprep.subr.bf16.mxu0 0
  %685 = vmatpush1.bf16.msra.mxu0 %v510
  %686 = vmatprep.subr.bf16.mxu0 0
  %687 = vmatpush1.bf16.msra.mxu0 %v509
  %688 = vmatprep.subr.bf16.mxu0 0
  %689 = vmatpush1.bf16.msra.mxu0 %v508
  %690 = vmatprep.subr.bf16.mxu0 0
  %691 = vmatpush1.bf16.msra.mxu0 %v507
  %692 = vmatprep.subr.bf16.mxu0 0
  %693 = vmatpush1.bf16.msra.mxu0 %v506
  %694 = vmatprep.subr.bf16.mxu0 0
  %695 = vmatpush1.bf16.msra.mxu0 %v505
  %696 = vmatprep.subr.bf16.mxu0 0
  %697 = vmatpush1.bf16.msra.mxu0 %v504
  %698 = vmatprep.subr.bf16.mxu0 0
  %699 = vmatpush2.bf16.msra.mxu0 %v519
  %700 = vmatprep.subr.bf16.mxu0 0
  %701 = vmatpush2.bf16.msra.mxu0 %v518
  %702 = vmatprep.subr.bf16.mxu0 0
  %703 = vmatpush2.bf16.msra.mxu0 %v517
  %704 = vmatprep.subr.bf16.mxu0 0
  %705 = vmatpush2.bf16.msra.mxu0 %v516
  %706 = vmatprep.subr.bf16.mxu0 0
  %707 = vmatpush2.bf16.msra.mxu0 %v515
  %708 = vmatprep.subr.bf16.mxu0 0
  %709 = vmatpush2.bf16.msra.mxu0 %v514
  %710 = vmatprep.subr.bf16.mxu0 0
  %711 = vmatpush2.bf16.msra.mxu0 %v513
  %712 = vmatprep.subr.bf16.mxu0 0
  %713 = vmatpush2.bf16.msra.mxu0 %v512
  %714 = vmatprep.mubr.bf16.mxu0 %v275
  %715 = vmatmul.mubr.bf16.gmra.mxu0 %v274
  %v716 = vpop.f32.mrf.mxu0
  %v717 = vadd.f32 %v620, %v716
  %v718 = vpop.f32.mrf.mxu0
  %v719 = vpop.f32.mrf.mxu0
  %v720 = vadd.f32 %v623, %v719
  %v721 = vpop.f32.mrf.mxu0
  %722 = vmatprep.mubr.bf16.mxu0 %v280
  %723 = vmatmul.mubr.bf16.gmra.mxu0 %v279
  %v724 = vpop.f32.mrf.mxu0
  %v725 = vadd.f32 %v628, %v724
  %v726 = vpop.f32.mrf.mxu0
  %v727 = vpop.f32.mrf.mxu0
  %v728 = vadd.f32 %v631, %v727
  %v729 = vpop.f32.mrf.mxu0
  %730 = vmatprep.mubr.bf16.mxu0 %v285
  %731 = vmatmul.mubr.bf16.gmra.mxu0 %v284
  %v732 = vpop.f32.mrf.mxu0
  %v733 = vadd.f32 %v636, %v732
  %v734 = vpop.f32.mrf.mxu0
  %v735 = vpop.f32.mrf.mxu0
  %v736 = vadd.f32 %v639, %v735
  %v737 = vpop.f32.mrf.mxu0
  %738 = vmatprep.mubr.bf16.mxu0 %v290
  %739 = vmatmul.mubr.bf16.gmra.mxu0 %v289
  %v740 = vpop.f32.mrf.mxu0
  %v741 = vadd.f32 %v644, %v740
  %v742 = vpop.f32.mrf.mxu0
  %v743 = vpop.f32.mrf.mxu0
  %v744 = vadd.f32 %v647, %v743
  %v745 = vpop.f32.mrf.mxu0
  %746 = vmatprep.mubr.bf16.mxu0 %v295
  %747 = vmatmul.mubr.bf16.gmra.mxu0 %v294
  %v748 = vpop.f32.mrf.mxu0
  %v749 = vadd.f32 %v652, %v748
  %v750 = vpop.f32.mrf.mxu0
  %v751 = vpop.f32.mrf.mxu0
  %v752 = vadd.f32 %v655, %v751
  %v753 = vpop.f32.mrf.mxu0
  %754 = vmatprep.mubr.bf16.mxu0 %v300
  %755 = vmatmul.mubr.bf16.gmra.mxu0 %v299
  %v756 = vpop.f32.mrf.mxu0
  %v757 = vadd.f32 %v660, %v756
  %v758 = vpop.f32.mrf.mxu0
  %v759 = vpop.f32.mrf.mxu0
  %v760 = vadd.f32 %v663, %v759
  %v761 = vpop.f32.mrf.mxu0
  %762 = vmatprep.mubr.bf16.mxu0 %v305
  %763 = vmatmul.mubr.bf16.gmra.mxu0 %v304
  %v764 = vpop.f32.mrf.mxu0
  %v765 = vadd.f32 %v668, %v764
  %v766 = vpop.f32.mrf.mxu0
  %v767 = vpop.f32.mrf.mxu0
  %v768 = vadd.f32 %v671, %v767
  %v769 = vpop.f32.mrf.mxu0
  %770 = vmatprep.mubr.bf16.mxu0 %v310
  %771 = vmatmul.mubr.bf16.gmra.mxu0 %v309
  %v772 = vpop.f32.mrf.mxu0
  %v773 = vadd.f32 %v676, %v772
  %v774 = vpop.f32.mrf.mxu0
  %v775 = vpop.f32.mrf.mxu0
  %v776 = vadd.f32 %v679, %v775
  %v777 = vpop.f32.mrf.mxu0
  %778 = vdwg.mxu0
  %779 = vmatprep.subr.bf16.mxu0 0
  %780 = vmatpush1.bf16.msra.mxu0 0
  %781 = vmatprep.subr.bf16.mxu0 0
  %782 = vmatpush1.bf16.msra.mxu0 0
  %783 = vmatprep.subr.bf16.mxu0 0
  %784 = vmatpush1.bf16.msra.mxu0 0
  %785 = vmatprep.subr.bf16.mxu0 0
  %786 = vmatpush1.bf16.msra.mxu0 0
  %787 = vmatprep.subr.bf16.mxu0 0
  %788 = vmatpush1.bf16.msra.mxu0 %v523
  %789 = vmatprep.subr.bf16.mxu0 0
  %790 = vmatpush1.bf16.msra.mxu0 %v522
  %791 = vmatprep.subr.bf16.mxu0 0
  %792 = vmatpush1.bf16.msra.mxu0 %v521
  %793 = vmatprep.subr.bf16.mxu0 0
  %794 = vmatpush1.bf16.msra.mxu0 %v520
  %795 = vmatprep.subr.bf16.mxu0 0
  %796 = vmatpush2.bf16.msra.mxu0 0
  %797 = vmatprep.subr.bf16.mxu0 0
  %798 = vmatpush2.bf16.msra.mxu0 0
  %799 = vmatprep.subr.bf16.mxu0 0
  %800 = vmatpush2.bf16.msra.mxu0 0
  %801 = vmatprep.subr.bf16.mxu0 0
  %802 = vmatpush2.bf16.msra.mxu0 0
  %803 = vmatprep.subr.bf16.mxu0 0
  %804 = vmatpush2.bf16.msra.mxu0 0
  %805 = vmatprep.subr.bf16.mxu0 0
  %806 = vmatpush2.bf16.msra.mxu0 0
  %807 = vmatprep.subr.bf16.mxu0 0
  %808 = vmatpush2.bf16.msra.mxu0 0
  %809 = vmatprep.subr.bf16.mxu0 0
  %810 = vmatpush2.bf16.msra.mxu0 0
  %811 = vmatprep.mubr.bf16.mxu0 0
  %812 = vmatmul.mubr.bf16.gmra.mxu0 %v562
  %v813 = vpop.f32.mrf.mxu0
  %v814 = vadd.f32 %v717, %v813
  %v815 = vpop.f32.mrf.mxu0
  %v816 = vpop.f32.mrf.mxu0
  %v817 = vadd.f32 %v720, %v816
  %v818 = vpop.f32.mrf.mxu0
  %819 = vmatprep.mubr.bf16.mxu0 0
  %820 = vmatmul.mubr.bf16.gmra.mxu0 %v565
  %v821 = vpop.f32.mrf.mxu0
  %v822 = vadd.f32 %v725, %v821
  %v823 = vpop.f32.mrf.mxu0
  %v824 = vpop.f32.mrf.mxu0
  %v825 = vadd.f32 %v728, %v824
  %v826 = vpop.f32.mrf.mxu0
  %827 = vmatprep.mubr.bf16.mxu0 0
  %828 = vmatmul.mubr.bf16.gmra.mxu0 %v568
  %v829 = vpop.f32.mrf.mxu0
  %v830 = vadd.f32 %v733, %v829
  %v831 = vpop.f32.mrf.mxu0
  %v832 = vpop.f32.mrf.mxu0
  %v833 = vadd.f32 %v736, %v832
  %v834 = vpop.f32.mrf.mxu0
  %835 = vmatprep.mubr.bf16.mxu0 0
  %836 = vmatmul.mubr.bf16.gmra.mxu0 %v571
  %v837 = vpop.f32.mrf.mxu0
  %v838 = vadd.f32 %v741, %v837
  %v839 = vpop.f32.mrf.mxu0
  %v840 = vpop.f32.mrf.mxu0
  %v841 = vadd.f32 %v744, %v840
  %v842 = vpop.f32.mrf.mxu0
  %843 = vmatprep.mubr.bf16.mxu0 0
  %844 = vmatmul.mubr.bf16.gmra.mxu0 %v574
  %v845 = vpop.f32.mrf.mxu0
  %v846 = vadd.f32 %v749, %v845
  %v847 = vpop.f32.mrf.mxu0
  %v848 = vpop.f32.mrf.mxu0
  %v849 = vadd.f32 %v752, %v848
  %v850 = vpop.f32.mrf.mxu0
  %851 = vmatprep.mubr.bf16.mxu0 0
  %852 = vmatmul.mubr.bf16.gmra.mxu0 %v577
  %v853 = vpop.f32.mrf.mxu0
  %v854 = vadd.f32 %v757, %v853
  %v855 = vpop.f32.mrf.mxu0
  %v856 = vpop.f32.mrf.mxu0
  %v857 = vadd.f32 %v760, %v856
  %v858 = vpop.f32.mrf.mxu0
  %859 = vmatprep.mubr.bf16.mxu0 0
  %860 = vmatmul.mubr.bf16.gmra.mxu0 %v580
  %v861 = vpop.f32.mrf.mxu0
  %v862 = vadd.f32 %v765, %v861
  %v863 = vpop.f32.mrf.mxu0
  %v864 = vpop.f32.mrf.mxu0
  %v865 = vadd.f32 %v768, %v864
  %v866 = vpop.f32.mrf.mxu0
  %867 = vmatprep.mubr.bf16.mxu0 0
  %868 = vmatmul.mubr.bf16.gmra.mxu0 %v583
  %v869 = vpop.f32.mrf.mxu0
  %v870 = vadd.f32 %v773, %v869
  %v871 = vpop.f32.mrf.mxu0
  %v872 = vpop.f32.mrf.mxu0
  %v873 = vadd.f32 %v776, %v872
  %v874 = vpop.f32.mrf.mxu0
  %875 = vdwg.mxu0
  %v876 = vadd.f32 %v814, %v817
  %v877 = vadd.f32 %v876, %v822
  %v878 = vadd.f32 %v877, %v825
  %v879 = vadd.f32 %v878, %v830
  %v880 = vadd.f32 %v879, %v833
  %v881 = vadd.f32 %v880, %v838
  %v882 = vadd.f32 %v881, %v841
  %v883 = vadd.f32 %v882, %v846
  %v884 = vadd.f32 %v883, %v849
  %v885 = vadd.f32 %v884, %v854
  %v886 = vadd.f32 %v885, %v857
  %v887 = vadd.f32 %v886, %v862
  %v888 = vadd.f32 %v887, %v865
  %v889 = vadd.f32 %v888, %v870
  %v890 = vadd.f32 %v889, %v873
  %v891 = vrot.slane %v890, 4
  %v892 = vadd.f32 %v890, %v891
  %v893 = vrot.slane %v892, 2
  %v894 = vadd.f32 %v892, %v893
  %v895 = vrot.slane %v894, 1
  %v896 = vadd.f32 %v894, %v895
  %v897 = vmul.f32 %v814, %v814
  %v898 = vmul.f32 %v817, %v817
  %v899 = vmul.f32 %v822, %v822
  %v900 = vmul.f32 %v825, %v825
  %v901 = vmul.f32 %v830, %v830
  %v902 = vmul.f32 %v833, %v833
  %v903 = vmul.f32 %v838, %v838
  %v904 = vmul.f32 %v841, %v841
  %v905 = vmul.f32 %v846, %v846
  %v906 = vmul.f32 %v849, %v849
  %v907 = vmul.f32 %v854, %v854
  %v908 = vmul.f32 %v857, %v857
  %v909 = vmul.f32 %v862, %v862
  %v910 = vmul.f32 %v865, %v865
  %v911 = vmul.f32 %v870, %v870
  %v912 = vmul.f32 %v873, %v873
  %v913 = vadd.f32 %v897, %v898
  %v914 = vadd.f32 %v913, %v899
  %v915 = vadd.f32 %v914, %v900
  %v916 = vadd.f32 %v915, %v901
  %v917 = vadd.f32 %v916, %v902
  %v918 = vadd.f32 %v917, %v903
  %v919 = vadd.f32 %v918, %v904
  %v920 = vadd.f32 %v919, %v905
  %v921 = vadd.f32 %v920, %v906
  %v922 = vadd.f32 %v921, %v907
  %v923 = vadd.f32 %v922, %v908
  %v924 = vadd.f32 %v923, %v909
  %v925 = vadd.f32 %v924, %v910
  %v926 = vadd.f32 %v925, %v911
  %v927 = vadd.f32 %v926, %v912
  %v928 = vrot.slane %v927, 4
  %v929 = vadd.f32 %v927, %v928
  %v930 = vrot.slane %v929, 2
  %v931 = vadd.f32 %v929, %v930
  %v932 = vrot.slane %v931, 1
  %v933 = vadd.f32 %v931, %v932
  %v934 = vld [vmem:[%s2] sm:$0xff]
  %v935 = vld [vmem:[%s2 + $0x8] sm:$0xff]
  %v936 = vld [vmem:[%s2 + $0x10] sm:$0xff]
  %v937 = vld [vmem:[%s2 + $0x18] sm:$0xff]
  %v938 = vld [vmem:[%s2 + $0x20] sm:$0xff]
  %v939 = vld [vmem:[%s2 + $0x28] sm:$0xff]
  %v940 = vld [vmem:[%s2 + $0x30] sm:$0xff]
  %v941 = vld [vmem:[%s2 + $0x38] sm:$0xff]
  %v942 = vld [vmem:[%s2 + $0x40] sm:$0xff]
  %v943 = vld [vmem:[%s2 + $0x48] sm:$0xff]
  %v944 = vld [vmem:[%s2 + $0x50] sm:$0xff]
  %v945 = vld [vmem:[%s2 + $0x58] sm:$0xff]
  %v946 = vld [vmem:[%s2 + $0x60] sm:$0xff]
  %v947 = vld [vmem:[%s2 + $0x68] sm:$0xff]
  %v948 = vld [vmem:[%s2 + $0x70] sm:$0xff]
  %v949 = vld [vmem:[%s2 + $0x78] sm:$0xff]
  %950 = vmatprep.subr.mxu0 0.0
  %951 = vmatpush1.msra.mxu0 %v949
  %952 = vmatprep.subr.mxu0 0.0
  %953 = vmatpush1.msra.mxu0 %v948
  %954 = vmatprep.subr.mxu0 0.0
  %955 = vmatpush1.msra.mxu0 %v947
  %956 = vmatprep.subr.mxu0 0.0
  %957 = vmatpush1.msra.mxu0 %v946
  %958 = vmatprep.subr.mxu0 0.0
  %959 = vmatpush1.msra.mxu0 %v945
  %960 = vmatprep.subr.mxu0 0.0
  %961 = vmatpush1.msra.mxu0 %v944
  %962 = vmatprep.subr.mxu0 0.0
  %963 = vmatpush1.msra.mxu0 %v943
  %964 = vmatprep.subr.mxu0 0.0
  %965 = vmatpush1.msra.mxu0 %v942
  %966 = vmatprep.subr.mxu0 0.0
  %967 = vmatpush1.msra.mxu0 %v941
  %968 = vmatprep.subr.mxu0 0.0
  %969 = vmatpush1.msra.mxu0 %v940
  %970 = vmatprep.subr.mxu0 0.0
  %971 = vmatpush1.msra.mxu0 %v939
  %972 = vmatprep.subr.mxu0 0.0
  %973 = vmatpush1.msra.mxu0 %v938
  %974 = vmatprep.subr.mxu0 0.0
  %975 = vmatpush1.msra.mxu0 %v937
  %976 = vmatprep.subr.mxu0 0.0
  %977 = vmatpush1.msra.mxu0 %v936
  %978 = vmatprep.subr.mxu0 0.0
  %979 = vmatpush1.msra.mxu0 %v935
  %980 = vmatprep.subr.mxu0 0.0
  %981 = vmatpush1.msra.mxu0 %v934
  %982 = vmatprep.subr.mxu0 0.0
  %983 = vmatpush2.msra.mxu0 0.0
  %984 = vmatprep.subr.mxu0 0.0
  %985 = vmatpush2.msra.mxu0 0.0
  %986 = vmatprep.subr.mxu0 0.0
  %987 = vmatpush2.msra.mxu0 0.0
  %988 = vmatprep.subr.mxu0 0.0
  %989 = vmatpush2.msra.mxu0 0.0
  %990 = vmatprep.subr.mxu0 0.0
  %991 = vmatpush2.msra.mxu0 0.0
  %992 = vmatprep.subr.mxu0 0.0
  %993 = vmatpush2.msra.mxu0 0.0
  %994 = vmatprep.subr.mxu0 0.0
  %995 = vmatpush2.msra.mxu0 0.0
  %996 = vmatprep.subr.mxu0 0.0
  %997 = vmatpush2.msra.mxu0 0.0
  %998 = vmatprep.subr.mxu0 0.0
  %999 = vmatpush2.msra.mxu0 0.0
  %1000 = vmatprep.subr.mxu0 0.0
  %1001 = vmatpush2.msra.mxu0 0.0
  %1002 = vmatprep.subr.mxu0 0.0
  %1003 = vmatpush2.msra.mxu0 0.0
  %1004 = vmatprep.subr.mxu0 0.0
  %1005 = vmatpush2.msra.mxu0 0.0
  %1006 = vmatprep.subr.mxu0 0.0
  %1007 = vmatpush2.msra.mxu0 0.0
  %1008 = vmatprep.subr.mxu0 0.0
  %1009 = vmatpush2.msra.mxu0 0.0
  %1010 = vmatprep.subr.mxu0 0.0
  %1011 = vmatpush2.msra.mxu0 0.0
  %1012 = vmatprep.subr.mxu0 0.0
  %1013 = vmatpush2.msra.mxu0 0.0
  %1014 = vmatprep.mubr.f32.mxu0 0.0
  %1015 = vmatmul.mubr.f32.gmra.mxu0 %v896
  %v1016 = vpop.f32.mrf.mxu0
  %v1017 = vadd.f32 0.0, %v1016
  %v1018 = vpop.f32.mrf.mxu0
  %1019 = vdwg.mxu0
  %1020 = vmatprep.subr.mxu0 0.0
  %1021 = vmatpush1.msra.mxu0 %v949
  %1022 = vmatprep.subr.mxu0 0.0
  %1023 = vmatpush1.msra.mxu0 %v948
  %1024 = vmatprep.subr.mxu0 0.0
  %1025 = vmatpush1.msra.mxu0 %v947
  %1026 = vmatprep.subr.mxu0 0.0
  %1027 = vmatpush1.msra.mxu0 %v946
  %1028 = vmatprep.subr.mxu0 0.0
  %1029 = vmatpush1.msra.mxu0 %v945
  %1030 = vmatprep.subr.mxu0 0.0
  %1031 = vmatpush1.msra.mxu0 %v944
  %1032 = vmatprep.subr.mxu0 0.0
  %1033 = vmatpush1.msra.mxu0 %v943
  %1034 = vmatprep.subr.mxu0 0.0
  %1035 = vmatpush1.msra.mxu0 %v942
  %1036 = vmatprep.subr.mxu0 0.0
  %1037 = vmatpush1.msra.mxu0 %v941
  %1038 = vmatprep.subr.mxu0 0.0
  %1039 = vmatpush1.msra.mxu0 %v940
  %1040 = vmatprep.subr.mxu0 0.0
  %1041 = vmatpush1.msra.mxu0 %v939
  %1042 = vmatprep.subr.mxu0 0.0
  %1043 = vmatpush1.msra.mxu0 %v938
  %1044 = vmatprep.subr.mxu0 0.0
  %1045 = vmatpush1.msra.mxu0 %v937
  %1046 = vmatprep.subr.mxu0 0.0
  %1047 = vmatpush1.msra.mxu0 %v936
  %1048 = vmatprep.subr.mxu0 0.0
  %1049 = vmatpush1.msra.mxu0 %v935
  %1050 = vmatprep.subr.mxu0 0.0
  %1051 = vmatpush1.msra.mxu0 %v934
  %1052 = vmatprep.subr.mxu0 0.0
  %1053 = vmatpush2.msra.mxu0 0.0
  %1054 = vmatprep.subr.mxu0 0.0
  %1055 = vmatpush2.msra.mxu0 0.0
  %1056 = vmatprep.subr.mxu0 0.0
  %1057 = vmatpush2.msra.mxu0 0.0
  %1058 = vmatprep.subr.mxu0 0.0
  %1059 = vmatpush2.msra.mxu0 0.0
  %1060 = vmatprep.subr.mxu0 0.0
  %1061 = vmatpush2.msra.mxu0 0.0
  %1062 = vmatprep.subr.mxu0 0.0
  %1063 = vmatpush2.msra.mxu0 0.0
  %1064 = vmatprep.subr.mxu0 0.0
  %1065 = vmatpush2.msra.mxu0 0.0
  %1066 = vmatprep.subr.mxu0 0.0
  %1067 = vmatpush2.msra.mxu0 0.0
  %1068 = vmatprep.subr.mxu0 0.0
  %1069 = vmatpush2.msra.mxu0 0.0
  %1070 = vmatprep.subr.mxu0 0.0
  %1071 = vmatpush2.msra.mxu0 0.0
  %1072 = vmatprep.subr.mxu0 0.0
  %1073 = vmatpush2.msra.mxu0 0.0
  %1074 = vmatprep.subr.mxu0 0.0
  %1075 = vmatpush2.msra.mxu0 0.0
  %1076 = vmatprep.subr.mxu0 0.0
  %1077 = vmatpush2.msra.mxu0 0.0
  %1078 = vmatprep.subr.mxu0 0.0
  %1079 = vmatpush2.msra.mxu0 0.0
  %1080 = vmatprep.subr.mxu0 0.0
  %1081 = vmatpush2.msra.mxu0 0.0
  %1082 = vmatprep.subr.mxu0 0.0
  %1083 = vmatpush2.msra.mxu0 0.0
  %1084 = vmatprep.mubr.f32.mxu0 0.0
  %1085 = vmatmul.mubr.f32.gmra.mxu0 %v933
  %v1086 = vpop.f32.mrf.mxu0
  %v1087 = vadd.f32 0.0, %v1086
  %v1088 = vpop.f32.mrf.mxu0
  %1089 = vdwg.mxu0
  %v1090 = vmul.f32 %v1017, 0.001953125
  %v1091 = vmul.f32 %v1087, 0.001953125
  %v1092 = vmul.f32 %v1090, %v1090
  %v1093 = vsub.f32 %v1091, %v1092
  %v1094 = vmax.f32 %v1093, 0.0
  %v1095 = vld [vmem:[%s4] sm:$0x1]
  %v1096 = vadd.f32 %v1094, 1e-05
  %v1097 = vrsqrt.pop %v1096
  %v1098 = vmul.f32 %v1095, %v1097
  %v1099 = vld [vmem:[%s5] sm:$0x1]
  %v1100 = vmul.f32 %v1090, %v1098
  %v1101 = vsub.f32 %v1099, %v1100
  %v1102 = vld [vmem:[%s3] sm:$0xff]
  %v1103 = vld [vmem:[%s3 + $0x8] sm:$0xff]
  %v1104 = vld [vmem:[%s3 + $0x10] sm:$0xff]
  %v1105 = vld [vmem:[%s3 + $0x18] sm:$0xff]
  %v1106 = vld [vmem:[%s3 + $0x20] sm:$0xff]
  %v1107 = vld [vmem:[%s3 + $0x28] sm:$0xff]
  %v1108 = vld [vmem:[%s3 + $0x30] sm:$0xff]
  %v1109 = vld [vmem:[%s3 + $0x38] sm:$0xff]
  %v1110 = vld [vmem:[%s3 + $0x40] sm:$0xff]
  %v1111 = vld [vmem:[%s3 + $0x48] sm:$0xff]
  %v1112 = vld [vmem:[%s3 + $0x50] sm:$0xff]
  %v1113 = vld [vmem:[%s3 + $0x58] sm:$0xff]
  %v1114 = vld [vmem:[%s3 + $0x60] sm:$0xff]
  %v1115 = vld [vmem:[%s3 + $0x68] sm:$0xff]
  %v1116 = vld [vmem:[%s3 + $0x70] sm:$0xff]
  %v1117 = vld [vmem:[%s3 + $0x78] sm:$0xff]
  %1118 = vmatprep.subr.mxu0 0.0
  %1119 = vmatpush1.msra.mxu0 %v1117
  %1120 = vmatprep.subr.mxu0 0.0
  %1121 = vmatpush1.msra.mxu0 %v1116
  %1122 = vmatprep.subr.mxu0 0.0
  %1123 = vmatpush1.msra.mxu0 %v1115
  %1124 = vmatprep.subr.mxu0 0.0
  %1125 = vmatpush1.msra.mxu0 %v1114
  %1126 = vmatprep.subr.mxu0 0.0
  %1127 = vmatpush1.msra.mxu0 %v1113
  %1128 = vmatprep.subr.mxu0 0.0
  %1129 = vmatpush1.msra.mxu0 %v1112
  %1130 = vmatprep.subr.mxu0 0.0
  %1131 = vmatpush1.msra.mxu0 %v1111
  %1132 = vmatprep.subr.mxu0 0.0
  %1133 = vmatpush1.msra.mxu0 %v1110
  %1134 = vmatprep.subr.mxu0 0.0
  %1135 = vmatpush1.msra.mxu0 %v1109
  %1136 = vmatprep.subr.mxu0 0.0
  %1137 = vmatpush1.msra.mxu0 %v1108
  %1138 = vmatprep.subr.mxu0 0.0
  %1139 = vmatpush1.msra.mxu0 %v1107
  %1140 = vmatprep.subr.mxu0 0.0
  %1141 = vmatpush1.msra.mxu0 %v1106
  %1142 = vmatprep.subr.mxu0 0.0
  %1143 = vmatpush1.msra.mxu0 %v1105
  %1144 = vmatprep.subr.mxu0 0.0
  %1145 = vmatpush1.msra.mxu0 %v1104
  %1146 = vmatprep.subr.mxu0 0.0
  %1147 = vmatpush1.msra.mxu0 %v1103
  %1148 = vmatprep.subr.mxu0 0.0
  %1149 = vmatpush1.msra.mxu0 %v1102
  %1150 = vmatprep.subr.mxu0 0.0
  %1151 = vmatpush2.msra.mxu0 0.0
  %1152 = vmatprep.subr.mxu0 0.0
  %1153 = vmatpush2.msra.mxu0 0.0
  %1154 = vmatprep.subr.mxu0 0.0
  %1155 = vmatpush2.msra.mxu0 0.0
  %1156 = vmatprep.subr.mxu0 0.0
  %1157 = vmatpush2.msra.mxu0 0.0
  %1158 = vmatprep.subr.mxu0 0.0
  %1159 = vmatpush2.msra.mxu0 0.0
  %1160 = vmatprep.subr.mxu0 0.0
  %1161 = vmatpush2.msra.mxu0 0.0
  %1162 = vmatprep.subr.mxu0 0.0
  %1163 = vmatpush2.msra.mxu0 0.0
  %1164 = vmatprep.subr.mxu0 0.0
  %1165 = vmatpush2.msra.mxu0 0.0
  %1166 = vmatprep.subr.mxu0 0.0
  %1167 = vmatpush2.msra.mxu0 0.0
  %1168 = vmatprep.subr.mxu0 0.0
  %1169 = vmatpush2.msra.mxu0 0.0
  %1170 = vmatprep.subr.mxu0 0.0
  %1171 = vmatpush2.msra.mxu0 0.0
  %1172 = vmatprep.subr.mxu0 0.0
  %1173 = vmatpush2.msra.mxu0 0.0
  %1174 = vmatprep.subr.mxu0 0.0
  %1175 = vmatpush2.msra.mxu0 0.0
  %1176 = vmatprep.subr.mxu0 0.0
  %1177 = vmatpush2.msra.mxu0 0.0
  %1178 = vmatprep.subr.mxu0 0.0
  %1179 = vmatpush2.msra.mxu0 0.0
  %1180 = vmatprep.subr.mxu0 0.0
  %1181 = vmatpush2.msra.mxu0 0.0
  %1182 = vmatprep.mubr.f32.mxu0 0.0
  %1183 = vmatmul.mubr.f32.gmra.mxu0 %v1098
  %v1184 = vpop.f32.mrf.mxu0
  %v1185 = vadd.f32 0.0, %v1184
  %v1186 = vpop.f32.mrf.mxu0
  %1187 = vdwg.mxu0
  %1188 = vmatprep.subr.mxu0 0.0
  %1189 = vmatpush1.msra.mxu0 %v1117
  %1190 = vmatprep.subr.mxu0 0.0
  %1191 = vmatpush1.msra.mxu0 %v1116
  %1192 = vmatprep.subr.mxu0 0.0
  %1193 = vmatpush1.msra.mxu0 %v1115
  %1194 = vmatprep.subr.mxu0 0.0
  %1195 = vmatpush1.msra.mxu0 %v1114
  %1196 = vmatprep.subr.mxu0 0.0
  %1197 = vmatpush1.msra.mxu0 %v1113
  %1198 = vmatprep.subr.mxu0 0.0
  %1199 = vmatpush1.msra.mxu0 %v1112
  %1200 = vmatprep.subr.mxu0 0.0
  %1201 = vmatpush1.msra.mxu0 %v1111
  %1202 = vmatprep.subr.mxu0 0.0
  %1203 = vmatpush1.msra.mxu0 %v1110
  %1204 = vmatprep.subr.mxu0 0.0
  %1205 = vmatpush1.msra.mxu0 %v1109
  %1206 = vmatprep.subr.mxu0 0.0
  %1207 = vmatpush1.msra.mxu0 %v1108
  %1208 = vmatprep.subr.mxu0 0.0
  %1209 = vmatpush1.msra.mxu0 %v1107
  %1210 = vmatprep.subr.mxu0 0.0
  %1211 = vmatpush1.msra.mxu0 %v1106
  %1212 = vmatprep.subr.mxu0 0.0
  %1213 = vmatpush1.msra.mxu0 %v1105
  %1214 = vmatprep.subr.mxu0 0.0
  %1215 = vmatpush1.msra.mxu0 %v1104
  %1216 = vmatprep.subr.mxu0 0.0
  %1217 = vmatpush1.msra.mxu0 %v1103
  %1218 = vmatprep.subr.mxu0 0.0
  %1219 = vmatpush1.msra.mxu0 %v1102
  %1220 = vmatprep.subr.mxu0 0.0
  %1221 = vmatpush2.msra.mxu0 0.0
  %1222 = vmatprep.subr.mxu0 0.0
  %1223 = vmatpush2.msra.mxu0 0.0
  %1224 = vmatprep.subr.mxu0 0.0
  %1225 = vmatpush2.msra.mxu0 0.0
  %1226 = vmatprep.subr.mxu0 0.0
  %1227 = vmatpush2.msra.mxu0 0.0
  %1228 = vmatprep.subr.mxu0 0.0
  %1229 = vmatpush2.msra.mxu0 0.0
  %1230 = vmatprep.subr.mxu0 0.0
  %1231 = vmatpush2.msra.mxu0 0.0
  %1232 = vmatprep.subr.mxu0 0.0
  %1233 = vmatpush2.msra.mxu0 0.0
  %1234 = vmatprep.subr.mxu0 0.0
  %1235 = vmatpush2.msra.mxu0 0.0
  %1236 = vmatprep.subr.mxu0 0.0
  %1237 = vmatpush2.msra.mxu0 0.0
  %1238 = vmatprep.subr.mxu0 0.0
  %1239 = vmatpush2.msra.mxu0 0.0
  %1240 = vmatprep.subr.mxu0 0.0
  %1241 = vmatpush2.msra.mxu0 0.0
  %1242 = vmatprep.subr.mxu0 0.0
  %1243 = vmatpush2.msra.mxu0 0.0
  %1244 = vmatprep.subr.mxu0 0.0
  %1245 = vmatpush2.msra.mxu0 0.0
  %1246 = vmatprep.subr.mxu0 0.0
  %1247 = vmatpush2.msra.mxu0 0.0
  %1248 = vmatprep.subr.mxu0 0.0
  %1249 = vmatpush2.msra.mxu0 0.0
  %1250 = vmatprep.subr.mxu0 0.0
  %1251 = vmatpush2.msra.mxu0 0.0
  %1252 = vmatprep.mubr.f32.mxu0 0.0
  %1253 = vmatmul.mubr.f32.gmra.mxu0 %v1101
  %v1254 = vpop.f32.mrf.mxu0
  %v1255 = vadd.f32 0.0, %v1254
  %v1256 = vpop.f32.mrf.mxu0
  %1257 = vdwg.mxu0
  %v1258 = vlaneseq
  %v1259 = vshrl.u32 %v1258, 7
  %v1260 = vsub.s32 0, %v1259
  %v1261 = vrot.slane %v1185, %v1260
  %v1262 = vmul.f32 %v814, %v1261
  %v1263 = vmul.f32 %v817, %v1261
  %v1264 = vmul.f32 %v822, %v1261
  %v1265 = vmul.f32 %v825, %v1261
  %v1266 = vmul.f32 %v830, %v1261
  %v1267 = vmul.f32 %v833, %v1261
  %v1268 = vmul.f32 %v838, %v1261
  %v1269 = vmul.f32 %v841, %v1261
  %v1270 = vmul.f32 %v846, %v1261
  %v1271 = vmul.f32 %v849, %v1261
  %v1272 = vmul.f32 %v854, %v1261
  %v1273 = vmul.f32 %v857, %v1261
  %v1274 = vmul.f32 %v862, %v1261
  %v1275 = vmul.f32 %v865, %v1261
  %v1276 = vmul.f32 %v870, %v1261
  %v1277 = vmul.f32 %v873, %v1261
  %v1278 = vlaneseq
  %v1279 = vshrl.u32 %v1278, 7
  %v1280 = vsub.s32 0, %v1279
  %v1281 = vrot.slane %v1255, %v1280
  %v1282 = vadd.f32 %v1262, %v1281
  %v1283 = vadd.f32 %v1263, %v1281
  %v1284 = vadd.f32 %v1264, %v1281
  %v1285 = vadd.f32 %v1265, %v1281
  %v1286 = vadd.f32 %v1266, %v1281
  %v1287 = vadd.f32 %v1267, %v1281
  %v1288 = vadd.f32 %v1268, %v1281
  %v1289 = vadd.f32 %v1269, %v1281
  %v1290 = vadd.f32 %v1270, %v1281
  %v1291 = vadd.f32 %v1271, %v1281
  %v1292 = vadd.f32 %v1272, %v1281
  %v1293 = vadd.f32 %v1273, %v1281
  %v1294 = vadd.f32 %v1274, %v1281
  %v1295 = vadd.f32 %v1275, %v1281
  %v1296 = vadd.f32 %v1276, %v1281
  %v1297 = vadd.f32 %v1277, %v1281
  %v1298 = vmax.f32 %v1282, 0.0
  %v1299 = vmax.f32 %v1283, 0.0
  %v1300 = vmax.f32 %v1284, 0.0
  %v1301 = vmax.f32 %v1285, 0.0
  %v1302 = vmax.f32 %v1286, 0.0
  %v1303 = vmax.f32 %v1287, 0.0
  %v1304 = vmax.f32 %v1288, 0.0
  %v1305 = vmax.f32 %v1289, 0.0
  %v1306 = vmax.f32 %v1290, 0.0
  %v1307 = vmax.f32 %v1291, 0.0
  %v1308 = vmax.f32 %v1292, 0.0
  %v1309 = vmax.f32 %v1293, 0.0
  %v1310 = vmax.f32 %v1294, 0.0
  %v1311 = vmax.f32 %v1295, 0.0
  %v1312 = vmax.f32 %v1296, 0.0
  %v1313 = vmax.f32 %v1297, 0.0
  %v1314 = vpack.c.bf16 %v1299, %v1298
  %v1315 = vpack.c.bf16 %v1301, %v1300
  %v1316 = vpack.c.bf16 %v1303, %v1302
  %v1317 = vpack.c.bf16 %v1305, %v1304
  %v1318 = vpack.c.bf16 %v1307, %v1306
  %v1319 = vpack.c.bf16 %v1309, %v1308
  %v1320 = vpack.c.bf16 %v1311, %v1310
  %v1321 = vpack.c.bf16 %v1313, %v1312
  %v1330 = vunpack.c.l.b16 %v1314
  %v1331 = vunpack.c.h.b16 %v1314
  %v1332 = vunpack.c.l.b16 %v1315
  %v1333 = vunpack.c.h.b16 %v1315
  %v1334 = vunpack.c.l.b16 %v1316
  %v1335 = vunpack.c.h.b16 %v1316
  %v1336 = vunpack.c.l.b16 %v1317
  %v1337 = vunpack.c.h.b16 %v1317
  %v1338 = vunpack.c.l.b16 %v1318
  %v1339 = vunpack.c.h.b16 %v1318
  %v1340 = vunpack.c.l.b16 %v1319
  %v1341 = vunpack.c.h.b16 %v1319
  %v1342 = vunpack.c.l.b16 %v1320
  %v1343 = vunpack.c.h.b16 %v1320
  %v1344 = vunpack.c.l.b16 %v1321
  %v1345 = vunpack.c.h.b16 %v1321
  %v1346 = vpack.c.b16 %v1330, %v1330
  %v1347 = vpack.c.b16 %v1331, %v1331
  %v1348 = vpack.c.b16 %v1332, %v1332
  %v1349 = vpack.c.b16 %v1333, %v1333
  %v1350 = vpack.c.b16 %v1334, %v1334
  %v1351 = vpack.c.b16 %v1335, %v1335
  %v1352 = vpack.c.b16 %v1336, %v1336
  %v1353 = vpack.c.b16 %v1337, %v1337
  %v1354 = vpack.c.b16 %v1338, %v1338
  %v1355 = vpack.c.b16 %v1339, %v1339
  %v1356 = vpack.c.b16 %v1340, %v1340
  %v1357 = vpack.c.b16 %v1341, %v1341
  %v1358 = vpack.c.b16 %v1342, %v1342
  %v1359 = vpack.c.b16 %v1343, %v1343
  %v1360 = vpack.c.b16 %v1344, %v1344
  %v1361 = vpack.c.b16 %v1345, %v1345
  %1378 = vst [vmem:[%s6] sm:$0xf] %v1346
  %1379 = vst [vmem:[%s6 + $0x4] sm:$0xf] %v1347
  %1380 = vst [vmem:[%s6 + $0x8] sm:$0xf] %v1348
  %1381 = vst [vmem:[%s6 + $0xc] sm:$0xf] %v1349
  %1382 = vst [vmem:[%s6 + $0x10] sm:$0xf] %v1350
  %1383 = vst [vmem:[%s6 + $0x14] sm:$0xf] %v1351
  %1384 = vst [vmem:[%s6 + $0x18] sm:$0xf] %v1352
  %1385 = vst [vmem:[%s6 + $0x1c] sm:$0xf] %v1353
  %1386 = vst [vmem:[%s6 + $0x20] sm:$0xf] %v1354
  %1387 = vst [vmem:[%s6 + $0x24] sm:$0xf] %v1355
  %1388 = vst [vmem:[%s6 + $0x28] sm:$0xf] %v1356
  %1389 = vst [vmem:[%s6 + $0x2c] sm:$0xf] %v1357
  %1390 = vst [vmem:[%s6 + $0x30] sm:$0xf] %v1358
  %1391 = vst [vmem:[%s6 + $0x34] sm:$0xf] %v1359
  %1392 = vst [vmem:[%s6 + $0x38] sm:$0xf] %v1360
  %1393 = vst [vmem:[%s6 + $0x3c] sm:$0xf] %v1361
  // Predicated region
  $region26: #{_lambda_.7} parent=0 // pred_check
    _
  $region27: #{_lambda_.7} parent=0 // pred_check_branch
    %1395 = sbr.rel (0) target = $region29
  $region28: #{_lambda_.7} parent=0 // pred_region
    _
  $region29: #{_lambda_.7} parent=0 // pred_fallthru
    _
  // Predicated region
  $region30: #{_lambda_.7} parent=0 // pred_check
    _
  $region31: #{_lambda_.7} parent=0 // pred_check_branch
    %1397 = sbr.rel (0) target = $region33
  $region32: #{_lambda_.7} parent=0 // pred_region
    _
  $region33: #{_lambda_.7} parent=0 // pred_fallthru
    _

// kernel: _lambda_.8
$region0: #{_lambda_.8}
  #allocation0 [shape = 'u32[]', space=smem, size = 0x4, offset = 0x4, fixed_abs, tag = 'smem constant byte address 0x4 - core index']
  #allocation1 [shape = 'u32[144,128]{1,0:T(1,128)}', space=vmem, size = 0x12000, scoped, tag = 'internal scratch']
  %s0 = inlined_call_operand.vmem [shape: bf16[512,288], index: 0, kind: input, shape index: {}]
  %s1 = inlined_call_operand.vmem [shape: bf16[288,128], index: 1, kind: input, shape index: {}]
  %s2 = inlined_call_operand.vmem [shape: f32[128,128], index: 2, kind: input, shape index: {}]
  %s3 = inlined_call_operand.vmem [shape: f32[128,128], index: 3, kind: input, shape index: {}]
  %s4 = inlined_call_operand.vmem [shape: f32[1,128], index: 4, kind: input, shape index: {}]
  %s5 = inlined_call_operand.vmem [shape: f32[1,128], index: 5, kind: input, shape index: {}]
  %s6 = inlined_call_operand.vmem [shape: bf16[512,128], index: 6, kind: output, shape index: {}]
  %s7 = sld [smem:[#allocation0]]
  $region34: #{_lambda_.8} parent=0
    _
  %s9 = ssub.s32 1, %s7
  %s10 = scalar_select 0, %s9, %s7
  // Predicated region
  $region2: #{_lambda_.8} parent=0 // pred_check
    _
  $region3: #{_lambda_.8} parent=0 // pred_check_branch
    %12 = sbr.rel (0) target = $region5
  $region4: #{_lambda_.8} parent=0 // pred_region
    _
  $region5: #{_lambda_.8} parent=0 // pred_fallthru
    _
  // Predicated region
  $region6: #{_lambda_.8} parent=0 // pred_check
    _
  $region7: #{_lambda_.8} parent=0 // pred_check_branch
    %14 = sbr.rel (0) target = $region9
  $region8: #{_lambda_.8} parent=0 // pred_region
    _
  $region9: #{_lambda_.8} parent=0 // pred_fallthru
    _
  // Predicated region
  $region10: #{_lambda_.8} parent=0 // pred_check
    _
  $region11: #{_lambda_.8} parent=0 // pred_check_branch
    %16 = sbr.rel (0) target = $region13
  $region12: #{_lambda_.8} parent=0 // pred_region
    _
  $region13: #{_lambda_.8} parent=0 // pred_fallthru
    _
  // Predicated region
  $region14: #{_lambda_.8} parent=0 // pred_check
    _
  $region15: #{_lambda_.8} parent=0 // pred_check_branch
    %18 = sbr.rel (0) target = $region17
  $region16: #{_lambda_.8} parent=0 // pred_region
    _
  $region17: #{_lambda_.8} parent=0 // pred_fallthru
    _
  // Predicated region
  $region18: #{_lambda_.8} parent=0 // pred_check
    _
  $region19: #{_lambda_.8} parent=0 // pred_check_branch
    %20 = sbr.rel (0) target = $region21
  $region20: #{_lambda_.8} parent=0 // pred_region
    _
  $region21: #{_lambda_.8} parent=0 // pred_fallthru
    _
  // Predicated region
  $region22: #{_lambda_.8} parent=0 // pred_check
    _
  $region23: #{_lambda_.8} parent=0 // pred_check_branch
    %22 = sbr.rel (0) target = $region25
  $region24: #{_lambda_.8} parent=0 // pred_region
    _
  $region25: #{_lambda_.8} parent=0 // pred_fallthru
    _
  %v24 = vld [vmem:[%s0] sm:$0xff]
  %v25 = vld [vmem:[%s0 + $0x8] sm:$0xf]
  %v26 = vld [vmem:[%s0 + $0xc] sm:$0xff]
  %v27 = vld [vmem:[%s0 + $0x14] sm:$0xf]
  %v28 = vld [vmem:[%s0 + $0x18] sm:$0xff]
  %v29 = vld [vmem:[%s0 + $0x20] sm:$0xf]
  %v30 = vld [vmem:[%s0 + $0x24] sm:$0xff]
  %v31 = vld [vmem:[%s0 + $0x2c] sm:$0xf]
  %v32 = vld [vmem:[%s0 + $0x30] sm:$0xff]
  %v33 = vld [vmem:[%s0 + $0x38] sm:$0xf]
  %v34 = vld [vmem:[%s0 + $0x3c] sm:$0xff]
  %v35 = vld [vmem:[%s0 + $0x44] sm:$0xf]
  %v36 = vld [vmem:[%s0 + $0x48] sm:$0xff]
  %v37 = vld [vmem:[%s0 + $0x50] sm:$0xf]
  %v38 = vld [vmem:[%s0 + $0x54] sm:$0xff]
  %v39 = vld [vmem:[%s0 + $0x5c] sm:$0xf]
  %v40 = vld [vmem:[%s0 + $0x60] sm:$0xff]
  %v41 = vld [vmem:[%s0 + $0x68] sm:$0xf]
  %v42 = vld [vmem:[%s0 + $0x6c] sm:$0xff]
  %v43 = vld [vmem:[%s0 + $0x74] sm:$0xf]
  %v44 = vld [vmem:[%s0 + $0x78] sm:$0xff]
  %v45 = vld [vmem:[%s0 + $0x80] sm:$0xf]
  %v46 = vld [vmem:[%s0 + $0x84] sm:$0xff]
  %v47 = vld [vmem:[%s0 + $0x8c] sm:$0xf]
  %v48 = vld [vmem:[%s0 + $0x90] sm:$0xff]
  %v49 = vld [vmem:[%s0 + $0x98] sm:$0xf]
  %v50 = vld [vmem:[%s0 + $0x9c] sm:$0xff]
  %v51 = vld [vmem:[%s0 + $0xa4] sm:$0xf]
  %v52 = vld [vmem:[%s0 + $0xa8] sm:$0xff]
  %v53 = vld [vmem:[%s0 + $0xb0] sm:$0xf]
  %v54 = vld [vmem:[%s0 + $0xb4] sm:$0xff]
  %v55 = vld [vmem:[%s0 + $0xbc] sm:$0xf]
  %v56 = vld [vmem:[%s0 + $0xc0] sm:$0xff]
  %v57 = vld [vmem:[%s0 + $0xc8] sm:$0xf]
  %v58 = vld [vmem:[%s0 + $0xcc] sm:$0xff]
  %v59 = vld [vmem:[%s0 + $0xd4] sm:$0xf]
  %v60 = vld [vmem:[%s0 + $0xd8] sm:$0xff]
  %v61 = vld [vmem:[%s0 + $0xe0] sm:$0xf]
  %v62 = vld [vmem:[%s0 + $0xe4] sm:$0xff]
  %v63 = vld [vmem:[%s0 + $0xec] sm:$0xf]
  %v64 = vld [vmem:[%s0 + $0xf0] sm:$0xff]
  %v65 = vld [vmem:[%s0 + $0xf8] sm:$0xf]
  %v66 = vld [vmem:[%s0 + $0xfc] sm:$0xff]
  %v67 = vld [vmem:[%s0 + $0x104] sm:$0xf]
  %v68 = vld [vmem:[%s0 + $0x108] sm:$0xff]
  %v69 = vld [vmem:[%s0 + $0x110] sm:$0xf]
  %v70 = vld [vmem:[%s0 + $0x114] sm:$0xff]
  %v71 = vld [vmem:[%s0 + $0x11c] sm:$0xf]
  %v72 = vld [vmem:[%s0 + $0x120] sm:$0xff]
  %v73 = vld [vmem:[%s0 + $0x128] sm:$0xf]
  %v74 = vld [vmem:[%s0 + $0x12c] sm:$0xff]
  %v75 = vld [vmem:[%s0 + $0x134] sm:$0xf]
  %v76 = vld [vmem:[%s0 + $0x138] sm:$0xff]
  %v77 = vld [vmem:[%s0 + $0x140] sm:$0xf]
  %v78 = vld [vmem:[%s0 + $0x144] sm:$0xff]
  %v79 = vld [vmem:[%s0 + $0x14c] sm:$0xf]
  %v80 = vld [vmem:[%s0 + $0x150] sm:$0xff]
  %v81 = vld [vmem:[%s0 + $0x158] sm:$0xf]
  %v82 = vld [vmem:[%s0 + $0x15c] sm:$0xff]
  %v83 = vld [vmem:[%s0 + $0x164] sm:$0xf]
  %v84 = vld [vmem:[%s0 + $0x168] sm:$0xff]
  %v85 = vld [vmem:[%s0 + $0x170] sm:$0xf]
  %v86 = vld [vmem:[%s0 + $0x174] sm:$0xff]
  %v87 = vld [vmem:[%s0 + $0x17c] sm:$0xf]
  %v88 = vld [vmem:[%s0 + $0x180] sm:$0xff]
  %v89 = vld [vmem:[%s0 + $0x188] sm:$0xf]
  %v90 = vld [vmem:[%s0 + $0x18c] sm:$0xff]
  %v91 = vld [vmem:[%s0 + $0x194] sm:$0xf]
  %v92 = vld [vmem:[%s0 + $0x198] sm:$0xff]
  %v93 = vld [vmem:[%s0 + $0x1a0] sm:$0xf]
  %v94 = vld [vmem:[%s0 + $0x1a4] sm:$0xff]
  %v95 = vld [vmem:[%s0 + $0x1ac] sm:$0xf]
  %v96 = vld [vmem:[%s0 + $0x1b0] sm:$0xff]
  %v97 = vld [vmem:[%s0 + $0x1b8] sm:$0xf]
  %v98 = vld [vmem:[%s0 + $0x1bc] sm:$0xff]
  %v99 = vld [vmem:[%s0 + $0x1c4] sm:$0xf]
  %v100 = vld [vmem:[%s0 + $0x1c8] sm:$0xff]
  %v101 = vld [vmem:[%s0 + $0x1d0] sm:$0xf]
  %v102 = vld [vmem:[%s0 + $0x1d4] sm:$0xff]
  %v103 = vld [vmem:[%s0 + $0x1dc] sm:$0xf]
  %v104 = vld [vmem:[%s0 + $0x1e0] sm:$0xff]
  %v105 = vld [vmem:[%s0 + $0x1e8] sm:$0xf]
  %v106 = vld [vmem:[%s0 + $0x1ec] sm:$0xff]
  %v107 = vld [vmem:[%s0 + $0x1f4] sm:$0xf]
  %v108 = vld [vmem:[%s0 + $0x1f8] sm:$0xff]
  %v109 = vld [vmem:[%s0 + $0x200] sm:$0xf]
  %v110 = vld [vmem:[%s0 + $0x204] sm:$0xff]
  %v111 = vld [vmem:[%s0 + $0x20c] sm:$0xf]
  %v112 = vld [vmem:[%s0 + $0x210] sm:$0xff]
  %v113 = vld [vmem:[%s0 + $0x218] sm:$0xf]
  %v114 = vld [vmem:[%s0 + $0x21c] sm:$0xff]
  %v115 = vld [vmem:[%s0 + $0x224] sm:$0xf]
  %v116 = vld [vmem:[%s0 + $0x228] sm:$0xff]
  %v117 = vld [vmem:[%s0 + $0x230] sm:$0xf]
  %v118 = vld [vmem:[%s0 + $0x234] sm:$0xff]
  %v119 = vld [vmem:[%s0 + $0x23c] sm:$0xf]
  %v120 = vld [vmem:[%s0 + $0x240] sm:$0xff]
  %v121 = vld [vmem:[%s0 + $0x248] sm:$0xf]
  %v122 = vld [vmem:[%s0 + $0x24c] sm:$0xff]
  %v123 = vld [vmem:[%s0 + $0x254] sm:$0xf]
  %v124 = vld [vmem:[%s0 + $0x258] sm:$0xff]
  %v125 = vld [vmem:[%s0 + $0x260] sm:$0xf]
  %v126 = vld [vmem:[%s0 + $0x264] sm:$0xff]
  %v127 = vld [vmem:[%s0 + $0x26c] sm:$0xf]
  %v128 = vld [vmem:[%s0 + $0x270] sm:$0xff]
  %v129 = vld [vmem:[%s0 + $0x278] sm:$0xf]
  %v130 = vld [vmem:[%s0 + $0x27c] sm:$0xff]
  %v131 = vld [vmem:[%s0 + $0x284] sm:$0xf]
  %v132 = vld [vmem:[%s0 + $0x288] sm:$0xff]
  %v133 = vld [vmem:[%s0 + $0x290] sm:$0xf]
  %v134 = vld [vmem:[%s0 + $0x294] sm:$0xff]
  %v135 = vld [vmem:[%s0 + $0x29c] sm:$0xf]
  %v136 = vld [vmem:[%s0 + $0x2a0] sm:$0xff]
  %v137 = vld [vmem:[%s0 + $0x2a8] sm:$0xf]
  %v138 = vld [vmem:[%s0 + $0x2ac] sm:$0xff]
  %v139 = vld [vmem:[%s0 + $0x2b4] sm:$0xf]
  %v140 = vld [vmem:[%s0 + $0x2b8] sm:$0xff]
  %v141 = vld [vmem:[%s0 + $0x2c0] sm:$0xf]
  %v142 = vld [vmem:[%s0 + $0x2c4] sm:$0xff]
  %v143 = vld [vmem:[%s0 + $0x2cc] sm:$0xf]
  %v144 = vld [vmem:[%s0 + $0x2d0] sm:$0xff]
  %v145 = vld [vmem:[%s0 + $0x2d8] sm:$0xf]
  %v146 = vld [vmem:[%s0 + $0x2dc] sm:$0xff]
  %v147 = vld [vmem:[%s0 + $0x2e4] sm:$0xf]
  %v148 = vld [vmem:[%s0 + $0x2e8] sm:$0xff]
  %v149 = vld [vmem:[%s0 + $0x2f0] sm:$0xf]
  %v150 = vld [vmem:[%s0 + $0x2f4] sm:$0xff]
  %v151 = vld [vmem:[%s0 + $0x2fc] sm:$0xf]
  %v152 = vld [vmem:[%s1] sm:$0xf]
  %v153 = vld [vmem:[%s1 + $0x4] sm:$0xf]
  %v154 = vld [vmem:[%s1 + $0x8] sm:$0xf]
  %v155 = vld [vmem:[%s1 + $0xc] sm:$0xf]
  %v156 = vld [vmem:[%s1 + $0x10] sm:$0xf]
  %v157 = vld [vmem:[%s1 + $0x14] sm:$0xf]
  %v158 = vld [vmem:[%s1 + $0x18] sm:$0xf]
  %v159 = vld [vmem:[%s1 + $0x1c] sm:$0xf]
  %v160 = vld [vmem:[%s1 + $0x20] sm:$0xf]
  %v161 = vld [vmem:[%s1 + $0x24] sm:$0xf]
  %v162 = vld [vmem:[%s1 + $0x28] sm:$0xf]
  %v163 = vld [vmem:[%s1 + $0x2c] sm:$0xf]
  %v164 = vld [vmem:[%s1 + $0x30] sm:$0xf]
  %v165 = vld [vmem:[%s1 + $0x34] sm:$0xf]
  %v166 = vld [vmem:[%s1 + $0x38] sm:$0xf]
  %v167 = vld [vmem:[%s1 + $0x3c] sm:$0xf]
  %v168 = vld [vmem:[%s1 + $0x40] sm:$0xf]
  %v169 = vld [vmem:[%s1 + $0x44] sm:$0xf]
  %v170 = vld [vmem:[%s1 + $0x48] sm:$0xf]
  %v171 = vld [vmem:[%s1 + $0x4c] sm:$0xf]
  %v172 = vld [vmem:[%s1 + $0x50] sm:$0xf]
  %v173 = vld [vmem:[%s1 + $0x54] sm:$0xf]
  %v174 = vld [vmem:[%s1 + $0x58] sm:$0xf]
  %v175 = vld [vmem:[%s1 + $0x5c] sm:$0xf]
  %v176 = vld [vmem:[%s1 + $0x60] sm:$0xf]
  %v177 = vld [vmem:[%s1 + $0x64] sm:$0xf]
  %v178 = vld [vmem:[%s1 + $0x68] sm:$0xf]
  %v179 = vld [vmem:[%s1 + $0x6c] sm:$0xf]
  %v180 = vld [vmem:[%s1 + $0x70] sm:$0xf]
  %v181 = vld [vmem:[%s1 + $0x74] sm:$0xf]
  %v182 = vld [vmem:[%s1 + $0x78] sm:$0xf]
  %v183 = vld [vmem:[%s1 + $0x7c] sm:$0xf]
  %v184 = vld [vmem:[%s1 + $0x80] sm:$0xf]
  %v185 = vld [vmem:[%s1 + $0x84] sm:$0xf]
  %v186 = vld [vmem:[%s1 + $0x88] sm:$0xf]
  %v187 = vld [vmem:[%s1 + $0x8c] sm:$0xf]
  %v316 = vunpack.c.l.b16 %v24
  %v317 = vunpack.c.h.b16 %v24
  %v318 = vunpack.c.l.b16 %v25
  %v319 = vunpack.c.l.b16 %v26
  %v320 = vunpack.c.h.b16 %v26
  %v321 = vunpack.c.l.b16 %v27
  %v322 = vunpack.c.l.b16 %v28
  %v323 = vunpack.c.h.b16 %v28
  %v324 = vunpack.c.l.b16 %v29
  %v325 = vunpack.c.l.b16 %v30
  %v326 = vunpack.c.h.b16 %v30
  %v327 = vunpack.c.l.b16 %v31
  %v328 = vunpack.c.l.b16 %v32
  %v329 = vunpack.c.h.b16 %v32
  %v330 = vunpack.c.l.b16 %v33
  %v331 = vunpack.c.l.b16 %v34
  %v332 = vunpack.c.h.b16 %v34
  %v333 = vunpack.c.l.b16 %v35
  %v334 = vunpack.c.l.b16 %v36
  %v335 = vunpack.c.h.b16 %v36
  %v336 = vunpack.c.l.b16 %v37
  %v337 = vunpack.c.l.b16 %v38
  %v338 = vunpack.c.h.b16 %v38
  %v339 = vunpack.c.l.b16 %v39
  %v340 = vunpack.c.l.b16 %v40
  %v341 = vunpack.c.h.b16 %v40
  %v342 = vunpack.c.l.b16 %v41
  %v343 = vunpack.c.l.b16 %v42
  %v344 = vunpack.c.h.b16 %v42
  %v345 = vunpack.c.l.b16 %v43
  %v346 = vunpack.c.l.b16 %v44
  %v347 = vunpack.c.h.b16 %v44
  %v348 = vunpack.c.l.b16 %v45
  %v349 = vunpack.c.l.b16 %v46
  %v350 = vunpack.c.h.b16 %v46
  %v351 = vunpack.c.l.b16 %v47
  %v352 = vunpack.c.l.b16 %v48
  %v353 = vunpack.c.h.b16 %v48
  %v354 = vunpack.c.l.b16 %v49
  %v355 = vunpack.c.l.b16 %v50
  %v356 = vunpack.c.h.b16 %v50
  %v357 = vunpack.c.l.b16 %v51
  %v358 = vunpack.c.l.b16 %v52
  %v359 = vunpack.c.h.b16 %v52
  %v360 = vunpack.c.l.b16 %v53
  %v361 = vunpack.c.l.b16 %v54
  %v362 = vunpack.c.h.b16 %v54
  %v363 = vunpack.c.l.b16 %v55
  %v364 = vunpack.c.l.b16 %v56
  %v365 = vunpack.c.h.b16 %v56
  %v366 = vunpack.c.l.b16 %v57
  %v367 = vunpack.c.l.b16 %v58
  %v368 = vunpack.c.h.b16 %v58
  %v369 = vunpack.c.l.b16 %v59
  %v370 = vunpack.c.l.b16 %v60
  %v371 = vunpack.c.h.b16 %v60
  %v372 = vunpack.c.l.b16 %v61
  %v373 = vunpack.c.l.b16 %v62
  %v374 = vunpack.c.h.b16 %v62
  %v375 = vunpack.c.l.b16 %v63
  %v376 = vunpack.c.l.b16 %v64
  %v377 = vunpack.c.h.b16 %v64
  %v378 = vunpack.c.l.b16 %v65
  %v379 = vunpack.c.l.b16 %v66
  %v380 = vunpack.c.h.b16 %v66
  %v381 = vunpack.c.l.b16 %v67
  %v382 = vunpack.c.l.b16 %v68
  %v383 = vunpack.c.h.b16 %v68
  %v384 = vunpack.c.l.b16 %v69
  %v385 = vunpack.c.l.b16 %v70
  %v386 = vunpack.c.h.b16 %v70
  %v387 = vunpack.c.l.b16 %v71
  %v388 = vunpack.c.l.b16 %v72
  %v389 = vunpack.c.h.b16 %v72
  %v390 = vunpack.c.l.b16 %v73
  %v391 = vunpack.c.l.b16 %v74
  %v392 = vunpack.c.h.b16 %v74
  %v393 = vunpack.c.l.b16 %v75
  %v394 = vunpack.c.l.b16 %v76
  %v395 = vunpack.c.h.b16 %v76
  %v396 = vunpack.c.l.b16 %v77
  %v397 = vunpack.c.l.b16 %v78
  %v398 = vunpack.c.h.b16 %v78
  %v399 = vunpack.c.l.b16 %v79
  %v400 = vunpack.c.l.b16 %v80
  %v401 = vunpack.c.h.b16 %v80
  %v402 = vunpack.c.l.b16 %v81
  %v403 = vunpack.c.l.b16 %v82
  %v404 = vunpack.c.h.b16 %v82
  %v405 = vunpack.c.l.b16 %v83
  %v406 = vunpack.c.l.b16 %v84
  %v407 = vunpack.c.h.b16 %v84
  %v408 = vunpack.c.l.b16 %v85
  %v409 = vunpack.c.l.b16 %v86
  %v410 = vunpack.c.h.b16 %v86
  %v411 = vunpack.c.l.b16 %v87
  %v412 = vunpack.c.l.b16 %v88
  %v413 = vunpack.c.h.b16 %v88
  %v414 = vunpack.c.l.b16 %v89
  %v415 = vunpack.c.l.b16 %v90
  %v416 = vunpack.c.h.b16 %v90
  %v417 = vunpack.c.l.b16 %v91
  %v418 = vunpack.c.l.b16 %v92
  %v419 = vunpack.c.h.b16 %v92
  %v420 = vunpack.c.l.b16 %v93
  %v421 = vunpack.c.l.b16 %v94
  %v422 = vunpack.c.h.b16 %v94
  %v423 = vunpack.c.l.b16 %v95
  %v424 = vunpack.c.l.b16 %v96
  %v425 = vunpack.c.h.b16 %v96
  %v426 = vunpack.c.l.b16 %v97
  %v427 = vunpack.c.l.b16 %v98
  %v428 = vunpack.c.h.b16 %v98
  %v429 = vunpack.c.l.b16 %v99
  %v430 = vunpack.c.l.b16 %v100
  %v431 = vunpack.c.h.b16 %v100
  %v432 = vunpack.c.l.b16 %v101
  %v433 = vunpack.c.l.b16 %v102
  %v434 = vunpack.c.h.b16 %v102
  %v435 = vunpack.c.l.b16 %v103
  %v436 = vunpack.c.l.b16 %v104
  %v437 = vunpack.c.h.b16 %v104
  %v438 = vunpack.c.l.b16 %v105
  %v439 = vunpack.c.l.b16 %v106
  %v440 = vunpack.c.h.b16 %v106
  %v441 = vunpack.c.l.b16 %v107
  %v442 = vunpack.c.l.b16 %v108
  %v443 = vunpack.c.h.b16 %v108
  %v444 = vunpack.c.l.b16 %v109
  %v445 = vunpack.c.l.b16 %v110
  %v446 = vunpack.c.h.b16 %v110
  %v447 = vunpack.c.l.b16 %v111
  %v448 = vunpack.c.l.b16 %v112
  %v449 = vunpack.c.h.b16 %v112
  %v450 = vunpack.c.l.b16 %v113
  %v451 = vunpack.c.l.b16 %v114
  %v452 = vunpack.c.h.b16 %v114
  %v453 = vunpack.c.l.b16 %v115
  %v454 = vunpack.c.l.b16 %v116
  %v455 = vunpack.c.h.b16 %v116
  %v456 = vunpack.c.l.b16 %v117
  %v457 = vunpack.c.l.b16 %v118
  %v458 = vunpack.c.h.b16 %v118
  %v459 = vunpack.c.l.b16 %v119
  %v460 = vunpack.c.l.b16 %v120
  %v461 = vunpack.c.h.b16 %v120
  %v462 = vunpack.c.l.b16 %v121
  %v463 = vunpack.c.l.b16 %v122
  %v464 = vunpack.c.h.b16 %v122
  %v465 = vunpack.c.l.b16 %v123
  %v466 = vunpack.c.l.b16 %v124
  %v467 = vunpack.c.h.b16 %v124
  %v468 = vunpack.c.l.b16 %v125
  %v469 = vunpack.c.l.b16 %v126
  %v470 = vunpack.c.h.b16 %v126
  %v471 = vunpack.c.l.b16 %v127
  %v472 = vunpack.c.l.b16 %v128
  %v473 = vunpack.c.h.b16 %v128
  %v474 = vunpack.c.l.b16 %v129
  %v475 = vunpack.c.l.b16 %v130
  %v476 = vunpack.c.h.b16 %v130
  %v477 = vunpack.c.l.b16 %v131
  %v478 = vunpack.c.l.b16 %v132
  %v479 = vunpack.c.h.b16 %v132
  %v480 = vunpack.c.l.b16 %v133
  %v481 = vunpack.c.l.b16 %v134
  %v482 = vunpack.c.h.b16 %v134
  %v483 = vunpack.c.l.b16 %v135
  %v484 = vunpack.c.l.b16 %v136
  %v485 = vunpack.c.h.b16 %v136
  %v486 = vunpack.c.l.b16 %v137
  %v487 = vunpack.c.l.b16 %v138
  %v488 = vunpack.c.h.b16 %v138
  %v489 = vunpack.c.l.b16 %v139
  %v490 = vunpack.c.l.b16 %v140
  %v491 = vunpack.c.h.b16 %v140
  %v492 = vunpack.c.l.b16 %v141
  %v493 = vunpack.c.l.b16 %v142
  %v494 = vunpack.c.h.b16 %v142
  %v495 = vunpack.c.l.b16 %v143
  %v496 = vunpack.c.l.b16 %v144
  %v497 = vunpack.c.h.b16 %v144
  %v498 = vunpack.c.l.b16 %v145
  %v499 = vunpack.c.l.b16 %v146
  %v500 = vunpack.c.h.b16 %v146
  %v501 = vunpack.c.l.b16 %v147
  %v502 = vunpack.c.l.b16 %v148
  %v503 = vunpack.c.h.b16 %v148
  %v504 = vunpack.c.l.b16 %v149
  %v505 = vunpack.c.l.b16 %v150
  %v506 = vunpack.c.h.b16 %v150
  %v507 = vunpack.c.l.b16 %v151
  %v508 = vpack.c.b16 %v319, %v316
  %v509 = vpack.c.b16 %v320, %v317
  %v510 = vpack.c.b16 %v321, %v318
  %v511 = vpack.c.b16 %v325, %v322
  %v512 = vpack.c.b16 %v326, %v323
  %v513 = vpack.c.b16 %v327, %v324
  %v514 = vpack.c.b16 %v331, %v328
  %v515 = vpack.c.b16 %v332, %v329
  %v516 = vpack.c.b16 %v333, %v330
  %v517 = vpack.c.b16 %v337, %v334
  %v518 = vpack.c.b16 %v338, %v335
  %v519 = vpack.c.b16 %v339, %v336
  %v520 = vpack.c.b16 %v343, %v340
  %v521 = vpack.c.b16 %v344, %v341
  %v522 = vpack.c.b16 %v345, %v342
  %v523 = vpack.c.b16 %v349, %v346
  %v524 = vpack.c.b16 %v350, %v347
  %v525 = vpack.c.b16 %v351, %v348
  %v526 = vpack.c.b16 %v355, %v352
  %v527 = vpack.c.b16 %v356, %v353
  %v528 = vpack.c.b16 %v357, %v354
  %v529 = vpack.c.b16 %v361, %v358
  %v530 = vpack.c.b16 %v362, %v359
  %v531 = vpack.c.b16 %v363, %v360
  %v532 = vpack.c.b16 %v367, %v364
  %v533 = vpack.c.b16 %v368, %v365
  %v534 = vpack.c.b16 %v369, %v366
  %v535 = vpack.c.b16 %v373, %v370
  %v536 = vpack.c.b16 %v374, %v371
  %v537 = vpack.c.b16 %v375, %v372
  %v538 = vpack.c.b16 %v379, %v376
  %v539 = vpack.c.b16 %v380, %v377
  %v540 = vpack.c.b16 %v381, %v378
  %v541 = vpack.c.b16 %v385, %v382
  %v542 = vpack.c.b16 %v386, %v383
  %v543 = vpack.c.b16 %v387, %v384
  %v544 = vpack.c.b16 %v391, %v388
  %v545 = vpack.c.b16 %v392, %v389
  %v546 = vpack.c.b16 %v393, %v390
  %v547 = vpack.c.b16 %v397, %v394
  %v548 = vpack.c.b16 %v398, %v395
  %v549 = vpack.c.b16 %v399, %v396
  %v550 = vpack.c.b16 %v403, %v400
  %v551 = vpack.c.b16 %v404, %v401
  %v552 = vpack.c.b16 %v405, %v402
  %v553 = vpack.c.b16 %v409, %v406
  %v554 = vpack.c.b16 %v410, %v407
  %v555 = vpack.c.b16 %v411, %v408
  %v556 = vpack.c.b16 %v415, %v412
  %v557 = vpack.c.b16 %v416, %v413
  %v558 = vpack.c.b16 %v417, %v414
  %v559 = vpack.c.b16 %v421, %v418
  %v560 = vpack.c.b16 %v422, %v419
  %v561 = vpack.c.b16 %v423, %v420
  %v562 = vpack.c.b16 %v427, %v424
  %v563 = vpack.c.b16 %v428, %v425
  %v564 = vpack.c.b16 %v429, %v426
  %v565 = vpack.c.b16 %v433, %v430
  %v566 = vpack.c.b16 %v434, %v431
  %v567 = vpack.c.b16 %v435, %v432
  %v568 = vpack.c.b16 %v439, %v436
  %v569 = vpack.c.b16 %v440, %v437
  %v570 = vpack.c.b16 %v441, %v438
  %v571 = vpack.c.b16 %v445, %v442
  %v572 = vpack.c.b16 %v446, %v443
  %v573 = vpack.c.b16 %v447, %v444
  %v574 = vpack.c.b16 %v451, %v448
  %v575 = vpack.c.b16 %v452, %v449
  %v576 = vpack.c.b16 %v453, %v450
  %v577 = vpack.c.b16 %v457, %v454
  %v578 = vpack.c.b16 %v458, %v455
  %v579 = vpack.c.b16 %v459, %v456
  %v580 = vpack.c.b16 %v463, %v460
  %v581 = vpack.c.b16 %v464, %v461
  %v582 = vpack.c.b16 %v465, %v462
  %v583 = vpack.c.b16 %v469, %v466
  %v584 = vpack.c.b16 %v470, %v467
  %v585 = vpack.c.b16 %v471, %v468
  %v586 = vpack.c.b16 %v475, %v472
  %v587 = vpack.c.b16 %v476, %v473
  %v588 = vpack.c.b16 %v477, %v474
  %v589 = vpack.c.b16 %v481, %v478
  %v590 = vpack.c.b16 %v482, %v479
  %v591 = vpack.c.b16 %v483, %v480
  %v592 = vpack.c.b16 %v487, %v484
  %v593 = vpack.c.b16 %v488, %v485
  %v594 = vpack.c.b16 %v489, %v486
  %v595 = vpack.c.b16 %v493, %v490
  %v596 = vpack.c.b16 %v494, %v491
  %v597 = vpack.c.b16 %v495, %v492
  %v598 = vpack.c.b16 %v499, %v496
  %v599 = vpack.c.b16 %v500, %v497
  %v600 = vpack.c.b16 %v501, %v498
  %v601 = vpack.c.b16 %v505, %v502
  %v602 = vpack.c.b16 %v506, %v503
  %v603 = vpack.c.b16 %v507, %v504
  %v704 = vunpack.c.l.b16 %v152
  %v705 = vunpack.c.l.b16 %v153
  %v706 = vunpack.c.l.b16 %v154
  %v707 = vunpack.c.l.b16 %v155
  %v708 = vunpack.c.l.b16 %v156
  %v709 = vunpack.c.l.b16 %v157
  %v710 = vunpack.c.l.b16 %v158
  %v711 = vunpack.c.l.b16 %v159
  %v712 = vunpack.c.l.b16 %v160
  %v713 = vunpack.c.l.b16 %v161
  %v714 = vunpack.c.l.b16 %v162
  %v715 = vunpack.c.l.b16 %v163
  %v716 = vunpack.c.l.b16 %v164
  %v717 = vunpack.c.l.b16 %v165
  %v718 = vunpack.c.l.b16 %v166
  %v719 = vunpack.c.l.b16 %v167
  %v720 = vunpack.c.l.b16 %v168
  %v721 = vunpack.c.l.b16 %v169
  %v722 = vunpack.c.l.b16 %v170
  %v723 = vunpack.c.l.b16 %v171
  %v724 = vunpack.c.l.b16 %v172
  %v725 = vunpack.c.l.b16 %v173
  %v726 = vunpack.c.l.b16 %v174
  %v727 = vunpack.c.l.b16 %v175
  %v728 = vunpack.c.l.b16 %v176
  %v729 = vunpack.c.l.b16 %v177
  %v730 = vunpack.c.l.b16 %v178
  %v731 = vunpack.c.l.b16 %v179
  %v732 = vunpack.c.l.b16 %v180
  %v733 = vunpack.c.l.b16 %v181
  %v734 = vunpack.c.l.b16 %v182
  %v735 = vunpack.c.l.b16 %v183
  %v736 = vunpack.c.l.b16 %v184
  %v737 = vunpack.c.l.b16 %v185
  %v738 = vunpack.c.l.b16 %v186
  %v739 = vunpack.c.l.b16 %v187
  %v740 = vpack.c.b16 %v705, %v704
  %v741 = vpack.c.b16 %v707, %v706
  %v742 = vpack.c.b16 %v709, %v708
  %v743 = vpack.c.b16 %v711, %v710
  %v744 = vpack.c.b16 %v713, %v712
  %v745 = vpack.c.b16 %v715, %v714
  %v746 = vpack.c.b16 %v717, %v716
  %v747 = vpack.c.b16 %v719, %v718
  %v748 = vpack.c.b16 %v721, %v720
  %v749 = vpack.c.b16 %v723, %v722
  %v750 = vpack.c.b16 %v725, %v724
  %v751 = vpack.c.b16 %v727, %v726
  %v752 = vpack.c.b16 %v729, %v728
  %v753 = vpack.c.b16 %v731, %v730
  %v754 = vpack.c.b16 %v733, %v732
  %v755 = vpack.c.b16 %v735, %v734
  %v756 = vpack.c.b16 %v737, %v736
  %v757 = vpack.c.b16 %v739, %v738
  %vm776 = vcmask 261120
  %v778 = vsel %vm776, %v510, 0
  %v781 = vsel %vm776, %v513, 0
  %v784 = vsel %vm776, %v516, 0
  %v787 = vsel %vm776, %v519, 0
  %v790 = vsel %vm776, %v522, 0
  %v793 = vsel %vm776, %v525, 0
  %v796 = vsel %vm776, %v528, 0
  %v799 = vsel %vm776, %v531, 0
  %v802 = vsel %vm776, %v534, 0
  %v805 = vsel %vm776, %v537, 0
  %v808 = vsel %vm776, %v540, 0
  %v811 = vsel %vm776, %v543, 0
  %v814 = vsel %vm776, %v546, 0
  %v817 = vsel %vm776, %v549, 0
  %v820 = vsel %vm776, %v552, 0
  %v823 = vsel %vm776, %v555, 0
  %v826 = vsel %vm776, %v558, 0
  %v829 = vsel %vm776, %v561, 0
  %v832 = vsel %vm776, %v564, 0
  %v835 = vsel %vm776, %v567, 0
  %v838 = vsel %vm776, %v570, 0
  %v841 = vsel %vm776, %v573, 0
  %v844 = vsel %vm776, %v576, 0
  %v847 = vsel %vm776, %v579, 0
  %v850 = vsel %vm776, %v582, 0
  %v853 = vsel %vm776, %v585, 0
  %v856 = vsel %vm776, %v588, 0
  %v859 = vsel %vm776, %v591, 0
  %v862 = vsel %vm776, %v594, 0
  %v865 = vsel %vm776, %v597, 0
  %v868 = vsel %vm776, %v600, 0
  %v871 = vsel %vm776, %v603, 0
  %873 = vmatprep.subr.bf16.mxu0 0
  %874 = vmatpush1.bf16.msra.mxu0 %v747
  %875 = vmatprep.subr.bf16.mxu0 0
  %876 = vmatpush1.bf16.msra.mxu0 %v746
  %877 = vmatprep.subr.bf16.mxu0 0
  %878 = vmatpush1.bf16.msra.mxu0 %v745
  %879 = vmatprep.subr.bf16.mxu0 0
  %880 = vmatpush1.bf16.msra.mxu0 %v744
  %881 = vmatprep.subr.bf16.mxu0 0
  %882 = vmatpush1.bf16.msra.mxu0 %v743
  %883 = vmatprep.subr.bf16.mxu0 0
  %884 = vmatpush1.bf16.msra.mxu0 %v742
  %885 = vmatprep.subr.bf16.mxu0 0
  %886 = vmatpush1.bf16.msra.mxu0 %v741
  %887 = vmatprep.subr.bf16.mxu0 0
  %888 = vmatpush1.bf16.msra.mxu0 %v740
  %889 = vmatprep.subr.bf16.mxu0 0
  %890 = vmatpush2.bf16.msra.mxu0 %v755
  %891 = vmatprep.subr.bf16.mxu0 0
  %892 = vmatpush2.bf16.msra.mxu0 %v754
  %893 = vmatprep.subr.bf16.mxu0 0
  %894 = vmatpush2.bf16.msra.mxu0 %v753
  %895 = vmatprep.subr.bf16.mxu0 0
  %896 = vmatpush2.bf16.msra.mxu0 %v752
  %897 = vmatprep.subr.bf16.mxu0 0
  %898 = vmatpush2.bf16.msra.mxu0 %v751
  %899 = vmatprep.subr.bf16.mxu0 0
  %900 = vmatpush2.bf16.msra.mxu0 %v750
  %901 = vmatprep.subr.bf16.mxu0 0
  %902 = vmatpush2.bf16.msra.mxu0 %v749
  %903 = vmatprep.subr.bf16.mxu0 0
  %904 = vmatpush2.bf16.msra.mxu0 %v748
  %905 = vmatprep.mubr.bf16.mxu0 %v509
  %906 = vmatmul.mubr.bf16.gmra.mxu0 %v508
  %v907 = vpop.f32.mrf.mxu0
  %v908 = vadd.f32 0.0, %v907
  %v909 = vpop.f32.mrf.mxu0
  %v910 = vpop.f32.mrf.mxu0
  %v911 = vadd.f32 0.0, %v910
  %v912 = vpop.f32.mrf.mxu0
  %913 = vmatprep.mubr.bf16.mxu0 %v512
  %914 = vmatmul.mubr.bf16.gmra.mxu0 %v511
  %v915 = vpop.f32.mrf.mxu0
  %v916 = vadd.f32 0.0, %v915
  %v917 = vpop.f32.mrf.mxu0
  %v918 = vpop.f32.mrf.mxu0
  %v919 = vadd.f32 0.0, %v918
  %v920 = vpop.f32.mrf.mxu0
  %921 = vmatprep.mubr.bf16.mxu0 %v515
  %922 = vmatmul.mubr.bf16.gmra.mxu0 %v514
  %v923 = vpop.f32.mrf.mxu0
  %v924 = vadd.f32 0.0, %v923
  %v925 = vpop.f32.mrf.mxu0
  %v926 = vpop.f32.mrf.mxu0
  %v927 = vadd.f32 0.0, %v926
  %v928 = vpop.f32.mrf.mxu0
  %929 = vmatprep.mubr.bf16.mxu0 %v518
  %930 = vmatmul.mubr.bf16.gmra.mxu0 %v517
  %v931 = vpop.f32.mrf.mxu0
  %v932 = vadd.f32 0.0, %v931
  %v933 = vpop.f32.mrf.mxu0
  %v934 = vpop.f32.mrf.mxu0
  %v935 = vadd.f32 0.0, %v934
  %v936 = vpop.f32.mrf.mxu0
  %937 = vmatprep.mubr.bf16.mxu0 %v521
  %938 = vmatmul.mubr.bf16.gmra.mxu0 %v520
  %v939 = vpop.f32.mrf.mxu0
  %v940 = vadd.f32 0.0, %v939
  %v941 = vpop.f32.mrf.mxu0
  %v942 = vpop.f32.mrf.mxu0
  %v943 = vadd.f32 0.0, %v942
  %v944 = vpop.f32.mrf.mxu0
  %945 = vmatprep.mubr.bf16.mxu0 %v524
  %946 = vmatmul.mubr.bf16.gmra.mxu0 %v523
  %v947 = vpop.f32.mrf.mxu0
  %v948 = vadd.f32 0.0, %v947
  %v949 = vpop.f32.mrf.mxu0
  %v950 = vpop.f32.mrf.mxu0
  %v951 = vadd.f32 0.0, %v950
  %v952 = vpop.f32.mrf.mxu0
  %953 = vmatprep.mubr.bf16.mxu0 %v527
  %954 = vmatmul.mubr.bf16.gmra.mxu0 %v526
  %v955 = vpop.f32.mrf.mxu0
  %v956 = vadd.f32 0.0, %v955
  %v957 = vpop.f32.mrf.mxu0
  %v958 = vpop.f32.mrf.mxu0
  %v959 = vadd.f32 0.0, %v958
  %v960 = vpop.f32.mrf.mxu0
  %961 = vmatprep.mubr.bf16.mxu0 %v530
  %962 = vmatmul.mubr.bf16.gmra.mxu0 %v529
  %v963 = vpop.f32.mrf.mxu0
  %v964 = vadd.f32 0.0, %v963
  %v965 = vpop.f32.mrf.mxu0
  %v966 = vpop.f32.mrf.mxu0
  %v967 = vadd.f32 0.0, %v966
  %v968 = vpop.f32.mrf.mxu0
  %969 = vmatprep.mubr.bf16.mxu0 %v533
  %970 = vmatmul.mubr.bf16.gmra.mxu0 %v532
  %v971 = vpop.f32.mrf.mxu0
  %v972 = vadd.f32 0.0, %v971
  %v973 = vpop.f32.mrf.mxu0
  %v974 = vpop.f32.mrf.mxu0
  %v975 = vadd.f32 0.0, %v974
  %v976 = vpop.f32.mrf.mxu0
  %977 = vmatprep.mubr.bf16.mxu0 %v536
  %978 = vmatmul.mubr.bf16.gmra.mxu0 %v535
  %v979 = vpop.f32.mrf.mxu0
  %v980 = vadd.f32 0.0, %v979
  %v981 = vpop.f32.mrf.mxu0
  %v982 = vpop.f32.mrf.mxu0
  %v983 = vadd.f32 0.0, %v982
  %v984 = vpop.f32.mrf.mxu0
  %985 = vmatprep.mubr.bf16.mxu0 %v539
  %986 = vmatmul.mubr.bf16.gmra.mxu0 %v538
  %v987 = vpop.f32.mrf.mxu0
  %v988 = vadd.f32 0.0, %v987
  %v989 = vpop.f32.mrf.mxu0
  %v990 = vpop.f32.mrf.mxu0
  %v991 = vadd.f32 0.0, %v990
  %v992 = vpop.f32.mrf.mxu0
  %993 = vmatprep.mubr.bf16.mxu0 %v542
  %994 = vmatmul.mubr.bf16.gmra.mxu0 %v541
  %v995 = vpop.f32.mrf.mxu0
  %v996 = vadd.f32 0.0, %v995
  %v997 = vpop.f32.mrf.mxu0
  %v998 = vpop.f32.mrf.mxu0
  %v999 = vadd.f32 0.0, %v998
  %v1000 = vpop.f32.mrf.mxu0
  %1001 = vmatprep.mubr.bf16.mxu0 %v545
  %1002 = vmatmul.mubr.bf16.gmra.mxu0 %v544
  %v1003 = vpop.f32.mrf.mxu0
  %v1004 = vadd.f32 0.0, %v1003
  %v1005 = vpop.f32.mrf.mxu0
  %v1006 = vpop.f32.mrf.mxu0
  %v1007 = vadd.f32 0.0, %v1006
  %v1008 = vpop.f32.mrf.mxu0
  %1009 = vmatprep.mubr.bf16.mxu0 %v548
  %1010 = vmatmul.mubr.bf16.gmra.mxu0 %v547
  %v1011 = vpop.f32.mrf.mxu0
  %v1012 = vadd.f32 0.0, %v1011
  %v1013 = vpop.f32.mrf.mxu0
  %v1014 = vpop.f32.mrf.mxu0
  %v1015 = vadd.f32 0.0, %v1014
  %v1016 = vpop.f32.mrf.mxu0
  %1017 = vmatprep.mubr.bf16.mxu0 %v551
  %1018 = vmatmul.mubr.bf16.gmra.mxu0 %v550
  %v1019 = vpop.f32.mrf.mxu0
  %v1020 = vadd.f32 0.0, %v1019
  %v1021 = vpop.f32.mrf.mxu0
  %v1022 = vpop.f32.mrf.mxu0
  %v1023 = vadd.f32 0.0, %v1022
  %v1024 = vpop.f32.mrf.mxu0
  %1025 = vmatprep.mubr.bf16.mxu0 %v554
  %1026 = vmatmul.mubr.bf16.gmra.mxu0 %v553
  %v1027 = vpop.f32.mrf.mxu0
  %v1028 = vadd.f32 0.0, %v1027
  %v1029 = vpop.f32.mrf.mxu0
  %v1030 = vpop.f32.mrf.mxu0
  %v1031 = vadd.f32 0.0, %v1030
  %v1032 = vpop.f32.mrf.mxu0
  %1033 = vmatprep.mubr.bf16.mxu0 %v557
  %1034 = vmatmul.mubr.bf16.gmra.mxu0 %v556
  %v1035 = vpop.f32.mrf.mxu0
  %v1036 = vadd.f32 0.0, %v1035
  %v1037 = vpop.f32.mrf.mxu0
  %v1038 = vpop.f32.mrf.mxu0
  %v1039 = vadd.f32 0.0, %v1038
  %v1040 = vpop.f32.mrf.mxu0
  %1041 = vmatprep.mubr.bf16.mxu0 %v560
  %1042 = vmatmul.mubr.bf16.gmra.mxu0 %v559
  %v1043 = vpop.f32.mrf.mxu0
  %v1044 = vadd.f32 0.0, %v1043
  %v1045 = vpop.f32.mrf.mxu0
  %v1046 = vpop.f32.mrf.mxu0
  %v1047 = vadd.f32 0.0, %v1046
  %v1048 = vpop.f32.mrf.mxu0
  %1049 = vmatprep.mubr.bf16.mxu0 %v563
  %1050 = vmatmul.mubr.bf16.gmra.mxu0 %v562
  %v1051 = vpop.f32.mrf.mxu0
  %v1052 = vadd.f32 0.0, %v1051
  %v1053 = vpop.f32.mrf.mxu0
  %v1054 = vpop.f32.mrf.mxu0
  %v1055 = vadd.f32 0.0, %v1054
  %v1056 = vpop.f32.mrf.mxu0
  %1057 = vmatprep.mubr.bf16.mxu0 %v566
  %1058 = vmatmul.mubr.bf16.gmra.mxu0 %v565
  %v1059 = vpop.f32.mrf.mxu0
  %v1060 = vadd.f32 0.0, %v1059
  %v1061 = vpop.f32.mrf.mxu0
  %v1062 = vpop.f32.mrf.mxu0
  %v1063 = vadd.f32 0.0, %v1062
  %v1064 = vpop.f32.mrf.mxu0
  %1065 = vmatprep.mubr.bf16.mxu0 %v569
  %1066 = vmatmul.mubr.bf16.gmra.mxu0 %v568
  %v1067 = vpop.f32.mrf.mxu0
  %v1068 = vadd.f32 0.0, %v1067
  %v1069 = vpop.f32.mrf.mxu0
  %v1070 = vpop.f32.mrf.mxu0
  %v1071 = vadd.f32 0.0, %v1070
  %v1072 = vpop.f32.mrf.mxu0
  %1073 = vmatprep.mubr.bf16.mxu0 %v572
  %1074 = vmatmul.mubr.bf16.gmra.mxu0 %v571
  %v1075 = vpop.f32.mrf.mxu0
  %v1076 = vadd.f32 0.0, %v1075
  %v1077 = vpop.f32.mrf.mxu0
  %v1078 = vpop.f32.mrf.mxu0
  %v1079 = vadd.f32 0.0, %v1078
  %v1080 = vpop.f32.mrf.mxu0
  %1081 = vmatprep.mubr.bf16.mxu0 %v575
  %1082 = vmatmul.mubr.bf16.gmra.mxu0 %v574
  %v1083 = vpop.f32.mrf.mxu0
  %v1084 = vadd.f32 0.0, %v1083
  %v1085 = vpop.f32.mrf.mxu0
  %v1086 = vpop.f32.mrf.mxu0
  %v1087 = vadd.f32 0.0, %v1086
  %v1088 = vpop.f32.mrf.mxu0
  %1089 = vmatprep.mubr.bf16.mxu0 %v578
  %1090 = vmatmul.mubr.bf16.gmra.mxu0 %v577
  %v1091 = vpop.f32.mrf.mxu0
  %v1092 = vadd.f32 0.0, %v1091
  %v1093 = vpop.f32.mrf.mxu0
  %v1094 = vpop.f32.mrf.mxu0
  %v1095 = vadd.f32 0.0, %v1094
  %v1096 = vpop.f32.mrf.mxu0
  %1097 = vmatprep.mubr.bf16.mxu0 %v581
  %1098 = vmatmul.mubr.bf16.gmra.mxu0 %v580
  %v1099 = vpop.f32.mrf.mxu0
  %v1100 = vadd.f32 0.0, %v1099
  %v1101 = vpop.f32.mrf.mxu0
  %v1102 = vpop.f32.mrf.mxu0
  %v1103 = vadd.f32 0.0, %v1102
  %v1104 = vpop.f32.mrf.mxu0
  %1105 = vmatprep.mubr.bf16.mxu0 %v584
  %1106 = vmatmul.mubr.bf16.gmra.mxu0 %v583
  %v1107 = vpop.f32.mrf.mxu0
  %v1108 = vadd.f32 0.0, %v1107
  %v1109 = vpop.f32.mrf.mxu0
  %v1110 = vpop.f32.mrf.mxu0
  %v1111 = vadd.f32 0.0, %v1110
  %v1112 = vpop.f32.mrf.mxu0
  %1113 = vmatprep.mubr.bf16.mxu0 %v587
  %1114 = vmatmul.mubr.bf16.gmra.mxu0 %v586
  %v1115 = vpop.f32.mrf.mxu0
  %v1116 = vadd.f32 0.0, %v1115
  %v1117 = vpop.f32.mrf.mxu0
  %v1118 = vpop.f32.mrf.mxu0
  %v1119 = vadd.f32 0.0, %v1118
  %v1120 = vpop.f32.mrf.mxu0
  %1121 = vmatprep.mubr.bf16.mxu0 %v590
  %1122 = vmatmul.mubr.bf16.gmra.mxu0 %v589
  %v1123 = vpop.f32.mrf.mxu0
  %v1124 = vadd.f32 0.0, %v1123
  %v1125 = vpop.f32.mrf.mxu0
  %v1126 = vpop.f32.mrf.mxu0
  %v1127 = vadd.f32 0.0, %v1126
  %v1128 = vpop.f32.mrf.mxu0
  %1129 = vmatprep.mubr.bf16.mxu0 %v593
  %1130 = vmatmul.mubr.bf16.gmra.mxu0 %v592
  %v1131 = vpop.f32.mrf.mxu0
  %v1132 = vadd.f32 0.0, %v1131
  %v1133 = vpop.f32.mrf.mxu0
  %v1134 = vpop.f32.mrf.mxu0
  %v1135 = vadd.f32 0.0, %v1134
  %v1136 = vpop.f32.mrf.mxu0
  %1137 = vmatprep.mubr.bf16.mxu0 %v596
  %1138 = vmatmul.mubr.bf16.gmra.mxu0 %v595
  %v1139 = vpop.f32.mrf.mxu0
  %v1140 = vadd.f32 0.0, %v1139
  %v1141 = vpop.f32.mrf.mxu0
  %v1142 = vpop.f32.mrf.mxu0
  %v1143 = vadd.f32 0.0, %v1142
  %v1144 = vpop.f32.mrf.mxu0
  %1145 = vmatprep.mubr.bf16.mxu0 %v599
  %1146 = vmatmul.mubr.bf16.gmra.mxu0 %v598
  %v1147 = vpop.f32.mrf.mxu0
  %v1148 = vadd.f32 0.0, %v1147
  %v1149 = vpop.f32.mrf.mxu0
  %v1150 = vpop.f32.mrf.mxu0
  %v1151 = vadd.f32 0.0, %v1150
  %v1152 = vpop.f32.mrf.mxu0
  %1153 = vmatprep.mubr.bf16.mxu0 %v602
  %1154 = vmatmul.mubr.bf16.gmra.mxu0 %v601
  %v1155 = vpop.f32.mrf.mxu0
  %v1156 = vadd.f32 0.0, %v1155
  %v1157 = vpop.f32.mrf.mxu0
  %v1158 = vpop.f32.mrf.mxu0
  %v1159 = vadd.f32 0.0, %v1158
  %v1160 = vpop.f32.mrf.mxu0
  %1161 = vdwg.mxu0
  %1162 = vmatprep.subr.bf16.mxu0 0
  %1163 = vmatpush1.bf16.msra.mxu0 0
  %1164 = vmatprep.subr.bf16.mxu0 0
  %1165 = vmatpush1.bf16.msra.mxu0 0
  %1166 = vmatprep.subr.bf16.mxu0 0
  %1167 = vmatpush1.bf16.msra.mxu0 0
  %1168 = vmatprep.subr.bf16.mxu0 0
  %1169 = vmatpush1.bf16.msra.mxu0 0
  %1170 = vmatprep.subr.bf16.mxu0 0
  %1171 = vmatpush1.bf16.msra.mxu0 0
  %1172 = vmatprep.subr.bf16.mxu0 0
  %1173 = vmatpush1.bf16.msra.mxu0 0
  %1174 = vmatprep.subr.bf16.mxu0 0
  %1175 = vmatpush1.bf16.msra.mxu0 %v757
  %1176 = vmatprep.subr.bf16.mxu0 0
  %1177 = vmatpush1.bf16.msra.mxu0 %v756
  %1178 = vmatprep.subr.bf16.mxu0 0
  %1179 = vmatpush2.bf16.msra.mxu0 0
  %1180 = vmatprep.subr.bf16.mxu0 0
  %1181 = vmatpush2.bf16.msra.mxu0 0
  %1182 = vmatprep.subr.bf16.mxu0 0
  %1183 = vmatpush2.bf16.msra.mxu0 0
  %1184 = vmatprep.subr.bf16.mxu0 0
  %1185 = vmatpush2.bf16.msra.mxu0 0
  %1186 = vmatprep.subr.bf16.mxu0 0
  %1187 = vmatpush2.bf16.msra.mxu0 0
  %1188 = vmatprep.subr.bf16.mxu0 0
  %1189 = vmatpush2.bf16.msra.mxu0 0
  %1190 = vmatprep.subr.bf16.mxu0 0
  %1191 = vmatpush2.bf16.msra.mxu0 0
  %1192 = vmatprep.subr.bf16.mxu0 0
  %1193 = vmatpush2.bf16.msra.mxu0 0
  %1194 = vmatprep.mubr.bf16.mxu0 0
  %1195 = vmatmul.mubr.bf16.gmra.mxu0 %v778
  %v1196 = vpop.f32.mrf.mxu0
  %v1197 = vadd.f32 %v908, %v1196
  %v1198 = vpop.f32.mrf.mxu0
  %v1199 = vpop.f32.mrf.mxu0
  %v1200 = vadd.f32 %v911, %v1199
  %v1201 = vpop.f32.mrf.mxu0
  %1202 = vmatprep.mubr.bf16.mxu0 0
  %1203 = vmatmul.mubr.bf16.gmra.mxu0 %v781
  %v1204 = vpop.f32.mrf.mxu0
  %v1205 = vadd.f32 %v916, %v1204
  %v1206 = vpop.f32.mrf.mxu0
  %v1207 = vpop.f32.mrf.mxu0
  %v1208 = vadd.f32 %v919, %v1207
  %v1209 = vpop.f32.mrf.mxu0
  %1210 = vmatprep.mubr.bf16.mxu0 0
  %1211 = vmatmul.mubr.bf16.gmra.mxu0 %v784
  %v1212 = vpop.f32.mrf.mxu0
  %v1213 = vadd.f32 %v924, %v1212
  %v1214 = vpop.f32.mrf.mxu0
  %v1215 = vpop.f32.mrf.mxu0
  %v1216 = vadd.f32 %v927, %v1215
  %v1217 = vpop.f32.mrf.mxu0
  %1218 = vmatprep.mubr.bf16.mxu0 0
  %1219 = vmatmul.mubr.bf16.gmra.mxu0 %v787
  %v1220 = vpop.f32.mrf.mxu0
  %v1221 = vadd.f32 %v932, %v1220
  %v1222 = vpop.f32.mrf.mxu0
  %v1223 = vpop.f32.mrf.mxu0
  %v1224 = vadd.f32 %v935, %v1223
  %v1225 = vpop.f32.mrf.mxu0
  %1226 = vmatprep.mubr.bf16.mxu0 0
  %1227 = vmatmul.mubr.bf16.gmra.mxu0 %v790
  %v1228 = vpop.f32.mrf.mxu0
  %v1229 = vadd.f32 %v940, %v1228
  %v1230 = vpop.f32.mrf.mxu0
  %v1231 = vpop.f32.mrf.mxu0
  %v1232 = vadd.f32 %v943, %v1231
  %v1233 = vpop.f32.mrf.mxu0
  %1234 = vmatprep.mubr.bf16.mxu0 0
  %1235 = vmatmul.mubr.bf16.gmra.mxu0 %v793
  %v1236 = vpop.f32.mrf.mxu0
  %v1237 = vadd.f32 %v948, %v1236
  %v1238 = vpop.f32.mrf.mxu0
  %v1239 = vpop.f32.mrf.mxu0
  %v1240 = vadd.f32 %v951, %v1239
  %v1241 = vpop.f32.mrf.mxu0
  %1242 = vmatprep.mubr.bf16.mxu0 0
  %1243 = vmatmul.mubr.bf16.gmra.mxu0 %v796
  %v1244 = vpop.f32.mrf.mxu0
  %v1245 = vadd.f32 %v956, %v1244
  %v1246 = vpop.f32.mrf.mxu0
  %v1247 = vpop.f32.mrf.mxu0
  %v1248 = vadd.f32 %v959, %v1247
  %v1249 = vpop.f32.mrf.mxu0
  %1250 = vmatprep.mubr.bf16.mxu0 0
  %1251 = vmatmul.mubr.bf16.gmra.mxu0 %v799
  %v1252 = vpop.f32.mrf.mxu0
  %v1253 = vadd.f32 %v964, %v1252
  %v1254 = vpop.f32.mrf.mxu0
  %v1255 = vpop.f32.mrf.mxu0
  %v1256 = vadd.f32 %v967, %v1255
  %v1257 = vpop.f32.mrf.mxu0
  %1258 = vmatprep.mubr.bf16.mxu0 0
  %1259 = vmatmul.mubr.bf16.gmra.mxu0 %v802
  %v1260 = vpop.f32.mrf.mxu0
  %v1261 = vadd.f32 %v972, %v1260
  %v1262 = vpop.f32.mrf.mxu0
  %v1263 = vpop.f32.mrf.mxu0
  %v1264 = vadd.f32 %v975, %v1263
  %v1265 = vpop.f32.mrf.mxu0
  %1266 = vmatprep.mubr.bf16.mxu0 0
  %1267 = vmatmul.mubr.bf16.gmra.mxu0 %v805
  %v1268 = vpop.f32.mrf.mxu0
  %v1269 = vadd.f32 %v980, %v1268
  %v1270 = vpop.f32.mrf.mxu0
  %v1271 = vpop.f32.mrf.mxu0
  %v1272 = vadd.f32 %v983, %v1271
  %v1273 = vpop.f32.mrf.mxu0
  %1274 = vmatprep.mubr.bf16.mxu0 0
  %1275 = vmatmul.mubr.bf16.gmra.mxu0 %v808
  %v1276 = vpop.f32.mrf.mxu0
  %v1277 = vadd.f32 %v988, %v1276
  %v1278 = vpop.f32.mrf.mxu0
  %v1279 = vpop.f32.mrf.mxu0
  %v1280 = vadd.f32 %v991, %v1279
  %v1281 = vpop.f32.mrf.mxu0
  %1282 = vmatprep.mubr.bf16.mxu0 0
  %1283 = vmatmul.mubr.bf16.gmra.mxu0 %v811
  %v1284 = vpop.f32.mrf.mxu0
  %v1285 = vadd.f32 %v996, %v1284
  %v1286 = vpop.f32.mrf.mxu0
  %v1287 = vpop.f32.mrf.mxu0
  %v1288 = vadd.f32 %v999, %v1287
  %v1289 = vpop.f32.mrf.mxu0
  %1290 = vmatprep.mubr.bf16.mxu0 0
  %1291 = vmatmul.mubr.bf16.gmra.mxu0 %v814
  %v1292 = vpop.f32.mrf.mxu0
  %v1293 = vadd.f32 %v1004, %v1292
  %v1294 = vpop.f32.mrf.mxu0
  %v1295 = vpop.f32.mrf.mxu0
  %v1296 = vadd.f32 %v1007, %v1295
  %v1297 = vpop.f32.mrf.mxu0
  %1298 = vmatprep.mubr.bf16.mxu0 0
  %1299 = vmatmul.mubr.bf16.gmra.mxu0 %v817
  %v1300 = vpop.f32.mrf.mxu0
  %v1301 = vadd.f32 %v1012, %v1300
  %v1302 = vpop.f32.mrf.mxu0
  %v1303 = vpop.f32.mrf.mxu0
  %v1304 = vadd.f32 %v1015, %v1303
  %v1305 = vpop.f32.mrf.mxu0
  %1306 = vmatprep.mubr.bf16.mxu0 0
  %1307 = vmatmul.mubr.bf16.gmra.mxu0 %v820
  %v1308 = vpop.f32.mrf.mxu0
  %v1309 = vadd.f32 %v1020, %v1308
  %v1310 = vpop.f32.mrf.mxu0
  %v1311 = vpop.f32.mrf.mxu0
  %v1312 = vadd.f32 %v1023, %v1311
  %v1313 = vpop.f32.mrf.mxu0
  %1314 = vmatprep.mubr.bf16.mxu0 0
  %1315 = vmatmul.mubr.bf16.gmra.mxu0 %v823
  %v1316 = vpop.f32.mrf.mxu0
  %v1317 = vadd.f32 %v1028, %v1316
  %v1318 = vpop.f32.mrf.mxu0
  %v1319 = vpop.f32.mrf.mxu0
  %v1320 = vadd.f32 %v1031, %v1319
  %v1321 = vpop.f32.mrf.mxu0
  %1322 = vmatprep.mubr.bf16.mxu0 0
  %1323 = vmatmul.mubr.bf16.gmra.mxu0 %v826
  %v1324 = vpop.f32.mrf.mxu0
  %v1325 = vadd.f32 %v1036, %v1324
  %v1326 = vpop.f32.mrf.mxu0
  %v1327 = vpop.f32.mrf.mxu0
  %v1328 = vadd.f32 %v1039, %v1327
  %v1329 = vpop.f32.mrf.mxu0
  %1330 = vmatprep.mubr.bf16.mxu0 0
  %1331 = vmatmul.mubr.bf16.gmra.mxu0 %v829
  %v1332 = vpop.f32.mrf.mxu0
  %v1333 = vadd.f32 %v1044, %v1332
  %v1334 = vpop.f32.mrf.mxu0
  %v1335 = vpop.f32.mrf.mxu0
  %v1336 = vadd.f32 %v1047, %v1335
  %v1337 = vpop.f32.mrf.mxu0
  %1338 = vmatprep.mubr.bf16.mxu0 0
  %1339 = vmatmul.mubr.bf16.gmra.mxu0 %v832
  %v1340 = vpop.f32.mrf.mxu0
  %v1341 = vadd.f32 %v1052, %v1340
  %v1342 = vpop.f32.mrf.mxu0
  %v1343 = vpop.f32.mrf.mxu0
  %v1344 = vadd.f32 %v1055, %v1343
  %v1345 = vpop.f32.mrf.mxu0
  %1346 = vmatprep.mubr.bf16.mxu0 0
  %1347 = vmatmul.mubr.bf16.gmra.mxu0 %v835
  %v1348 = vpop.f32.mrf.mxu0
  %v1349 = vadd.f32 %v1060, %v1348
  %v1350 = vpop.f32.mrf.mxu0
  %v1351 = vpop.f32.mrf.mxu0
  %v1352 = vadd.f32 %v1063, %v1351
  %v1353 = vpop.f32.mrf.mxu0
  %1354 = vmatprep.mubr.bf16.mxu0 0
  %1355 = vmatmul.mubr.bf16.gmra.mxu0 %v838
  %v1356 = vpop.f32.mrf.mxu0
  %v1357 = vadd.f32 %v1068, %v1356
  %v1358 = vpop.f32.mrf.mxu0
  %v1359 = vpop.f32.mrf.mxu0
  %v1360 = vadd.f32 %v1071, %v1359
  %v1361 = vpop.f32.mrf.mxu0
  %1362 = vmatprep.mubr.bf16.mxu0 0
  %1363 = vmatmul.mubr.bf16.gmra.mxu0 %v841
  %v1364 = vpop.f32.mrf.mxu0
  %v1365 = vadd.f32 %v1076, %v1364
  %v1366 = vpop.f32.mrf.mxu0
  %v1367 = vpop.f32.mrf.mxu0
  %v1368 = vadd.f32 %v1079, %v1367
  %v1369 = vpop.f32.mrf.mxu0
  %1370 = vmatprep.mubr.bf16.mxu0 0
  %1371 = vmatmul.mubr.bf16.gmra.mxu0 %v844
  %v1372 = vpop.f32.mrf.mxu0
  %v1373 = vadd.f32 %v1084, %v1372
  %v1374 = vpop.f32.mrf.mxu0
  %v1375 = vpop.f32.mrf.mxu0
  %v1376 = vadd.f32 %v1087, %v1375
  %v1377 = vpop.f32.mrf.mxu0
  %1378 = vmatprep.mubr.bf16.mxu0 0
  %1379 = vmatmul.mubr.bf16.gmra.mxu0 %v847
  %v1380 = vpop.f32.mrf.mxu0
  %v1381 = vadd.f32 %v1092, %v1380
  %v1382 = vpop.f32.mrf.mxu0
  %v1383 = vpop.f32.mrf.mxu0
  %v1384 = vadd.f32 %v1095, %v1383
  %v1385 = vpop.f32.mrf.mxu0
  %1386 = vmatprep.mubr.bf16.mxu0 0
  %1387 = vmatmul.mubr.bf16.gmra.mxu0 %v850
  %v1388 = vpop.f32.mrf.mxu0
  %v1389 = vadd.f32 %v1100, %v1388
  %v1390 = vpop.f32.mrf.mxu0
  %v1391 = vpop.f32.mrf.mxu0
  %v1392 = vadd.f32 %v1103, %v1391
  %v1393 = vpop.f32.mrf.mxu0
  %1394 = vmatprep.mubr.bf16.mxu0 0
  %1395 = vmatmul.mubr.bf16.gmra.mxu0 %v853
  %v1396 = vpop.f32.mrf.mxu0
  %v1397 = vadd.f32 %v1108, %v1396
  %v1398 = vpop.f32.mrf.mxu0
  %v1399 = vpop.f32.mrf.mxu0
  %v1400 = vadd.f32 %v1111, %v1399
  %v1401 = vpop.f32.mrf.mxu0
  %1402 = vmatprep.mubr.bf16.mxu0 0
  %1403 = vmatmul.mubr.bf16.gmra.mxu0 %v856
  %v1404 = vpop.f32.mrf.mxu0
  %v1405 = vadd.f32 %v1116, %v1404
  %v1406 = vpop.f32.mrf.mxu0
  %v1407 = vpop.f32.mrf.mxu0
  %v1408 = vadd.f32 %v1119, %v1407
  %v1409 = vpop.f32.mrf.mxu0
  %1410 = vmatprep.mubr.bf16.mxu0 0
  %1411 = vmatmul.mubr.bf16.gmra.mxu0 %v859
  %v1412 = vpop.f32.mrf.mxu0
  %v1413 = vadd.f32 %v1124, %v1412
  %v1414 = vpop.f32.mrf.mxu0
  %v1415 = vpop.f32.mrf.mxu0
  %v1416 = vadd.f32 %v1127, %v1415
  %v1417 = vpop.f32.mrf.mxu0
  %1418 = vmatprep.mubr.bf16.mxu0 0
  %1419 = vmatmul.mubr.bf16.gmra.mxu0 %v862
  %v1420 = vpop.f32.mrf.mxu0
  %v1421 = vadd.f32 %v1132, %v1420
  %v1422 = vpop.f32.mrf.mxu0
  %v1423 = vpop.f32.mrf.mxu0
  %v1424 = vadd.f32 %v1135, %v1423
  %v1425 = vpop.f32.mrf.mxu0
  %1426 = vmatprep.mubr.bf16.mxu0 0
  %1427 = vmatmul.mubr.bf16.gmra.mxu0 %v865
  %v1428 = vpop.f32.mrf.mxu0
  %v1429 = vadd.f32 %v1140, %v1428
  %v1430 = vpop.f32.mrf.mxu0
  %v1431 = vpop.f32.mrf.mxu0
  %v1432 = vadd.f32 %v1143, %v1431
  %v1433 = vpop.f32.mrf.mxu0
  %1434 = vmatprep.mubr.bf16.mxu0 0
  %1435 = vmatmul.mubr.bf16.gmra.mxu0 %v868
  %v1436 = vpop.f32.mrf.mxu0
  %v1437 = vadd.f32 %v1148, %v1436
  %v1438 = vpop.f32.mrf.mxu0
  %v1439 = vpop.f32.mrf.mxu0
  %v1440 = vadd.f32 %v1151, %v1439
  %v1441 = vpop.f32.mrf.mxu0
  %1442 = vmatprep.mubr.bf16.mxu0 0
  %1443 = vmatmul.mubr.bf16.gmra.mxu0 %v871
  %v1444 = vpop.f32.mrf.mxu0
  %v1445 = vadd.f32 %v1156, %v1444
  %v1446 = vpop.f32.mrf.mxu0
  %v1447 = vpop.f32.mrf.mxu0
  %v1448 = vadd.f32 %v1159, %v1447
  %v1449 = vpop.f32.mrf.mxu0
  %1450 = vdwg.mxu0
  %v1451 = vadd.f32 %v1197, %v1200
  %v1452 = vadd.f32 %v1451, %v1205
  %v1453 = vadd.f32 %v1452, %v1208
  %v1454 = vadd.f32 %v1453, %v1213
  %v1455 = vadd.f32 %v1454, %v1216
  %v1456 = vadd.f32 %v1455, %v1221
  %v1457 = vadd.f32 %v1456, %v1224
  %v1458 = vadd.f32 %v1457, %v1229
  %v1459 = vadd.f32 %v1458, %v1232
  %v1460 = vadd.f32 %v1459, %v1237
  %v1461 = vadd.f32 %v1460, %v1240
  %v1462 = vadd.f32 %v1461, %v1245
  %v1463 = vadd.f32 %v1462, %v1248
  %v1464 = vadd.f32 %v1463, %v1253
  %v1465 = vadd.f32 %v1464, %v1256
  %v1466 = vadd.f32 %v1465, %v1261
  %v1467 = vadd.f32 %v1466, %v1264
  %v1468 = vadd.f32 %v1467, %v1269
  %v1469 = vadd.f32 %v1468, %v1272
  %v1470 = vadd.f32 %v1469, %v1277
  %v1471 = vadd.f32 %v1470, %v1280
  %v1472 = vadd.f32 %v1471, %v1285
  %v1473 = vadd.f32 %v1472, %v1288
  %v1474 = vadd.f32 %v1473, %v1293
  %v1475 = vadd.f32 %v1474, %v1296
  %v1476 = vadd.f32 %v1475, %v1301
  %v1477 = vadd.f32 %v1476, %v1304
  %v1478 = vadd.f32 %v1477, %v1309
  %v1479 = vadd.f32 %v1478, %v1312
  %v1480 = vadd.f32 %v1479, %v1317
  %v1481 = vadd.f32 %v1480, %v1320
  %v1482 = vadd.f32 %v1481, %v1325
  %v1483 = vadd.f32 %v1482, %v1328
  %v1484 = vadd.f32 %v1483, %v1333
  %v1485 = vadd.f32 %v1484, %v1336
  %v1486 = vadd.f32 %v1485, %v1341
  %v1487 = vadd.f32 %v1486, %v1344
  %v1488 = vadd.f32 %v1487, %v1349
  %v1489 = vadd.f32 %v1488, %v1352
  %v1490 = vadd.f32 %v1489, %v1357
  %v1491 = vadd.f32 %v1490, %v1360
  %v1492 = vadd.f32 %v1491, %v1365
  %v1493 = vadd.f32 %v1492, %v1368
  %v1494 = vadd.f32 %v1493, %v1373
  %v1495 = vadd.f32 %v1494, %v1376
  %v1496 = vadd.f32 %v1495, %v1381
  %v1497 = vadd.f32 %v1496, %v1384
  %v1498 = vadd.f32 %v1497, %v1389
  %v1499 = vadd.f32 %v1498, %v1392
  %v1500 = vadd.f32 %v1499, %v1397
  %v1501 = vadd.f32 %v1500, %v1400
  %v1502 = vadd.f32 %v1501, %v1405
  %v1503 = vadd.f32 %v1502, %v1408
  %v1504 = vadd.f32 %v1503, %v1413
  %v1505 = vadd.f32 %v1504, %v1416
  %v1506 = vadd.f32 %v1505, %v1421
  %v1507 = vadd.f32 %v1506, %v1424
  %v1508 = vadd.f32 %v1507, %v1429
  %v1509 = vadd.f32 %v1508, %v1432
  %v1510 = vadd.f32 %v1509, %v1437
  %v1511 = vadd.f32 %v1510, %v1440
  %v1512 = vadd.f32 %v1511, %v1445
  %v1513 = vadd.f32 %v1512, %v1448
  %v1514 = vrot.slane %v1513, 4
  %v1515 = vadd.f32 %v1513, %v1514
  %v1516 = vrot.slane %v1515, 2
  %v1517 = vadd.f32 %v1515, %v1516
  %v1518 = vrot.slane %v1517, 1
  %v1519 = vadd.f32 %v1517, %v1518
  %v1520 = vmul.f32 %v1197, %v1197
  %v1521 = vmul.f32 %v1200, %v1200
  %v1522 = vmul.f32 %v1205, %v1205
  %v1523 = vmul.f32 %v1208, %v1208
  %v1524 = vmul.f32 %v1213, %v1213
  %v1525 = vmul.f32 %v1216, %v1216
  %v1526 = vmul.f32 %v1221, %v1221
  %v1527 = vmul.f32 %v1224, %v1224
  %v1528 = vmul.f32 %v1229, %v1229
  %v1529 = vmul.f32 %v1232, %v1232
  %v1530 = vmul.f32 %v1237, %v1237
  %v1531 = vmul.f32 %v1240, %v1240
  %v1532 = vmul.f32 %v1245, %v1245
  %v1533 = vmul.f32 %v1248, %v1248
  %v1534 = vmul.f32 %v1253, %v1253
  %v1535 = vmul.f32 %v1256, %v1256
  %v1536 = vmul.f32 %v1261, %v1261
  %v1537 = vmul.f32 %v1264, %v1264
  %v1538 = vmul.f32 %v1269, %v1269
  %v1539 = vmul.f32 %v1272, %v1272
  %v1540 = vmul.f32 %v1277, %v1277
  %v1541 = vmul.f32 %v1280, %v1280
  %v1542 = vmul.f32 %v1285, %v1285
  %v1543 = vmul.f32 %v1288, %v1288
  %v1544 = vmul.f32 %v1293, %v1293
  %v1545 = vmul.f32 %v1296, %v1296
  %v1546 = vmul.f32 %v1301, %v1301
  %v1547 = vmul.f32 %v1304, %v1304
  %v1548 = vmul.f32 %v1309, %v1309
  %v1549 = vmul.f32 %v1312, %v1312
  %v1550 = vmul.f32 %v1317, %v1317
  %v1551 = vmul.f32 %v1320, %v1320
  %v1552 = vmul.f32 %v1325, %v1325
  %v1553 = vmul.f32 %v1328, %v1328
  %v1554 = vmul.f32 %v1333, %v1333
  %v1555 = vmul.f32 %v1336, %v1336
  %v1556 = vmul.f32 %v1341, %v1341
  %v1557 = vmul.f32 %v1344, %v1344
  %v1558 = vmul.f32 %v1349, %v1349
  %v1559 = vmul.f32 %v1352, %v1352
  %v1560 = vmul.f32 %v1357, %v1357
  %v1561 = vmul.f32 %v1360, %v1360
  %v1562 = vmul.f32 %v1365, %v1365
  %v1563 = vmul.f32 %v1368, %v1368
  %v1564 = vmul.f32 %v1373, %v1373
  %v1565 = vmul.f32 %v1376, %v1376
  %v1566 = vmul.f32 %v1381, %v1381
  %v1567 = vmul.f32 %v1384, %v1384
  %v1568 = vmul.f32 %v1389, %v1389
  %v1569 = vmul.f32 %v1392, %v1392
  %v1570 = vmul.f32 %v1397, %v1397
  %v1571 = vmul.f32 %v1400, %v1400
  %v1572 = vmul.f32 %v1405, %v1405
  %v1573 = vmul.f32 %v1408, %v1408
  %v1574 = vmul.f32 %v1413, %v1413
  %v1575 = vmul.f32 %v1416, %v1416
  %v1576 = vmul.f32 %v1421, %v1421
  %v1577 = vmul.f32 %v1424, %v1424
  %v1578 = vmul.f32 %v1429, %v1429
  %v1579 = vmul.f32 %v1432, %v1432
  %v1580 = vmul.f32 %v1437, %v1437
  %v1581 = vmul.f32 %v1440, %v1440
  %v1582 = vmul.f32 %v1445, %v1445
  %v1583 = vmul.f32 %v1448, %v1448
  %v1584 = vadd.f32 %v1520, %v1521
  %v1585 = vadd.f32 %v1584, %v1522
  %v1586 = vadd.f32 %v1585, %v1523
  %v1587 = vadd.f32 %v1586, %v1524
  %v1588 = vadd.f32 %v1587, %v1525
  %v1589 = vadd.f32 %v1588, %v1526
  %v1590 = vadd.f32 %v1589, %v1527
  %v1591 = vadd.f32 %v1590, %v1528
  %v1592 = vadd.f32 %v1591, %v1529
  %v1593 = vadd.f32 %v1592, %v1530
  %v1594 = vadd.f32 %v1593, %v1531
  %v1595 = vadd.f32 %v1594, %v1532
  %v1596 = vadd.f32 %v1595, %v1533
  %v1597 = vadd.f32 %v1596, %v1534
  %v1598 = vadd.f32 %v1597, %v1535
  %v1599 = vadd.f32 %v1598, %v1536
  %v1600 = vadd.f32 %v1599, %v1537
  %v1601 = vadd.f32 %v1600, %v1538
  %v1602 = vadd.f32 %v1601, %v1539
  %v1603 = vadd.f32 %v1602, %v1540
  %v1604 = vadd.f32 %v1603, %v1541
  %v1605 = vadd.f32 %v1604, %v1542
  %v1606 = vadd.f32 %v1605, %v1543
  %v1607 = vadd.f32 %v1606, %v1544
  %v1608 = vadd.f32 %v1607, %v1545
  %v1609 = vadd.f32 %v1608, %v1546
  %v1610 = vadd.f32 %v1609, %v1547
  %v1611 = vadd.f32 %v1610, %v1548
  %v1612 = vadd.f32 %v1611, %v1549
  %v1613 = vadd.f32 %v1612, %v1550
  %v1614 = vadd.f32 %v1613, %v1551
  %v1615 = vadd.f32 %v1614, %v1552
  %v1616 = vadd.f32 %v1615, %v1553
  %v1617 = vadd.f32 %v1616, %v1554
  %v1618 = vadd.f32 %v1617, %v1555
  %v1619 = vadd.f32 %v1618, %v1556
  %v1620 = vadd.f32 %v1619, %v1557
  %v1621 = vadd.f32 %v1620, %v1558
  %v1622 = vadd.f32 %v1621, %v1559
  %v1623 = vadd.f32 %v1622, %v1560
  %v1624 = vadd.f32 %v1623, %v1561
  %v1625 = vadd.f32 %v1624, %v1562
  %v1626 = vadd.f32 %v1625, %v1563
  %v1627 = vadd.f32 %v1626, %v1564
  %v1628 = vadd.f32 %v1627, %v1565
  %v1629 = vadd.f32 %v1628, %v1566
  %v1630 = vadd.f32 %v1629, %v1567
  %v1631 = vadd.f32 %v1630, %v1568
  %v1632 = vadd.f32 %v1631, %v1569
  %v1633 = vadd.f32 %v1632, %v1570
  %v1634 = vadd.f32 %v1633, %v1571
  %v1635 = vadd.f32 %v1634, %v1572
  %v1636 = vadd.f32 %v1635, %v1573
  %v1637 = vadd.f32 %v1636, %v1574
  %v1638 = vadd.f32 %v1637, %v1575
  %v1639 = vadd.f32 %v1638, %v1576
  %v1640 = vadd.f32 %v1639, %v1577
  %v1641 = vadd.f32 %v1640, %v1578
  %v1642 = vadd.f32 %v1641, %v1579
  %v1643 = vadd.f32 %v1642, %v1580
  %v1644 = vadd.f32 %v1643, %v1581
  %v1645 = vadd.f32 %v1644, %v1582
  %v1646 = vadd.f32 %v1645, %v1583
  %v1647 = vrot.slane %v1646, 4
  %v1648 = vadd.f32 %v1646, %v1647
  %v1649 = vrot.slane %v1648, 2
  %v1650 = vadd.f32 %v1648, %v1649
  %v1651 = vrot.slane %v1650, 1
  %v1652 = vadd.f32 %v1650, %v1651
  %v1653 = vld [vmem:[%s2] sm:$0xff]
  %v1654 = vld [vmem:[%s2 + $0x8] sm:$0xff]
  %v1655 = vld [vmem:[%s2 + $0x10] sm:$0xff]
  %v1656 = vld [vmem:[%s2 + $0x18] sm:$0xff]
  %v1657 = vld [vmem:[%s2 + $0x20] sm:$0xff]
  %v1658 = vld [vmem:[%s2 + $0x28] sm:$0xff]
  %v1659 = vld [vmem:[%s2 + $0x30] sm:$0xff]
  %v1660 = vld [vmem:[%s2 + $0x38] sm:$0xff]
  %v1661 = vld [vmem:[%s2 + $0x40] sm:$0xff]
  %v1662 = vld [vmem:[%s2 + $0x48] sm:$0xff]
  %v1663 = vld [vmem:[%s2 + $0x50] sm:$0xff]
  %v1664 = vld [vmem:[%s2 + $0x58] sm:$0xff]
  %v1665 = vld [vmem:[%s2 + $0x60] sm:$0xff]
  %v1666 = vld [vmem:[%s2 + $0x68] sm:$0xff]
  %v1667 = vld [vmem:[%s2 + $0x70] sm:$0xff]
  %v1668 = vld [vmem:[%s2 + $0x78] sm:$0xff]
  %1669 = vmatprep.subr.mxu0 0.0
  %1670 = vmatpush1.msra.mxu0 %v1668
  %1671 = vmatprep.subr.mxu0 0.0
  %1672 = vmatpush1.msra.mxu0 %v1667
  %1673 = vmatprep.subr.mxu0 0.0
  %1674 = vmatpush1.msra.mxu0 %v1666
  %1675 = vmatprep.subr.mxu0 0.0
  %1676 = vmatpush1.msra.mxu0 %v1665
  %1677 = vmatprep.subr.mxu0 0.0
  %1678 = vmatpush1.msra.mxu0 %v1664
  %1679 = vmatprep.subr.mxu0 0.0
  %1680 = vmatpush1.msra.mxu0 %v1663
  %1681 = vmatprep.subr.mxu0 0.0
  %1682 = vmatpush1.msra.mxu0 %v1662
  %1683 = vmatprep.subr.mxu0 0.0
  %1684 = vmatpush1.msra.mxu0 %v1661
  %1685 = vmatprep.subr.mxu0 0.0
  %1686 = vmatpush1.msra.mxu0 %v1660
  %1687 = vmatprep.subr.mxu0 0.0
  %1688 = vmatpush1.msra.mxu0 %v1659
  %1689 = vmatprep.subr.mxu0 0.0
  %1690 = vmatpush1.msra.mxu0 %v1658
  %1691 = vmatprep.subr.mxu0 0.0
  %1692 = vmatpush1.msra.mxu0 %v1657
  %1693 = vmatprep.subr.mxu0 0.0
  %1694 = vmatpush1.msra.mxu0 %v1656
  %1695 = vmatprep.subr.mxu0 0.0
  %1696 = vmatpush1.msra.mxu0 %v1655
  %1697 = vmatprep.subr.mxu0 0.0
  %1698 = vmatpush1.msra.mxu0 %v1654
  %1699 = vmatprep.subr.mxu0 0.0
  %1700 = vmatpush1.msra.mxu0 %v1653
  %1701 = vmatprep.subr.mxu0 0.0
  %1702 = vmatpush2.msra.mxu0 0.0
  %1703 = vmatprep.subr.mxu0 0.0
  %1704 = vmatpush2.msra.mxu0 0.0
  %1705 = vmatprep.subr.mxu0 0.0
  %1706 = vmatpush2.msra.mxu0 0.0
  %1707 = vmatprep.subr.mxu0 0.0
  %1708 = vmatpush2.msra.mxu0 0.0
  %1709 = vmatprep.subr.mxu0 0.0
  %1710 = vmatpush2.msra.mxu0 0.0
  %1711 = vmatprep.subr.mxu0 0.0
  %1712 = vmatpush2.msra.mxu0 0.0
  %1713 = vmatprep.subr.mxu0 0.0
  %1714 = vmatpush2.msra.mxu0 0.0
  %1715 = vmatprep.subr.mxu0 0.0
  %1716 = vmatpush2.msra.mxu0 0.0
  %1717 = vmatprep.subr.mxu0 0.0
  %1718 = vmatpush2.msra.mxu0 0.0
  %1719 = vmatprep.subr.mxu0 0.0
  %1720 = vmatpush2.msra.mxu0 0.0
  %1721 = vmatprep.subr.mxu0 0.0
  %1722 = vmatpush2.msra.mxu0 0.0
  %1723 = vmatprep.subr.mxu0 0.0
  %1724 = vmatpush2.msra.mxu0 0.0
  %1725 = vmatprep.subr.mxu0 0.0
  %1726 = vmatpush2.msra.mxu0 0.0
  %1727 = vmatprep.subr.mxu0 0.0
  %1728 = vmatpush2.msra.mxu0 0.0
  %1729 = vmatprep.subr.mxu0 0.0
  %1730 = vmatpush2.msra.mxu0 0.0
  %1731 = vmatprep.subr.mxu0 0.0
  %1732 = vmatpush2.msra.mxu0 0.0
  %1733 = vmatprep.mubr.f32.mxu0 0.0
  %1734 = vmatmul.mubr.f32.gmra.mxu0 %v1519
  %v1735 = vpop.f32.mrf.mxu0
  %v1736 = vadd.f32 0.0, %v1735
  %v1737 = vpop.f32.mrf.mxu0
  %1738 = vdwg.mxu0
  %1739 = vmatprep.subr.mxu0 0.0
  %1740 = vmatpush1.msra.mxu0 %v1668
  %1741 = vmatprep.subr.mxu0 0.0
  %1742 = vmatpush1.msra.mxu0 %v1667
  %1743 = vmatprep.subr.mxu0 0.0
  %1744 = vmatpush1.msra.mxu0 %v1666
  %1745 = vmatprep.subr.mxu0 0.0
  %1746 = vmatpush1.msra.mxu0 %v1665
  %1747 = vmatprep.subr.mxu0 0.0
  %1748 = vmatpush1.msra.mxu0 %v1664
  %1749 = vmatprep.subr.mxu0 0.0
  %1750 = vmatpush1.msra.mxu0 %v1663
  %1751 = vmatprep.subr.mxu0 0.0
  %1752 = vmatpush1.msra.mxu0 %v1662
  %1753 = vmatprep.subr.mxu0 0.0
  %1754 = vmatpush1.msra.mxu0 %v1661
  %1755 = vmatprep.subr.mxu0 0.0
  %1756 = vmatpush1.msra.mxu0 %v1660
  %1757 = vmatprep.subr.mxu0 0.0
  %1758 = vmatpush1.msra.mxu0 %v1659
  %1759 = vmatprep.subr.mxu0 0.0
  %1760 = vmatpush1.msra.mxu0 %v1658
  %1761 = vmatprep.subr.mxu0 0.0
  %1762 = vmatpush1.msra.mxu0 %v1657
  %1763 = vmatprep.subr.mxu0 0.0
  %1764 = vmatpush1.msra.mxu0 %v1656
  %1765 = vmatprep.subr.mxu0 0.0
  %1766 = vmatpush1.msra.mxu0 %v1655
  %1767 = vmatprep.subr.mxu0 0.0
  %1768 = vmatpush1.msra.mxu0 %v1654
  %1769 = vmatprep.subr.mxu0 0.0
  %1770 = vmatpush1.msra.mxu0 %v1653
  %1771 = vmatprep.subr.mxu0 0.0
  %1772 = vmatpush2.msra.mxu0 0.0
  %1773 = vmatprep.subr.mxu0 0.0
  %1774 = vmatpush2.msra.mxu0 0.0
  %1775 = vmatprep.subr.mxu0 0.0
  %1776 = vmatpush2.msra.mxu0 0.0
  %1777 = vmatprep.subr.mxu0 0.0
  %1778 = vmatpush2.msra.mxu0 0.0
  %1779 = vmatprep.subr.mxu0 0.0
  %1780 = vmatpush2.msra.mxu0 0.0
  %1781 = vmatprep.subr.mxu0 0.0
  %1782 = vmatpush2.msra.mxu0 0.0
  %1783 = vmatprep.subr.mxu0 0.0
  %1784 = vmatpush2.msra.mxu0 0.0
  %1785 = vmatprep.subr.mxu0 0.0
  %1786 = vmatpush2.msra.mxu0 0.0
  %1787 = vmatprep.subr.mxu0 0.0
  %1788 = vmatpush2.msra.mxu0 0.0
  %1789 = vmatprep.subr.mxu0 0.0
  %1790 = vmatpush2.msra.mxu0 0.0
  %1791 = vmatprep.subr.mxu0 0.0
  %1792 = vmatpush2.msra.mxu0 0.0
  %1793 = vmatprep.subr.mxu0 0.0
  %1794 = vmatpush2.msra.mxu0 0.0
  %1795 = vmatprep.subr.mxu0 0.0
  %1796 = vmatpush2.msra.mxu0 0.0
  %1797 = vmatprep.subr.mxu0 0.0
  %1798 = vmatpush2.msra.mxu0 0.0
  %1799 = vmatprep.subr.mxu0 0.0
  %1800 = vmatpush2.msra.mxu0 0.0
  %1801 = vmatprep.subr.mxu0 0.0
  %1802 = vmatpush2.msra.mxu0 0.0
  %1803 = vmatprep.mubr.f32.mxu0 0.0
  %1804 = vmatmul.mubr.f32.gmra.mxu0 %v1652
  %v1805 = vpop.f32.mrf.mxu0
  %v1806 = vadd.f32 0.0, %v1805
  %v1807 = vpop.f32.mrf.mxu0
  %1808 = vdwg.mxu0
  %v1809 = vmul.f32 %v1736, 0.00048828125
  %v1810 = vmul.f32 %v1806, 0.00048828125
  %v1811 = vmul.f32 %v1809, %v1809
  %v1812 = vsub.f32 %v1810, %v1811
  %v1813 = vmax.f32 %v1812, 0.0
  %v1814 = vld [vmem:[%s4] sm:$0x1]
  %v1815 = vadd.f32 %v1813, 1e-05
  %v1816 = vrsqrt.pop %v1815
  %v1817 = vmul.f32 %v1814, %v1816
  %v1818 = vld [vmem:[%s5] sm:$0x1]
  %v1819 = vmul.f32 %v1809, %v1817
  %v1820 = vsub.f32 %v1818, %v1819
  %v1821 = vld [vmem:[%s3] sm:$0xff]
  %v1822 = vld [vmem:[%s3 + $0x8] sm:$0xff]
  %v1823 = vld [vmem:[%s3 + $0x10] sm:$0xff]
  %v1824 = vld [vmem:[%s3 + $0x18] sm:$0xff]
  %v1825 = vld [vmem:[%s3 + $0x20] sm:$0xff]
  %v1826 = vld [vmem:[%s3 + $0x28] sm:$0xff]
  %v1827 = vld [vmem:[%s3 + $0x30] sm:$0xff]
  %v1828 = vld [vmem:[%s3 + $0x38] sm:$0xff]
  %v1829 = vld [vmem:[%s3 + $0x40] sm:$0xff]
  %v1830 = vld [vmem:[%s3 + $0x48] sm:$0xff]
  %v1831 = vld [vmem:[%s3 + $0x50] sm:$0xff]
  %v1832 = vld [vmem:[%s3 + $0x58] sm:$0xff]
  %v1833 = vld [vmem:[%s3 + $0x60] sm:$0xff]
  %v1834 = vld [vmem:[%s3 + $0x68] sm:$0xff]
  %v1835 = vld [vmem:[%s3 + $0x70] sm:$0xff]
  %v1836 = vld [vmem:[%s3 + $0x78] sm:$0xff]
  %1837 = vmatprep.subr.mxu0 0.0
  %1838 = vmatpush1.msra.mxu0 %v1836
  %1839 = vmatprep.subr.mxu0 0.0
  %1840 = vmatpush1.msra.mxu0 %v1835
  %1841 = vmatprep.subr.mxu0 0.0
  %1842 = vmatpush1.msra.mxu0 %v1834
  %1843 = vmatprep.subr.mxu0 0.0
  %1844 = vmatpush1.msra.mxu0 %v1833
  %1845 = vmatprep.subr.mxu0 0.0
  %1846 = vmatpush1.msra.mxu0 %v1832
  %1847 = vmatprep.subr.mxu0 0.0
  %1848 = vmatpush1.msra.mxu0 %v1831
  %1849 = vmatprep.subr.mxu0 0.0
  %1850 = vmatpush1.msra.mxu0 %v1830
  %1851 = vmatprep.subr.mxu0 0.0
  %1852 = vmatpush1.msra.mxu0 %v1829
  %1853 = vmatprep.subr.mxu0 0.0
  %1854 = vmatpush1.msra.mxu0 %v1828
  %1855 = vmatprep.subr.mxu0 0.0
  %1856 = vmatpush1.msra.mxu0 %v1827
  %1857 = vmatprep.subr.mxu0 0.0
  %1858 = vmatpush1.msra.mxu0 %v1826
  %1859 = vmatprep.subr.mxu0 0.0
  %1860 = vmatpush1.msra.mxu0 %v1825
  %1861 = vmatprep.subr.mxu0 0.0
  %1862 = vmatpush1.msra.mxu0 %v1824
  %1863 = vmatprep.subr.mxu0 0.0
  %1864 = vmatpush1.msra.mxu0 %v1823
  %1865 = vmatprep.subr.mxu0 0.0
  %1866 = vmatpush1.msra.mxu0 %v1822
  %1867 = vmatprep.subr.mxu0 0.0
  %1868 = vmatpush1.msra.mxu0 %v1821
  %1869 = vmatprep.subr.mxu0 0.0
  %1870 = vmatpush2.msra.mxu0 0.0
  %1871 = vmatprep.subr.mxu0 0.0
  %1872 = vmatpush2.msra.mxu0 0.0
  %1873 = vmatprep.subr.mxu0 0.0
  %1874 = vmatpush2.msra.mxu0 0.0
  %1875 = vmatprep.subr.mxu0 0.0
  %1876 = vmatpush2.msra.mxu0 0.0
  %1877 = vmatprep.subr.mxu0 0.0
  %1878 = vmatpush2.msra.mxu0 0.0
  %1879 = vmatprep.subr.mxu0 0.0
  %1880 = vmatpush2.msra.mxu0 0.0
  %1881 = vmatprep.subr.mxu0 0.0
  %1882 = vmatpush2.msra.mxu0 0.0
  %1883 = vmatprep.subr.mxu0 0.0
  %1884 = vmatpush2.msra.mxu0 0.0
  %1885 = vmatprep.subr.mxu0 0.0
  %1886 = vmatpush2.msra.mxu0 0.0
  %1887 = vmatprep.subr.mxu0 0.0
  %1888 = vmatpush2.msra.mxu0 0.0
  %1889 = vmatprep.subr.mxu0 0.0
  %1890 = vmatpush2.msra.mxu0 0.0
  %1891 = vmatprep.subr.mxu0 0.0
  %1892 = vmatpush2.msra.mxu0 0.0
  %1893 = vmatprep.subr.mxu0 0.0
  %1894 = vmatpush2.msra.mxu0 0.0
  %1895 = vmatprep.subr.mxu0 0.0
  %1896 = vmatpush2.msra.mxu0 0.0
  %1897 = vmatprep.subr.mxu0 0.0
  %1898 = vmatpush2.msra.mxu0 0.0
  %1899 = vmatprep.subr.mxu0 0.0
  %1900 = vmatpush2.msra.mxu0 0.0
  %1901 = vmatprep.mubr.f32.mxu0 0.0
  %1902 = vmatmul.mubr.f32.gmra.mxu0 %v1817
  %v1903 = vpop.f32.mrf.mxu0
  %v1904 = vadd.f32 0.0, %v1903
  %v1905 = vpop.f32.mrf.mxu0
  %1906 = vdwg.mxu0
  %1907 = vmatprep.subr.mxu0 0.0
  %1908 = vmatpush1.msra.mxu0 %v1836
  %1909 = vmatprep.subr.mxu0 0.0
  %1910 = vmatpush1.msra.mxu0 %v1835
  %1911 = vmatprep.subr.mxu0 0.0
  %1912 = vmatpush1.msra.mxu0 %v1834
  %1913 = vmatprep.subr.mxu0 0.0
  %1914 = vmatpush1.msra.mxu0 %v1833
  %1915 = vmatprep.subr.mxu0 0.0
  %1916 = vmatpush1.msra.mxu0 %v1832
  %1917 = vmatprep.subr.mxu0 0.0
  %1918 = vmatpush1.msra.mxu0 %v1831
  %1919 = vmatprep.subr.mxu0 0.0
  %1920 = vmatpush1.msra.mxu0 %v1830
  %1921 = vmatprep.subr.mxu0 0.0
  %1922 = vmatpush1.msra.mxu0 %v1829
  %1923 = vmatprep.subr.mxu0 0.0
  %1924 = vmatpush1.msra.mxu0 %v1828
  %1925 = vmatprep.subr.mxu0 0.0
  %1926 = vmatpush1.msra.mxu0 %v1827
  %1927 = vmatprep.subr.mxu0 0.0
  %1928 = vmatpush1.msra.mxu0 %v1826
  %1929 = vmatprep.subr.mxu0 0.0
  %1930 = vmatpush1.msra.mxu0 %v1825
  %1931 = vmatprep.subr.mxu0 0.0
  %1932 = vmatpush1.msra.mxu0 %v1824
  %1933 = vmatprep.subr.mxu0 0.0
  %1934 = vmatpush1.msra.mxu0 %v1823
  %1935 = vmatprep.subr.mxu0 0.0
  %1936 = vmatpush1.msra.mxu0 %v1822
  %1937 = vmatprep.subr.mxu0 0.0
  %1938 = vmatpush1.msra.mxu0 %v1821
  %1939 = vmatprep.subr.mxu0 0.0
  %1940 = vmatpush2.msra.mxu0 0.0
  %1941 = vmatprep.subr.mxu0 0.0
  %1942 = vmatpush2.msra.mxu0 0.0
  %1943 = vmatprep.subr.mxu0 0.0
  %1944 = vmatpush2.msra.mxu0 0.0
  %1945 = vmatprep.subr.mxu0 0.0
  %1946 = vmatpush2.msra.mxu0 0.0
  %1947 = vmatprep.subr.mxu0 0.0
  %1948 = vmatpush2.msra.mxu0 0.0
  %1949 = vmatprep.subr.mxu0 0.0
  %1950 = vmatpush2.msra.mxu0 0.0
  %1951 = vmatprep.subr.mxu0 0.0
  %1952 = vmatpush2.msra.mxu0 0.0
  %1953 = vmatprep.subr.mxu0 0.0
  %1954 = vmatpush2.msra.mxu0 0.0
  %1955 = vmatprep.subr.mxu0 0.0
  %1956 = vmatpush2.msra.mxu0 0.0
  %1957 = vmatprep.subr.mxu0 0.0
  %1958 = vmatpush2.msra.mxu0 0.0
  %1959 = vmatprep.subr.mxu0 0.0
  %1960 = vmatpush2.msra.mxu0 0.0
  %1961 = vmatprep.subr.mxu0 0.0
  %1962 = vmatpush2.msra.mxu0 0.0
  %1963 = vmatprep.subr.mxu0 0.0
  %1964 = vmatpush2.msra.mxu0 0.0
  %1965 = vmatprep.subr.mxu0 0.0
  %1966 = vmatpush2.msra.mxu0 0.0
  %1967 = vmatprep.subr.mxu0 0.0
  %1968 = vmatpush2.msra.mxu0 0.0
  %1969 = vmatprep.subr.mxu0 0.0
  %1970 = vmatpush2.msra.mxu0 0.0
  %1971 = vmatprep.mubr.f32.mxu0 0.0
  %1972 = vmatmul.mubr.f32.gmra.mxu0 %v1820
  %v1973 = vpop.f32.mrf.mxu0
  %v1974 = vadd.f32 0.0, %v1973
  %v1975 = vpop.f32.mrf.mxu0
  %1976 = vdwg.mxu0
  %v1977 = vlaneseq
  %v1978 = vshrl.u32 %v1977, 7
  %v1979 = vsub.s32 0, %v1978
  %v1980 = vrot.slane %v1904, %v1979
  %v1981 = vmul.f32 %v1197, %v1980
  %v1982 = vmul.f32 %v1200, %v1980
  %v1983 = vmul.f32 %v1205, %v1980
  %v1984 = vmul.f32 %v1208, %v1980
  %v1985 = vmul.f32 %v1213, %v1980
  %v1986 = vmul.f32 %v1216, %v1980
  %v1987 = vmul.f32 %v1221, %v1980
  %v1988 = vmul.f32 %v1224, %v1980
  %v1989 = vmul.f32 %v1229, %v1980
  %v1990 = vmul.f32 %v1232, %v1980
  %v1991 = vmul.f32 %v1237, %v1980
  %v1992 = vmul.f32 %v1240, %v1980
  %v1993 = vmul.f32 %v1245, %v1980
  %v1994 = vmul.f32 %v1248, %v1980
  %v1995 = vmul.f32 %v1253, %v1980
  %v1996 = vmul.f32 %v1256, %v1980
  %v1997 = vmul.f32 %v1261, %v1980
  %v1998 = vmul.f32 %v1264, %v1980
  %v1999 = vmul.f32 %v1269, %v1980
  %v2000 = vmul.f32 %v1272, %v1980
  %v2001 = vmul.f32 %v1277, %v1980
  %v2002 = vmul.f32 %v1280, %v1980
  %v2003 = vmul.f32 %v1285, %v1980
  %v2004 = vmul.f32 %v1288, %v1980
  %v2005 = vmul.f32 %v1293, %v1980
  %v2006 = vmul.f32 %v1296, %v1980
  %v2007 = vmul.f32 %v1301, %v1980
  %v2008 = vmul.f32 %v1304, %v1980
  %v2009 = vmul.f32 %v1309, %v1980
  %v2010 = vmul.f32 %v1312, %v1980
  %v2011 = vmul.f32 %v1317, %v1980
  %v2012 = vmul.f32 %v1320, %v1980
  %v2013 = vmul.f32 %v1325, %v1980
  %v2014 = vmul.f32 %v1328, %v1980
  %v2015 = vmul.f32 %v1333, %v1980
  %v2016 = vmul.f32 %v1336, %v1980
  %v2017 = vmul.f32 %v1341, %v1980
  %v2018 = vmul.f32 %v1344, %v1980
  %v2019 = vmul.f32 %v1349, %v1980
  %v2020 = vmul.f32 %v1352, %v1980
  %v2021 = vmul.f32 %v1357, %v1980
  %v2022 = vmul.f32 %v1360, %v1980
  %v2023 = vmul.f32 %v1365, %v1980
  %v2024 = vmul.f32 %v1368, %v1980
  %v2025 = vmul.f32 %v1373, %v1980
  %v2026 = vmul.f32 %v1376, %v1980
  %v2027 = vmul.f32 %v1381, %v1980
  %v2028 = vmul.f32 %v1384, %v1980
  %v2029 = vmul.f32 %v1389, %v1980
  %v2030 = vmul.f32 %v1392, %v1980
  %v2031 = vmul.f32 %v1397, %v1980
  %v2032 = vmul.f32 %v1400, %v1980
  %v2033 = vmul.f32 %v1405, %v1980
  %v2034 = vmul.f32 %v1408, %v1980
  %v2035 = vmul.f32 %v1413, %v1980
  %v2036 = vmul.f32 %v1416, %v1980
  %v2037 = vmul.f32 %v1421, %v1980
  %v2038 = vmul.f32 %v1424, %v1980
  %v2039 = vmul.f32 %v1429, %v1980
  %v2040 = vmul.f32 %v1432, %v1980
  %v2041 = vmul.f32 %v1437, %v1980
  %v2042 = vmul.f32 %v1440, %v1980
  %v2043 = vmul.f32 %v1445, %v1980
  %v2044 = vmul.f32 %v1448, %v1980
  %v2045 = vlaneseq
  %v2046 = vshrl.u32 %v2045, 7
  %v2047 = vsub.s32 0, %v2046
  %v2048 = vrot.slane %v1974, %v2047
  %v2049 = vadd.f32 %v1981, %v2048
  %v2050 = vadd.f32 %v1982, %v2048
  %v2051 = vadd.f32 %v1983, %v2048
  %v2052 = vadd.f32 %v1984, %v2048
  %v2053 = vadd.f32 %v1985, %v2048
  %v2054 = vadd.f32 %v1986, %v2048
  %v2055 = vadd.f32 %v1987, %v2048
  %v2056 = vadd.f32 %v1988, %v2048
  %v2057 = vadd.f32 %v1989, %v2048
  %v2058 = vadd.f32 %v1990, %v2048
  %v2059 = vadd.f32 %v1991, %v2048
  %v2060 = vadd.f32 %v1992, %v2048
  %v2061 = vadd.f32 %v1993, %v2048
  %v2062 = vadd.f32 %v1994, %v2048
  %v2063 = vadd.f32 %v1995, %v2048
  %v2064 = vadd.f32 %v1996, %v2048
  %v2065 = vadd.f32 %v1997, %v2048
  %v2066 = vadd.f32 %v1998, %v2048
  %v2067 = vadd.f32 %v1999, %v2048
  %v2068 = vadd.f32 %v2000, %v2048
  %v2069 = vadd.f32 %v2001, %v2048
  %v2070 = vadd.f32 %v2002, %v2048
  %v2071 = vadd.f32 %v2003, %v2048
  %v2072 = vadd.f32 %v2004, %v2048
  %v2073 = vadd.f32 %v2005, %v2048
  %v2074 = vadd.f32 %v2006, %v2048
  %v2075 = vadd.f32 %v2007, %v2048
  %v2076 = vadd.f32 %v2008, %v2048
  %v2077 = vadd.f32 %v2009, %v2048
  %v2078 = vadd.f32 %v2010, %v2048
  %v2079 = vadd.f32 %v2011, %v2048
  %v2080 = vadd.f32 %v2012, %v2048
  %v2081 = vadd.f32 %v2013, %v2048
  %v2082 = vadd.f32 %v2014, %v2048
  %v2083 = vadd.f32 %v2015, %v2048
  %v2084 = vadd.f32 %v2016, %v2048
  %v2085 = vadd.f32 %v2017, %v2048
  %v2086 = vadd.f32 %v2018, %v2048
  %v2087 = vadd.f32 %v2019, %v2048
  %v2088 = vadd.f32 %v2020, %v2048
  %v2089 = vadd.f32 %v2021, %v2048
  %v2090 = vadd.f32 %v2022, %v2048
  %v2091 = vadd.f32 %v2023, %v2048
  %v2092 = vadd.f32 %v2024, %v2048
  %v2093 = vadd.f32 %v2025, %v2048
  %v2094 = vadd.f32 %v2026, %v2048
  %v2095 = vadd.f32 %v2027, %v2048
  %v2096 = vadd.f32 %v2028, %v2048
  %v2097 = vadd.f32 %v2029, %v2048
  %v2098 = vadd.f32 %v2030, %v2048
  %v2099 = vadd.f32 %v2031, %v2048
  %v2100 = vadd.f32 %v2032, %v2048
  %v2101 = vadd.f32 %v2033, %v2048
  %v2102 = vadd.f32 %v2034, %v2048
  %v2103 = vadd.f32 %v2035, %v2048
  %v2104 = vadd.f32 %v2036, %v2048
  %v2105 = vadd.f32 %v2037, %v2048
  %v2106 = vadd.f32 %v2038, %v2048
  %v2107 = vadd.f32 %v2039, %v2048
  %v2108 = vadd.f32 %v2040, %v2048
  %v2109 = vadd.f32 %v2041, %v2048
  %v2110 = vadd.f32 %v2042, %v2048
  %v2111 = vadd.f32 %v2043, %v2048
  %v2112 = vadd.f32 %v2044, %v2048
  %v2113 = vmax.f32 %v2049, 0.0
  %v2114 = vmax.f32 %v2050, 0.0
  %v2115 = vmax.f32 %v2051, 0.0
  %v2116 = vmax.f32 %v2052, 0.0
  %v2117 = vmax.f32 %v2053, 0.0
  %v2118 = vmax.f32 %v2054, 0.0
  %v2119 = vmax.f32 %v2055, 0.0
  %v2120 = vmax.f32 %v2056, 0.0
  %v2121 = vmax.f32 %v2057, 0.0
  %v2122 = vmax.f32 %v2058, 0.0
  %v2123 = vmax.f32 %v2059, 0.0
  %v2124 = vmax.f32 %v2060, 0.0
  %v2125 = vmax.f32 %v2061, 0.0
  %v2126 = vmax.f32 %v2062, 0.0
  %v2127 = vmax.f32 %v2063, 0.0
  %v2128 = vmax.f32 %v2064, 0.0
  %v2129 = vmax.f32 %v2065, 0.0
  %v2130 = vmax.f32 %v2066, 0.0
  %v2131 = vmax.f32 %v2067, 0.0
  %v2132 = vmax.f32 %v2068, 0.0
  %v2133 = vmax.f32 %v2069, 0.0
  %v2134 = vmax.f32 %v2070, 0.0
  %v2135 = vmax.f32 %v2071, 0.0
  %v2136 = vmax.f32 %v2072, 0.0
  %v2137 = vmax.f32 %v2073, 0.0
  %v2138 = vmax.f32 %v2074, 0.0
  %v2139 = vmax.f32 %v2075, 0.0
  %v2140 = vmax.f32 %v2076, 0.0
  %v2141 = vmax.f32 %v2077, 0.0
  %v2142 = vmax.f32 %v2078, 0.0
  %v2143 = vmax.f32 %v2079, 0.0
  %v2144 = vmax.f32 %v2080, 0.0
  %v2145 = vmax.f32 %v2081, 0.0
  %v2146 = vmax.f32 %v2082, 0.0
  %v2147 = vmax.f32 %v2083, 0.0
  %v2148 = vmax.f32 %v2084, 0.0
  %v2149 = vmax.f32 %v2085, 0.0
  %v2150 = vmax.f32 %v2086, 0.0
  %v2151 = vmax.f32 %v2087, 0.0
  %v2152 = vmax.f32 %v2088, 0.0
  %v2153 = vmax.f32 %v2089, 0.0
  %v2154 = vmax.f32 %v2090, 0.0
  %v2155 = vmax.f32 %v2091, 0.0
  %v2156 = vmax.f32 %v2092, 0.0
  %v2157 = vmax.f32 %v2093, 0.0
  %v2158 = vmax.f32 %v2094, 0.0
  %v2159 = vmax.f32 %v2095, 0.0
  %v2160 = vmax.f32 %v2096, 0.0
  %v2161 = vmax.f32 %v2097, 0.0
  %v2162 = vmax.f32 %v2098, 0.0
  %v2163 = vmax.f32 %v2099, 0.0
  %v2164 = vmax.f32 %v2100, 0.0
  %v2165 = vmax.f32 %v2101, 0.0
  %v2166 = vmax.f32 %v2102, 0.0
  %v2167 = vmax.f32 %v2103, 0.0
  %v2168 = vmax.f32 %v2104, 0.0
  %v2169 = vmax.f32 %v2105, 0.0
  %v2170 = vmax.f32 %v2106, 0.0
  %v2171 = vmax.f32 %v2107, 0.0
  %v2172 = vmax.f32 %v2108, 0.0
  %v2173 = vmax.f32 %v2109, 0.0
  %v2174 = vmax.f32 %v2110, 0.0
  %v2175 = vmax.f32 %v2111, 0.0
  %v2176 = vmax.f32 %v2112, 0.0
  %v2177 = vpack.c.bf16 %v2114, %v2113
  %v2178 = vpack.c.bf16 %v2116, %v2115
  %v2179 = vpack.c.bf16 %v2118, %v2117
  %v2180 = vpack.c.bf16 %v2120, %v2119
  %v2181 = vpack.c.bf16 %v2122, %v2121
  %v2182 = vpack.c.bf16 %v2124, %v2123
  %v2183 = vpack.c.bf16 %v2126, %v2125
  %v2184 = vpack.c.bf16 %v2128, %v2127
  %v2185 = vpack.c.bf16 %v2130, %v2129
  %v2186 = vpack.c.bf16 %v2132, %v2131
  %v2187 = vpack.c.bf16 %v2134, %v2133
  %v2188 = vpack.c.bf16 %v2136, %v2135
  %v2189 = vpack.c.bf16 %v2138, %v2137
  %v2190 = vpack.c.bf16 %v2140, %v2139
  %v2191 = vpack.c.bf16 %v2142, %v2141
  %v2192 = vpack.c.bf16 %v2144, %v2143
  %v2193 = vpack.c.bf16 %v2146, %v2145
  %v2194 = vpack.c.bf16 %v2148, %v2147
  %v2195 = vpack.c.bf16 %v2150, %v2149
  %v2196 = vpack.c.bf16 %v2152, %v2151
  %v2197 = vpack.c.bf16 %v2154, %v2153
  %v2198 = vpack.c.bf16 %v2156, %v2155
  %v2199 = vpack.c.bf16 %v2158, %v2157
  %v2200 = vpack.c.bf16 %v2160, %v2159
  %v2201 = vpack.c.bf16 %v2162, %v2161
  %v2202 = vpack.c.bf16 %v2164, %v2163
  %v2203 = vpack.c.bf16 %v2166, %v2165
  %v2204 = vpack.c.bf16 %v2168, %v2167
  %v2205 = vpack.c.bf16 %v2170, %v2169
  %v2206 = vpack.c.bf16 %v2172, %v2171
  %v2207 = vpack.c.bf16 %v2174, %v2173
  %v2208 = vpack.c.bf16 %v2176, %v2175
  %v2241 = vunpack.c.l.b16 %v2177
  %v2242 = vunpack.c.h.b16 %v2177
  %v2243 = vunpack.c.l.b16 %v2178
  %v2244 = vunpack.c.h.b16 %v2178
  %v2245 = vunpack.c.l.b16 %v2179
  %v2246 = vunpack.c.h.b16 %v2179
  %v2247 = vunpack.c.l.b16 %v2180
  %v2248 = vunpack.c.h.b16 %v2180
  %v2249 = vunpack.c.l.b16 %v2181
  %v2250 = vunpack.c.h.b16 %v2181
  %v2251 = vunpack.c.l.b16 %v2182
  %v2252 = vunpack.c.h.b16 %v2182
  %v2253 = vunpack.c.l.b16 %v2183
  %v2254 = vunpack.c.h.b16 %v2183
  %v2255 = vunpack.c.l.b16 %v2184
  %v2256 = vunpack.c.h.b16 %v2184
  %v2257 = vunpack.c.l.b16 %v2185
  %v2258 = vunpack.c.h.b16 %v2185
  %v2259 = vunpack.c.l.b16 %v2186
  %v2260 = vunpack.c.h.b16 %v2186
  %v2261 = vunpack.c.l.b16 %v2187
  %v2262 = vunpack.c.h.b16 %v2187
  %v2263 = vunpack.c.l.b16 %v2188
  %v2264 = vunpack.c.h.b16 %v2188
  %v2265 = vunpack.c.l.b16 %v2189
  %v2266 = vunpack.c.h.b16 %v2189
  %v2267 = vunpack.c.l.b16 %v2190
  %v2268 = vunpack.c.h.b16 %v2190
  %v2269 = vunpack.c.l.b16 %v2191
  %v2270 = vunpack.c.h.b16 %v2191
  %v2271 = vunpack.c.l.b16 %v2192
  %v2272 = vunpack.c.h.b16 %v2192
  %v2273 = vunpack.c.l.b16 %v2193
  %v2274 = vunpack.c.h.b16 %v2193
  %v2275 = vunpack.c.l.b16 %v2194
  %v2276 = vunpack.c.h.b16 %v2194
  %v2277 = vunpack.c.l.b16 %v2195
  %v2278 = vunpack.c.h.b16 %v2195
  %v2279 = vunpack.c.l.b16 %v2196
  %v2280 = vunpack.c.h.b16 %v2196
  %v2281 = vunpack.c.l.b16 %v2197
  %v2282 = vunpack.c.h.b16 %v2197
  %v2283 = vunpack.c.l.b16 %v2198
  %v2284 = vunpack.c.h.b16 %v2198
  %v2285 = vunpack.c.l.b16 %v2199
  %v2286 = vunpack.c.h.b16 %v2199
  %v2287 = vunpack.c.l.b16 %v2200
  %v2288 = vunpack.c.h.b16 %v2200
  %v2289 = vunpack.c.l.b16 %v2201
  %v2290 = vunpack.c.h.b16 %v2201
  %v2291 = vunpack.c.l.b16 %v2202
  %v2292 = vunpack.c.h.b16 %v2202
  %v2293 = vunpack.c.l.b16 %v2203
  %v2294 = vunpack.c.h.b16 %v2203
  %v2295 = vunpack.c.l.b16 %v2204
  %v2296 = vunpack.c.h.b16 %v2204
  %v2297 = vunpack.c.l.b16 %v2205
  %v2298 = vunpack.c.h.b16 %v2205
  %v2299 = vunpack.c.l.b16 %v2206
  %v2300 = vunpack.c.h.b16 %v2206
  %v2301 = vunpack.c.l.b16 %v2207
  %v2302 = vunpack.c.h.b16 %v2207
  %v2303 = vunpack.c.l.b16 %v2208
  %v2304 = vunpack.c.h.b16 %v2208
  %v2305 = vpack.c.b16 %v2241, %v2241
  %v2306 = vpack.c.b16 %v2242, %v2242
  %v2307 = vpack.c.b16 %v2243, %v2243
  %v2308 = vpack.c.b16 %v2244, %v2244
  %v2309 = vpack.c.b16 %v2245, %v2245
  %v2310 = vpack.c.b16 %v2246, %v2246
  %v2311 = vpack.c.b16 %v2247, %v2247
  %v2312 = vpack.c.b16 %v2248, %v2248
  %v2313 = vpack.c.b16 %v2249, %v2249
  %v2314 = vpack.c.b16 %v2250, %v2250
  %v2315 = vpack.c.b16 %v2251, %v2251
  %v2316 = vpack.c.b16 %v2252, %v2252
  %v2317 = vpack.c.b16 %v2253, %v2253
  %v2318 = vpack.c.b16 %v2254, %v2254
  %v2319 = vpack.c.b16 %v2255, %v2255
  %v2320 = vpack.c.b16 %v2256, %v2256
  %v2321 = vpack.c.b16 %v2257, %v2257
  %v2322 = vpack.c.b16 %v2258, %v2258
  %v2323 = vpack.c.b16 %v2259, %v2259
  %v2324 = vpack.c.b16 %v2260, %v2260
  %v2325 = vpack.c.b16 %v2261, %v2261
  %v2326 = vpack.c.b16 %v2262, %v2262
  %v2327 = vpack.c.b16 %v2263, %v2263
  %v2328 = vpack.c.b16 %v2264, %v2264
  %v2329 = vpack.c.b16 %v2265, %v2265
  %v2330 = vpack.c.b16 %v2266, %v2266
  %v2331 = vpack.c.b16 %v2267, %v2267
  %v2332 = vpack.c.b16 %v2268, %v2268
  %v2333 = vpack.c.b16 %v2269, %v2269
  %v2334 = vpack.c.b16 %v2270, %v2270
  %v2335 = vpack.c.b16 %v2271, %v2271
  %v2336 = vpack.c.b16 %v2272, %v2272
  %v2337 = vpack.c.b16 %v2273, %v2273
  %v2338 = vpack.c.b16 %v2274, %v2274
  %v2339 = vpack.c.b16 %v2275, %v2275
  %v2340 = vpack.c.b16 %v2276, %v2276
  %v2341 = vpack.c.b16 %v2277, %v2277
  %v2342 = vpack.c.b16 %v2278, %v2278
  %v2343 = vpack.c.b16 %v2279, %v2279
  %v2344 = vpack.c.b16 %v2280, %v2280
  %v2345 = vpack.c.b16 %v2281, %v2281
  %v2346 = vpack.c.b16 %v2282, %v2282
  %v2347 = vpack.c.b16 %v2283, %v2283
  %v2348 = vpack.c.b16 %v2284, %v2284
  %v2349 = vpack.c.b16 %v2285, %v2285
  %v2350 = vpack.c.b16 %v2286, %v2286
  %v2351 = vpack.c.b16 %v2287, %v2287
  %v2352 = vpack.c.b16 %v2288, %v2288
  %v2353 = vpack.c.b16 %v2289, %v2289
  %v2354 = vpack.c.b16 %v2290, %v2290
  %v2355 = vpack.c.b16 %v2291, %v2291
  %v2356 = vpack.c.b16 %v2292, %v2292
  %v2357 = vpack.c.b16 %v2293, %v2293
  %v2358 = vpack.c.b16 %v2294, %v2294
  %v2359 = vpack.c.b16 %v2295, %v2295
  %v2360 = vpack.c.b16 %v2296, %v2296
  %v2361 = vpack.c.b16 %v2297, %v2297
  %v2362 = vpack.c.b16 %v2298, %v2298
  %v2363 = vpack.c.b16 %v2299, %v2299
  %v2364 = vpack.c.b16 %v2300, %v2300
  %v2365 = vpack.c.b16 %v2301, %v2301
  %v2366 = vpack.c.b16 %v2302, %v2302
  %v2367 = vpack.c.b16 %v2303, %v2303
  %v2368 = vpack.c.b16 %v2304, %v2304
  %2433 = vst [vmem:[%s6] sm:$0xf] %v2305
  %2434 = vst [vmem:[%s6 + $0x4] sm:$0xf] %v2306
  %2435 = vst [vmem:[%s6 + $0x8] sm:$0xf] %v2307
  %2436 = vst [vmem:[%s6 + $0xc] sm:$0xf] %v2308
  %2437 = vst [vmem:[%s6 + $0x10] sm:$0xf] %v2309
  %2438 = vst [vmem:[%s6 + $0x14] sm:$0xf] %v2310
  %2439 = vst [vmem:[%s6 + $0x18] sm:$0xf] %v2311
  %2440 = vst [vmem:[%s6 + $0x1c] sm:$0xf] %v2312
  %2441 = vst [vmem:[%s6 + $0x20] sm:$0xf] %v2313
  %2442 = vst [vmem:[%s6 + $0x24] sm:$0xf] %v2314
  %2443 = vst [vmem:[%s6 + $0x28] sm:$0xf] %v2315
  %2444 = vst [vmem:[%s6 + $0x2c] sm:$0xf] %v2316
  %2445 = vst [vmem:[%s6 + $0x30] sm:$0xf] %v2317
  %2446 = vst [vmem:[%s6 + $0x34] sm:$0xf] %v2318
  %2447 = vst [vmem:[%s6 + $0x38] sm:$0xf] %v2319
  %2448 = vst [vmem:[%s6 + $0x3c] sm:$0xf] %v2320
  %2449 = vst [vmem:[%s6 + $0x40] sm:$0xf] %v2321
  %2450 = vst [vmem:[%s6 + $0x44] sm:$0xf] %v2322
  %2451 = vst [vmem:[%s6 + $0x48] sm:$0xf] %v2323
  %2452 = vst [vmem:[%s6 + $0x4c] sm:$0xf] %v2324
  %2453 = vst [vmem:[%s6 + $0x50] sm:$0xf] %v2325
  %2454 = vst [vmem:[%s6 + $0x54] sm:$0xf] %v2326
  %2455 = vst [vmem:[%s6 + $0x58] sm:$0xf] %v2327
  %2456 = vst [vmem:[%s6 + $0x5c] sm:$0xf] %v2328
  %2457 = vst [vmem:[%s6 + $0x60] sm:$0xf] %v2329
  %2458 = vst [vmem:[%s6 + $0x64] sm:$0xf] %v2330
  %2459 = vst [vmem:[%s6 + $0x68] sm:$0xf] %v2331
  %2460 = vst [vmem:[%s6 + $0x6c] sm:$0xf] %v2332
  %2461 = vst [vmem:[%s6 + $0x70] sm:$0xf] %v2333
  %2462 = vst [vmem:[%s6 + $0x74] sm:$0xf] %v2334
  %2463 = vst [vmem:[%s6 + $0x78] sm:$0xf] %v2335
  %2464 = vst [vmem:[%s6 + $0x7c] sm:$0xf] %v2336
  %2465 = vst [vmem:[%s6 + $0x80] sm:$0xf] %v2337
  %2466 = vst [vmem:[%s6 + $0x84] sm:$0xf] %v2338
  %2467 = vst [vmem:[%s6 + $0x88] sm:$0xf] %v2339
  %2468 = vst [vmem:[%s6 + $0x8c] sm:$0xf] %v2340
  %2469 = vst [vmem:[%s6 + $0x90] sm:$0xf] %v2341
  %2470 = vst [vmem:[%s6 + $0x94] sm:$0xf] %v2342
  %2471 = vst [vmem:[%s6 + $0x98] sm:$0xf] %v2343
  %2472 = vst [vmem:[%s6 + $0x9c] sm:$0xf] %v2344
  %2473 = vst [vmem:[%s6 + $0xa0] sm:$0xf] %v2345
  %2474 = vst [vmem:[%s6 + $0xa4] sm:$0xf] %v2346
  %2475 = vst [vmem:[%s6 + $0xa8] sm:$0xf] %v2347
  %2476 = vst [vmem:[%s6 + $0xac] sm:$0xf] %v2348
  %2477 = vst [vmem:[%s6 + $0xb0] sm:$0xf] %v2349
  %2478 = vst [vmem:[%s6 + $0xb4] sm:$0xf] %v2350
  %2479 = vst [vmem:[%s6 + $0xb8] sm:$0xf] %v2351
  %2480 = vst [vmem:[%s6 + $0xbc] sm:$0xf] %v2352
  %2481 = vst [vmem:[%s6 + $0xc0] sm:$0xf] %v2353
  %2482 = vst [vmem:[%s6 + $0xc4] sm:$0xf] %v2354
  %2483 = vst [vmem:[%s6 + $0xc8] sm:$0xf] %v2355
  %2484 = vst [vmem:[%s6 + $0xcc] sm:$0xf] %v2356
  %2485 = vst [vmem:[%s6 + $0xd0] sm:$0xf] %v2357
  %2486 = vst [vmem:[%s6 + $0xd4] sm:$0xf] %v2358
  %2487 = vst [vmem:[%s6 + $0xd8] sm:$0xf] %v2359
  %2488 = vst [vmem:[%s6 + $0xdc] sm:$0xf] %v2360
  %2489 = vst [vmem:[%s6 + $0xe0] sm:$0xf] %v2361
  %2490 = vst [vmem:[%s6 + $0xe4] sm:$0xf] %v2362
  %2491 = vst [vmem:[%s6 + $0xe8] sm:$0xf] %v2363
  %2492 = vst [vmem:[%s6 + $0xec] sm:$0xf] %v2364
  %2493 = vst [vmem:[%s6 + $0xf0] sm:$0xf] %v2365
  %2494 = vst [vmem:[%s6 + $0xf4] sm:$0xf] %v2366
  %2495 = vst [vmem:[%s6 + $0xf8] sm:$0xf] %v2367
  %2496 = vst [vmem:[%s6 + $0xfc] sm:$0xf] %v2368
  // Predicated region
  $region26: #{_lambda_.8} parent=0 // pred_check
    _
  $region27: #{_lambda_.8} parent=0 // pred_check_branch
    %2498 = sbr.rel (0) target = $region29
  $region28: #{_lambda_.8} parent=0 // pred_region
    _
  $region29: #{_lambda_.8} parent=0 // pred_fallthru
    _
  // Predicated region
  $region30: #{_lambda_.8} parent=0 // pred_check
    _
  $region31: #{_lambda_.8} parent=0 // pred_check_branch
    %2500 = sbr.rel (0) target = $region33
  $region32: #{_lambda_.8} parent=0 // pred_region
    _
  $region33: #{_lambda_.8} parent=0 // pred_fallthru
    _

// kernel: _lambda_.9
$region0: #{_lambda_.9}
  #allocation0 [shape = 'u32[]', space=smem, size = 0x4, offset = 0x4, fixed_abs, tag = 'smem constant byte address 0x4 - core index']
  #allocation1 [shape = 'u32[144,128]{1,0:T(1,128)}', space=vmem, size = 0x12000, scoped, tag = 'internal scratch']
  %s0 = inlined_call_operand.vmem [shape: bf16[2048,144], index: 0, kind: input, shape index: {}]
  %s1 = inlined_call_operand.vmem [shape: bf16[144,128], index: 1, kind: input, shape index: {}]
  %s2 = inlined_call_operand.vmem [shape: f32[1,128], index: 2, kind: input, shape index: {}]
  %s3 = inlined_call_operand.vmem [shape: bf16[2048,128], index: 3, kind: output, shape index: {}]
  %s4 = sld [smem:[#allocation0]]
  $region45: #{_lambda_.9} parent=0
    _
  %s6 = ssub.s32 1, %s4
  %s7 = scalar_select 0, %s6, %s4
  loop: start=0, step=1, limit=6
  $region2: #{_lambda_.9} parent=0 // loop_pre_header
    _
  $region3: #{_lambda_.9} parent=0 // loop_header
    %s9 = sphi 0, %s13
    %p10 = scmp.ge.s32.totalorder %s9, 6
    %s19 = sphi 0, %s21
    %s22 = sphi 0, %s19
    %s23 = sphi 0, %s22
    %s39 = sphi 0, %s23
    %s43 = sphi 0, %s43
    %s45 = sphi 0, %s43
    %s46 = sphi 0, %s45
    %s60 = sphi 0, %s46
    %s64 = sphi 0, %s64
    %s66 = sphi 0, %s64
    %s67 = sphi 0, %s66
    %s81 = sphi 0, %s67
    %s87 = sphi 0, %s89
    %s90 = sphi 0, %s87
    %s91 = sphi 0, %s90
    %s107 = sphi 0, %s91
  $region4: #{_lambda_.9} parent=0 // loop_header_branch
    %12 = sbr.rel (%p10) target = $region8
  $region5: #{_lambda_.9} parent=0 // loop_body
    %s14 = ssub.s32 %s9, 1
    %s15 = ssub.s32 %s9, 2
    %s16 = sadd.s32 %s9, 1
    %s17 = ssub.s32 %s9, %s16
    %p18 = scmp.eq.s32.totalorder %s17, 0
    %s20 = sadd.s32 %s19, 1
    %s21 = scalar_select %p18, %s19, %s20
    %p24 = pneg %p18
    %p25 = scmp.eq.s32.totalorder %s9, 3
    %p26 = por %p24, %p25
    %p27 = scmp.ne.s32.totalorder %s19, %s22
    %p28 = scmp.eq.s32.totalorder %s9, 0
    %p29 = por %p27, %p28
    %p30 = scmp.ne.s32.totalorder %s19, %s22
    %p31 = scmp.eq.s32.totalorder %s14, 3
    %p32 = por %p30, %p31
    %p33 = scmp.ne.s32.totalorder %s22, %s23
    %p34 = scmp.eq.s32.totalorder %s14, 0
    %p35 = por %p33, %p34
    %p36 = scmp.ne.s32.totalorder %s22, %s23
    %p37 = scmp.eq.s32.totalorder %s15, 3
    %p38 = por %p36, %p37
    %p40 = scmp.ne.s32.totalorder %s23, %s39
    %p41 = scmp.eq.s32.totalorder %s15, 0
    %p42 = por %p40, %p41
    %s44 = sadd.s32 %s43, 1
    %p47 = scmp.eq.s32.totalorder %s9, 3
    %p48 = scmp.ne.s32.totalorder %s43, %s45
    %p49 = scmp.eq.s32.totalorder %s9, 0
    %p50 = por %p48, %p49
    %p51 = scmp.ne.s32.totalorder %s43, %s45
    %p52 = scmp.eq.s32.totalorder %s14, 3
    %p53 = por %p51, %p52
    %p54 = scmp.ne.s32.totalorder %s45, %s46
    %p55 = scmp.eq.s32.totalorder %s14, 0
    %p56 = por %p54, %p55
    %p57 = scmp.ne.s32.totalorder %s45, %s46
    %p58 = scmp.eq.s32.totalorder %s15, 3
    %p59 = por %p57, %p58
    %p61 = scmp.ne.s32.totalorder %s46, %s60
    %p62 = scmp.eq.s32.totalorder %s15, 0
    %p63 = por %p61, %p62
    %s65 = sadd.s32 %s64, 1
    %p68 = scmp.eq.s32.totalorder %s9, 3
    %p69 = scmp.ne.s32.totalorder %s64, %s66
    %p70 = scmp.eq.s32.totalorder %s9, 0
    %p71 = por %p69, %p70
    %p72 = scmp.ne.s32.totalorder %s64, %s66
    %p73 = scmp.eq.s32.totalorder %s14, 3
    %p74 = por %p72, %p73
    %p75 = scmp.ne.s32.totalorder %s66, %s67
    %p76 = scmp.eq.s32.totalorder %s14, 0
    %p77 = por %p75, %p76
    %p78 = scmp.ne.s32.totalorder %s66, %s67
    %p79 = scmp.eq.s32.totalorder %s15, 3
    %p80 = por %p78, %p79
    %p82 = scmp.ne.s32.totalorder %s67, %s81
    %p83 = scmp.eq.s32.totalorder %s15, 0
    %p84 = por %p82, %p83
    %s85 = ssub.s32 %s9, %s16
    %p86 = scmp.eq.s32.totalorder %s85, 0
    %s88 = sadd.s32 %s87, 1
    %s89 = scalar_select %p86, %s87, %s88
    %p92 = pneg %p86
    %p93 = scmp.eq.s32.totalorder %s9, 3
    %p94 = por %p92, %p93
    %p95 = scmp.ne.s32.totalorder %s87, %s90
    %p96 = scmp.eq.s32.totalorder %s9, 0
    %p97 = por %p95, %p96
    %p98 = scmp.ne.s32.totalorder %s87, %s90
    %p99 = scmp.eq.s32.totalorder %s14, 3
    %p100 = por %p98, %p99
    %p101 = scmp.ne.s32.totalorder %s90, %s91
    %p102 = scmp.eq.s32.totalorder %s14, 0
    %p103 = por %p101, %p102
    %p104 = scmp.ne.s32.totalorder %s90, %s91
    %p105 = scmp.eq.s32.totalorder %s15, 3
    %p106 = por %p104, %p105
    %p108 = scmp.ne.s32.totalorder %s91, %s107
    %p109 = scmp.eq.s32.totalorder %s15, 0
    %p110 = por %p108, %p109
    %p111 = scmp.le.s32.totalorder 1, %s9
    %p112 = scmp.lt.s32.totalorder %s9, 5
    %p113 = pnand %p111, %p112
    %p114 = pneg %p113
    // Predicated region
    $region9: #{_lambda_.9} parent=5 // pred_check
      _
    $region10: #{_lambda_.9} parent=5 // pred_check_branch
      %116 = sbr.rel (%p113) target = $region12
    $region11: #{_lambda_.9} parent=5 // pred_region
      %s117 = ssub.s32 %s9, 1
      // Predicated region
      $region13: #{_lambda_.9} parent=11 // pred_check
        %p118 = pneg %p56
      $region14: #{_lambda_.9} parent=11 // pred_check_branch
        %120 = sbr.rel (%p118) target = $region16
      $region15: #{_lambda_.9} parent=11 // pred_region
        _
      $region16: #{_lambda_.9} parent=11 // pred_fallthru
        _
      // Predicated region
      $region17: #{_lambda_.9} parent=11 // pred_check
        %p121 = pneg %p77
      $region18: #{_lambda_.9} parent=11 // pred_check_branch
        %123 = sbr.rel (%p121) target = $region20
      $region19: #{_lambda_.9} parent=11 // pred_region
        _
      $region20: #{_lambda_.9} parent=11 // pred_fallthru
        _
    $region12: #{_lambda_.9} parent=5 // pred_fallthru
      _
    %p124 = scmp.lt.s32.totalorder %s9, 4
    // Predicated region
    $region21: #{_lambda_.9} parent=5 // pred_check
      %p125 = pneg %p124
    $region22: #{_lambda_.9} parent=5 // pred_check_branch
      %127 = sbr.rel (%p125) target = $region24
    $region23: #{_lambda_.9} parent=5 // pred_region
      // Predicated region
      $region25: #{_lambda_.9} parent=23 // pred_check
        %p128 = pneg %p29
      $region26: #{_lambda_.9} parent=23 // pred_check_branch
        %130 = sbr.rel (%p128) target = $region28
      $region27: #{_lambda_.9} parent=23 // pred_region
        %s131 = smul.u32 64, %s9
        %p132 = scmp.lt.s32.totalorder %s131, 255
        %s133 = scalar_select %p132, %s131, 255
        %s134 = smul.addr %s133, 2
        %s135 = smul.addr %s134, 4
        %s136 = scalar_lea.vmem %s0, %s135
        %s137 = smul.u32 64, %s9
      $region28: #{_lambda_.9} parent=23 // pred_fallthru
        _
    $region24: #{_lambda_.9} parent=5 // pred_fallthru
      _
    %p138 = scmp.le.s32.totalorder 1, %s9
    %p139 = scmp.lt.s32.totalorder %s9, 5
    %p140 = pnand %p138, %p139
    %p141 = pneg %p140
    // Predicated region
    $region29: #{_lambda_.9} parent=5 // pred_check
      _
    $region30: #{_lambda_.9} parent=5 // pred_check_branch
      %143 = sbr.rel (%p140) target = $region32
    $region31: #{_lambda_.9} parent=5 // pred_region
      %s144 = ssub.s32 %s9, 1
      %s145 = smul.u32 64, %s14
      %p146 = scmp.lt.s32.totalorder %s145, 255
      %s147 = scalar_select %p146, %s145, 255
      %s148 = smul.addr %s147, 2
      %s149 = smul.addr %s148, 4
      %s150 = scalar_lea.vmem %s0, %s149
      %p151 = pneg %p35
      %p152 = pneg %p32
      %p153 = pneg %p56
      %p154 = pneg %p53
      %p155 = pneg %p77
      %p156 = pneg %p74
      %p157 = pneg %p103
      %p158 = pneg %p100
      %s159 = smul.u32 64, %s14
      %p160 = scmp.lt.s32.totalorder %s159, 255
      %s161 = scalar_select %p160, %s159, 255
      %s162 = smul.addr %s161, 4
      %s163 = scalar_lea.vmem %s3, %s162
      %s164 = smul.u32 64, %s14
      %p165 = scmp.lt.s32.totalorder %s164, 255
      %s166 = scalar_select %p165, %s164, 255
      %s167 = smul.addr %s166, 2
      %s168 = smul.addr %s167, 4
      %s169 = scalar_lea.vmem %s0, %s168
      %s170 = smul.u32 64, %s14
      %s171 = smul.u32 64, %s14
      %p172 = scmp.lt.s32.totalorder %s171, 255
      %s173 = scalar_select %p172, %s171, 255
      %s174 = smul.addr %s173, 4
      %s175 = scalar_lea.vmem %s3, %s174
      %s176 = smul.u32 64, %s14
      %v178 = vld [vmem:[%s169] sm:$0xff]
      %v179 = vld [vmem:[%s169 + $0x8] sm:$0xff]
      %v180 = vld [vmem:[%s169 + $0x10] sm:$0xff]
      %v181 = vld [vmem:[%s169 + $0x18] sm:$0xff]
      %v182 = vld [vmem:[%s169 + $0x20] sm:$0xff]
      %v183 = vld [vmem:[%s169 + $0x28] sm:$0xff]
      %v184 = vld [vmem:[%s169 + $0x30] sm:$0xff]
      %v185 = vld [vmem:[%s169 + $0x38] sm:$0xff]
      %v186 = vld [vmem:[%s169 + $0x40] sm:$0xff]
      %v187 = vld [vmem:[%s169 + $0x48] sm:$0xff]
      %v188 = vld [vmem:[%s169 + $0x50] sm:$0xff]
      %v189 = vld [vmem:[%s169 + $0x58] sm:$0xff]
      %v190 = vld [vmem:[%s169 + $0x60] sm:$0xff]
      %v191 = vld [vmem:[%s169 + $0x68] sm:$0xff]
      %v192 = vld [vmem:[%s169 + $0x70] sm:$0xff]
      %v193 = vld [vmem:[%s169 + $0x78] sm:$0xff]
      %v194 = vld [vmem:[%s169 + $0x80] sm:$0xff]
      %v195 = vld [vmem:[%s169 + $0x88] sm:$0xff]
      %v196 = vld [vmem:[%s169 + $0x90] sm:$0xff]
      %v197 = vld [vmem:[%s169 + $0x98] sm:$0xff]
      %v198 = vld [vmem:[%s169 + $0xa0] sm:$0xff]
      %v199 = vld [vmem:[%s169 + $0xa8] sm:$0xff]
      %v200 = vld [vmem:[%s169 + $0xb0] sm:$0xff]
      %v201 = vld [vmem:[%s169 + $0xb8] sm:$0xff]
      %v202 = vld [vmem:[%s169 + $0xc0] sm:$0xff]
      %v203 = vld [vmem:[%s169 + $0xc8] sm:$0xff]
      %v204 = vld [vmem:[%s169 + $0xd0] sm:$0xff]
      %v205 = vld [vmem:[%s169 + $0xd8] sm:$0xff]
      %v206 = vld [vmem:[%s169 + $0xe0] sm:$0xff]
      %v207 = vld [vmem:[%s169 + $0xe8] sm:$0xff]
      %v208 = vld [vmem:[%s169 + $0xf0] sm:$0xff]
      %v209 = vld [vmem:[%s169 + $0xf8] sm:$0xff]
      %v210 = vld [vmem:[%s169 + $0x100] sm:$0xff]
      %v211 = vld [vmem:[%s169 + $0x108] sm:$0xff]
      %v212 = vld [vmem:[%s169 + $0x110] sm:$0xff]
      %v213 = vld [vmem:[%s169 + $0x118] sm:$0xff]
      %v214 = vld [vmem:[%s169 + $0x120] sm:$0xff]
      %v215 = vld [vmem:[%s169 + $0x128] sm:$0xff]
      %v216 = vld [vmem:[%s169 + $0x130] sm:$0xff]
      %v217 = vld [vmem:[%s169 + $0x138] sm:$0xff]
      %v218 = vld [vmem:[%s169 + $0x140] sm:$0xff]
      %v219 = vld [vmem:[%s169 + $0x148] sm:$0xff]
      %v220 = vld [vmem:[%s169 + $0x150] sm:$0xff]
      %v221 = vld [vmem:[%s169 + $0x158] sm:$0xff]
      %v222 = vld [vmem:[%s169 + $0x160] sm:$0xff]
      %v223 = vld [vmem:[%s169 + $0x168] sm:$0xff]
      %v224 = vld [vmem:[%s169 + $0x170] sm:$0xff]
      %v225 = vld [vmem:[%s169 + $0x178] sm:$0xff]
      %v226 = vld [vmem:[%s169 + $0x180] sm:$0xff]
      %v227 = vld [vmem:[%s169 + $0x188] sm:$0xff]
      %v228 = vld [vmem:[%s169 + $0x190] sm:$0xff]
      %v229 = vld [vmem:[%s169 + $0x198] sm:$0xff]
      %v230 = vld [vmem:[%s169 + $0x1a0] sm:$0xff]
      %v231 = vld [vmem:[%s169 + $0x1a8] sm:$0xff]
      %v232 = vld [vmem:[%s169 + $0x1b0] sm:$0xff]
      %v233 = vld [vmem:[%s169 + $0x1b8] sm:$0xff]
      %v234 = vld [vmem:[%s169 + $0x1c0] sm:$0xff]
      %v235 = vld [vmem:[%s169 + $0x1c8] sm:$0xff]
      %v236 = vld [vmem:[%s169 + $0x1d0] sm:$0xff]
      %v237 = vld [vmem:[%s169 + $0x1d8] sm:$0xff]
      %v238 = vld [vmem:[%s169 + $0x1e0] sm:$0xff]
      %v239 = vld [vmem:[%s169 + $0x1e8] sm:$0xff]
      %v240 = vld [vmem:[%s169 + $0x1f0] sm:$0xff]
      %v241 = vld [vmem:[%s169 + $0x1f8] sm:$0xff]
      %v242 = vld [vmem:[%s1] sm:$0xf]
      %v243 = vld [vmem:[%s1 + $0x4] sm:$0xf]
      %v244 = vld [vmem:[%s1 + $0x8] sm:$0xf]
      %v245 = vld [vmem:[%s1 + $0xc] sm:$0xf]
      %v246 = vld [vmem:[%s1 + $0x10] sm:$0xf]
      %v247 = vld [vmem:[%s1 + $0x14] sm:$0xf]
      %v248 = vld [vmem:[%s1 + $0x18] sm:$0xf]
      %v249 = vld [vmem:[%s1 + $0x1c] sm:$0xf]
      %v250 = vld [vmem:[%s1 + $0x20] sm:$0xf]
      %v251 = vld [vmem:[%s1 + $0x24] sm:$0xf]
      %v252 = vld [vmem:[%s1 + $0x28] sm:$0xf]
      %v253 = vld [vmem:[%s1 + $0x2c] sm:$0xf]
      %v254 = vld [vmem:[%s1 + $0x30] sm:$0xf]
      %v255 = vld [vmem:[%s1 + $0x34] sm:$0xf]
      %v256 = vld [vmem:[%s1 + $0x38] sm:$0xf]
      %v257 = vld [vmem:[%s1 + $0x3c] sm:$0xf]
      %v258 = vld [vmem:[%s1 + $0x40] sm:$0xf]
      %v259 = vld [vmem:[%s1 + $0x44] sm:$0xf]
      %v260 = vld [vmem:[%s2] sm:$0x1]
      %v262 = vlaneseq
      %v263 = vshrl.u32 %v262, 7
      %v264 = vsub.s32 0, %v263
      %v265 = vrot.slane %v260, %v264
      %v331 = vunpack.c.l.b16 %v178
      %v332 = vunpack.c.h.b16 %v178
      %v333 = vunpack.c.l.b16 %v179
      %v334 = vunpack.c.h.b16 %v179
      %v335 = vunpack.c.l.b16 %v180
      %v336 = vunpack.c.h.b16 %v180
      %v337 = vunpack.c.l.b16 %v181
      %v338 = vunpack.c.h.b16 %v181
      %v339 = vunpack.c.l.b16 %v182
      %v340 = vunpack.c.h.b16 %v182
      %v341 = vunpack.c.l.b16 %v183
      %v342 = vunpack.c.h.b16 %v183
      %v343 = vunpack.c.l.b16 %v184
      %v344 = vunpack.c.h.b16 %v184
      %v345 = vunpack.c.l.b16 %v185
      %v346 = vunpack.c.h.b16 %v185
      %v347 = vunpack.c.l.b16 %v186
      %v348 = vunpack.c.h.b16 %v186
      %v349 = vunpack.c.l.b16 %v187
      %v350 = vunpack.c.h.b16 %v187
      %v351 = vunpack.c.l.b16 %v188
      %v352 = vunpack.c.h.b16 %v188
      %v353 = vunpack.c.l.b16 %v189
      %v354 = vunpack.c.h.b16 %v189
      %v355 = vunpack.c.l.b16 %v190
      %v356 = vunpack.c.h.b16 %v190
      %v357 = vunpack.c.l.b16 %v191
      %v358 = vunpack.c.h.b16 %v191
      %v359 = vunpack.c.l.b16 %v192
      %v360 = vunpack.c.h.b16 %v192
      %v361 = vunpack.c.l.b16 %v193
      %v362 = vunpack.c.h.b16 %v193
      %v363 = vunpack.c.l.b16 %v194
      %v364 = vunpack.c.h.b16 %v194
      %v365 = vunpack.c.l.b16 %v195
      %v366 = vunpack.c.h.b16 %v195
      %v367 = vunpack.c.l.b16 %v196
      %v368 = vunpack.c.h.b16 %v196
      %v369 = vunpack.c.l.b16 %v197
      %v370 = vunpack.c.h.b16 %v197
      %v371 = vunpack.c.l.b16 %v198
      %v372 = vunpack.c.h.b16 %v198
      %v373 = vunpack.c.l.b16 %v199
      %v374 = vunpack.c.h.b16 %v199
      %v375 = vunpack.c.l.b16 %v200
      %v376 = vunpack.c.h.b16 %v200
      %v377 = vunpack.c.l.b16 %v201
      %v378 = vunpack.c.h.b16 %v201
      %v379 = vunpack.c.l.b16 %v202
      %v380 = vunpack.c.h.b16 %v202
      %v381 = vunpack.c.l.b16 %v203
      %v382 = vunpack.c.h.b16 %v203
      %v383 = vunpack.c.l.b16 %v204
      %v384 = vunpack.c.h.b16 %v204
      %v385 = vunpack.c.l.b16 %v205
      %v386 = vunpack.c.h.b16 %v205
      %v387 = vunpack.c.l.b16 %v206
      %v388 = vunpack.c.h.b16 %v206
      %v389 = vunpack.c.l.b16 %v207
      %v390 = vunpack.c.h.b16 %v207
      %v391 = vunpack.c.l.b16 %v208
      %v392 = vunpack.c.h.b16 %v208
      %v393 = vunpack.c.l.b16 %v209
      %v394 = vunpack.c.h.b16 %v209
      %v395 = vunpack.c.l.b16 %v210
      %v396 = vunpack.c.h.b16 %v210
      %v397 = vunpack.c.l.b16 %v211
      %v398 = vunpack.c.h.b16 %v211
      %v399 = vunpack.c.l.b16 %v212
      %v400 = vunpack.c.h.b16 %v212
      %v401 = vunpack.c.l.b16 %v213
      %v402 = vunpack.c.h.b16 %v213
      %v403 = vunpack.c.l.b16 %v214
      %v404 = vunpack.c.h.b16 %v214
      %v405 = vunpack.c.l.b16 %v215
      %v406 = vunpack.c.h.b16 %v215
      %v407 = vunpack.c.l.b16 %v216
      %v408 = vunpack.c.h.b16 %v216
      %v409 = vunpack.c.l.b16 %v217
      %v410 = vunpack.c.h.b16 %v217
      %v411 = vunpack.c.l.b16 %v218
      %v412 = vunpack.c.h.b16 %v218
      %v413 = vunpack.c.l.b16 %v219
      %v414 = vunpack.c.h.b16 %v219
      %v415 = vunpack.c.l.b16 %v220
      %v416 = vunpack.c.h.b16 %v220
      %v417 = vunpack.c.l.b16 %v221
      %v418 = vunpack.c.h.b16 %v221
      %v419 = vunpack.c.l.b16 %v222
      %v420 = vunpack.c.h.b16 %v222
      %v421 = vunpack.c.l.b16 %v223
      %v422 = vunpack.c.h.b16 %v223
      %v423 = vunpack.c.l.b16 %v224
      %v424 = vunpack.c.h.b16 %v224
      %v425 = vunpack.c.l.b16 %v225
      %v426 = vunpack.c.h.b16 %v225
      %v427 = vunpack.c.l.b16 %v226
      %v428 = vunpack.c.h.b16 %v226
      %v429 = vunpack.c.l.b16 %v227
      %v430 = vunpack.c.h.b16 %v227
      %v431 = vunpack.c.l.b16 %v228
      %v432 = vunpack.c.h.b16 %v228
      %v433 = vunpack.c.l.b16 %v229
      %v434 = vunpack.c.h.b16 %v229
      %v435 = vunpack.c.l.b16 %v230
      %v436 = vunpack.c.h.b16 %v230
      %v437 = vunpack.c.l.b16 %v231
      %v438 = vunpack.c.h.b16 %v231
      %v439 = vunpack.c.l.b16 %v232
      %v440 = vunpack.c.h.b16 %v232
      %v441 = vunpack.c.l.b16 %v233
      %v442 = vunpack.c.h.b16 %v233
      %v443 = vunpack.c.l.b16 %v234
      %v444 = vunpack.c.h.b16 %v234
      %v445 = vunpack.c.l.b16 %v235
      %v446 = vunpack.c.h.b16 %v235
      %v447 = vunpack.c.l.b16 %v236
      %v448 = vunpack.c.h.b16 %v236
      %v449 = vunpack.c.l.b16 %v237
      %v450 = vunpack.c.h.b16 %v237
      %v451 = vunpack.c.l.b16 %v238
      %v452 = vunpack.c.h.b16 %v238
      %v453 = vunpack.c.l.b16 %v239
      %v454 = vunpack.c.h.b16 %v239
      %v455 = vunpack.c.l.b16 %v240
      %v456 = vunpack.c.h.b16 %v240
      %v457 = vunpack.c.l.b16 %v241
      %v458 = vunpack.c.h.b16 %v241
      %v459 = vpack.c.b16 %v333, %v331
      %v460 = vpack.c.b16 %v334, %v332
      %v461 = vpack.c.b16 %v337, %v335
      %v462 = vpack.c.b16 %v338, %v336
      %v463 = vpack.c.b16 %v341, %v339
      %v464 = vpack.c.b16 %v342, %v340
      %v465 = vpack.c.b16 %v345, %v343
      %v466 = vpack.c.b16 %v346, %v344
      %v467 = vpack.c.b16 %v349, %v347
      %v468 = vpack.c.b16 %v350, %v348
      %v469 = vpack.c.b16 %v353, %v351
      %v470 = vpack.c.b16 %v354, %v352
      %v471 = vpack.c.b16 %v357, %v355
      %v472 = vpack.c.b16 %v358, %v356
      %v473 = vpack.c.b16 %v361, %v359
      %v474 = vpack.c.b16 %v362, %v360
      %v475 = vpack.c.b16 %v365, %v363
      %v476 = vpack.c.b16 %v366, %v364
      %v477 = vpack.c.b16 %v369, %v367
      %v478 = vpack.c.b16 %v370, %v368
      %v479 = vpack.c.b16 %v373, %v371
      %v480 = vpack.c.b16 %v374, %v372
      %v481 = vpack.c.b16 %v377, %v375
      %v482 = vpack.c.b16 %v378, %v376
      %v483 = vpack.c.b16 %v381, %v379
      %v484 = vpack.c.b16 %v382, %v380
      %v485 = vpack.c.b16 %v385, %v383
      %v486 = vpack.c.b16 %v386, %v384
      %v487 = vpack.c.b16 %v389, %v387
      %v488 = vpack.c.b16 %v390, %v388
      %v489 = vpack.c.b16 %v393, %v391
      %v490 = vpack.c.b16 %v394, %v392
      %v491 = vpack.c.b16 %v397, %v395
      %v492 = vpack.c.b16 %v398, %v396
      %v493 = vpack.c.b16 %v401, %v399
      %v494 = vpack.c.b16 %v402, %v400
      %v495 = vpack.c.b16 %v405, %v403
      %v496 = vpack.c.b16 %v406, %v404
      %v497 = vpack.c.b16 %v409, %v407
      %v498 = vpack.c.b16 %v410, %v408
      %v499 = vpack.c.b16 %v413, %v411
      %v500 = vpack.c.b16 %v414, %v412
      %v501 = vpack.c.b16 %v417, %v415
      %v502 = vpack.c.b16 %v418, %v416
      %v503 = vpack.c.b16 %v421, %v419
      %v504 = vpack.c.b16 %v422, %v420
      %v505 = vpack.c.b16 %v425, %v423
      %v506 = vpack.c.b16 %v426, %v424
      %v507 = vpack.c.b16 %v429, %v427
      %v508 = vpack.c.b16 %v430, %v428
      %v509 = vpack.c.b16 %v433, %v431
      %v510 = vpack.c.b16 %v434, %v432
      %v511 = vpack.c.b16 %v437, %v435
      %v512 = vpack.c.b16 %v438, %v436
      %v513 = vpack.c.b16 %v441, %v439
      %v514 = vpack.c.b16 %v442, %v440
      %v515 = vpack.c.b16 %v445, %v443
      %v516 = vpack.c.b16 %v446, %v444
      %v517 = vpack.c.b16 %v449, %v447
      %v518 = vpack.c.b16 %v450, %v448
      %v519 = vpack.c.b16 %v453, %v451
      %v520 = vpack.c.b16 %v454, %v452
      %v521 = vpack.c.b16 %v457, %v455
      %v522 = vpack.c.b16 %v458, %v456
      %v573 = vunpack.c.l.b16 %v242
      %v574 = vunpack.c.l.b16 %v243
      %v575 = vunpack.c.l.b16 %v244
      %v576 = vunpack.c.l.b16 %v245
      %v577 = vunpack.c.l.b16 %v246
      %v578 = vunpack.c.l.b16 %v247
      %v579 = vunpack.c.l.b16 %v248
      %v580 = vunpack.c.l.b16 %v249
      %v581 = vunpack.c.l.b16 %v250
      %v582 = vunpack.c.l.b16 %v251
      %v583 = vunpack.c.l.b16 %v252
      %v584 = vunpack.c.l.b16 %v253
      %v585 = vunpack.c.l.b16 %v254
      %v586 = vunpack.c.l.b16 %v255
      %v587 = vunpack.c.l.b16 %v256
      %v588 = vunpack.c.l.b16 %v257
      %v589 = vunpack.c.l.b16 %v258
      %v590 = vunpack.c.l.b16 %v259
      %v591 = vpack.c.b16 %v574, %v573
      %v592 = vpack.c.b16 %v576, %v575
      %v593 = vpack.c.b16 %v578, %v577
      %v594 = vpack.c.b16 %v580, %v579
      %v595 = vpack.c.b16 %v582, %v581
      %v596 = vpack.c.b16 %v584, %v583
      %v597 = vpack.c.b16 %v586, %v585
      %v598 = vpack.c.b16 %v588, %v587
      %v599 = vpack.c.b16 %v590, %v589
      %vm609 = vcmask 130048
      %v611 = vsel %vm609, %v460, 0
      %v614 = vsel %vm609, %v462, 0
      %v617 = vsel %vm609, %v464, 0
      %v620 = vsel %vm609, %v466, 0
      %v623 = vsel %vm609, %v468, 0
      %v626 = vsel %vm609, %v470, 0
      %v629 = vsel %vm609, %v472, 0
      %v632 = vsel %vm609, %v474, 0
      %v635 = vsel %vm609, %v476, 0
      %v638 = vsel %vm609, %v478, 0
      %v641 = vsel %vm609, %v480, 0
      %v644 = vsel %vm609, %v482, 0
      %v647 = vsel %vm609, %v484, 0
      %v650 = vsel %vm609, %v486, 0
      %v653 = vsel %vm609, %v488, 0
      %v656 = vsel %vm609, %v490, 0
      %v659 = vsel %vm609, %v492, 0
      %v662 = vsel %vm609, %v494, 0
      %v665 = vsel %vm609, %v496, 0
      %v668 = vsel %vm609, %v498, 0
      %v671 = vsel %vm609, %v500, 0
      %v674 = vsel %vm609, %v502, 0
      %v677 = vsel %vm609, %v504, 0
      %v680 = vsel %vm609, %v506, 0
      %v683 = vsel %vm609, %v508, 0
      %v686 = vsel %vm609, %v510, 0
      %v689 = vsel %vm609, %v512, 0
      %v692 = vsel %vm609, %v514, 0
      %v695 = vsel %vm609, %v516, 0
      %v698 = vsel %vm609, %v518, 0
      %v701 = vsel %vm609, %v520, 0
      %v704 = vsel %vm609, %v522, 0
      %706 = vmatprep.subr.bf16.mxu0 0
      %707 = vmatpush1.bf16.msra.mxu0 %v598
      %708 = vmatprep.subr.bf16.mxu0 0
      %709 = vmatpush1.bf16.msra.mxu0 %v597
      %710 = vmatprep.subr.bf16.mxu0 0
      %711 = vmatpush1.bf16.msra.mxu0 %v596
      %712 = vmatprep.subr.bf16.mxu0 0
      %713 = vmatpush1.bf16.msra.mxu0 %v595
      %714 = vmatprep.subr.bf16.mxu0 0
      %715 = vmatpush1.bf16.msra.mxu0 %v594
      %716 = vmatprep.subr.bf16.mxu0 0
      %717 = vmatpush1.bf16.msra.mxu0 %v593
      %718 = vmatprep.subr.bf16.mxu0 0
      %719 = vmatpush1.bf16.msra.mxu0 %v592
      %720 = vmatprep.subr.bf16.mxu0 0
      %721 = vmatpush1.bf16.msra.mxu0 %v591
      %722 = vmatprep.subr.bf16.mxu0 0
      %723 = vmatpush2.bf16.msra.mxu0 0
      %724 = vmatprep.subr.bf16.mxu0 0
      %725 = vmatpush2.bf16.msra.mxu0 0
      %726 = vmatprep.subr.bf16.mxu0 0
      %727 = vmatpush2.bf16.msra.mxu0 0
      %728 = vmatprep.subr.bf16.mxu0 0
      %729 = vmatpush2.bf16.msra.mxu0 0
      %730 = vmatprep.subr.bf16.mxu0 0
      %731 = vmatpush2.bf16.msra.mxu0 0
      %732 = vmatprep.subr.bf16.mxu0 0
      %733 = vmatpush2.bf16.msra.mxu0 0
      %734 = vmatprep.subr.bf16.mxu0 0
      %735 = vmatpush2.bf16.msra.mxu0 0
      %736 = vmatprep.subr.bf16.mxu0 0
      %737 = vmatpush2.bf16.msra.mxu0 %v599
      %738 = vmatprep.mubr.bf16.mxu0 %v611
      %739 = vmatmul.mubr.bf16.gmra.mxu0 %v459
      %v740 = vpop.f32.mrf.mxu0
      %v741 = vadd.f32 %v265, %v740
      %v742 = vpop.f32.mrf.mxu0
      %v743 = vpop.f32.mrf.mxu0
      %v744 = vadd.f32 %v265, %v743
      %v745 = vpop.f32.mrf.mxu0
      %746 = vmatprep.mubr.bf16.mxu0 %v614
      %747 = vmatmul.mubr.bf16.gmra.mxu0 %v461
      %v748 = vpop.f32.mrf.mxu0
      %v749 = vadd.f32 %v265, %v748
      %v750 = vpop.f32.mrf.mxu0
      %v751 = vpop.f32.mrf.mxu0
      %v752 = vadd.f32 %v265, %v751
      %v753 = vpop.f32.mrf.mxu0
      %754 = vmatprep.mubr.bf16.mxu0 %v617
      %755 = vmatmul.mubr.bf16.gmra.mxu0 %v463
      %v756 = vpop.f32.mrf.mxu0
      %v757 = vadd.f32 %v265, %v756
      %v758 = vpop.f32.mrf.mxu0
      %v759 = vpop.f32.mrf.mxu0
      %v760 = vadd.f32 %v265, %v759
      %v761 = vpop.f32.mrf.mxu0
      %762 = vmatprep.mubr.bf16.mxu0 %v620
      %763 = vmatmul.mubr.bf16.gmra.mxu0 %v465
      %v764 = vpop.f32.mrf.mxu0
      %v765 = vadd.f32 %v265, %v764
      %v766 = vpop.f32.mrf.mxu0
      %v767 = vpop.f32.mrf.mxu0
      %v768 = vadd.f32 %v265, %v767
      %v769 = vpop.f32.mrf.mxu0
      %770 = vmatprep.mubr.bf16.mxu0 %v623
      %771 = vmatmul.mubr.bf16.gmra.mxu0 %v467
      %v772 = vpop.f32.mrf.mxu0
      %v773 = vadd.f32 %v265, %v772
      %v774 = vpop.f32.mrf.mxu0
      %v775 = vpop.f32.mrf.mxu0
      %v776 = vadd.f32 %v265, %v775
      %v777 = vpop.f32.mrf.mxu0
      %778 = vmatprep.mubr.bf16.mxu0 %v626
      %779 = vmatmul.mubr.bf16.gmra.mxu0 %v469
      %v780 = vpop.f32.mrf.mxu0
      %v781 = vadd.f32 %v265, %v780
      %v782 = vpop.f32.mrf.mxu0
      %v783 = vpop.f32.mrf.mxu0
      %v784 = vadd.f32 %v265, %v783
      %v785 = vpop.f32.mrf.mxu0
      %786 = vmatprep.mubr.bf16.mxu0 %v629
      %787 = vmatmul.mubr.bf16.gmra.mxu0 %v471
      %v788 = vpop.f32.mrf.mxu0
      %v789 = vadd.f32 %v265, %v788
      %v790 = vpop.f32.mrf.mxu0
      %v791 = vpop.f32.mrf.mxu0
      %v792 = vadd.f32 %v265, %v791
      %v793 = vpop.f32.mrf.mxu0
      %794 = vmatprep.mubr.bf16.mxu0 %v632
      %795 = vmatmul.mubr.bf16.gmra.mxu0 %v473
      %v796 = vpop.f32.mrf.mxu0
      %v797 = vadd.f32 %v265, %v796
      %v798 = vpop.f32.mrf.mxu0
      %v799 = vpop.f32.mrf.mxu0
      %v800 = vadd.f32 %v265, %v799
      %v801 = vpop.f32.mrf.mxu0
      %802 = vmatprep.mubr.bf16.mxu0 %v635
      %803 = vmatmul.mubr.bf16.gmra.mxu0 %v475
      %v804 = vpop.f32.mrf.mxu0
      %v805 = vadd.f32 %v265, %v804
      %v806 = vpop.f32.mrf.mxu0
      %v807 = vpop.f32.mrf.mxu0
      %v808 = vadd.f32 %v265, %v807
      %v809 = vpop.f32.mrf.mxu0
      %810 = vmatprep.mubr.bf16.mxu0 %v638
      %811 = vmatmul.mubr.bf16.gmra.mxu0 %v477
      %v812 = vpop.f32.mrf.mxu0
      %v813 = vadd.f32 %v265, %v812
      %v814 = vpop.f32.mrf.mxu0
      %v815 = vpop.f32.mrf.mxu0
      %v816 = vadd.f32 %v265, %v815
      %v817 = vpop.f32.mrf.mxu0
      %818 = vmatprep.mubr.bf16.mxu0 %v641
      %819 = vmatmul.mubr.bf16.gmra.mxu0 %v479
      %v820 = vpop.f32.mrf.mxu0
      %v821 = vadd.f32 %v265, %v820
      %v822 = vpop.f32.mrf.mxu0
      %v823 = vpop.f32.mrf.mxu0
      %v824 = vadd.f32 %v265, %v823
      %v825 = vpop.f32.mrf.mxu0
      %826 = vmatprep.mubr.bf16.mxu0 %v644
      %827 = vmatmul.mubr.bf16.gmra.mxu0 %v481
      %v828 = vpop.f32.mrf.mxu0
      %v829 = vadd.f32 %v265, %v828
      %v830 = vpop.f32.mrf.mxu0
      %v831 = vpop.f32.mrf.mxu0
      %v832 = vadd.f32 %v265, %v831
      %v833 = vpop.f32.mrf.mxu0
      %834 = vmatprep.mubr.bf16.mxu0 %v647
      %835 = vmatmul.mubr.bf16.gmra.mxu0 %v483
      %v836 = vpop.f32.mrf.mxu0
      %v837 = vadd.f32 %v265, %v836
      %v838 = vpop.f32.mrf.mxu0
      %v839 = vpop.f32.mrf.mxu0
      %v840 = vadd.f32 %v265, %v839
      %v841 = vpop.f32.mrf.mxu0
      %842 = vmatprep.mubr.bf16.mxu0 %v650
      %843 = vmatmul.mubr.bf16.gmra.mxu0 %v485
      %v844 = vpop.f32.mrf.mxu0
      %v845 = vadd.f32 %v265, %v844
      %v846 = vpop.f32.mrf.mxu0
      %v847 = vpop.f32.mrf.mxu0
      %v848 = vadd.f32 %v265, %v847
      %v849 = vpop.f32.mrf.mxu0
      %850 = vmatprep.mubr.bf16.mxu0 %v653
      %851 = vmatmul.mubr.bf16.gmra.mxu0 %v487
      %v852 = vpop.f32.mrf.mxu0
      %v853 = vadd.f32 %v265, %v852
      %v854 = vpop.f32.mrf.mxu0
      %v855 = vpop.f32.mrf.mxu0
      %v856 = vadd.f32 %v265, %v855
      %v857 = vpop.f32.mrf.mxu0
      %858 = vmatprep.mubr.bf16.mxu0 %v656
      %859 = vmatmul.mubr.bf16.gmra.mxu0 %v489
      %v860 = vpop.f32.mrf.mxu0
      %v861 = vadd.f32 %v265, %v860
      %v862 = vpop.f32.mrf.mxu0
      %v863 = vpop.f32.mrf.mxu0
      %v864 = vadd.f32 %v265, %v863
      %v865 = vpop.f32.mrf.mxu0
      %866 = vmatprep.mubr.bf16.mxu0 %v659
      %867 = vmatmul.mubr.bf16.gmra.mxu0 %v491
      %v868 = vpop.f32.mrf.mxu0
      %v869 = vadd.f32 %v265, %v868
      %v870 = vpop.f32.mrf.mxu0
      %v871 = vpop.f32.mrf.mxu0
      %v872 = vadd.f32 %v265, %v871
      %v873 = vpop.f32.mrf.mxu0
      %874 = vmatprep.mubr.bf16.mxu0 %v662
      %875 = vmatmul.mubr.bf16.gmra.mxu0 %v493
      %v876 = vpop.f32.mrf.mxu0
      %v877 = vadd.f32 %v265, %v876
      %v878 = vpop.f32.mrf.mxu0
      %v879 = vpop.f32.mrf.mxu0
      %v880 = vadd.f32 %v265, %v879
      %v881 = vpop.f32.mrf.mxu0
      %882 = vmatprep.mubr.bf16.mxu0 %v665
      %883 = vmatmul.mubr.bf16.gmra.mxu0 %v495
      %v884 = vpop.f32.mrf.mxu0
      %v885 = vadd.f32 %v265, %v884
      %v886 = vpop.f32.mrf.mxu0
      %v887 = vpop.f32.mrf.mxu0
      %v888 = vadd.f32 %v265, %v887
      %v889 = vpop.f32.mrf.mxu0
      %890 = vmatprep.mubr.bf16.mxu0 %v668
      %891 = vmatmul.mubr.bf16.gmra.mxu0 %v497
      %v892 = vpop.f32.mrf.mxu0
      %v893 = vadd.f32 %v265, %v892
      %v894 = vpop.f32.mrf.mxu0
      %v895 = vpop.f32.mrf.mxu0
      %v896 = vadd.f32 %v265, %v895
      %v897 = vpop.f32.mrf.mxu0
      %898 = vmatprep.mubr.bf16.mxu0 %v671
      %899 = vmatmul.mubr.bf16.gmra.mxu0 %v499
      %v900 = vpop.f32.mrf.mxu0
      %v901 = vadd.f32 %v265, %v900
      %v902 = vpop.f32.mrf.mxu0
      %v903 = vpop.f32.mrf.mxu0
      %v904 = vadd.f32 %v265, %v903
      %v905 = vpop.f32.mrf.mxu0
      %906 = vmatprep.mubr.bf16.mxu0 %v674
      %907 = vmatmul.mubr.bf16.gmra.mxu0 %v501
      %v908 = vpop.f32.mrf.mxu0
      %v909 = vadd.f32 %v265, %v908
      %v910 = vpop.f32.mrf.mxu0
      %v911 = vpop.f32.mrf.mxu0
      %v912 = vadd.f32 %v265, %v911
      %v913 = vpop.f32.mrf.mxu0
      %914 = vmatprep.mubr.bf16.mxu0 %v677
      %915 = vmatmul.mubr.bf16.gmra.mxu0 %v503
      %v916 = vpop.f32.mrf.mxu0
      %v917 = vadd.f32 %v265, %v916
      %v918 = vpop.f32.mrf.mxu0
      %v919 = vpop.f32.mrf.mxu0
      %v920 = vadd.f32 %v265, %v919
      %v921 = vpop.f32.mrf.mxu0
      %922 = vmatprep.mubr.bf16.mxu0 %v680
      %923 = vmatmul.mubr.bf16.gmra.mxu0 %v505
      %v924 = vpop.f32.mrf.mxu0
      %v925 = vadd.f32 %v265, %v924
      %v926 = vpop.f32.mrf.mxu0
      %v927 = vpop.f32.mrf.mxu0
      %v928 = vadd.f32 %v265, %v927
      %v929 = vpop.f32.mrf.mxu0
      %930 = vmatprep.mubr.bf16.mxu0 %v683
      %931 = vmatmul.mubr.bf16.gmra.mxu0 %v507
      %v932 = vpop.f32.mrf.mxu0
      %v933 = vadd.f32 %v265, %v932
      %v934 = vpop.f32.mrf.mxu0
      %v935 = vpop.f32.mrf.mxu0
      %v936 = vadd.f32 %v265, %v935
      %v937 = vpop.f32.mrf.mxu0
      %938 = vmatprep.mubr.bf16.mxu0 %v686
      %939 = vmatmul.mubr.bf16.gmra.mxu0 %v509
      %v940 = vpop.f32.mrf.mxu0
      %v941 = vadd.f32 %v265, %v940
      %v942 = vpop.f32.mrf.mxu0
      %v943 = vpop.f32.mrf.mxu0
      %v944 = vadd.f32 %v265, %v943
      %v945 = vpop.f32.mrf.mxu0
      %946 = vmatprep.mubr.bf16.mxu0 %v689
      %947 = vmatmul.mubr.bf16.gmra.mxu0 %v511
      %v948 = vpop.f32.mrf.mxu0
      %v949 = vadd.f32 %v265, %v948
      %v950 = vpop.f32.mrf.mxu0
      %v951 = vpop.f32.mrf.mxu0
      %v952 = vadd.f32 %v265, %v951
      %v953 = vpop.f32.mrf.mxu0
      %954 = vmatprep.mubr.bf16.mxu0 %v692
      %955 = vmatmul.mubr.bf16.gmra.mxu0 %v513
      %v956 = vpop.f32.mrf.mxu0
      %v957 = vadd.f32 %v265, %v956
      %v958 = vpop.f32.mrf.mxu0
      %v959 = vpop.f32.mrf.mxu0
      %v960 = vadd.f32 %v265, %v959
      %v961 = vpop.f32.mrf.mxu0
      %962 = vmatprep.mubr.bf16.mxu0 %v695
      %963 = vmatmul.mubr.bf16.gmra.mxu0 %v515
      %v964 = vpop.f32.mrf.mxu0
      %v965 = vadd.f32 %v265, %v964
      %v966 = vpop.f32.mrf.mxu0
      %v967 = vpop.f32.mrf.mxu0
      %v968 = vadd.f32 %v265, %v967
      %v969 = vpop.f32.mrf.mxu0
      %970 = vmatprep.mubr.bf16.mxu0 %v698
      %971 = vmatmul.mubr.bf16.gmra.mxu0 %v517
      %v972 = vpop.f32.mrf.mxu0
      %v973 = vadd.f32 %v265, %v972
      %v974 = vpop.f32.mrf.mxu0
      %v975 = vpop.f32.mrf.mxu0
      %v976 = vadd.f32 %v265, %v975
      %v977 = vpop.f32.mrf.mxu0
      %978 = vmatprep.mubr.bf16.mxu0 %v701
      %979 = vmatmul.mubr.bf16.gmra.mxu0 %v519
      %v980 = vpop.f32.mrf.mxu0
      %v981 = vadd.f32 %v265, %v980
      %v982 = vpop.f32.mrf.mxu0
      %v983 = vpop.f32.mrf.mxu0
      %v984 = vadd.f32 %v265, %v983
      %v985 = vpop.f32.mrf.mxu0
      %986 = vmatprep.mubr.bf16.mxu0 %v704
      %987 = vmatmul.mubr.bf16.gmra.mxu0 %v521
      %v988 = vpop.f32.mrf.mxu0
      %v989 = vadd.f32 %v265, %v988
      %v990 = vpop.f32.mrf.mxu0
      %v991 = vpop.f32.mrf.mxu0
      %v992 = vadd.f32 %v265, %v991
      %v993 = vpop.f32.mrf.mxu0
      %994 = vdwg.mxu0
      %v995 = vtanh.pop %v741
      %v996 = vtanh.pop %v744
      %v997 = vtanh.pop %v749
      %v998 = vtanh.pop %v752
      %v999 = vtanh.pop %v757
      %v1000 = vtanh.pop %v760
      %v1001 = vtanh.pop %v765
      %v1002 = vtanh.pop %v768
      %v1003 = vtanh.pop %v773
      %v1004 = vtanh.pop %v776
      %v1005 = vtanh.pop %v781
      %v1006 = vtanh.pop %v784
      %v1007 = vtanh.pop %v789
      %v1008 = vtanh.pop %v792
      %v1009 = vtanh.pop %v797
      %v1010 = vtanh.pop %v800
      %v1011 = vtanh.pop %v805
      %v1012 = vtanh.pop %v808
      %v1013 = vtanh.pop %v813
      %v1014 = vtanh.pop %v816
      %v1015 = vtanh.pop %v821
      %v1016 = vtanh.pop %v824
      %v1017 = vtanh.pop %v829
      %v1018 = vtanh.pop %v832
      %v1019 = vtanh.pop %v837
      %v1020 = vtanh.pop %v840
      %v1021 = vtanh.pop %v845
      %v1022 = vtanh.pop %v848
      %v1023 = vtanh.pop %v853
      %v1024 = vtanh.pop %v856
      %v1025 = vtanh.pop %v861
      %v1026 = vtanh.pop %v864
      %v1027 = vtanh.pop %v869
      %v1028 = vtanh.pop %v872
      %v1029 = vtanh.pop %v877
      %v1030 = vtanh.pop %v880
      %v1031 = vtanh.pop %v885
      %v1032 = vtanh.pop %v888
      %v1033 = vtanh.pop %v893
      %v1034 = vtanh.pop %v896
      %v1035 = vtanh.pop %v901
      %v1036 = vtanh.pop %v904
      %v1037 = vtanh.pop %v909
      %v1038 = vtanh.pop %v912
      %v1039 = vtanh.pop %v917
      %v1040 = vtanh.pop %v920
      %v1041 = vtanh.pop %v925
      %v1042 = vtanh.pop %v928
      %v1043 = vtanh.pop %v933
      %v1044 = vtanh.pop %v936
      %v1045 = vtanh.pop %v941
      %v1046 = vtanh.pop %v944
      %v1047 = vtanh.pop %v949
      %v1048 = vtanh.pop %v952
      %v1049 = vtanh.pop %v957
      %v1050 = vtanh.pop %v960
      %v1051 = vtanh.pop %v965
      %v1052 = vtanh.pop %v968
      %v1053 = vtanh.pop %v973
      %v1054 = vtanh.pop %v976
      %v1055 = vtanh.pop %v981
      %v1056 = vtanh.pop %v984
      %v1057 = vtanh.pop %v989
      %v1058 = vtanh.pop %v992
      %v1059 = vpack.c.bf16 %v996, %v995
      %v1060 = vpack.c.bf16 %v998, %v997
      %v1061 = vpack.c.bf16 %v1000, %v999
      %v1062 = vpack.c.bf16 %v1002, %v1001
      %v1063 = vpack.c.bf16 %v1004, %v1003
      %v1064 = vpack.c.bf16 %v1006, %v1005
      %v1065 = vpack.c.bf16 %v1008, %v1007
      %v1066 = vpack.c.bf16 %v1010, %v1009
      %v1067 = vpack.c.bf16 %v1012, %v1011
      %v1068 = vpack.c.bf16 %v1014, %v1013
      %v1069 = vpack.c.bf16 %v1016, %v1015
      %v1070 = vpack.c.bf16 %v1018, %v1017
      %v1071 = vpack.c.bf16 %v1020, %v1019
      %v1072 = vpack.c.bf16 %v1022, %v1021
      %v1073 = vpack.c.bf16 %v1024, %v1023
      %v1074 = vpack.c.bf16 %v1026, %v1025
      %v1075 = vpack.c.bf16 %v1028, %v1027
      %v1076 = vpack.c.bf16 %v1030, %v1029
      %v1077 = vpack.c.bf16 %v1032, %v1031
      %v1078 = vpack.c.bf16 %v1034, %v1033
      %v1079 = vpack.c.bf16 %v1036, %v1035
      %v1080 = vpack.c.bf16 %v1038, %v1037
      %v1081 = vpack.c.bf16 %v1040, %v1039
      %v1082 = vpack.c.bf16 %v1042, %v1041
      %v1083 = vpack.c.bf16 %v1044, %v1043
      %v1084 = vpack.c.bf16 %v1046, %v1045
      %v1085 = vpack.c.bf16 %v1048, %v1047
      %v1086 = vpack.c.bf16 %v1050, %v1049
      %v1087 = vpack.c.bf16 %v1052, %v1051
      %v1088 = vpack.c.bf16 %v1054, %v1053
      %v1089 = vpack.c.bf16 %v1056, %v1055
      %v1090 = vpack.c.bf16 %v1058, %v1057
      %v1123 = vunpack.c.l.b16 %v1059
      %v1124 = vunpack.c.h.b16 %v1059
      %v1125 = vunpack.c.l.b16 %v1060
      %v1126 = vunpack.c.h.b16 %v1060
      %v1127 = vunpack.c.l.b16 %v1061
      %v1128 = vunpack.c.h.b16 %v1061
      %v1129 = vunpack.c.l.b16 %v1062
      %v1130 = vunpack.c.h.b16 %v1062
      %v1131 = vunpack.c.l.b16 %v1063
      %v1132 = vunpack.c.h.b16 %v1063
      %v1133 = vunpack.c.l.b16 %v1064
      %v1134 = vunpack.c.h.b16 %v1064
      %v1135 = vunpack.c.l.b16 %v1065
      %v1136 = vunpack.c.h.b16 %v1065
      %v1137 = vunpack.c.l.b16 %v1066
      %v1138 = vunpack.c.h.b16 %v1066
      %v1139 = vunpack.c.l.b16 %v1067
      %v1140 = vunpack.c.h.b16 %v1067
      %v1141 = vunpack.c.l.b16 %v1068
      %v1142 = vunpack.c.h.b16 %v1068
      %v1143 = vunpack.c.l.b16 %v1069
      %v1144 = vunpack.c.h.b16 %v1069
      %v1145 = vunpack.c.l.b16 %v1070
      %v1146 = vunpack.c.h.b16 %v1070
      %v1147 = vunpack.c.l.b16 %v1071
      %v1148 = vunpack.c.h.b16 %v1071
      %v1149 = vunpack.c.l.b16 %v1072
      %v1150 = vunpack.c.h.b16 %v1072
      %v1151 = vunpack.c.l.b16 %v1073
      %v1152 = vunpack.c.h.b16 %v1073
      %v1153 = vunpack.c.l.b16 %v1074
      %v1154 = vunpack.c.h.b16 %v1074
      %v1155 = vunpack.c.l.b16 %v1075
      %v1156 = vunpack.c.h.b16 %v1075
      %v1157 = vunpack.c.l.b16 %v1076
      %v1158 = vunpack.c.h.b16 %v1076
      %v1159 = vunpack.c.l.b16 %v1077
      %v1160 = vunpack.c.h.b16 %v1077
      %v1161 = vunpack.c.l.b16 %v1078
      %v1162 = vunpack.c.h.b16 %v1078
      %v1163 = vunpack.c.l.b16 %v1079
      %v1164 = vunpack.c.h.b16 %v1079
      %v1165 = vunpack.c.l.b16 %v1080
      %v1166 = vunpack.c.h.b16 %v1080
      %v1167 = vunpack.c.l.b16 %v1081
      %v1168 = vunpack.c.h.b16 %v1081
      %v1169 = vunpack.c.l.b16 %v1082
      %v1170 = vunpack.c.h.b16 %v1082
      %v1171 = vunpack.c.l.b16 %v1083
      %v1172 = vunpack.c.h.b16 %v1083
      %v1173 = vunpack.c.l.b16 %v1084
      %v1174 = vunpack.c.h.b16 %v1084
      %v1175 = vunpack.c.l.b16 %v1085
      %v1176 = vunpack.c.h.b16 %v1085
      %v1177 = vunpack.c.l.b16 %v1086
      %v1178 = vunpack.c.h.b16 %v1086
      %v1179 = vunpack.c.l.b16 %v1087
      %v1180 = vunpack.c.h.b16 %v1087
      %v1181 = vunpack.c.l.b16 %v1088
      %v1182 = vunpack.c.h.b16 %v1088
      %v1183 = vunpack.c.l.b16 %v1089
      %v1184 = vunpack.c.h.b16 %v1089
      %v1185 = vunpack.c.l.b16 %v1090
      %v1186 = vunpack.c.h.b16 %v1090
      %v1187 = vpack.c.b16 %v1123, %v1123
      %v1188 = vpack.c.b16 %v1124, %v1124
      %v1189 = vpack.c.b16 %v1125, %v1125
      %v1190 = vpack.c.b16 %v1126, %v1126
      %v1191 = vpack.c.b16 %v1127, %v1127
      %v1192 = vpack.c.b16 %v1128, %v1128
      %v1193 = vpack.c.b16 %v1129, %v1129
      %v1194 = vpack.c.b16 %v1130, %v1130
      %v1195 = vpack.c.b16 %v1131, %v1131
      %v1196 = vpack.c.b16 %v1132, %v1132
      %v1197 = vpack.c.b16 %v1133, %v1133
      %v1198 = vpack.c.b16 %v1134, %v1134
      %v1199 = vpack.c.b16 %v1135, %v1135
      %v1200 = vpack.c.b16 %v1136, %v1136
      %v1201 = vpack.c.b16 %v1137, %v1137
      %v1202 = vpack.c.b16 %v1138, %v1138
      %v1203 = vpack.c.b16 %v1139, %v1139
      %v1204 = vpack.c.b16 %v1140, %v1140
      %v1205 = vpack.c.b16 %v1141, %v1141
      %v1206 = vpack.c.b16 %v1142, %v1142
      %v1207 = vpack.c.b16 %v1143, %v1143
      %v1208 = vpack.c.b16 %v1144, %v1144
      %v1209 = vpack.c.b16 %v1145, %v1145
      %v1210 = vpack.c.b16 %v1146, %v1146
      %v1211 = vpack.c.b16 %v1147, %v1147
      %v1212 = vpack.c.b16 %v1148, %v1148
      %v1213 = vpack.c.b16 %v1149, %v1149
      %v1214 = vpack.c.b16 %v1150, %v1150
      %v1215 = vpack.c.b16 %v1151, %v1151
      %v1216 = vpack.c.b16 %v1152, %v1152
      %v1217 = vpack.c.b16 %v1153, %v1153
      %v1218 = vpack.c.b16 %v1154, %v1154
      %v1219 = vpack.c.b16 %v1155, %v1155
      %v1220 = vpack.c.b16 %v1156, %v1156
      %v1221 = vpack.c.b16 %v1157, %v1157
      %v1222 = vpack.c.b16 %v1158, %v1158
      %v1223 = vpack.c.b16 %v1159, %v1159
      %v1224 = vpack.c.b16 %v1160, %v1160
      %v1225 = vpack.c.b16 %v1161, %v1161
      %v1226 = vpack.c.b16 %v1162, %v1162
      %v1227 = vpack.c.b16 %v1163, %v1163
      %v1228 = vpack.c.b16 %v1164, %v1164
      %v1229 = vpack.c.b16 %v1165, %v1165
      %v1230 = vpack.c.b16 %v1166, %v1166
      %v1231 = vpack.c.b16 %v1167, %v1167
      %v1232 = vpack.c.b16 %v1168, %v1168
      %v1233 = vpack.c.b16 %v1169, %v1169
      %v1234 = vpack.c.b16 %v1170, %v1170
      %v1235 = vpack.c.b16 %v1171, %v1171
      %v1236 = vpack.c.b16 %v1172, %v1172
      %v1237 = vpack.c.b16 %v1173, %v1173
      %v1238 = vpack.c.b16 %v1174, %v1174
      %v1239 = vpack.c.b16 %v1175, %v1175
      %v1240 = vpack.c.b16 %v1176, %v1176
      %v1241 = vpack.c.b16 %v1177, %v1177
      %v1242 = vpack.c.b16 %v1178, %v1178
      %v1243 = vpack.c.b16 %v1179, %v1179
      %v1244 = vpack.c.b16 %v1180, %v1180
      %v1245 = vpack.c.b16 %v1181, %v1181
      %v1246 = vpack.c.b16 %v1182, %v1182
      %v1247 = vpack.c.b16 %v1183, %v1183
      %v1248 = vpack.c.b16 %v1184, %v1184
      %v1249 = vpack.c.b16 %v1185, %v1185
      %v1250 = vpack.c.b16 %v1186, %v1186
      %1315 = vst [vmem:[%s175] sm:$0xf] %v1187
      %1316 = vst [vmem:[%s175 + $0x4] sm:$0xf] %v1188
      %1317 = vst [vmem:[%s175 + $0x8] sm:$0xf] %v1189
      %1318 = vst [vmem:[%s175 + $0xc] sm:$0xf] %v1190
      %1319 = vst [vmem:[%s175 + $0x10] sm:$0xf] %v1191
      %1320 = vst [vmem:[%s175 + $0x14] sm:$0xf] %v1192
      %1321 = vst [vmem:[%s175 + $0x18] sm:$0xf] %v1193
      %1322 = vst [vmem:[%s175 + $0x1c] sm:$0xf] %v1194
      %1323 = vst [vmem:[%s175 + $0x20] sm:$0xf] %v1195
      %1324 = vst [vmem:[%s175 + $0x24] sm:$0xf] %v1196
      %1325 = vst [vmem:[%s175 + $0x28] sm:$0xf] %v1197
      %1326 = vst [vmem:[%s175 + $0x2c] sm:$0xf] %v1198
      %1327 = vst [vmem:[%s175 + $0x30] sm:$0xf] %v1199
      %1328 = vst [vmem:[%s175 + $0x34] sm:$0xf] %v1200
      %1329 = vst [vmem:[%s175 + $0x38] sm:$0xf] %v1201
      %1330 = vst [vmem:[%s175 + $0x3c] sm:$0xf] %v1202
      %1331 = vst [vmem:[%s175 + $0x40] sm:$0xf] %v1203
      %1332 = vst [vmem:[%s175 + $0x44] sm:$0xf] %v1204
      %1333 = vst [vmem:[%s175 + $0x48] sm:$0xf] %v1205
      %1334 = vst [vmem:[%s175 + $0x4c] sm:$0xf] %v1206
      %1335 = vst [vmem:[%s175 + $0x50] sm:$0xf] %v1207
      %1336 = vst [vmem:[%s175 + $0x54] sm:$0xf] %v1208
      %1337 = vst [vmem:[%s175 + $0x58] sm:$0xf] %v1209
      %1338 = vst [vmem:[%s175 + $0x5c] sm:$0xf] %v1210
      %1339 = vst [vmem:[%s175 + $0x60] sm:$0xf] %v1211
      %1340 = vst [vmem:[%s175 + $0x64] sm:$0xf] %v1212
      %1341 = vst [vmem:[%s175 + $0x68] sm:$0xf] %v1213
      %1342 = vst [vmem:[%s175 + $0x6c] sm:$0xf] %v1214
      %1343 = vst [vmem:[%s175 + $0x70] sm:$0xf] %v1215
      %1344 = vst [vmem:[%s175 + $0x74] sm:$0xf] %v1216
      %1345 = vst [vmem:[%s175 + $0x78] sm:$0xf] %v1217
      %1346 = vst [vmem:[%s175 + $0x7c] sm:$0xf] %v1218
      %1347 = vst [vmem:[%s175 + $0x80] sm:$0xf] %v1219
      %1348 = vst [vmem:[%s175 + $0x84] sm:$0xf] %v1220
      %1349 = vst [vmem:[%s175 + $0x88] sm:$0xf] %v1221
      %1350 = vst [vmem:[%s175 + $0x8c] sm:$0xf] %v1222
      %1351 = vst [vmem:[%s175 + $0x90] sm:$0xf] %v1223
      %1352 = vst [vmem:[%s175 + $0x94] sm:$0xf] %v1224
      %1353 = vst [vmem:[%s175 + $0x98] sm:$0xf] %v1225
      %1354 = vst [vmem:[%s175 + $0x9c] sm:$0xf] %v1226
      %1355 = vst [vmem:[%s175 + $0xa0] sm:$0xf] %v1227
      %1356 = vst [vmem:[%s175 + $0xa4] sm:$0xf] %v1228
      %1357 = vst [vmem:[%s175 + $0xa8] sm:$0xf] %v1229
      %1358 = vst [vmem:[%s175 + $0xac] sm:$0xf] %v1230
      %1359 = vst [vmem:[%s175 + $0xb0] sm:$0xf] %v1231
      %1360 = vst [vmem:[%s175 + $0xb4] sm:$0xf] %v1232
      %1361 = vst [vmem:[%s175 + $0xb8] sm:$0xf] %v1233
      %1362 = vst [vmem:[%s175 + $0xbc] sm:$0xf] %v1234
      %1363 = vst [vmem:[%s175 + $0xc0] sm:$0xf] %v1235
      %1364 = vst [vmem:[%s175 + $0xc4] sm:$0xf] %v1236
      %1365 = vst [vmem:[%s175 + $0xc8] sm:$0xf] %v1237
      %1366 = vst [vmem:[%s175 + $0xcc] sm:$0xf] %v1238
      %1367 = vst [vmem:[%s175 + $0xd0] sm:$0xf] %v1239
      %1368 = vst [vmem:[%s175 + $0xd4] sm:$0xf] %v1240
      %1369 = vst [vmem:[%s175 + $0xd8] sm:$0xf] %v1241
      %1370 = vst [vmem:[%s175 + $0xdc] sm:$0xf] %v1242
      %1371 = vst [vmem:[%s175 + $0xe0] sm:$0xf] %v1243
      %1372 = vst [vmem:[%s175 + $0xe4] sm:$0xf] %v1244
      %1373 = vst [vmem:[%s175 + $0xe8] sm:$0xf] %v1245
      %1374 = vst [vmem:[%s175 + $0xec] sm:$0xf] %v1246
      %1375 = vst [vmem:[%s175 + $0xf0] sm:$0xf] %v1247
      %1376 = vst [vmem:[%s175 + $0xf4] sm:$0xf] %v1248
      %1377 = vst [vmem:[%s175 + $0xf8] sm:$0xf] %v1249
      %1378 = vst [vmem:[%s175 + $0xfc] sm:$0xf] %v1250
      %s1379 = smul.u32 64, %s14
      %p1380 = scmp.lt.s32.totalorder %s1379, 255
      %s1381 = scalar_select %p1380, %s1379, 255
      %s1382 = smul.addr %s1381, 4
      %s1383 = scalar_lea.vmem %s3, %s1382
      // Predicated region
      $region33: #{_lambda_.9} parent=31 // pred_check
        %p1384 = pneg %p100
      $region34: #{_lambda_.9} parent=31 // pred_check_branch
        %1386 = sbr.rel (%p1384) target = $region36
      $region35: #{_lambda_.9} parent=31 // pred_region
        %s1387 = smul.u32 64, %s14
      $region36: #{_lambda_.9} parent=31 // pred_fallthru
        _
    $region32: #{_lambda_.9} parent=5 // pred_fallthru
      _
    %p1388 = scmp.le.s32.totalorder 2, %s9
    // Predicated region
    $region37: #{_lambda_.9} parent=5 // pred_check
      %p1389 = pneg %p1388
    $region38: #{_lambda_.9} parent=5 // pred_check_branch
      %1391 = sbr.rel (%p1389) target = $region40
    $region39: #{_lambda_.9} parent=5 // pred_region
      %s1392 = ssub.s32 %s9, 2
      // Predicated region
      $region41: #{_lambda_.9} parent=39 // pred_check
        %p1393 = pneg %p106
      $region42: #{_lambda_.9} parent=39 // pred_check_branch
        %1395 = sbr.rel (%p1393) target = $region44
      $region43: #{_lambda_.9} parent=39 // pred_region
        %s1396 = smul.u32 64, %s15
        %p1397 = scmp.lt.s32.totalorder %s1396, 255
        %s1398 = scalar_select %p1397, %s1396, 255
        %s1399 = smul.addr %s1398, 4
        %s1400 = scalar_lea.vmem %s3, %s1399
      $region44: #{_lambda_.9} parent=39 // pred_fallthru
        _
    $region40: #{_lambda_.9} parent=5 // pred_fallthru
      _
  $region6: #{_lambda_.9} parent=0 // loop_footer
    %s13 = sadd.s32 1, %s9
  $region7: #{_lambda_.9} parent=0 // loop_footer_branch
    %8 = sbr.rel target = $region3
  $region8: #{_lambda_.9} parent=0 // loop_exit
    _

</llo_original>
